<compile_context>
chip_gen: v5e
topology: v5e:2x2
jax: 0.10.0
libtpu: 0.0.40
codegen_flags: <defaults>
</compile_context>

<pallas_src>
import jax
import jax.numpy as jnp
from jax import lax
from jax.experimental import pallas as pl
from jax.experimental.pallas import tpu as pltpu

LANE = 128
_EPS = 1e-5


# --------------------------------------------------------------------------- #
# small static helpers                                                         #
# --------------------------------------------------------------------------- #
def _round_up(x, m):
    return ((x + m - 1) // m) * m


def _vmem_limit_bytes():
    """~75% of physical VMEM (64 MiB on v7x, 128 MiB on v5e/v6e)."""
    cap = 128 * 1024 * 1024
    try:
        cap = int(getattr(pltpu.get_tpu_info(), "vmem_capacity_bytes", cap))
    except Exception:
        pass
    return int(cap * 3 // 4)


def _cout_tile(co):
    """Largest multiple-of-128 divisor of co that is <= 512 (usually co itself => CT == 1)."""
    best, t = LANE, LANE
    while t <= min(co, 512):
        if co % t == 0:
            best = t
        t += LANE
    return best


def _batch_tile(n, per_image_bytes, budget_bytes):
    """Images per grid step: as many as fit the budget, keeping >= 2 grid steps (v7x 2 TCs)."""
    best = 1
    for bn in range(1, n + 1):
        if n % bn:
            continue
        if bn * per_image_bytes > budget_bytes:
            continue
        if n >= 2 and n // bn < 2:
            continue
        best = bn
    return best


def _row_tile(rows, co, max_bytes=8 * 1024 * 1024):
    """Row tile for the flattened BN+ReLU pass: big, lane-dense, >= 2 steps when possible."""
    cap = max(8, min(rows, max_bytes // (co * 4)))
    best = rows
    for tr in range(8, rows + 1, 8):
        if rows % tr or tr > cap:
            continue
        if rows >= 16 and rows // tr < 2:
            continue
        best = tr
    return best


# --------------------------------------------------------------------------- #
# in-kernel 3x3 conv: im2col (K = 9*Ci) -> one MXU matmul                      #
# --------------------------------------------------------------------------- #
def _conv3x3(win_ref, w_ref, h, w):
    """win_ref: [BN, H+2, W+2, Ci] bf16 (zero halo); w_ref: [9*Ci, TC] bf16 -> f32 [BN*H*W, TC]."""
    bn = win_ref.shape[0]
    ci = win_ref.shape[3]
    patches = []
    for dy in range(3):
        for dx in range(3):
            patches.append(win_ref[:, dy:dy + h, dx:dx + w, :].reshape(bn * h * w, ci))
    col = jnp.concatenate(patches, axis=-1)                      # [M, 9*Ci] bf16
    return jnp.dot(col, w_ref[...], preferred_element_type=jnp.float32)


# --------------------------------------------------------------------------- #
# Phase A: conv1 + BatchNorm partial statistics                                #
# --------------------------------------------------------------------------- #
def _conv_stats_kernel(xp_ref, w_ref, out_ref, stats_ref):
    bn, hp, wp, _ = xp_ref.shape
    h, w = hp - 2, wp - 2
    tc = out_ref.shape[-1]
    acc = _conv3x3(xp_ref, w_ref, h, w)                          # [BN*H*W, TC] f32
    # NOTE: conv bias intentionally omitted -- it cancels exactly in train-mode BatchNorm.
    out_ref[...] = acc.reshape(bn, h, w, tc).astype(out_ref.dtype)
    m = jnp.mean(acc, axis=0, keepdims=True)                     # [1, TC]
    stats_ref[0:1, :] = m
    stats_ref[1:2, :] = jnp.sum((acc - m) ** 2, axis=0, keepdims=True)


# --------------------------------------------------------------------------- #
# Phase B: fused BN1+ReLU (on the loaded block) + in-VMEM zero halo + conv2    #
# --------------------------------------------------------------------------- #
def _fused_bn_relu_conv_stats_kernel(x_ref, scale_ref, shift_ref, w_ref,
                                     out_ref, stats_ref, pad_ref):
    bn, h, w, ci = x_ref.shape
    tc = out_ref.shape[-1]
    sc = scale_ref[...].reshape(1, 1, 1, ci)
    sh = shift_ref[...].reshape(1, 1, 1, ci)
    act = jnp.maximum(x_ref[...].astype(jnp.float32) * sc + sh, 0.0)
    # build the zero-padded window in VMEM (PyTorch zero-pads the post-BN-ReLU activation)
    pad_ref[...] = jnp.zeros(pad_ref.shape, pad_ref.dtype)
    pad_ref[:, 1:h + 1, 1:w + 1, :] = act.astype(pad_ref.dtype)
    acc = _conv3x3(pad_ref, w_ref, h, w)                         # [BN*H*W, TC] f32
    out_ref[...] = acc.reshape(bn, h, w, tc).astype(out_ref.dtype)
    m = jnp.mean(acc, axis=0, keepdims=True)
    stats_ref[0:1, :] = m
    stats_ref[1:2, :] = jnp.sum((acc - m) ** 2, axis=0, keepdims=True)


# --------------------------------------------------------------------------- #
# Phase C: final BN + ReLU on a flattened lane-dense view                      #
# --------------------------------------------------------------------------- #
def _bn_relu_kernel(y_ref, scale_ref, shift_ref, o_ref):
    y = y_ref[...].astype(jnp.float32)
    o_ref[...] = jnp.maximum(y * scale_ref[...] + shift_ref[...], 0.0).astype(o_ref.dtype)


# --------------------------------------------------------------------------- #
# pallas_call wrappers                                                         #
# --------------------------------------------------------------------------- #
def _conv_bn_stats(xp, w_col, out_dtype, bn_imgs, tc):
    """Phase A.  xp: [N, H+2, W+2, Ci] bf16 (zero halo + zero-padded channels)."""
    n, hp, wp, ci = xp.shape
    h, w = hp - 2, wp - 2
    co = w_col.shape[-1]
    nt, ct = n // bn_imgs, co // tc
    return pl.pallas_call(
        _conv_stats_kernel,
        grid=(nt, ct),                    # ct innermost -> activation block resident across ct
        in_specs=[
            pl.BlockSpec((bn_imgs, hp, wp, ci), lambda i, c: (i, 0, 0, 0)),
            pl.BlockSpec((9 * ci, tc), lambda i, c: (0, c)),
        ],
        out_specs=[
            pl.BlockSpec((bn_imgs, h, w, tc), lambda i, c: (i, 0, 0, c)),
            pl.BlockSpec((None, 2, tc), lambda i, c: (i, 0, c)),
        ],
        out_shape=[
            jax.ShapeDtypeStruct((n, h, w, co), out_dtype),
            jax.ShapeDtypeStruct((nt, 2, co), jnp.float32),
        ],
        compiler_params=pltpu.CompilerParams(
            dimension_semantics=("parallel", "parallel"),
            vmem_limit_bytes=_vmem_limit_bytes()),
    )(xp, w_col)


def _fused_bn_relu_conv_stats(x, scale, shift, w_col, out_dtype, bn_imgs, tc):
    """Phase B.  x: [N, H, W, Ci] bf16 pre-BN conv output of the previous block."""
    n, h, w, ci = x.shape
    co = w_col.shape[-1]
    nt, ct = n // bn_imgs, co // tc
    return pl.pallas_call(
        _fused_bn_relu_conv_stats_kernel,
        grid=(nt, ct),
        in_specs=[
            pl.BlockSpec((bn_imgs, h, w, ci), lambda i, c: (i, 0, 0, 0)),
            pl.BlockSpec((1, ci), lambda i, c: (0, 0)),
            pl.BlockSpec((1, ci), lambda i, c: (0, 0)),
            pl.BlockSpec((9 * ci, tc), lambda i, c: (0, c)),
        ],
        out_specs=[
            pl.BlockSpec((bn_imgs, h, w, tc), lambda i, c: (i, 0, 0, c)),
            pl.BlockSpec((None, 2, tc), lambda i, c: (i, 0, c)),
        ],
        out_shape=[
            jax.ShapeDtypeStruct((n, h, w, co), out_dtype),
            jax.ShapeDtypeStruct((nt, 2, co), jnp.float32),
        ],
        scratch_shapes=[pltpu.VMEM((bn_imgs, h + 2, w + 2, ci), jnp.bfloat16)],
        compiler_params=pltpu.CompilerParams(
            dimension_semantics=("parallel", "parallel"),
            vmem_limit_bytes=_vmem_limit_bytes()),
    )(x, scale, shift, w_col)


def _bn_relu(y_flat, scale, shift, out_dtype):
    rows, co = y_flat.shape
    tr = _row_tile(rows, co)
    return pl.pallas_call(
        _bn_relu_kernel,
        grid=(rows // tr,),
        in_specs=[
            pl.BlockSpec((tr, co), lambda r: (r, 0)),
            pl.BlockSpec((1, co), lambda r: (0, 0)),
            pl.BlockSpec((1, co), lambda r: (0, 0)),
        ],
        out_specs=pl.BlockSpec((tr, co), lambda r: (r, 0)),
        out_shape=jax.ShapeDtypeStruct((rows, co), out_dtype),
        compiler_params=pltpu.CompilerParams(
            dimension_semantics=("parallel",),
            vmem_limit_bytes=_vmem_limit_bytes()),
    )(y_flat, scale, shift)


def _fold_bn(stats, gamma_p, beta_p, pix_per_block, total_pix):
    """Merge equal-sized per-block (mean, centered M2) partials -> folded BN scale/shift."""
    m = stats[:, 0, :]                                           # [NT, Co]
    m2 = stats[:, 1, :]
    mean = jnp.mean(m, axis=0)                                   # equal pixel counts per block
    m2_tot = jnp.sum(m2, axis=0) + pix_per_block * jnp.sum((m - mean) ** 2, axis=0)
    var = m2_tot / total_pix                                     # biased (train-mode BN)
    scale = gamma_p * lax.rsqrt(var + _EPS)                      # [1, Co]
    shift = beta_p - mean * scale                                # [1, Co]
    return scale, shift


# --------------------------------------------------------------------------- #
# parameters & forward                                                         #
# --------------------------------------------------------------------------- #
def init_bridge_params(key, in_channels, out_channels):
    """Synthetic params matching Bridge.__init__ shapes (+ lane-padded im2col weights)."""
    def one_block(k, cin, cout):
        k1, k2, k3, k4 = jax.random.split(k, 4)
        w_pt = 0.1 * jax.random.normal(k1, (cout, cin, 3, 3), jnp.float32)   # PyTorch OIHW
        b = 0.1 * jax.random.normal(k2, (cout,), jnp.float32)                # reference only
        gamma = 1.0 + 0.1 * jax.random.normal(k3, (cout,), jnp.float32)
        beta = 0.1 * jax.random.normal(k4, (cout,), jnp.float32)
        ci, co = _round_up(cin, LANE), _round_up(cout, LANE)
        w_hwio = jnp.transpose(w_pt, (2, 3, 1, 0))                           # [3,3,cin,cout]
        w_pad = jnp.pad(w_hwio, ((0, 0), (0, 0), (0, ci - cin), (0, co - cout)))
        w_col = w_pad.reshape(9 * ci, co).astype(jnp.bfloat16)               # (dy,dx,c)-major
        gamma_p = jnp.pad(gamma, (0, co - cout), constant_values=1.0).reshape(1, co)
        beta_p = jnp.pad(beta, (0, co - cout)).reshape(1, co)
        return dict(w_pt=w_pt, b=b, gamma=gamma, beta=beta,
                    w_col=w_col, gamma_p=gamma_p, beta_p=beta_p)

    ka, kb = jax.random.split(key)
    return [one_block(ka, in_channels, out_channels),
            one_block(kb, out_channels, out_channels)]


@jax.jit
def bridge_forward(x_nchw, params):
    """Bridge.forward: two ConvBlocks.  Input/output in PyTorch NCHW layout."""
    p1, p2 = params
    cout_real = p2["gamma"].shape[0]
    n, cin, h, w = x_nchw.shape
    ci1, co1 = p1["w_col"].shape[0] // 9, p1["w_col"].shape[1]
    ci2, co2 = p2["w_col"].shape[0] // 9, p2["w_col"].shape[1]

    # glue: NCHW->NHWC, 1-px zero halo + channel pad to 128 lanes, bf16 for the MXU
    x = jnp.transpose(x_nchw, (0, 2, 3, 1))
    xp = jnp.pad(x, ((0, 0), (1, 1), (1, 1), (0, ci1 - cin))).astype(jnp.bfloat16)

    tc1, tc2 = _cout_tile(co1), _cout_tile(co2)
    ci_max, tc_max = max(ci1, ci2), max(tc1, tc2)
    per_img = (h + 2) * (w + 2) * ci_max * 2 * 2                 # halo window + VMEM pad scratch
    per_img += h * w * (9 * ci_max * 2 + tc_max * 4 * 2)         # im2col col + f32 acc + out blk
    bn_imgs = _batch_tile(n, per_img, _vmem_limit_bytes() // 6)

    pix = bn_imgs * h * w
    total_pix = n * h * w

    # Block 1: conv + stats; conv output kept bf16 (it feeds the next MXU matmul anyway).
    conv1, stats1 = _conv_bn_stats(xp, p1["w_col"], jnp.bfloat16, bn_imgs, tc1)
    scale1, shift1 = _fold_bn(stats1, p1["gamma_p"], p1["beta_p"], pix, total_pix)

    # Block 2: BN1+ReLU fused into the conv load (halo built in VMEM) -> conv2 + stats.
    conv2, stats2 = _fused_bn_relu_conv_stats(conv1, scale1, shift1, p2["w_col"],
                                              jnp.float32, bn_imgs, tc2)
    scale2, shift2 = _fold_bn(stats2, p2["gamma_p"], p2["beta_p"], pix, total_pix)

    # Final BN2 + ReLU over a flattened, lane-dense view.
    y = _bn_relu(conv2.reshape(n * h * w, co2), scale2, shift2, jnp.float32)
    y = y.reshape(n, h, w, co2)[..., :cout_real]                 # drop channel padding
    return jnp.transpose(y, (0, 3, 1, 2))                        # NHWC -> NCHW


# --------------------------------------------------------------------------- #
# pure-JAX reference (mirrors the kernel's bf16 intermediate storage)          #
# --------------------------------------------------------------------------- #
def _reference_forward(x_nchw, params):
    p1, p2 = params
    x = jnp.transpose(x_nchw, (0, 2, 3, 1)).astype(jnp.bfloat16)

    def conv(a, p):
        w_hwio = jnp.transpose(p["w_pt"], (2, 3, 1, 0)).astype(jnp.bfloat16)
        y = lax.conv_general_dilated(
            a, w_hwio, window_strides=(1, 1), padding="SAME",
            dimension_numbers=("NHWC", "HWIO", "NHWC"),
            preferred_element_type=jnp.float32)
        return y + p["b"].reshape(1, 1, 1, -1)                   # conv bias (cancels in BN)

    def bn_fold(y, p):
        mean = jnp.mean(y, axis=(0, 1, 2))
        var = jnp.mean((y - mean) ** 2, axis=(0, 1, 2))
        scale = p["gamma"] * lax.rsqrt(var + _EPS)
        return scale, p["beta"] - mean * scale

    y1 = conv(x, p1)
    s1, t1 = bn_fold(y1, p1)
    y1q = y1.astype(jnp.bfloat16).astype(jnp.float32)            # kernel stores conv1 as bf16
    a1 = jnp.maximum(y1q * s1 + t1, 0.0).astype(jnp.bfloat16)    # kernel casts act for the MXU
    y2 = conv(a1, p2)
    s2, t2 = bn_fold(y2, p2)
    out = jnp.maximum(y2 * s2 + t2, 0.0)
    return jnp.transpose(out, (0, 3, 1, 2))


if __name__ == "__main__":
    key = jax.random.PRNGKey(0)
    k_x, k_p = jax.random.split(key)

    N, Cin, H, W = 2, 4, 16, 16
    Cout = 8
    x = jax.random.normal(k_x, (N, Cin, H, W), jnp.float32)      # NCHW like PyTorch
    params = init_bridge_params(k_p, Cin, Cout)

    out = jax.block_until_ready(bridge_forward(x, params))
    assert out.shape == (N, Cout, H, W), out.shape

    ref = _reference_forward(x, params)
    max_diff = float(jnp.max(jnp.abs(out - ref)))
    assert jnp.allclose(out, ref, atol=2e-2, rtol=2e-2), f"mismatch vs ref, max={max_diff}"

    print("KERNEL_OK")
</pallas_src>

<mosaic_0001>
module attributes {stable_mosaic.version = 11 : i64} {
  func.func @_conv_stats_kernel(%arg0: i32, %arg1: i32, %arg2: memref<1x18x18x128xbf16, #tpu.memory_space<vmem>>, %arg3: memref<1152x128xbf16, #tpu.memory_space<vmem>>, %arg4: memref<1x16x16x128xbf16, #tpu.memory_space<vmem>>, %arg5: memref<1x2x128xf32, #tpu.memory_space<vmem>>) attributes {dimension_semantics = [#tpu.dimension_semantics<parallel>, #tpu.dimension_semantics<parallel>], iteration_bounds = array<i64: 2, 1>, scalar_prefetch = 0 : i64, scratch_operands = 0 : i64, tpu.core_type = #tpu.core_type<tc>, window_params = [{transform_indices = @transform_0, window_bounds = array<i64: 1, 18, 18, 128>}, {transform_indices = @transform_1, window_bounds = array<i64: 1152, 128>}, {transform_indices = @transform_2, window_bounds = array<i64: 1, 16, 16, 128>}, {transform_indices = @transform_3, window_bounds = array<i64: 1, 2, 128>}]} {
    %c0 = arith.constant 0 : index
    %c0_0 = arith.constant 0 : index
    %c0_1 = arith.constant 0 : index
    %c0_2 = arith.constant 0 : index
    %0 = vector.load %arg2[%c0, %c0_0, %c0_1, %c0_2] : memref<1x18x18x128xbf16, #tpu.memory_space<vmem>>, vector<1x16x16x128xbf16>
    %1 = vector.shape_cast %0 : vector<1x16x16x128xbf16> to vector<256x128xbf16>
    %c0_3 = arith.constant 0 : index
    %c0_4 = arith.constant 0 : index
    %c1 = arith.constant 1 : index
    %c0_5 = arith.constant 0 : index
    %2 = vector.load %arg2[%c0_3, %c0_4, %c1, %c0_5] : memref<1x18x18x128xbf16, #tpu.memory_space<vmem>>, vector<1x16x16x128xbf16>
    %3 = vector.shape_cast %2 : vector<1x16x16x128xbf16> to vector<256x128xbf16>
    %c0_6 = arith.constant 0 : index
    %c0_7 = arith.constant 0 : index
    %c2 = arith.constant 2 : index
    %c0_8 = arith.constant 0 : index
    %4 = vector.load %arg2[%c0_6, %c0_7, %c2, %c0_8] : memref<1x18x18x128xbf16, #tpu.memory_space<vmem>>, vector<1x16x16x128xbf16>
    %5 = vector.shape_cast %4 : vector<1x16x16x128xbf16> to vector<256x128xbf16>
    %c0_9 = arith.constant 0 : index
    %c1_10 = arith.constant 1 : index
    %c0_11 = arith.constant 0 : index
    %c0_12 = arith.constant 0 : index
    %6 = vector.load %arg2[%c0_9, %c1_10, %c0_11, %c0_12] : memref<1x18x18x128xbf16, #tpu.memory_space<vmem>>, vector<1x16x16x128xbf16>
    %7 = vector.shape_cast %6 : vector<1x16x16x128xbf16> to vector<256x128xbf16>
    %c0_13 = arith.constant 0 : index
    %c1_14 = arith.constant 1 : index
    %c1_15 = arith.constant 1 : index
    %c0_16 = arith.constant 0 : index
    %8 = vector.load %arg2[%c0_13, %c1_14, %c1_15, %c0_16] : memref<1x18x18x128xbf16, #tpu.memory_space<vmem>>, vector<1x16x16x128xbf16>
    %9 = vector.shape_cast %8 : vector<1x16x16x128xbf16> to vector<256x128xbf16>
    %c0_17 = arith.constant 0 : index
    %c1_18 = arith.constant 1 : index
    %c2_19 = arith.constant 2 : index
    %c0_20 = arith.constant 0 : index
    %10 = vector.load %arg2[%c0_17, %c1_18, %c2_19, %c0_20] : memref<1x18x18x128xbf16, #tpu.memory_space<vmem>>, vector<1x16x16x128xbf16>
    %11 = vector.shape_cast %10 : vector<1x16x16x128xbf16> to vector<256x128xbf16>
    %c0_21 = arith.constant 0 : index
    %c2_22 = arith.constant 2 : index
    %c0_23 = arith.constant 0 : index
    %c0_24 = arith.constant 0 : index
    %12 = vector.load %arg2[%c0_21, %c2_22, %c0_23, %c0_24] : memref<1x18x18x128xbf16, #tpu.memory_space<vmem>>, vector<1x16x16x128xbf16>
    %13 = vector.shape_cast %12 : vector<1x16x16x128xbf16> to vector<256x128xbf16>
    %c0_25 = arith.constant 0 : index
    %c2_26 = arith.constant 2 : index
    %c1_27 = arith.constant 1 : index
    %c0_28 = arith.constant 0 : index
    %14 = vector.load %arg2[%c0_25, %c2_26, %c1_27, %c0_28] : memref<1x18x18x128xbf16, #tpu.memory_space<vmem>>, vector<1x16x16x128xbf16>
    %15 = vector.shape_cast %14 : vector<1x16x16x128xbf16> to vector<256x128xbf16>
    %c0_29 = arith.constant 0 : index
    %c2_30 = arith.constant 2 : index
    %c2_31 = arith.constant 2 : index
    %c0_32 = arith.constant 0 : index
    %16 = vector.load %arg2[%c0_29, %c2_30, %c2_31, %c0_32] : memref<1x18x18x128xbf16, #tpu.memory_space<vmem>>, vector<1x16x16x128xbf16>
    %17 = vector.shape_cast %16 : vector<1x16x16x128xbf16> to vector<256x128xbf16>
    %18 = tpu.concatenate %1, %3, %5, %7, %9, %11, %13, %15, %17 in 1 : vector<256x128xbf16>, vector<256x128xbf16>, vector<256x128xbf16>, vector<256x128xbf16>, vector<256x128xbf16>, vector<256x128xbf16>, vector<256x128xbf16>, vector<256x128xbf16>, vector<256x128xbf16> -> vector<256x1152xbf16>
    %c0_33 = arith.constant 0 : index
    %c0_34 = arith.constant 0 : index
    %19 = vector.load %arg3[%c0_33, %c0_34] : memref<1152x128xbf16, #tpu.memory_space<vmem>>, vector<1152x128xbf16>
    %cst = arith.constant dense<0.000000e+00> : vector<256x128xf32>
    %20 = tpu.matmul %18, %19, %cst {dimension_numbers = #tpu.dot_dimension_numbers<[1], [0], [0], [1], [0, 0, 1, 1], [], []>} : vector<256x1152xbf16>, vector<1152x128xbf16>, vector<256x128xf32> -> vector<256x128xf32>
    %21 = vector.shape_cast %20 : vector<256x128xf32> to vector<1x16x16x128xf32>
    %22 = arith.truncf %21 : vector<1x16x16x128xf32> to vector<1x16x16x128xbf16>
    %c0_35 = arith.constant 0 : index
    %c0_36 = arith.constant 0 : index
    %c0_37 = arith.constant 0 : index
    %c0_38 = arith.constant 0 : index
    %23 = vector.load %arg4[%c0_35, %c0_36, %c0_37, %c0_38] : memref<1x16x16x128xbf16, #tpu.memory_space<vmem>>, vector<1x16x16x128xbf16>
    tpu.vector_store %arg4[%c0_35, %c0_36, %c0_37, %c0_38], %22 {strides = array<i32>} : memref<1x16x16x128xbf16, #tpu.memory_space<vmem>>, vector<1x16x16x128xbf16>,
    %cst_39 = arith.constant dense<0.000000e+00> : vector<128xf32>
    %24 = vector.multi_reduction <add>, %20, %cst_39 [0] : vector<256x128xf32> to vector<128xf32>
    %25 = vector.shape_cast %24 : vector<128xf32> to vector<1x128xf32>
    %cst_40 = arith.constant 2.560000e+02 : f32
    %26 = vector.broadcast %cst_40 : f32 to vector<1x128xf32>
    %27 = arith.divf %25, %26 : vector<1x128xf32>
    %c0_41 = arith.constant 0 : index
    %c0_42 = arith.constant 0 : index
    %c0_43 = arith.constant 0 : index
    %28 = vector.load %arg5[%c0_41, %c0_42, %c0_43] : memref<1x2x128xf32, #tpu.memory_space<vmem>>, vector<1x1x128xf32>
    %29 = vector.shape_cast %28 : vector<1x1x128xf32> to vector<1x128xf32>
    %30 = vector.shape_cast %27 : vector<1x128xf32> to vector<1x1x128xf32>
    tpu.vector_store %arg5[%c0_41, %c0_42, %c0_43], %30 {strides = array<i32>} : memref<1x2x128xf32, #tpu.memory_space<vmem>>, vector<1x1x128xf32>,
    %31 = vector.broadcast %27 : vector<1x128xf32> to vector<256x128xf32>
    %32 = arith.subf %20, %31 : vector<256x128xf32>
    %33 = arith.mulf %32, %32 : vector<256x128xf32>
    %cst_44 = arith.constant dense<0.000000e+00> : vector<128xf32>
    %34 = vector.multi_reduction <add>, %33, %cst_44 [0] : vector<256x128xf32> to vector<128xf32>
    %35 = vector.shape_cast %34 : vector<128xf32> to vector<1x128xf32>
    %c0_45 = arith.constant 0 : index
    %c1_46 = arith.constant 1 : index
    %c0_47 = arith.constant 0 : index
    %36 = vector.load %arg5[%c0_45, %c1_46, %c0_47] : memref<1x2x128xf32, #tpu.memory_space<vmem>>, vector<1x1x128xf32>
    %37 = vector.shape_cast %36 : vector<1x1x128xf32> to vector<1x128xf32>
    %38 = vector.shape_cast %35 : vector<1x128xf32> to vector<1x1x128xf32>
    tpu.vector_store %arg5[%c0_45, %c1_46, %c0_47], %38 {strides = array<i32>} : memref<1x2x128xf32, #tpu.memory_space<vmem>>, vector<1x1x128xf32>,
    return
  }
  func.func @transform_0(%arg0: i32, %arg1: i32) -> (i32, i32, i32, i32) {
    %c0_i32 = arith.constant 0 : i32
    %c0_i32_0 = arith.constant 0 : i32
    %c0_i32_1 = arith.constant 0 : i32
    %c0_i32_2 = arith.constant 0 : i32
    return %arg0, %c0_i32, %c0_i32_0, %c0_i32_1 : i32, i32, i32, i32
  }
  func.func @transform_1(%arg0: i32, %arg1: i32) -> (i32, i32) {
    %c0_i32 = arith.constant 0 : i32
    %c0_i32_0 = arith.constant 0 : i32
    return %c0_i32, %arg1 : i32, i32
  }
  func.func @transform_2(%arg0: i32, %arg1: i32) -> (i32, i32, i32, i32) {
    %c0_i32 = arith.constant 0 : i32
    %c0_i32_0 = arith.constant 0 : i32
    %c0_i32_1 = arith.constant 0 : i32
    return %arg0, %c0_i32, %c0_i32_0, %arg1 : i32, i32, i32, i32
  }
  func.func @transform_3(%arg0: i32, %arg1: i32) -> (i32, i32, i32) {
    %c0_i32 = arith.constant 0 : i32
    %c0_i32_0 = arith.constant 0 : i32
    return %arg0, %c0_i32, %arg1 : i32, i32, i32
  }
}

module attributes {stable_mosaic.version = 11 : i64} {
  func.func @_fused_bn_relu_conv_stats_kernel(%arg0: i32, %arg1: i32, %arg2: memref<1x16x16x128xbf16, #tpu.memory_space<vmem>>, %arg3: memref<1x128xf32, #tpu.memory_space<vmem>>, %arg4: memref<1x128xf32, #tpu.memory_space<vmem>>, %arg5: memref<1152x128xbf16, #tpu.memory_space<vmem>>, %arg6: memref<1x16x16x128xf32, #tpu.memory_space<vmem>>, %arg7: memref<1x2x128xf32, #tpu.memory_space<vmem>>, %arg8: memref<1x18x18x128xbf16, #tpu.memory_space<vmem>>) attributes {dimension_semantics = [#tpu.dimension_semantics<parallel>, #tpu.dimension_semantics<parallel>], iteration_bounds = array<i64: 2, 1>, scalar_prefetch = 0 : i64, scratch_operands = 1 : i64, tpu.core_type = #tpu.core_type<tc>, window_params = [{transform_indices = @transform_0, window_bounds = array<i64: 1, 16, 16, 128>}, {pipeline_mode = #tpu.pipeline_mode<synchronous>, transform_indices = @transform_1, window_bounds = array<i64: 1, 128>}, {pipeline_mode = #tpu.pipeline_mode<synchronous>, transform_indices = @transform_2, window_bounds = array<i64: 1, 128>}, {transform_indices = @transform_3, window_bounds = array<i64: 1152, 128>}, {transform_indices = @transform_4, window_bounds = array<i64: 1, 16, 16, 128>}, {transform_indices = @transform_5, window_bounds = array<i64: 1, 2, 128>}]} {
    %c0 = arith.constant 0 : index
    %c0_0 = arith.constant 0 : index
    %0 = vector.load %arg3[%c0, %c0_0] : memref<1x128xf32, #tpu.memory_space<vmem>>, vector<1x128xf32>
    %1 = vector.shape_cast %0 : vector<1x128xf32> to vector<1x1x1x128xf32>
    %c0_1 = arith.constant 0 : index
    %c0_2 = arith.constant 0 : index
    %2 = vector.load %arg4[%c0_1, %c0_2] : memref<1x128xf32, #tpu.memory_space<vmem>>, vector<1x128xf32>
    %3 = vector.shape_cast %2 : vector<1x128xf32> to vector<1x1x1x128xf32>
    %c0_3 = arith.constant 0 : index
    %c0_4 = arith.constant 0 : index
    %c0_5 = arith.constant 0 : index
    %c0_6 = arith.constant 0 : index
    %4 = vector.load %arg2[%c0_3, %c0_4, %c0_5, %c0_6] : memref<1x16x16x128xbf16, #tpu.memory_space<vmem>>, vector<1x16x16x128xbf16>
    %5 = arith.extf %4 : vector<1x16x16x128xbf16> to vector<1x16x16x128xf32>
    %6 = vector.broadcast %1 : vector<1x1x1x128xf32> to vector<1x16x16x128xf32>
    %7 = arith.mulf %5, %6 : vector<1x16x16x128xf32>
    %8 = vector.broadcast %3 : vector<1x1x1x128xf32> to vector<1x16x16x128xf32>
    %9 = arith.addf %7, %8 : vector<1x16x16x128xf32>
    %cst = arith.constant 0.000000e+00 : f32
    %10 = vector.broadcast %cst : f32 to vector<1x16x16x128xf32>
    %11 = arith.maximumf %9, %10 : vector<1x16x16x128xf32>
    %cst_7 = arith.constant 0.000000e+00 : bf16
    %12 = vector.broadcast %cst_7 : bf16 to vector<1x18x18x128xbf16>
    %c0_8 = arith.constant 0 : index
    %c0_9 = arith.constant 0 : index
    %c0_10 = arith.constant 0 : index
    %c0_11 = arith.constant 0 : index
    %13 = vector.load %arg8[%c0_8, %c0_9, %c0_10, %c0_11] : memref<1x18x18x128xbf16, #tpu.memory_space<vmem>>, vector<1x18x18x128xbf16>
    tpu.vector_store %arg8[%c0_8, %c0_9, %c0_10, %c0_11], %12 {strides = array<i32>} : memref<1x18x18x128xbf16, #tpu.memory_space<vmem>>, vector<1x18x18x128xbf16>,
    %14 = arith.truncf %11 : vector<1x16x16x128xf32> to vector<1x16x16x128xbf16>
    %c0_12 = arith.constant 0 : index
    %c1 = arith.constant 1 : index
    %c1_13 = arith.constant 1 : index
    %c0_14 = arith.constant 0 : index
    %15 = vector.load %arg8[%c0_12, %c1, %c1_13, %c0_14] : memref<1x18x18x128xbf16, #tpu.memory_space<vmem>>, vector<1x16x16x128xbf16>
    tpu.vector_store %arg8[%c0_12, %c1, %c1_13, %c0_14], %14 {strides = array<i32>} : memref<1x18x18x128xbf16, #tpu.memory_space<vmem>>, vector<1x16x16x128xbf16>,
    %c0_15 = arith.constant 0 : index
    %c0_16 = arith.constant 0 : index
    %c0_17 = arith.constant 0 : index
    %c0_18 = arith.constant 0 : index
    %16 = vector.load %arg8[%c0_15, %c0_16, %c0_17, %c0_18] : memref<1x18x18x128xbf16, #tpu.memory_space<vmem>>, vector<1x16x16x128xbf16>
    %17 = vector.shape_cast %16 : vector<1x16x16x128xbf16> to vector<256x128xbf16>
    %c0_19 = arith.constant 0 : index
    %c0_20 = arith.constant 0 : index
    %c1_21 = arith.constant 1 : index
    %c0_22 = arith.constant 0 : index
    %18 = vector.load %arg8[%c0_19, %c0_20, %c1_21, %c0_22] : memref<1x18x18x128xbf16, #tpu.memory_space<vmem>>, vector<1x16x16x128xbf16>
    %19 = vector.shape_cast %18 : vector<1x16x16x128xbf16> to vector<256x128xbf16>
    %c0_23 = arith.constant 0 : index
    %c0_24 = arith.constant 0 : index
    %c2 = arith.constant 2 : index
    %c0_25 = arith.constant 0 : index
    %20 = vector.load %arg8[%c0_23, %c0_24, %c2, %c0_25] : memref<1x18x18x128xbf16, #tpu.memory_space<vmem>>, vector<1x16x16x128xbf16>
    %21 = vector.shape_cast %20 : vector<1x16x16x128xbf16> to vector<256x128xbf16>
    %c0_26 = arith.constant 0 : index
    %c1_27 = arith.constant 1 : index
    %c0_28 = arith.constant 0 : index
    %c0_29 = arith.constant 0 : index
    %22 = vector.load %arg8[%c0_26, %c1_27, %c0_28, %c0_29] : memref<1x18x18x128xbf16, #tpu.memory_space<vmem>>, vector<1x16x16x128xbf16>
    %23 = vector.shape_cast %22 : vector<1x16x16x128xbf16> to vector<256x128xbf16>
    %c0_30 = arith.constant 0 : index
    %c1_31 = arith.constant 1 : index
    %c1_32 = arith.constant 1 : index
    %c0_33 = arith.constant 0 : index
    %24 = vector.load %arg8[%c0_30, %c1_31, %c1_32, %c0_33] : memref<1x18x18x128xbf16, #tpu.memory_space<vmem>>, vector<1x16x16x128xbf16>
    %25 = vector.shape_cast %24 : vector<1x16x16x128xbf16> to vector<256x128xbf16>
    %c0_34 = arith.constant 0 : index
    %c1_35 = arith.constant 1 : index
    %c2_36 = arith.constant 2 : index
    %c0_37 = arith.constant 0 : index
    %26 = vector.load %arg8[%c0_34, %c1_35, %c2_36, %c0_37] : memref<1x18x18x128xbf16, #tpu.memory_space<vmem>>, vector<1x16x16x128xbf16>
    %27 = vector.shape_cast %26 : vector<1x16x16x128xbf16> to vector<256x128xbf16>
    %c0_38 = arith.constant 0 : index
    %c2_39 = arith.constant 2 : index
    %c0_40 = arith.constant 0 : index
    %c0_41 = arith.constant 0 : index
    %28 = vector.load %arg8[%c0_38, %c2_39, %c0_40, %c0_41] : memref<1x18x18x128xbf16, #tpu.memory_space<vmem>>, vector<1x16x16x128xbf16>
    %29 = vector.shape_cast %28 : vector<1x16x16x128xbf16> to vector<256x128xbf16>
    %c0_42 = arith.constant 0 : index
    %c2_43 = arith.constant 2 : index
    %c1_44 = arith.constant 1 : index
    %c0_45 = arith.constant 0 : index
    %30 = vector.load %arg8[%c0_42, %c2_43, %c1_44, %c0_45] : memref<1x18x18x128xbf16, #tpu.memory_space<vmem>>, vector<1x16x16x128xbf16>
    %31 = vector.shape_cast %30 : vector<1x16x16x128xbf16> to vector<256x128xbf16>
    %c0_46 = arith.constant 0 : index
    %c2_47 = arith.constant 2 : index
    %c2_48 = arith.constant 2 : index
    %c0_49 = arith.constant 0 : index
    %32 = vector.load %arg8[%c0_46, %c2_47, %c2_48, %c0_49] : memref<1x18x18x128xbf16, #tpu.memory_space<vmem>>, vector<1x16x16x128xbf16>
    %33 = vector.shape_cast %32 : vector<1x16x16x128xbf16> to vector<256x128xbf16>
    %34 = tpu.concatenate %17, %19, %21, %23, %25, %27, %29, %31, %33 in 1 : vector<256x128xbf16>, vector<256x128xbf16>, vector<256x128xbf16>, vector<256x128xbf16>, vector<256x128xbf16>, vector<256x128xbf16>, vector<256x128xbf16>, vector<256x128xbf16>, vector<256x128xbf16> -> vector<256x1152xbf16>
    %c0_50 = arith.constant 0 : index
    %c0_51 = arith.constant 0 : index
    %35 = vector.load %arg5[%c0_50, %c0_51] : memref<1152x128xbf16, #tpu.memory_space<vmem>>, vector<1152x128xbf16>
    %cst_52 = arith.constant dense<0.000000e+00> : vector<256x128xf32>
    %36 = tpu.matmul %34, %35, %cst_52 {dimension_numbers = #tpu.dot_dimension_numbers<[1], [0], [0], [1], [0, 0, 1, 1], [], []>} : vector<256x1152xbf16>, vector<1152x128xbf16>, vector<256x128xf32> -> vector<256x128xf32>
    %37 = vector.shape_cast %36 : vector<256x128xf32> to vector<1x16x16x128xf32>
    %c0_53 = arith.constant 0 : index
    %c0_54 = arith.constant 0 : index
    %c0_55 = arith.constant 0 : index
    %c0_56 = arith.constant 0 : index
    %38 = vector.load %arg6[%c0_53, %c0_54, %c0_55, %c0_56] : memref<1x16x16x128xf32, #tpu.memory_space<vmem>>, vector<1x16x16x128xf32>
    tpu.vector_store %arg6[%c0_53, %c0_54, %c0_55, %c0_56], %37 {strides = array<i32>} : memref<1x16x16x128xf32, #tpu.memory_space<vmem>>, vector<1x16x16x128xf32>,
    %cst_57 = arith.constant dense<0.000000e+00> : vector<128xf32>
    %39 = vector.multi_reduction <add>, %36, %cst_57 [0] : vector<256x128xf32> to vector<128xf32>
    %40 = vector.shape_cast %39 : vector<128xf32> to vector<1x128xf32>
    %cst_58 = arith.constant 2.560000e+02 : f32
    %41 = vector.broadcast %cst_58 : f32 to vector<1x128xf32>
    %42 = arith.divf %40, %41 : vector<1x128xf32>
    %c0_59 = arith.constant 0 : index
    %c0_60 = arith.constant 0 : index
    %c0_61 = arith.constant 0 : index
    %43 = vector.load %arg7[%c0_59, %c0_60, %c0_61] : memref<1x2x128xf32, #tpu.memory_space<vmem>>, vector<1x1x128xf32>
    %44 = vector.shape_cast %43 : vector<1x1x128xf32> to vector<1x128xf32>
    %45 = vector.shape_cast %42 : vector<1x128xf32> to vector<1x1x128xf32>
    tpu.vector_store %arg7[%c0_59, %c0_60, %c0_61], %45 {strides = array<i32>} : memref<1x2x128xf32, #tpu.memory_space<vmem>>, vector<1x1x128xf32>,
    %46 = vector.broadcast %42 : vector<1x128xf32> to vector<256x128xf32>
    %47 = arith.subf %36, %46 : vector<256x128xf32>
    %48 = arith.mulf %47, %47 : vector<256x128xf32>
    %cst_62 = arith.constant dense<0.000000e+00> : vector<128xf32>
    %49 = vector.multi_reduction <add>, %48, %cst_62 [0] : vector<256x128xf32> to vector<128xf32>
    %50 = vector.shape_cast %49 : vector<128xf32> to vector<1x128xf32>
    %c0_63 = arith.constant 0 : index
    %c1_64 = arith.constant 1 : index
    %c0_65 = arith.constant 0 : index
    %51 = vector.load %arg7[%c0_63, %c1_64, %c0_65] : memref<1x2x128xf32, #tpu.memory_space<vmem>>, vector<1x1x128xf32>
    %52 = vector.shape_cast %51 : vector<1x1x128xf32> to vector<1x128xf32>
    %53 = vector.shape_cast %50 : vector<1x128xf32> to vector<1x1x128xf32>
    tpu.vector_store %arg7[%c0_63, %c1_64, %c0_65], %53 {strides = array<i32>} : memref<1x2x128xf32, #tpu.memory_space<vmem>>, vector<1x1x128xf32>,
    return
  }
  func.func @transform_0(%arg0: i32, %arg1: i32) -> (i32, i32, i32, i32) {
    %c0_i32 = arith.constant 0 : i32
    %c0_i32_0 = arith.constant 0 : i32
    %c0_i32_1 = arith.constant 0 : i32
    %c0_i32_2 = arith.constant 0 : i32
    return %arg0, %c0_i32, %c0_i32_0, %c0_i32_1 : i32, i32, i32, i32
  }
  func.func @transform_1(%arg0: i32, %arg1: i32) -> (i32, i32) {
    %c0_i32 = arith.constant 0 : i32
    %c0_i32_0 = arith.constant 0 : i32
    %c0_i32_1 = arith.constant 0 : i32
    return %c0_i32, %c0_i32_0 : i32, i32
  }
  func.func @transform_2(%arg0: i32, %arg1: i32) -> (i32, i32) {
    %c0_i32 = arith.constant 0 : i32
    %c0_i32_0 = arith.constant 0 : i32
    %c0_i32_1 = arith.constant 0 : i32
    return %c0_i32, %c0_i32_0 : i32, i32
  }
  func.func @transform_3(%arg0: i32, %arg1: i32) -> (i32, i32) {
    %c0_i32 = arith.constant 0 : i32
    %c0_i32_0 = arith.constant 0 : i32
    return %c0_i32, %arg1 : i32, i32
  }
  func.func @transform_4(%arg0: i32, %arg1: i32) -> (i32, i32, i32, i32) {
    %c0_i32 = arith.constant 0 : i32
    %c0_i32_0 = arith.constant 0 : i32
    %c0_i32_1 = arith.constant 0 : i32
    return %arg0, %c0_i32, %c0_i32_0, %arg1 : i32, i32, i32, i32
  }
  func.func @transform_5(%arg0: i32, %arg1: i32) -> (i32, i32, i32) {
    %c0_i32 = arith.constant 0 : i32
    %c0_i32_0 = arith.constant 0 : i32
    return %arg0, %c0_i32, %arg1 : i32, i32, i32
  }
}

module attributes {stable_mosaic.version = 11 : i64} {
  func.func @_bn_relu_kernel(%arg0: i32, %arg1: memref<256x128xf32, #tpu.memory_space<vmem>>, %arg2: memref<1x128xf32, #tpu.memory_space<vmem>>, %arg3: memref<1x128xf32, #tpu.memory_space<vmem>>, %arg4: memref<256x128xf32, #tpu.memory_space<vmem>>) attributes {dimension_semantics = [#tpu.dimension_semantics<parallel>], iteration_bounds = array<i64: 2>, scalar_prefetch = 0 : i64, scratch_operands = 0 : i64, tpu.core_type = #tpu.core_type<tc>, window_params = [{transform_indices = @transform_0, window_bounds = array<i64: 256, 128>}, {pipeline_mode = #tpu.pipeline_mode<synchronous>, transform_indices = @transform_1, window_bounds = array<i64: 1, 128>}, {pipeline_mode = #tpu.pipeline_mode<synchronous>, transform_indices = @transform_2, window_bounds = array<i64: 1, 128>}, {transform_indices = @transform_3, window_bounds = array<i64: 256, 128>}]} {
    %c0 = arith.constant 0 : index
    %c0_0 = arith.constant 0 : index
    %0 = vector.load %arg1[%c0, %c0_0] : memref<256x128xf32, #tpu.memory_space<vmem>>, vector<256x128xf32>
    %c0_1 = arith.constant 0 : index
    %c0_2 = arith.constant 0 : index
    %1 = vector.load %arg2[%c0_1, %c0_2] : memref<1x128xf32, #tpu.memory_space<vmem>>, vector<1x128xf32>
    %2 = vector.broadcast %1 : vector<1x128xf32> to vector<256x128xf32>
    %3 = arith.mulf %0, %2 : vector<256x128xf32>
    %c0_3 = arith.constant 0 : index
    %c0_4 = arith.constant 0 : index
    %4 = vector.load %arg3[%c0_3, %c0_4] : memref<1x128xf32, #tpu.memory_space<vmem>>, vector<1x128xf32>
    %5 = vector.broadcast %4 : vector<1x128xf32> to vector<256x128xf32>
    %6 = arith.addf %3, %5 : vector<256x128xf32>
    %cst = arith.constant 0.000000e+00 : f32
    %7 = vector.broadcast %cst : f32 to vector<256x128xf32>
    %8 = arith.maximumf %6, %7 : vector<256x128xf32>
    %c0_5 = arith.constant 0 : index
    %c0_6 = arith.constant 0 : index
    %9 = vector.load %arg4[%c0_5, %c0_6] : memref<256x128xf32, #tpu.memory_space<vmem>>, vector<256x128xf32>
    tpu.vector_store %arg4[%c0_5, %c0_6], %8 {strides = array<i32>} : memref<256x128xf32, #tpu.memory_space<vmem>>, vector<256x128xf32>,
    return
  }
  func.func @transform_0(%arg0: i32) -> (i32, i32) {
    %c0_i32 = arith.constant 0 : i32
    %c0_i32_0 = arith.constant 0 : i32
    return %arg0, %c0_i32 : i32, i32
  }
  func.func @transform_1(%arg0: i32) -> (i32, i32) {
    %c0_i32 = arith.constant 0 : i32
    %c0_i32_0 = arith.constant 0 : i32
    %c0_i32_1 = arith.constant 0 : i32
    return %c0_i32, %c0_i32_0 : i32, i32
  }
  func.func @transform_2(%arg0: i32) -> (i32, i32) {
    %c0_i32 = arith.constant 0 : i32
    %c0_i32_0 = arith.constant 0 : i32
    %c0_i32_1 = arith.constant 0 : i32
    return %c0_i32, %c0_i32_0 : i32, i32
  }
  func.func @transform_3(%arg0: i32) -> (i32, i32) {
    %c0_i32 = arith.constant 0 : i32
    %c0_i32_0 = arith.constant 0 : i32
    return %arg0, %c0_i32 : i32, i32
  }
}

</mosaic_0001>

<llo_original>
// kernel: bridge_forward.5
$region0: #{bridge_forward.5}
  #allocation0 [shape = 'u32[]', space=smem, size = 0x4, offset = 0x4, fixed_abs, tag = 'smem constant byte address 0x4 - core index']
  #allocation1 [shape = 'u32[72,128]{1,0:T(1,128)}', space=vmem, size = 0x9000, scoped, tag = 'internal scratch']
  %s0 = inlined_call_operand.vmem [shape: f32[512,128], index: 0, kind: input, shape index: {}]
  %s1 = inlined_call_operand.vmem [shape: f32[1,128], index: 1, kind: input, shape index: {}]
  %s2 = inlined_call_operand.vmem [shape: f32[1,128], index: 2, kind: input, shape index: {}]
  %s3 = inlined_call_operand.vmem [shape: f32[512,128], index: 3, kind: output, shape index: {}]
  %s4 = sld [smem:[#allocation0]]
  $region45: #{bridge_forward.5} parent=0
    _
  %s6 = ssub.s32 1, %s4
  %s7 = scalar_select 0, %s6, %s4
  loop: start=0, step=1, limit=4
  $region2: #{bridge_forward.5} parent=0 // loop_pre_header
    _
  $region3: #{bridge_forward.5} parent=0 // loop_header
    %s9 = sphi 0, %s13
    %p10 = scmp.ge.s32.totalorder %s9, 4
    %s19 = sphi 0, %s21
    %s22 = sphi 0, %s19
    %s23 = sphi 0, %s22
    %s39 = sphi 0, %s23
    %s43 = sphi 0, %s43
    %s45 = sphi 0, %s43
    %s46 = sphi 0, %s45
    %s60 = sphi 0, %s46
    %s64 = sphi 0, %s64
    %s66 = sphi 0, %s64
    %s67 = sphi 0, %s66
    %s81 = sphi 0, %s67
    %s87 = sphi 0, %s89
    %s90 = sphi 0, %s87
    %s91 = sphi 0, %s90
    %s107 = sphi 0, %s91
  $region4: #{bridge_forward.5} parent=0 // loop_header_branch
    %12 = sbr.rel (%p10) target = $region8
  $region5: #{bridge_forward.5} parent=0 // loop_body
    %s14 = ssub.s32 %s9, 1
    %s15 = ssub.s32 %s9, 2
    %s16 = sadd.s32 %s9, 1
    %s17 = ssub.s32 %s9, %s16
    %p18 = scmp.eq.s32.totalorder %s17, 0
    %s20 = sadd.s32 %s19, 1
    %s21 = scalar_select %p18, %s19, %s20
    %p24 = pneg %p18
    %p25 = scmp.eq.s32.totalorder %s9, 1
    %p26 = por %p24, %p25
    %p27 = scmp.ne.s32.totalorder %s19, %s22
    %p28 = scmp.eq.s32.totalorder %s9, 0
    %p29 = por %p27, %p28
    %p30 = scmp.ne.s32.totalorder %s19, %s22
    %p31 = scmp.eq.s32.totalorder %s14, 1
    %p32 = por %p30, %p31
    %p33 = scmp.ne.s32.totalorder %s22, %s23
    %p34 = scmp.eq.s32.totalorder %s14, 0
    %p35 = por %p33, %p34
    %p36 = scmp.ne.s32.totalorder %s22, %s23
    %p37 = scmp.eq.s32.totalorder %s15, 1
    %p38 = por %p36, %p37
    %p40 = scmp.ne.s32.totalorder %s23, %s39
    %p41 = scmp.eq.s32.totalorder %s15, 0
    %p42 = por %p40, %p41
    %s44 = sadd.s32 %s43, 1
    %p47 = scmp.eq.s32.totalorder %s9, 1
    %p48 = scmp.ne.s32.totalorder %s43, %s45
    %p49 = scmp.eq.s32.totalorder %s9, 0
    %p50 = por %p48, %p49
    %p51 = scmp.ne.s32.totalorder %s43, %s45
    %p52 = scmp.eq.s32.totalorder %s14, 1
    %p53 = por %p51, %p52
    %p54 = scmp.ne.s32.totalorder %s45, %s46
    %p55 = scmp.eq.s32.totalorder %s14, 0
    %p56 = por %p54, %p55
    %p57 = scmp.ne.s32.totalorder %s45, %s46
    %p58 = scmp.eq.s32.totalorder %s15, 1
    %p59 = por %p57, %p58
    %p61 = scmp.ne.s32.totalorder %s46, %s60
    %p62 = scmp.eq.s32.totalorder %s15, 0
    %p63 = por %p61, %p62
    %s65 = sadd.s32 %s64, 1
    %p68 = scmp.eq.s32.totalorder %s9, 1
    %p69 = scmp.ne.s32.totalorder %s64, %s66
    %p70 = scmp.eq.s32.totalorder %s9, 0
    %p71 = por %p69, %p70
    %p72 = scmp.ne.s32.totalorder %s64, %s66
    %p73 = scmp.eq.s32.totalorder %s14, 1
    %p74 = por %p72, %p73
    %p75 = scmp.ne.s32.totalorder %s66, %s67
    %p76 = scmp.eq.s32.totalorder %s14, 0
    %p77 = por %p75, %p76
    %p78 = scmp.ne.s32.totalorder %s66, %s67
    %p79 = scmp.eq.s32.totalorder %s15, 1
    %p80 = por %p78, %p79
    %p82 = scmp.ne.s32.totalorder %s67, %s81
    %p83 = scmp.eq.s32.totalorder %s15, 0
    %p84 = por %p82, %p83
    %s85 = ssub.s32 %s9, %s16
    %p86 = scmp.eq.s32.totalorder %s85, 0
    %s88 = sadd.s32 %s87, 1
    %s89 = scalar_select %p86, %s87, %s88
    %p92 = pneg %p86
    %p93 = scmp.eq.s32.totalorder %s9, 1
    %p94 = por %p92, %p93
    %p95 = scmp.ne.s32.totalorder %s87, %s90
    %p96 = scmp.eq.s32.totalorder %s9, 0
    %p97 = por %p95, %p96
    %p98 = scmp.ne.s32.totalorder %s87, %s90
    %p99 = scmp.eq.s32.totalorder %s14, 1
    %p100 = por %p98, %p99
    %p101 = scmp.ne.s32.totalorder %s90, %s91
    %p102 = scmp.eq.s32.totalorder %s14, 0
    %p103 = por %p101, %p102
    %p104 = scmp.ne.s32.totalorder %s90, %s91
    %p105 = scmp.eq.s32.totalorder %s15, 1
    %p106 = por %p104, %p105
    %p108 = scmp.ne.s32.totalorder %s91, %s107
    %p109 = scmp.eq.s32.totalorder %s15, 0
    %p110 = por %p108, %p109
    %p111 = scmp.le.s32.totalorder 1, %s9
    %p112 = scmp.lt.s32.totalorder %s9, 3
    %p113 = pnand %p111, %p112
    %p114 = pneg %p113
    // Predicated region
    $region9: #{bridge_forward.5} parent=5 // pred_check
      _
    $region10: #{bridge_forward.5} parent=5 // pred_check_branch
      %116 = sbr.rel (%p113) target = $region12
    $region11: #{bridge_forward.5} parent=5 // pred_region
      %s117 = ssub.s32 %s9, 1
      // Predicated region
      $region13: #{bridge_forward.5} parent=11 // pred_check
        %p118 = pneg %p56
      $region14: #{bridge_forward.5} parent=11 // pred_check_branch
        %120 = sbr.rel (%p118) target = $region16
      $region15: #{bridge_forward.5} parent=11 // pred_region
        _
      $region16: #{bridge_forward.5} parent=11 // pred_fallthru
        _
      // Predicated region
      $region17: #{bridge_forward.5} parent=11 // pred_check
        %p121 = pneg %p77
      $region18: #{bridge_forward.5} parent=11 // pred_check_branch
        %123 = sbr.rel (%p121) target = $region20
      $region19: #{bridge_forward.5} parent=11 // pred_region
        _
      $region20: #{bridge_forward.5} parent=11 // pred_fallthru
        _
    $region12: #{bridge_forward.5} parent=5 // pred_fallthru
      _
    %p124 = scmp.lt.s32.totalorder %s9, 2
    // Predicated region
    $region21: #{bridge_forward.5} parent=5 // pred_check
      %p125 = pneg %p124
    $region22: #{bridge_forward.5} parent=5 // pred_check_branch
      %127 = sbr.rel (%p125) target = $region24
    $region23: #{bridge_forward.5} parent=5 // pred_region
      // Predicated region
      $region25: #{bridge_forward.5} parent=23 // pred_check
        %p128 = pneg %p29
      $region26: #{bridge_forward.5} parent=23 // pred_check_branch
        %130 = sbr.rel (%p128) target = $region28
      $region27: #{bridge_forward.5} parent=23 // pred_region
        %s131 = smul.u32 32, %s9
        %p132 = scmp.lt.s32.totalorder %s131, 63
        %s133 = scalar_select %p132, %s131, 63
        %s134 = smul.addr %s133, 8
        %s135 = scalar_lea.vmem %s0, %s134
        %s136 = smul.u32 32, %s9
      $region28: #{bridge_forward.5} parent=23 // pred_fallthru
        _
    $region24: #{bridge_forward.5} parent=5 // pred_fallthru
      _
    %p137 = scmp.le.s32.totalorder 1, %s9
    %p138 = scmp.lt.s32.totalorder %s9, 3
    %p139 = pnand %p137, %p138
    %p140 = pneg %p139
    // Predicated region
    $region29: #{bridge_forward.5} parent=5 // pred_check
      _
    $region30: #{bridge_forward.5} parent=5 // pred_check_branch
      %142 = sbr.rel (%p139) target = $region32
    $region31: #{bridge_forward.5} parent=5 // pred_region
      %s143 = ssub.s32 %s9, 1
      %s144 = smul.u32 32, %s14
      %p145 = scmp.lt.s32.totalorder %s144, 63
      %s146 = scalar_select %p145, %s144, 63
      %s147 = smul.addr %s146, 8
      %s148 = scalar_lea.vmem %s0, %s147
      %p149 = pneg %p35
      %p150 = pneg %p32
      %p151 = pneg %p56
      %p152 = pneg %p53
      %p153 = pneg %p77
      %p154 = pneg %p74
      %p155 = pneg %p103
      %p156 = pneg %p100
      %s157 = smul.u32 32, %s14
      %p158 = scmp.lt.s32.totalorder %s157, 63
      %s159 = scalar_select %p158, %s157, 63
      %s160 = smul.addr %s159, 8
      %s161 = scalar_lea.vmem %s3, %s160
      %s162 = smul.u32 32, %s14
      %p163 = scmp.lt.s32.totalorder %s162, 63
      %s164 = scalar_select %p163, %s162, 63
      %s165 = smul.addr %s164, 8
      %s166 = scalar_lea.vmem %s0, %s165
      %s167 = smul.u32 32, %s14
      %s168 = smul.u32 32, %s14
      %p169 = scmp.lt.s32.totalorder %s168, 63
      %s170 = scalar_select %p169, %s168, 63
      %s171 = smul.addr %s170, 8
      %s172 = scalar_lea.vmem %s3, %s171
      %s173 = smul.u32 32, %s14
      %v174 = vld [vmem:[%s166] sm:$0xff]
      %v175 = vld [vmem:[%s166 + $0x8] sm:$0xff]
      %v176 = vld [vmem:[%s166 + $0x10] sm:$0xff]
      %v177 = vld [vmem:[%s166 + $0x18] sm:$0xff]
      %v178 = vld [vmem:[%s166 + $0x20] sm:$0xff]
      %v179 = vld [vmem:[%s166 + $0x28] sm:$0xff]
      %v180 = vld [vmem:[%s166 + $0x30] sm:$0xff]
      %v181 = vld [vmem:[%s166 + $0x38] sm:$0xff]
      %v182 = vld [vmem:[%s166 + $0x40] sm:$0xff]
      %v183 = vld [vmem:[%s166 + $0x48] sm:$0xff]
      %v184 = vld [vmem:[%s166 + $0x50] sm:$0xff]
      %v185 = vld [vmem:[%s166 + $0x58] sm:$0xff]
      %v186 = vld [vmem:[%s166 + $0x60] sm:$0xff]
      %v187 = vld [vmem:[%s166 + $0x68] sm:$0xff]
      %v188 = vld [vmem:[%s166 + $0x70] sm:$0xff]
      %v189 = vld [vmem:[%s166 + $0x78] sm:$0xff]
      %v190 = vld [vmem:[%s166 + $0x80] sm:$0xff]
      %v191 = vld [vmem:[%s166 + $0x88] sm:$0xff]
      %v192 = vld [vmem:[%s166 + $0x90] sm:$0xff]
      %v193 = vld [vmem:[%s166 + $0x98] sm:$0xff]
      %v194 = vld [vmem:[%s166 + $0xa0] sm:$0xff]
      %v195 = vld [vmem:[%s166 + $0xa8] sm:$0xff]
      %v196 = vld [vmem:[%s166 + $0xb0] sm:$0xff]
      %v197 = vld [vmem:[%s166 + $0xb8] sm:$0xff]
      %v198 = vld [vmem:[%s166 + $0xc0] sm:$0xff]
      %v199 = vld [vmem:[%s166 + $0xc8] sm:$0xff]
      %v200 = vld [vmem:[%s166 + $0xd0] sm:$0xff]
      %v201 = vld [vmem:[%s166 + $0xd8] sm:$0xff]
      %v202 = vld [vmem:[%s166 + $0xe0] sm:$0xff]
      %v203 = vld [vmem:[%s166 + $0xe8] sm:$0xff]
      %v204 = vld [vmem:[%s166 + $0xf0] sm:$0xff]
      %v205 = vld [vmem:[%s166 + $0xf8] sm:$0xff]
      %v206 = vld [vmem:[%s1] sm:$0x1]
      %v208 = vperm.slane %v206, 0
      %v210 = vmul.f32 %v174, %v208
      %v211 = vmul.f32 %v175, %v208
      %v212 = vmul.f32 %v176, %v208
      %v213 = vmul.f32 %v177, %v208
      %v214 = vmul.f32 %v178, %v208
      %v215 = vmul.f32 %v179, %v208
      %v216 = vmul.f32 %v180, %v208
      %v217 = vmul.f32 %v181, %v208
      %v218 = vmul.f32 %v182, %v208
      %v219 = vmul.f32 %v183, %v208
      %v220 = vmul.f32 %v184, %v208
      %v221 = vmul.f32 %v185, %v208
      %v222 = vmul.f32 %v186, %v208
      %v223 = vmul.f32 %v187, %v208
      %v224 = vmul.f32 %v188, %v208
      %v225 = vmul.f32 %v189, %v208
      %v226 = vmul.f32 %v190, %v208
      %v227 = vmul.f32 %v191, %v208
      %v228 = vmul.f32 %v192, %v208
      %v229 = vmul.f32 %v193, %v208
      %v230 = vmul.f32 %v194, %v208
      %v231 = vmul.f32 %v195, %v208
      %v232 = vmul.f32 %v196, %v208
      %v233 = vmul.f32 %v197, %v208
      %v234 = vmul.f32 %v198, %v208
      %v235 = vmul.f32 %v199, %v208
      %v236 = vmul.f32 %v200, %v208
      %v237 = vmul.f32 %v201, %v208
      %v238 = vmul.f32 %v202, %v208
      %v239 = vmul.f32 %v203, %v208
      %v240 = vmul.f32 %v204, %v208
      %v241 = vmul.f32 %v205, %v208
      %v242 = vld [vmem:[%s2] sm:$0x1]
      %v244 = vperm.slane %v242, 0
      %v246 = vadd.f32 %v210, %v244
      %v247 = vadd.f32 %v211, %v244
      %v248 = vadd.f32 %v212, %v244
      %v249 = vadd.f32 %v213, %v244
      %v250 = vadd.f32 %v214, %v244
      %v251 = vadd.f32 %v215, %v244
      %v252 = vadd.f32 %v216, %v244
      %v253 = vadd.f32 %v217, %v244
      %v254 = vadd.f32 %v218, %v244
      %v255 = vadd.f32 %v219, %v244
      %v256 = vadd.f32 %v220, %v244
      %v257 = vadd.f32 %v221, %v244
      %v258 = vadd.f32 %v222, %v244
      %v259 = vadd.f32 %v223, %v244
      %v260 = vadd.f32 %v224, %v244
      %v261 = vadd.f32 %v225, %v244
      %v262 = vadd.f32 %v226, %v244
      %v263 = vadd.f32 %v227, %v244
      %v264 = vadd.f32 %v228, %v244
      %v265 = vadd.f32 %v229, %v244
      %v266 = vadd.f32 %v230, %v244
      %v267 = vadd.f32 %v231, %v244
      %v268 = vadd.f32 %v232, %v244
      %v269 = vadd.f32 %v233, %v244
      %v270 = vadd.f32 %v234, %v244
      %v271 = vadd.f32 %v235, %v244
      %v272 = vadd.f32 %v236, %v244
      %v273 = vadd.f32 %v237, %v244
      %v274 = vadd.f32 %v238, %v244
      %v275 = vadd.f32 %v239, %v244
      %v276 = vadd.f32 %v240, %v244
      %v277 = vadd.f32 %v241, %v244
      %v278 = vmax.f32 %v246, 0.0
      %v279 = vmax.f32 %v247, 0.0
      %v280 = vmax.f32 %v248, 0.0
      %v281 = vmax.f32 %v249, 0.0
      %v282 = vmax.f32 %v250, 0.0
      %v283 = vmax.f32 %v251, 0.0
      %v284 = vmax.f32 %v252, 0.0
      %v285 = vmax.f32 %v253, 0.0
      %v286 = vmax.f32 %v254, 0.0
      %v287 = vmax.f32 %v255, 0.0
      %v288 = vmax.f32 %v256, 0.0
      %v289 = vmax.f32 %v257, 0.0
      %v290 = vmax.f32 %v258, 0.0
      %v291 = vmax.f32 %v259, 0.0
      %v292 = vmax.f32 %v260, 0.0
      %v293 = vmax.f32 %v261, 0.0
      %v294 = vmax.f32 %v262, 0.0
      %v295 = vmax.f32 %v263, 0.0
      %v296 = vmax.f32 %v264, 0.0
      %v297 = vmax.f32 %v265, 0.0
      %v298 = vmax.f32 %v266, 0.0
      %v299 = vmax.f32 %v267, 0.0
      %v300 = vmax.f32 %v268, 0.0
      %v301 = vmax.f32 %v269, 0.0
      %v302 = vmax.f32 %v270, 0.0
      %v303 = vmax.f32 %v271, 0.0
      %v304 = vmax.f32 %v272, 0.0
      %v305 = vmax.f32 %v273, 0.0
      %v306 = vmax.f32 %v274, 0.0
      %v307 = vmax.f32 %v275, 0.0
      %v308 = vmax.f32 %v276, 0.0
      %v309 = vmax.f32 %v277, 0.0
      %310 = vst [vmem:[%s172] sm:$0xff] %v278
      %311 = vst [vmem:[%s172 + $0x8] sm:$0xff] %v279
      %312 = vst [vmem:[%s172 + $0x10] sm:$0xff] %v280
      %313 = vst [vmem:[%s172 + $0x18] sm:$0xff] %v281
      %314 = vst [vmem:[%s172 + $0x20] sm:$0xff] %v282
      %315 = vst [vmem:[%s172 + $0x28] sm:$0xff] %v283
      %316 = vst [vmem:[%s172 + $0x30] sm:$0xff] %v284
      %317 = vst [vmem:[%s172 + $0x38] sm:$0xff] %v285
      %318 = vst [vmem:[%s172 + $0x40] sm:$0xff] %v286
      %319 = vst [vmem:[%s172 + $0x48] sm:$0xff] %v287
      %320 = vst [vmem:[%s172 + $0x50] sm:$0xff] %v288
      %321 = vst [vmem:[%s172 + $0x58] sm:$0xff] %v289
      %322 = vst [vmem:[%s172 + $0x60] sm:$0xff] %v290
      %323 = vst [vmem:[%s172 + $0x68] sm:$0xff] %v291
      %324 = vst [vmem:[%s172 + $0x70] sm:$0xff] %v292
      %325 = vst [vmem:[%s172 + $0x78] sm:$0xff] %v293
      %326 = vst [vmem:[%s172 + $0x80] sm:$0xff] %v294
      %327 = vst [vmem:[%s172 + $0x88] sm:$0xff] %v295
      %328 = vst [vmem:[%s172 + $0x90] sm:$0xff] %v296
      %329 = vst [vmem:[%s172 + $0x98] sm:$0xff] %v297
      %330 = vst [vmem:[%s172 + $0xa0] sm:$0xff] %v298
      %331 = vst [vmem:[%s172 + $0xa8] sm:$0xff] %v299
      %332 = vst [vmem:[%s172 + $0xb0] sm:$0xff] %v300
      %333 = vst [vmem:[%s172 + $0xb8] sm:$0xff] %v301
      %334 = vst [vmem:[%s172 + $0xc0] sm:$0xff] %v302
      %335 = vst [vmem:[%s172 + $0xc8] sm:$0xff] %v303
      %336 = vst [vmem:[%s172 + $0xd0] sm:$0xff] %v304
      %337 = vst [vmem:[%s172 + $0xd8] sm:$0xff] %v305
      %338 = vst [vmem:[%s172 + $0xe0] sm:$0xff] %v306
      %339 = vst [vmem:[%s172 + $0xe8] sm:$0xff] %v307
      %340 = vst [vmem:[%s172 + $0xf0] sm:$0xff] %v308
      %341 = vst [vmem:[%s172 + $0xf8] sm:$0xff] %v309
      %s342 = smul.u32 32, %s14
      %p343 = scmp.lt.s32.totalorder %s342, 63
      %s344 = scalar_select %p343, %s342, 63
      %s345 = smul.addr %s344, 8
      %s346 = scalar_lea.vmem %s3, %s345
      // Predicated region
      $region33: #{bridge_forward.5} parent=31 // pred_check
        %p347 = pneg %p100
      $region34: #{bridge_forward.5} parent=31 // pred_check_branch
        %349 = sbr.rel (%p347) target = $region36
      $region35: #{bridge_forward.5} parent=31 // pred_region
        %s350 = smul.u32 32, %s14
      $region36: #{bridge_forward.5} parent=31 // pred_fallthru
        _
    $region32: #{bridge_forward.5} parent=5 // pred_fallthru
      _
    %p351 = scmp.le.s32.totalorder 2, %s9
    // Predicated region
    $region37: #{bridge_forward.5} parent=5 // pred_check
      %p352 = pneg %p351
    $region38: #{bridge_forward.5} parent=5 // pred_check_branch
      %354 = sbr.rel (%p352) target = $region40
    $region39: #{bridge_forward.5} parent=5 // pred_region
      %s355 = ssub.s32 %s9, 2
      // Predicated region
      $region41: #{bridge_forward.5} parent=39 // pred_check
        %p356 = pneg %p106
      $region42: #{bridge_forward.5} parent=39 // pred_check_branch
        %358 = sbr.rel (%p356) target = $region44
      $region43: #{bridge_forward.5} parent=39 // pred_region
        %s359 = smul.u32 32, %s15
        %p360 = scmp.lt.s32.totalorder %s359, 63
        %s361 = scalar_select %p360, %s359, 63
        %s362 = smul.addr %s361, 8
        %s363 = scalar_lea.vmem %s3, %s362
      $region44: #{bridge_forward.5} parent=39 // pred_fallthru
        _
    $region40: #{bridge_forward.5} parent=5 // pred_fallthru
      _
  $region6: #{bridge_forward.5} parent=0 // loop_footer
    %s13 = sadd.s32 1, %s9
  $region7: #{bridge_forward.5} parent=0 // loop_footer_branch
    %8 = sbr.rel target = $region3
  $region8: #{bridge_forward.5} parent=0 // loop_exit
    _

// kernel: bridge_forward.3
$region0: #{bridge_forward.3}
  #allocation0 [shape = 'u32[]', space=smem, size = 0x4, offset = 0x4, fixed_abs, tag = 'smem constant byte address 0x4 - core index']
  #allocation1 [shape = 'u32[72,128]{1,0:T(1,128)}', space=vmem, size = 0x9000, scoped, tag = 'internal scratch']
  %s0 = inlined_call_operand.vmem [shape: bf16[2,18,18,128], index: 0, kind: input, shape index: {}]
  %s1 = inlined_call_operand.vmem [shape: bf16[1152,128], index: 1, kind: input, shape index: {}]
  %s2 = inlined_call_operand.vmem [shape: bf16[2,16,16,128], index: 2, kind: output, shape index: {0}]
  %s3 = inlined_call_operand.vmem [shape: f32[2,2,128], index: 3, kind: output, shape index: {1}]
  %4 = xla_tuple %s2, %s3
  %s5 = sld [smem:[#allocation0]]
  $region49: #{bridge_forward.3} parent=0
    _
  %s7 = ssub.s32 1, %s5
  %s8 = scalar_select 0, %s7, %s5
  loop: start=0, step=1, limit=4
  $region2: #{bridge_forward.3} parent=0 // loop_pre_header
    _
  $region3: #{bridge_forward.3} parent=0 // loop_header
    %s10 = sphi 0, %s14
    %p11 = scmp.ge.s32.totalorder %s10, 4
    %s17 = sphi 0, %s29
    %s18 = sphi 0, %s25
    %s19 = sphi 0, %s17
    %s20 = sphi 0, %s18
    %s21 = sphi 0, %s19
    %s22 = sphi 0, %s20
    %s32 = sphi 0, %s34
    %s35 = sphi 0, %s32
    %s36 = sphi 0, %s35
    %s52 = sphi 0, %s36
    %s58 = sphi 0, %s60
    %s61 = sphi 0, %s58
    %s62 = sphi 0, %s61
    %s78 = sphi 0, %s62
    %s86 = sphi 0, %s88
    %s89 = sphi 0, %s86
    %s90 = sphi 0, %s89
    %s106 = sphi 0, %s90
    %s114 = sphi 0, %s116
    %s117 = sphi 0, %s114
    %s118 = sphi 0, %s117
    %s134 = sphi 0, %s118
  $region4: #{bridge_forward.3} parent=0 // loop_header_branch
    %13 = sbr.rel (%p11) target = $region8
  $region5: #{bridge_forward.3} parent=0 // loop_body
    %s15 = ssub.s32 %s10, 1
    %s16 = ssub.s32 %s10, 2
    %s23 = sadd.s32 1, %s18
    %p24 = scmp.ge.s32.totalorder %s23, 1
    %s25 = scalar_select %p24, 0, %s23
    %s26 = sadd.s32 1, %s17
    %s27 = scalar_select %p24, %s26, %s17
    %p28 = scmp.ge.s32.totalorder %s27, 2
    %s29 = scalar_select %p28, 0, %s27
    %s30 = ssub.s32 %s17, %s29
    %p31 = scmp.eq.s32.totalorder %s30, 0
    %s33 = sadd.s32 %s32, 1
    %s34 = scalar_select %p31, %s32, %s33
    %p37 = pneg %p31
    %p38 = scmp.eq.s32.totalorder %s10, 1
    %p39 = por %p37, %p38
    %p40 = scmp.ne.s32.totalorder %s32, %s35
    %p41 = scmp.eq.s32.totalorder %s10, 0
    %p42 = por %p40, %p41
    %p43 = scmp.ne.s32.totalorder %s32, %s35
    %p44 = scmp.eq.s32.totalorder %s15, 1
    %p45 = por %p43, %p44
    %p46 = scmp.ne.s32.totalorder %s35, %s36
    %p47 = scmp.eq.s32.totalorder %s15, 0
    %p48 = por %p46, %p47
    %p49 = scmp.ne.s32.totalorder %s35, %s36
    %p50 = scmp.eq.s32.totalorder %s16, 1
    %p51 = por %p49, %p50
    %p53 = scmp.ne.s32.totalorder %s36, %s52
    %p54 = scmp.eq.s32.totalorder %s16, 0
    %p55 = por %p53, %p54
    %s56 = ssub.s32 %s18, %s25
    %p57 = scmp.eq.s32.totalorder %s56, 0
    %s59 = sadd.s32 %s58, 1
    %s60 = scalar_select %p57, %s58, %s59
    %p63 = pneg %p57
    %p64 = scmp.eq.s32.totalorder %s10, 1
    %p65 = por %p63, %p64
    %p66 = scmp.ne.s32.totalorder %s58, %s61
    %p67 = scmp.eq.s32.totalorder %s10, 0
    %p68 = por %p66, %p67
    %p69 = scmp.ne.s32.totalorder %s58, %s61
    %p70 = scmp.eq.s32.totalorder %s15, 1
    %p71 = por %p69, %p70
    %p72 = scmp.ne.s32.totalorder %s61, %s62
    %p73 = scmp.eq.s32.totalorder %s15, 0
    %p74 = por %p72, %p73
    %p75 = scmp.ne.s32.totalorder %s61, %s62
    %p76 = scmp.eq.s32.totalorder %s16, 1
    %p77 = por %p75, %p76
    %p79 = scmp.ne.s32.totalorder %s62, %s78
    %p80 = scmp.eq.s32.totalorder %s16, 0
    %p81 = por %p79, %p80
    %s82 = ssub.s32 %s17, %s29
    %s83 = ssub.s32 %s18, %s25
    %s84 = sor.u32 %s82, %s83
    %p85 = scmp.eq.s32.totalorder %s84, 0
    %s87 = sadd.s32 %s86, 1
    %s88 = scalar_select %p85, %s86, %s87
    %p91 = pneg %p85
    %p92 = scmp.eq.s32.totalorder %s10, 1
    %p93 = por %p91, %p92
    %p94 = scmp.ne.s32.totalorder %s86, %s89
    %p95 = scmp.eq.s32.totalorder %s10, 0
    %p96 = por %p94, %p95
    %p97 = scmp.ne.s32.totalorder %s86, %s89
    %p98 = scmp.eq.s32.totalorder %s15, 1
    %p99 = por %p97, %p98
    %p100 = scmp.ne.s32.totalorder %s89, %s90
    %p101 = scmp.eq.s32.totalorder %s15, 0
    %p102 = por %p100, %p101
    %p103 = scmp.ne.s32.totalorder %s89, %s90
    %p104 = scmp.eq.s32.totalorder %s16, 1
    %p105 = por %p103, %p104
    %p107 = scmp.ne.s32.totalorder %s90, %s106
    %p108 = scmp.eq.s32.totalorder %s16, 0
    %p109 = por %p107, %p108
    %s110 = ssub.s32 %s17, %s29
    %s111 = ssub.s32 %s18, %s25
    %s112 = sor.u32 %s110, %s111
    %p113 = scmp.eq.s32.totalorder %s112, 0
    %s115 = sadd.s32 %s114, 1
    %s116 = scalar_select %p113, %s114, %s115
    %p119 = pneg %p113
    %p120 = scmp.eq.s32.totalorder %s10, 1
    %p121 = por %p119, %p120
    %p122 = scmp.ne.s32.totalorder %s114, %s117
    %p123 = scmp.eq.s32.totalorder %s10, 0
    %p124 = por %p122, %p123
    %p125 = scmp.ne.s32.totalorder %s114, %s117
    %p126 = scmp.eq.s32.totalorder %s15, 1
    %p127 = por %p125, %p126
    %p128 = scmp.ne.s32.totalorder %s117, %s118
    %p129 = scmp.eq.s32.totalorder %s15, 0
    %p130 = por %p128, %p129
    %p131 = scmp.ne.s32.totalorder %s117, %s118
    %p132 = scmp.eq.s32.totalorder %s16, 1
    %p133 = por %p131, %p132
    %p135 = scmp.ne.s32.totalorder %s118, %s134
    %p136 = scmp.eq.s32.totalorder %s16, 0
    %p137 = por %p135, %p136
    %p138 = scmp.le.s32.totalorder 1, %s10
    %p139 = scmp.lt.s32.totalorder %s10, 3
    %p140 = pnand %p138, %p139
    %p141 = pneg %p140
    // Predicated region
    $region9: #{bridge_forward.3} parent=5 // pred_check
      _
    $region10: #{bridge_forward.3} parent=5 // pred_check_branch
      %143 = sbr.rel (%p140) target = $region12
    $region11: #{bridge_forward.3} parent=5 // pred_region
      %s144 = ssub.s32 %s10, 1
      // Predicated region
      $region13: #{bridge_forward.3} parent=11 // pred_check
        %p145 = pneg %p74
      $region14: #{bridge_forward.3} parent=11 // pred_check_branch
        %147 = sbr.rel (%p145) target = $region16
      $region15: #{bridge_forward.3} parent=11 // pred_region
        %p148 = scmp.lt.s32.totalorder %s20, 0
        %s149 = scalar_select %p148, %s20, 0
        %s150 = smul.addr %s149, 4
        %s151 = scalar_lea.vmem %s1, %s150
      $region16: #{bridge_forward.3} parent=11 // pred_fallthru
        _
    $region12: #{bridge_forward.3} parent=5 // pred_fallthru
      _
    %p152 = scmp.lt.s32.totalorder %s10, 2
    // Predicated region
    $region17: #{bridge_forward.3} parent=5 // pred_check
      %p153 = pneg %p152
    $region18: #{bridge_forward.3} parent=5 // pred_check_branch
      %155 = sbr.rel (%p153) target = $region20
    $region19: #{bridge_forward.3} parent=5 // pred_region
      // Predicated region
      $region21: #{bridge_forward.3} parent=19 // pred_check
        %p156 = pneg %p42
      $region22: #{bridge_forward.3} parent=19 // pred_check_branch
        %158 = sbr.rel (%p156) target = $region24
      $region23: #{bridge_forward.3} parent=19 // pred_region
        %p159 = scmp.lt.s32.totalorder %s17, 1
        %s160 = scalar_select %p159, %s17, 1
        %s161 = smul.addr %s160, 54
        %s162 = smul.addr %s161, 4
        %s163 = scalar_lea.vmem %s0, %s162
      $region24: #{bridge_forward.3} parent=19 // pred_fallthru
        _
    $region20: #{bridge_forward.3} parent=5 // pred_fallthru
      _
    %p164 = scmp.le.s32.totalorder 1, %s10
    %p165 = scmp.lt.s32.totalorder %s10, 3
    %p166 = pnand %p164, %p165
    %p167 = pneg %p166
    // Predicated region
    $region25: #{bridge_forward.3} parent=5 // pred_check
      _
    $region26: #{bridge_forward.3} parent=5 // pred_check_branch
      %169 = sbr.rel (%p166) target = $region28
    $region27: #{bridge_forward.3} parent=5 // pred_region
      %s170 = ssub.s32 %s10, 1
      %p171 = scmp.lt.s32.totalorder %s19, 1
      %s172 = scalar_select %p171, %s19, 1
      %s173 = smul.addr %s172, 54
      %s174 = smul.addr %s173, 4
      %s175 = scalar_lea.vmem %s0, %s174
      %p176 = pneg %p48
      %p177 = pneg %p45
      %p178 = scmp.lt.s32.totalorder %s20, 0
      %s179 = scalar_select %p178, %s20, 0
      %s180 = smul.addr %s179, 4
      %s181 = scalar_lea.vmem %s1, %s180
      %p182 = pneg %p74
      %p183 = pneg %p71
      %p184 = pneg %p102
      %p185 = pneg %p99
      %p186 = scmp.lt.s32.totalorder %s19, 1
      %s187 = scalar_select %p186, %s19, 1
      %p188 = scmp.lt.s32.totalorder %s20, 0
      %s189 = scalar_select %p188, %s20, 0
      %s190 = smul.addr %s187, 32
      %s191 = sadd.s32 %s189, %s190
      %s192 = smul.addr %s191, 4
      %s193 = scalar_lea.vmem %s2, %s192
      %p194 = pneg %p130
      %p195 = pneg %p127
      %p196 = scmp.lt.s32.totalorder %s19, 1
      %s197 = scalar_select %p196, %s19, 1
      %p198 = scmp.lt.s32.totalorder %s20, 0
      %s199 = scalar_select %p198, %s20, 0
      %s200 = sadd.s32 %s199, %s197
      %s201 = smul.addr %s200, 2
      %s202 = scalar_lea.vmem %s3, %s201
      %p203 = scmp.lt.s32.totalorder %s19, 1
      %s204 = scalar_select %p203, %s19, 1
      %s205 = smul.addr %s204, 54
      %s206 = smul.addr %s205, 4
      %s207 = scalar_lea.vmem %s0, %s206
      %p208 = scmp.lt.s32.totalorder %s20, 0
      %s209 = scalar_select %p208, %s20, 0
      %s210 = smul.addr %s209, 4
      %s211 = scalar_lea.vmem %s1, %s210
      %p212 = scmp.lt.s32.totalorder %s19, 1
      %s213 = scalar_select %p212, %s19, 1
      %p214 = scmp.lt.s32.totalorder %s20, 0
      %s215 = scalar_select %p214, %s20, 0
      %s216 = smul.addr %s213, 32
      %s217 = sadd.s32 %s215, %s216
      %s218 = smul.addr %s217, 4
      %s219 = scalar_lea.vmem %s2, %s218
      %p220 = scmp.lt.s32.totalorder %s19, 1
      %s221 = scalar_select %p220, %s19, 1
      %p222 = scmp.lt.s32.totalorder %s20, 0
      %s223 = scalar_select %p222, %s20, 0
      %s224 = sadd.s32 %s223, %s221
      %s225 = smul.addr %s224, 2
      %s226 = scalar_lea.vmem %s3, %s225
      %v227 = vld [vmem:[%s207] sm:$0xf]
      %v228 = vld [vmem:[%s207 + $0x4] sm:$0xf]
      %v229 = vld [vmem:[%s207 + $0xc] sm:$0xf]
      %v230 = vld [vmem:[%s207 + $0x10] sm:$0xf]
      %v231 = vld [vmem:[%s207 + $0x18] sm:$0xf]
      %v232 = vld [vmem:[%s207 + $0x1c] sm:$0xf]
      %v233 = vld [vmem:[%s207 + $0x24] sm:$0xf]
      %v234 = vld [vmem:[%s207 + $0x28] sm:$0xf]
      %v235 = vld [vmem:[%s207 + $0x30] sm:$0xf]
      %v236 = vld [vmem:[%s207 + $0x34] sm:$0xf]
      %v237 = vld [vmem:[%s207 + $0x3c] sm:$0xf]
      %v238 = vld [vmem:[%s207 + $0x40] sm:$0xf]
      %v239 = vld [vmem:[%s207 + $0x48] sm:$0xf]
      %v240 = vld [vmem:[%s207 + $0x4c] sm:$0xf]
      %v241 = vld [vmem:[%s207 + $0x54] sm:$0xf]
      %v242 = vld [vmem:[%s207 + $0x58] sm:$0xf]
      %v243 = vld [vmem:[%s207 + $0x60] sm:$0xf]
      %v244 = vld [vmem:[%s207 + $0x64] sm:$0xf]
      %v245 = vld [vmem:[%s207 + $0x6c] sm:$0xf]
      %v246 = vld [vmem:[%s207 + $0x70] sm:$0xf]
      %v247 = vld [vmem:[%s207 + $0x78] sm:$0xf]
      %v248 = vld [vmem:[%s207 + $0x7c] sm:$0xf]
      %v249 = vld [vmem:[%s207 + $0x84] sm:$0xf]
      %v250 = vld [vmem:[%s207 + $0x88] sm:$0xf]
      %v251 = vld [vmem:[%s207 + $0x90] sm:$0xf]
      %v252 = vld [vmem:[%s207 + $0x94] sm:$0xf]
      %v253 = vld [vmem:[%s207 + $0x9c] sm:$0xf]
      %v254 = vld [vmem:[%s207 + $0xa0] sm:$0xf]
      %v255 = vld [vmem:[%s207 + $0xa8] sm:$0xf]
      %v256 = vld [vmem:[%s207 + $0xac] sm:$0xf]
      %v257 = vld [vmem:[%s207 + $0xb4] sm:$0xf]
      %v258 = vld [vmem:[%s207 + $0xb8] sm:$0xf]
      %v259 = vld [vmem:[%s207 + $0x8] sm:$0x1]
      %v260 = vld [vmem:[%s207 + $0x14] sm:$0x1]
      %v261 = vld [vmem:[%s207 + $0x20] sm:$0x1]
      %v262 = vld [vmem:[%s207 + $0x2c] sm:$0x1]
      %v263 = vld [vmem:[%s207 + $0x38] sm:$0x1]
      %v264 = vld [vmem:[%s207 + $0x44] sm:$0x1]
      %v265 = vld [vmem:[%s207 + $0x50] sm:$0x1]
      %v266 = vld [vmem:[%s207 + $0x5c] sm:$0x1]
      %v267 = vld [vmem:[%s207 + $0x68] sm:$0x1]
      %v268 = vld [vmem:[%s207 + $0x74] sm:$0x1]
      %v269 = vld [vmem:[%s207 + $0x80] sm:$0x1]
      %v270 = vld [vmem:[%s207 + $0x8c] sm:$0x1]
      %v271 = vld [vmem:[%s207 + $0x98] sm:$0x1]
      %v272 = vld [vmem:[%s207 + $0xa4] sm:$0x1]
      %v273 = vld [vmem:[%s207 + $0xb0] sm:$0x1]
      %v274 = vld [vmem:[%s207 + $0xbc] sm:$0x1]
      %vm275 = vsmask.f32 3328
      %vm276 = vsmask.f32 7440
      %vm277 = vmor %vm275, %vm276
      %v279 = vshrl.u32 %v227, 16
      %v281 = vrot.slane %v279, 4
      %v282 = vshll.u32 %v227, 16
      %v284 = vrot.slane %v282, 5
      %v285 = vor.u32 %v281, %v284
      %v286 = vrot.slane %v285, 4
      %v288 = vshll.u32 %v228, 16
      %v290 = vrot.slane %v288, 5
      %v291 = vsel %vm277, %v286, %v290
      %v292 = vshrl.u32 %v228, 16
      %v294 = vrot.slane %v292, 4
      %v295 = vor.u32 %v294, %v290
      %v296 = vrot.slane %v295, 4
      %v298 = vshll.u32 %v259, 16
      %v300 = vrot.slane %v298, 5
      %v301 = vsel %vm277, %v296, %v300
      %v303 = vshrl.u32 %v229, 16
      %v305 = vrot.slane %v303, 4
      %v306 = vshll.u32 %v229, 16
      %v308 = vrot.slane %v306, 5
      %v309 = vor.u32 %v305, %v308
      %v310 = vrot.slane %v309, 4
      %v312 = vshll.u32 %v230, 16
      %v314 = vrot.slane %v312, 5
      %v315 = vsel %vm277, %v310, %v314
      %v316 = vshrl.u32 %v230, 16
      %v318 = vrot.slane %v316, 4
      %v319 = vor.u32 %v318, %v314
      %v320 = vrot.slane %v319, 4
      %v322 = vshll.u32 %v260, 16
      %v324 = vrot.slane %v322, 5
      %v325 = vsel %vm277, %v320, %v324
      %v327 = vshrl.u32 %v231, 16
      %v329 = vrot.slane %v327, 4
      %v330 = vshll.u32 %v231, 16
      %v332 = vrot.slane %v330, 5
      %v333 = vor.u32 %v329, %v332
      %v334 = vrot.slane %v333, 4
      %v336 = vshll.u32 %v232, 16
      %v338 = vrot.slane %v336, 5
      %v339 = vsel %vm277, %v334, %v338
      %v340 = vshrl.u32 %v232, 16
      %v342 = vrot.slane %v340, 4
      %v343 = vor.u32 %v342, %v338
      %v344 = vrot.slane %v343, 4
      %v346 = vshll.u32 %v261, 16
      %v348 = vrot.slane %v346, 5
      %v349 = vsel %vm277, %v344, %v348
      %v351 = vshrl.u32 %v233, 16
      %v353 = vrot.slane %v351, 4
      %v354 = vshll.u32 %v233, 16
      %v356 = vrot.slane %v354, 5
      %v357 = vor.u32 %v353, %v356
      %v358 = vrot.slane %v357, 4
      %v360 = vshll.u32 %v234, 16
      %v362 = vrot.slane %v360, 5
      %v363 = vsel %vm277, %v358, %v362
      %v364 = vshrl.u32 %v234, 16
      %v366 = vrot.slane %v364, 4
      %v367 = vor.u32 %v366, %v362
      %v368 = vrot.slane %v367, 4
      %v370 = vshll.u32 %v262, 16
      %v372 = vrot.slane %v370, 5
      %v373 = vsel %vm277, %v368, %v372
      %v375 = vshrl.u32 %v235, 16
      %v377 = vrot.slane %v375, 4
      %v378 = vshll.u32 %v235, 16
      %v380 = vrot.slane %v378, 5
      %v381 = vor.u32 %v377, %v380
      %v382 = vrot.slane %v381, 4
      %v384 = vshll.u32 %v236, 16
      %v386 = vrot.slane %v384, 5
      %v387 = vsel %vm277, %v382, %v386
      %v388 = vshrl.u32 %v236, 16
      %v390 = vrot.slane %v388, 4
      %v391 = vor.u32 %v390, %v386
      %v392 = vrot.slane %v391, 4
      %v394 = vshll.u32 %v263, 16
      %v396 = vrot.slane %v394, 5
      %v397 = vsel %vm277, %v392, %v396
      %v399 = vshrl.u32 %v237, 16
      %v401 = vrot.slane %v399, 4
      %v402 = vshll.u32 %v237, 16
      %v404 = vrot.slane %v402, 5
      %v405 = vor.u32 %v401, %v404
      %v406 = vrot.slane %v405, 4
      %v408 = vshll.u32 %v238, 16
      %v410 = vrot.slane %v408, 5
      %v411 = vsel %vm277, %v406, %v410
      %v412 = vshrl.u32 %v238, 16
      %v414 = vrot.slane %v412, 4
      %v415 = vor.u32 %v414, %v410
      %v416 = vrot.slane %v415, 4
      %v418 = vshll.u32 %v264, 16
      %v420 = vrot.slane %v418, 5
      %v421 = vsel %vm277, %v416, %v420
      %v423 = vshrl.u32 %v239, 16
      %v425 = vrot.slane %v423, 4
      %v426 = vshll.u32 %v239, 16
      %v428 = vrot.slane %v426, 5
      %v429 = vor.u32 %v425, %v428
      %v430 = vrot.slane %v429, 4
      %v432 = vshll.u32 %v240, 16
      %v434 = vrot.slane %v432, 5
      %v435 = vsel %vm277, %v430, %v434
      %v436 = vshrl.u32 %v240, 16
      %v438 = vrot.slane %v436, 4
      %v439 = vor.u32 %v438, %v434
      %v440 = vrot.slane %v439, 4
      %v442 = vshll.u32 %v265, 16
      %v444 = vrot.slane %v442, 5
      %v445 = vsel %vm277, %v440, %v444
      %v447 = vshrl.u32 %v241, 16
      %v449 = vrot.slane %v447, 4
      %v450 = vshll.u32 %v241, 16
      %v452 = vrot.slane %v450, 5
      %v453 = vor.u32 %v449, %v452
      %v454 = vrot.slane %v453, 4
      %v456 = vshll.u32 %v242, 16
      %v458 = vrot.slane %v456, 5
      %v459 = vsel %vm277, %v454, %v458
      %v460 = vshrl.u32 %v242, 16
      %v462 = vrot.slane %v460, 4
      %v463 = vor.u32 %v462, %v458
      %v464 = vrot.slane %v463, 4
      %v466 = vshll.u32 %v266, 16
      %v468 = vrot.slane %v466, 5
      %v469 = vsel %vm277, %v464, %v468
      %v471 = vshrl.u32 %v243, 16
      %v473 = vrot.slane %v471, 4
      %v474 = vshll.u32 %v243, 16
      %v476 = vrot.slane %v474, 5
      %v477 = vor.u32 %v473, %v476
      %v478 = vrot.slane %v477, 4
      %v480 = vshll.u32 %v244, 16
      %v482 = vrot.slane %v480, 5
      %v483 = vsel %vm277, %v478, %v482
      %v484 = vshrl.u32 %v244, 16
      %v486 = vrot.slane %v484, 4
      %v487 = vor.u32 %v486, %v482
      %v488 = vrot.slane %v487, 4
      %v490 = vshll.u32 %v267, 16
      %v492 = vrot.slane %v490, 5
      %v493 = vsel %vm277, %v488, %v492
      %v495 = vshrl.u32 %v245, 16
      %v497 = vrot.slane %v495, 4
      %v498 = vshll.u32 %v245, 16
      %v500 = vrot.slane %v498, 5
      %v501 = vor.u32 %v497, %v500
      %v502 = vrot.slane %v501, 4
      %v504 = vshll.u32 %v246, 16
      %v506 = vrot.slane %v504, 5
      %v507 = vsel %vm277, %v502, %v506
      %v508 = vshrl.u32 %v246, 16
      %v510 = vrot.slane %v508, 4
      %v511 = vor.u32 %v510, %v506
      %v512 = vrot.slane %v511, 4
      %v514 = vshll.u32 %v268, 16
      %v516 = vrot.slane %v514, 5
      %v517 = vsel %vm277, %v512, %v516
      %v519 = vshrl.u32 %v247, 16
      %v521 = vrot.slane %v519, 4
      %v522 = vshll.u32 %v247, 16
      %v524 = vrot.slane %v522, 5
      %v525 = vor.u32 %v521, %v524
      %v526 = vrot.slane %v525, 4
      %v528 = vshll.u32 %v248, 16
      %v530 = vrot.slane %v528, 5
      %v531 = vsel %vm277, %v526, %v530
      %v532 = vshrl.u32 %v248, 16
      %v534 = vrot.slane %v532, 4
      %v535 = vor.u32 %v534, %v530
      %v536 = vrot.slane %v535, 4
      %v538 = vshll.u32 %v269, 16
      %v540 = vrot.slane %v538, 5
      %v541 = vsel %vm277, %v536, %v540
      %v543 = vshrl.u32 %v249, 16
      %v545 = vrot.slane %v543, 4
      %v546 = vshll.u32 %v249, 16
      %v548 = vrot.slane %v546, 5
      %v549 = vor.u32 %v545, %v548
      %v550 = vrot.slane %v549, 4
      %v552 = vshll.u32 %v250, 16
      %v554 = vrot.slane %v552, 5
      %v555 = vsel %vm277, %v550, %v554
      %v556 = vshrl.u32 %v250, 16
      %v558 = vrot.slane %v556, 4
      %v559 = vor.u32 %v558, %v554
      %v560 = vrot.slane %v559, 4
      %v562 = vshll.u32 %v270, 16
      %v564 = vrot.slane %v562, 5
      %v565 = vsel %vm277, %v560, %v564
      %v567 = vshrl.u32 %v251, 16
      %v569 = vrot.slane %v567, 4
      %v570 = vshll.u32 %v251, 16
      %v572 = vrot.slane %v570, 5
      %v573 = vor.u32 %v569, %v572
      %v574 = vrot.slane %v573, 4
      %v576 = vshll.u32 %v252, 16
      %v578 = vrot.slane %v576, 5
      %v579 = vsel %vm277, %v574, %v578
      %v580 = vshrl.u32 %v252, 16
      %v582 = vrot.slane %v580, 4
      %v583 = vor.u32 %v582, %v578
      %v584 = vrot.slane %v583, 4
      %v586 = vshll.u32 %v271, 16
      %v588 = vrot.slane %v586, 5
      %v589 = vsel %vm277, %v584, %v588
      %v591 = vshrl.u32 %v253, 16
      %v593 = vrot.slane %v591, 4
      %v594 = vshll.u32 %v253, 16
      %v596 = vrot.slane %v594, 5
      %v597 = vor.u32 %v593, %v596
      %v598 = vrot.slane %v597, 4
      %v600 = vshll.u32 %v254, 16
      %v602 = vrot.slane %v600, 5
      %v603 = vsel %vm277, %v598, %v602
      %v604 = vshrl.u32 %v254, 16
      %v606 = vrot.slane %v604, 4
      %v607 = vor.u32 %v606, %v602
      %v608 = vrot.slane %v607, 4
      %v610 = vshll.u32 %v272, 16
      %v612 = vrot.slane %v610, 5
      %v613 = vsel %vm277, %v608, %v612
      %v615 = vshrl.u32 %v255, 16
      %v617 = vrot.slane %v615, 4
      %v618 = vshll.u32 %v255, 16
      %v620 = vrot.slane %v618, 5
      %v621 = vor.u32 %v617, %v620
      %v622 = vrot.slane %v621, 4
      %v624 = vshll.u32 %v256, 16
      %v626 = vrot.slane %v624, 5
      %v627 = vsel %vm277, %v622, %v626
      %v628 = vshrl.u32 %v256, 16
      %v630 = vrot.slane %v628, 4
      %v631 = vor.u32 %v630, %v626
      %v632 = vrot.slane %v631, 4
      %v634 = vshll.u32 %v273, 16
      %v636 = vrot.slane %v634, 5
      %v637 = vsel %vm277, %v632, %v636
      %v639 = vshrl.u32 %v257, 16
      %v641 = vrot.slane %v639, 4
      %v642 = vshll.u32 %v257, 16
      %v644 = vrot.slane %v642, 5
      %v645 = vor.u32 %v641, %v644
      %v646 = vrot.slane %v645, 4
      %v648 = vshll.u32 %v258, 16
      %v650 = vrot.slane %v648, 5
      %v651 = vsel %vm277, %v646, %v650
      %v652 = vshrl.u32 %v258, 16
      %v654 = vrot.slane %v652, 4
      %v655 = vor.u32 %v654, %v650
      %v656 = vrot.slane %v655, 4
      %v658 = vshll.u32 %v274, 16
      %v660 = vrot.slane %v658, 5
      %v661 = vsel %vm277, %v656, %v660
      %v662 = vld [vmem:[%s207] sm:$0xe]
      %v663 = vld [vmem:[%s207 + $0xc] sm:$0xe]
      %v664 = vld [vmem:[%s207 + $0x18] sm:$0xe]
      %v665 = vld [vmem:[%s207 + $0x24] sm:$0xe]
      %v666 = vld [vmem:[%s207 + $0x30] sm:$0xe]
      %v667 = vld [vmem:[%s207 + $0x3c] sm:$0xe]
      %v668 = vld [vmem:[%s207 + $0x48] sm:$0xe]
      %v669 = vld [vmem:[%s207 + $0x54] sm:$0xe]
      %v670 = vld [vmem:[%s207 + $0x60] sm:$0xe]
      %v671 = vld [vmem:[%s207 + $0x6c] sm:$0xe]
      %v672 = vld [vmem:[%s207 + $0x78] sm:$0xe]
      %v673 = vld [vmem:[%s207 + $0x84] sm:$0xe]
      %v674 = vld [vmem:[%s207 + $0x90] sm:$0xe]
      %v675 = vld [vmem:[%s207 + $0x9c] sm:$0xe]
      %v676 = vld [vmem:[%s207 + $0xa8] sm:$0xe]
      %v677 = vld [vmem:[%s207 + $0xb4] sm:$0xe]
      %vm726 = vcmask 1042432
      %vm727 = vcmask 1046532
      %vm728 = vmor %vm726, %vm727
      %v729 = vrot.slane %v662, 5
      %v730 = vrot.slane %v729, 4
      %v731 = vrot.slane %v228, 5
      %v732 = vsel %vm728, %v730, %v731
      %v733 = vrot.slane %v731, 4
      %v734 = vrot.slane %v259, 5
      %v735 = vsel %vm728, %v733, %v734
      %v736 = vrot.slane %v663, 5
      %v737 = vrot.slane %v736, 4
      %v738 = vrot.slane %v230, 5
      %v739 = vsel %vm728, %v737, %v738
      %v740 = vrot.slane %v738, 4
      %v741 = vrot.slane %v260, 5
      %v742 = vsel %vm728, %v740, %v741
      %v743 = vrot.slane %v664, 5
      %v744 = vrot.slane %v743, 4
      %v745 = vrot.slane %v232, 5
      %v746 = vsel %vm728, %v744, %v745
      %v747 = vrot.slane %v745, 4
      %v748 = vrot.slane %v261, 5
      %v749 = vsel %vm728, %v747, %v748
      %v750 = vrot.slane %v665, 5
      %v751 = vrot.slane %v750, 4
      %v752 = vrot.slane %v234, 5
      %v753 = vsel %vm728, %v751, %v752
      %v754 = vrot.slane %v752, 4
      %v755 = vrot.slane %v262, 5
      %v756 = vsel %vm728, %v754, %v755
      %v757 = vrot.slane %v666, 5
      %v758 = vrot.slane %v757, 4
      %v759 = vrot.slane %v236, 5
      %v760 = vsel %vm728, %v758, %v759
      %v761 = vrot.slane %v759, 4
      %v762 = vrot.slane %v263, 5
      %v763 = vsel %vm728, %v761, %v762
      %v764 = vrot.slane %v667, 5
      %v765 = vrot.slane %v764, 4
      %v766 = vrot.slane %v238, 5
      %v767 = vsel %vm728, %v765, %v766
      %v768 = vrot.slane %v766, 4
      %v769 = vrot.slane %v264, 5
      %v770 = vsel %vm728, %v768, %v769
      %v771 = vrot.slane %v668, 5
      %v772 = vrot.slane %v771, 4
      %v773 = vrot.slane %v240, 5
      %v774 = vsel %vm728, %v772, %v773
      %v775 = vrot.slane %v773, 4
      %v776 = vrot.slane %v265, 5
      %v777 = vsel %vm728, %v775, %v776
      %v778 = vrot.slane %v669, 5
      %v779 = vrot.slane %v778, 4
      %v780 = vrot.slane %v242, 5
      %v781 = vsel %vm728, %v779, %v780
      %v782 = vrot.slane %v780, 4
      %v783 = vrot.slane %v266, 5
      %v784 = vsel %vm728, %v782, %v783
      %v785 = vrot.slane %v670, 5
      %v786 = vrot.slane %v785, 4
      %v787 = vrot.slane %v244, 5
      %v788 = vsel %vm728, %v786, %v787
      %v789 = vrot.slane %v787, 4
      %v790 = vrot.slane %v267, 5
      %v791 = vsel %vm728, %v789, %v790
      %v792 = vrot.slane %v671, 5
      %v793 = vrot.slane %v792, 4
      %v794 = vrot.slane %v246, 5
      %v795 = vsel %vm728, %v793, %v794
      %v796 = vrot.slane %v794, 4
      %v797 = vrot.slane %v268, 5
      %v798 = vsel %vm728, %v796, %v797
      %v799 = vrot.slane %v672, 5
      %v800 = vrot.slane %v799, 4
      %v801 = vrot.slane %v248, 5
      %v802 = vsel %vm728, %v800, %v801
      %v803 = vrot.slane %v801, 4
      %v804 = vrot.slane %v269, 5
      %v805 = vsel %vm728, %v803, %v804
      %v806 = vrot.slane %v673, 5
      %v807 = vrot.slane %v806, 4
      %v808 = vrot.slane %v250, 5
      %v809 = vsel %vm728, %v807, %v808
      %v810 = vrot.slane %v808, 4
      %v811 = vrot.slane %v270, 5
      %v812 = vsel %vm728, %v810, %v811
      %v813 = vrot.slane %v674, 5
      %v814 = vrot.slane %v813, 4
      %v815 = vrot.slane %v252, 5
      %v816 = vsel %vm728, %v814, %v815
      %v817 = vrot.slane %v815, 4
      %v818 = vrot.slane %v271, 5
      %v819 = vsel %vm728, %v817, %v818
      %v820 = vrot.slane %v675, 5
      %v821 = vrot.slane %v820, 4
      %v822 = vrot.slane %v254, 5
      %v823 = vsel %vm728, %v821, %v822
      %v824 = vrot.slane %v822, 4
      %v825 = vrot.slane %v272, 5
      %v826 = vsel %vm728, %v824, %v825
      %v827 = vrot.slane %v676, 5
      %v828 = vrot.slane %v827, 4
      %v829 = vrot.slane %v256, 5
      %v830 = vsel %vm728, %v828, %v829
      %v831 = vrot.slane %v829, 4
      %v832 = vrot.slane %v273, 5
      %v833 = vsel %vm728, %v831, %v832
      %v834 = vrot.slane %v677, 5
      %v835 = vrot.slane %v834, 4
      %v836 = vrot.slane %v258, 5
      %v837 = vsel %vm728, %v835, %v836
      %v838 = vrot.slane %v836, 4
      %v839 = vrot.slane %v274, 5
      %v840 = vsel %vm728, %v838, %v839
      %s841 = scalar_lea.vmem %s207, 12
      %v842 = vld [vmem:[%s841] sm:$0xf]
      %v843 = vld [vmem:[%s841 + $0x4] sm:$0xf]
      %v844 = vld [vmem:[%s841 + $0xc] sm:$0xf]
      %v845 = vld [vmem:[%s841 + $0x10] sm:$0xf]
      %v846 = vld [vmem:[%s841 + $0x18] sm:$0xf]
      %v847 = vld [vmem:[%s841 + $0x1c] sm:$0xf]
      %v848 = vld [vmem:[%s841 + $0x24] sm:$0xf]
      %v849 = vld [vmem:[%s841 + $0x28] sm:$0xf]
      %v850 = vld [vmem:[%s841 + $0x30] sm:$0xf]
      %v851 = vld [vmem:[%s841 + $0x34] sm:$0xf]
      %v852 = vld [vmem:[%s841 + $0x3c] sm:$0xf]
      %v853 = vld [vmem:[%s841 + $0x40] sm:$0xf]
      %v854 = vld [vmem:[%s841 + $0x48] sm:$0xf]
      %v855 = vld [vmem:[%s841 + $0x4c] sm:$0xf]
      %v856 = vld [vmem:[%s841 + $0x54] sm:$0xf]
      %v857 = vld [vmem:[%s841 + $0x58] sm:$0xf]
      %v858 = vld [vmem:[%s841 + $0x60] sm:$0xf]
      %v859 = vld [vmem:[%s841 + $0x64] sm:$0xf]
      %v860 = vld [vmem:[%s841 + $0x6c] sm:$0xf]
      %v861 = vld [vmem:[%s841 + $0x70] sm:$0xf]
      %v862 = vld [vmem:[%s841 + $0x78] sm:$0xf]
      %v863 = vld [vmem:[%s841 + $0x7c] sm:$0xf]
      %v864 = vld [vmem:[%s841 + $0x84] sm:$0xf]
      %v865 = vld [vmem:[%s841 + $0x88] sm:$0xf]
      %v866 = vld [vmem:[%s841 + $0x90] sm:$0xf]
      %v867 = vld [vmem:[%s841 + $0x94] sm:$0xf]
      %v868 = vld [vmem:[%s841 + $0x9c] sm:$0xf]
      %v869 = vld [vmem:[%s841 + $0xa0] sm:$0xf]
      %v870 = vld [vmem:[%s841 + $0xa8] sm:$0xf]
      %v871 = vld [vmem:[%s841 + $0xac] sm:$0xf]
      %v872 = vld [vmem:[%s841 + $0xb4] sm:$0xf]
      %v873 = vld [vmem:[%s841 + $0xb8] sm:$0xf]
      %v874 = vld [vmem:[%s841 + $0x8] sm:$0x1]
      %v875 = vld [vmem:[%s841 + $0x14] sm:$0x1]
      %v876 = vld [vmem:[%s841 + $0x20] sm:$0x1]
      %v877 = vld [vmem:[%s841 + $0x2c] sm:$0x1]
      %v878 = vld [vmem:[%s841 + $0x38] sm:$0x1]
      %v879 = vld [vmem:[%s841 + $0x44] sm:$0x1]
      %v880 = vld [vmem:[%s841 + $0x50] sm:$0x1]
      %v881 = vld [vmem:[%s841 + $0x5c] sm:$0x1]
      %v882 = vld [vmem:[%s841 + $0x68] sm:$0x1]
      %v883 = vld [vmem:[%s841 + $0x74] sm:$0x1]
      %v884 = vld [vmem:[%s841 + $0x80] sm:$0x1]
      %v885 = vld [vmem:[%s841 + $0x8c] sm:$0x1]
      %v886 = vld [vmem:[%s841 + $0x98] sm:$0x1]
      %v887 = vld [vmem:[%s841 + $0xa4] sm:$0x1]
      %v888 = vld [vmem:[%s841 + $0xb0] sm:$0x1]
      %v889 = vld [vmem:[%s841 + $0xbc] sm:$0x1]
      %v891 = vshrl.u32 %v842, 16
      %v893 = vrot.slane %v891, 4
      %v894 = vshll.u32 %v842, 16
      %v896 = vrot.slane %v894, 5
      %v897 = vor.u32 %v893, %v896
      %v898 = vrot.slane %v897, 4
      %v900 = vshll.u32 %v843, 16
      %v902 = vrot.slane %v900, 5
      %v903 = vsel %vm277, %v898, %v902
      %v904 = vshrl.u32 %v843, 16
      %v906 = vrot.slane %v904, 4
      %v907 = vor.u32 %v906, %v902
      %v908 = vrot.slane %v907, 4
      %v910 = vshll.u32 %v874, 16
      %v912 = vrot.slane %v910, 5
      %v913 = vsel %vm277, %v908, %v912
      %v915 = vshrl.u32 %v844, 16
      %v917 = vrot.slane %v915, 4
      %v918 = vshll.u32 %v844, 16
      %v920 = vrot.slane %v918, 5
      %v921 = vor.u32 %v917, %v920
      %v922 = vrot.slane %v921, 4
      %v924 = vshll.u32 %v845, 16
      %v926 = vrot.slane %v924, 5
      %v927 = vsel %vm277, %v922, %v926
      %v928 = vshrl.u32 %v845, 16
      %v930 = vrot.slane %v928, 4
      %v931 = vor.u32 %v930, %v926
      %v932 = vrot.slane %v931, 4
      %v934 = vshll.u32 %v875, 16
      %v936 = vrot.slane %v934, 5
      %v937 = vsel %vm277, %v932, %v936
      %v939 = vshrl.u32 %v846, 16
      %v941 = vrot.slane %v939, 4
      %v942 = vshll.u32 %v846, 16
      %v944 = vrot.slane %v942, 5
      %v945 = vor.u32 %v941, %v944
      %v946 = vrot.slane %v945, 4
      %v948 = vshll.u32 %v847, 16
      %v950 = vrot.slane %v948, 5
      %v951 = vsel %vm277, %v946, %v950
      %v952 = vshrl.u32 %v847, 16
      %v954 = vrot.slane %v952, 4
      %v955 = vor.u32 %v954, %v950
      %v956 = vrot.slane %v955, 4
      %v958 = vshll.u32 %v876, 16
      %v960 = vrot.slane %v958, 5
      %v961 = vsel %vm277, %v956, %v960
      %v963 = vshrl.u32 %v848, 16
      %v965 = vrot.slane %v963, 4
      %v966 = vshll.u32 %v848, 16
      %v968 = vrot.slane %v966, 5
      %v969 = vor.u32 %v965, %v968
      %v970 = vrot.slane %v969, 4
      %v972 = vshll.u32 %v849, 16
      %v974 = vrot.slane %v972, 5
      %v975 = vsel %vm277, %v970, %v974
      %v976 = vshrl.u32 %v849, 16
      %v978 = vrot.slane %v976, 4
      %v979 = vor.u32 %v978, %v974
      %v980 = vrot.slane %v979, 4
      %v982 = vshll.u32 %v877, 16
      %v984 = vrot.slane %v982, 5
      %v985 = vsel %vm277, %v980, %v984
      %v987 = vshrl.u32 %v850, 16
      %v989 = vrot.slane %v987, 4
      %v990 = vshll.u32 %v850, 16
      %v992 = vrot.slane %v990, 5
      %v993 = vor.u32 %v989, %v992
      %v994 = vrot.slane %v993, 4
      %v996 = vshll.u32 %v851, 16
      %v998 = vrot.slane %v996, 5
      %v999 = vsel %vm277, %v994, %v998
      %v1000 = vshrl.u32 %v851, 16
      %v1002 = vrot.slane %v1000, 4
      %v1003 = vor.u32 %v1002, %v998
      %v1004 = vrot.slane %v1003, 4
      %v1006 = vshll.u32 %v878, 16
      %v1008 = vrot.slane %v1006, 5
      %v1009 = vsel %vm277, %v1004, %v1008
      %v1011 = vshrl.u32 %v852, 16
      %v1013 = vrot.slane %v1011, 4
      %v1014 = vshll.u32 %v852, 16
      %v1016 = vrot.slane %v1014, 5
      %v1017 = vor.u32 %v1013, %v1016
      %v1018 = vrot.slane %v1017, 4
      %v1020 = vshll.u32 %v853, 16
      %v1022 = vrot.slane %v1020, 5
      %v1023 = vsel %vm277, %v1018, %v1022
      %v1024 = vshrl.u32 %v853, 16
      %v1026 = vrot.slane %v1024, 4
      %v1027 = vor.u32 %v1026, %v1022
      %v1028 = vrot.slane %v1027, 4
      %v1030 = vshll.u32 %v879, 16
      %v1032 = vrot.slane %v1030, 5
      %v1033 = vsel %vm277, %v1028, %v1032
      %v1035 = vshrl.u32 %v854, 16
      %v1037 = vrot.slane %v1035, 4
      %v1038 = vshll.u32 %v854, 16
      %v1040 = vrot.slane %v1038, 5
      %v1041 = vor.u32 %v1037, %v1040
      %v1042 = vrot.slane %v1041, 4
      %v1044 = vshll.u32 %v855, 16
      %v1046 = vrot.slane %v1044, 5
      %v1047 = vsel %vm277, %v1042, %v1046
      %v1048 = vshrl.u32 %v855, 16
      %v1050 = vrot.slane %v1048, 4
      %v1051 = vor.u32 %v1050, %v1046
      %v1052 = vrot.slane %v1051, 4
      %v1054 = vshll.u32 %v880, 16
      %v1056 = vrot.slane %v1054, 5
      %v1057 = vsel %vm277, %v1052, %v1056
      %v1059 = vshrl.u32 %v856, 16
      %v1061 = vrot.slane %v1059, 4
      %v1062 = vshll.u32 %v856, 16
      %v1064 = vrot.slane %v1062, 5
      %v1065 = vor.u32 %v1061, %v1064
      %v1066 = vrot.slane %v1065, 4
      %v1068 = vshll.u32 %v857, 16
      %v1070 = vrot.slane %v1068, 5
      %v1071 = vsel %vm277, %v1066, %v1070
      %v1072 = vshrl.u32 %v857, 16
      %v1074 = vrot.slane %v1072, 4
      %v1075 = vor.u32 %v1074, %v1070
      %v1076 = vrot.slane %v1075, 4
      %v1078 = vshll.u32 %v881, 16
      %v1080 = vrot.slane %v1078, 5
      %v1081 = vsel %vm277, %v1076, %v1080
      %v1083 = vshrl.u32 %v858, 16
      %v1085 = vrot.slane %v1083, 4
      %v1086 = vshll.u32 %v858, 16
      %v1088 = vrot.slane %v1086, 5
      %v1089 = vor.u32 %v1085, %v1088
      %v1090 = vrot.slane %v1089, 4
      %v1092 = vshll.u32 %v859, 16
      %v1094 = vrot.slane %v1092, 5
      %v1095 = vsel %vm277, %v1090, %v1094
      %v1096 = vshrl.u32 %v859, 16
      %v1098 = vrot.slane %v1096, 4
      %v1099 = vor.u32 %v1098, %v1094
      %v1100 = vrot.slane %v1099, 4
      %v1102 = vshll.u32 %v882, 16
      %v1104 = vrot.slane %v1102, 5
      %v1105 = vsel %vm277, %v1100, %v1104
      %v1107 = vshrl.u32 %v860, 16
      %v1109 = vrot.slane %v1107, 4
      %v1110 = vshll.u32 %v860, 16
      %v1112 = vrot.slane %v1110, 5
      %v1113 = vor.u32 %v1109, %v1112
      %v1114 = vrot.slane %v1113, 4
      %v1116 = vshll.u32 %v861, 16
      %v1118 = vrot.slane %v1116, 5
      %v1119 = vsel %vm277, %v1114, %v1118
      %v1120 = vshrl.u32 %v861, 16
      %v1122 = vrot.slane %v1120, 4
      %v1123 = vor.u32 %v1122, %v1118
      %v1124 = vrot.slane %v1123, 4
      %v1126 = vshll.u32 %v883, 16
      %v1128 = vrot.slane %v1126, 5
      %v1129 = vsel %vm277, %v1124, %v1128
      %v1131 = vshrl.u32 %v862, 16
      %v1133 = vrot.slane %v1131, 4
      %v1134 = vshll.u32 %v862, 16
      %v1136 = vrot.slane %v1134, 5
      %v1137 = vor.u32 %v1133, %v1136
      %v1138 = vrot.slane %v1137, 4
      %v1140 = vshll.u32 %v863, 16
      %v1142 = vrot.slane %v1140, 5
      %v1143 = vsel %vm277, %v1138, %v1142
      %v1144 = vshrl.u32 %v863, 16
      %v1146 = vrot.slane %v1144, 4
      %v1147 = vor.u32 %v1146, %v1142
      %v1148 = vrot.slane %v1147, 4
      %v1150 = vshll.u32 %v884, 16
      %v1152 = vrot.slane %v1150, 5
      %v1153 = vsel %vm277, %v1148, %v1152
      %v1155 = vshrl.u32 %v864, 16
      %v1157 = vrot.slane %v1155, 4
      %v1158 = vshll.u32 %v864, 16
      %v1160 = vrot.slane %v1158, 5
      %v1161 = vor.u32 %v1157, %v1160
      %v1162 = vrot.slane %v1161, 4
      %v1164 = vshll.u32 %v865, 16
      %v1166 = vrot.slane %v1164, 5
      %v1167 = vsel %vm277, %v1162, %v1166
      %v1168 = vshrl.u32 %v865, 16
      %v1170 = vrot.slane %v1168, 4
      %v1171 = vor.u32 %v1170, %v1166
      %v1172 = vrot.slane %v1171, 4
      %v1174 = vshll.u32 %v885, 16
      %v1176 = vrot.slane %v1174, 5
      %v1177 = vsel %vm277, %v1172, %v1176
      %v1179 = vshrl.u32 %v866, 16
      %v1181 = vrot.slane %v1179, 4
      %v1182 = vshll.u32 %v866, 16
      %v1184 = vrot.slane %v1182, 5
      %v1185 = vor.u32 %v1181, %v1184
      %v1186 = vrot.slane %v1185, 4
      %v1188 = vshll.u32 %v867, 16
      %v1190 = vrot.slane %v1188, 5
      %v1191 = vsel %vm277, %v1186, %v1190
      %v1192 = vshrl.u32 %v867, 16
      %v1194 = vrot.slane %v1192, 4
      %v1195 = vor.u32 %v1194, %v1190
      %v1196 = vrot.slane %v1195, 4
      %v1198 = vshll.u32 %v886, 16
      %v1200 = vrot.slane %v1198, 5
      %v1201 = vsel %vm277, %v1196, %v1200
      %v1203 = vshrl.u32 %v868, 16
      %v1205 = vrot.slane %v1203, 4
      %v1206 = vshll.u32 %v868, 16
      %v1208 = vrot.slane %v1206, 5
      %v1209 = vor.u32 %v1205, %v1208
      %v1210 = vrot.slane %v1209, 4
      %v1212 = vshll.u32 %v869, 16
      %v1214 = vrot.slane %v1212, 5
      %v1215 = vsel %vm277, %v1210, %v1214
      %v1216 = vshrl.u32 %v869, 16
      %v1218 = vrot.slane %v1216, 4
      %v1219 = vor.u32 %v1218, %v1214
      %v1220 = vrot.slane %v1219, 4
      %v1222 = vshll.u32 %v887, 16
      %v1224 = vrot.slane %v1222, 5
      %v1225 = vsel %vm277, %v1220, %v1224
      %v1227 = vshrl.u32 %v870, 16
      %v1229 = vrot.slane %v1227, 4
      %v1230 = vshll.u32 %v870, 16
      %v1232 = vrot.slane %v1230, 5
      %v1233 = vor.u32 %v1229, %v1232
      %v1234 = vrot.slane %v1233, 4
      %v1236 = vshll.u32 %v871, 16
      %v1238 = vrot.slane %v1236, 5
      %v1239 = vsel %vm277, %v1234, %v1238
      %v1240 = vshrl.u32 %v871, 16
      %v1242 = vrot.slane %v1240, 4
      %v1243 = vor.u32 %v1242, %v1238
      %v1244 = vrot.slane %v1243, 4
      %v1246 = vshll.u32 %v888, 16
      %v1248 = vrot.slane %v1246, 5
      %v1249 = vsel %vm277, %v1244, %v1248
      %v1251 = vshrl.u32 %v872, 16
      %v1253 = vrot.slane %v1251, 4
      %v1254 = vshll.u32 %v872, 16
      %v1256 = vrot.slane %v1254, 5
      %v1257 = vor.u32 %v1253, %v1256
      %v1258 = vrot.slane %v1257, 4
      %v1260 = vshll.u32 %v873, 16
      %v1262 = vrot.slane %v1260, 5
      %v1263 = vsel %vm277, %v1258, %v1262
      %v1264 = vshrl.u32 %v873, 16
      %v1266 = vrot.slane %v1264, 4
      %v1267 = vor.u32 %v1266, %v1262
      %v1268 = vrot.slane %v1267, 4
      %v1270 = vshll.u32 %v889, 16
      %v1272 = vrot.slane %v1270, 5
      %v1273 = vsel %vm277, %v1268, %v1272
      %v1274 = vld [vmem:[%s841] sm:$0xe]
      %v1275 = vld [vmem:[%s841 + $0xc] sm:$0xe]
      %v1276 = vld [vmem:[%s841 + $0x18] sm:$0xe]
      %v1277 = vld [vmem:[%s841 + $0x24] sm:$0xe]
      %v1278 = vld [vmem:[%s841 + $0x30] sm:$0xe]
      %v1279 = vld [vmem:[%s841 + $0x3c] sm:$0xe]
      %v1280 = vld [vmem:[%s841 + $0x48] sm:$0xe]
      %v1281 = vld [vmem:[%s841 + $0x54] sm:$0xe]
      %v1282 = vld [vmem:[%s841 + $0x60] sm:$0xe]
      %v1283 = vld [vmem:[%s841 + $0x6c] sm:$0xe]
      %v1284 = vld [vmem:[%s841 + $0x78] sm:$0xe]
      %v1285 = vld [vmem:[%s841 + $0x84] sm:$0xe]
      %v1286 = vld [vmem:[%s841 + $0x90] sm:$0xe]
      %v1287 = vld [vmem:[%s841 + $0x9c] sm:$0xe]
      %v1288 = vld [vmem:[%s841 + $0xa8] sm:$0xe]
      %v1289 = vld [vmem:[%s841 + $0xb4] sm:$0xe]
      %v1338 = vrot.slane %v1274, 5
      %v1339 = vrot.slane %v1338, 4
      %v1340 = vrot.slane %v843, 5
      %v1341 = vsel %vm728, %v1339, %v1340
      %v1342 = vrot.slane %v1340, 4
      %v1343 = vrot.slane %v874, 5
      %v1344 = vsel %vm728, %v1342, %v1343
      %v1345 = vrot.slane %v1275, 5
      %v1346 = vrot.slane %v1345, 4
      %v1347 = vrot.slane %v845, 5
      %v1348 = vsel %vm728, %v1346, %v1347
      %v1349 = vrot.slane %v1347, 4
      %v1350 = vrot.slane %v875, 5
      %v1351 = vsel %vm728, %v1349, %v1350
      %v1352 = vrot.slane %v1276, 5
      %v1353 = vrot.slane %v1352, 4
      %v1354 = vrot.slane %v847, 5
      %v1355 = vsel %vm728, %v1353, %v1354
      %v1356 = vrot.slane %v1354, 4
      %v1357 = vrot.slane %v876, 5
      %v1358 = vsel %vm728, %v1356, %v1357
      %v1359 = vrot.slane %v1277, 5
      %v1360 = vrot.slane %v1359, 4
      %v1361 = vrot.slane %v849, 5
      %v1362 = vsel %vm728, %v1360, %v1361
      %v1363 = vrot.slane %v1361, 4
      %v1364 = vrot.slane %v877, 5
      %v1365 = vsel %vm728, %v1363, %v1364
      %v1366 = vrot.slane %v1278, 5
      %v1367 = vrot.slane %v1366, 4
      %v1368 = vrot.slane %v851, 5
      %v1369 = vsel %vm728, %v1367, %v1368
      %v1370 = vrot.slane %v1368, 4
      %v1371 = vrot.slane %v878, 5
      %v1372 = vsel %vm728, %v1370, %v1371
      %v1373 = vrot.slane %v1279, 5
      %v1374 = vrot.slane %v1373, 4
      %v1375 = vrot.slane %v853, 5
      %v1376 = vsel %vm728, %v1374, %v1375
      %v1377 = vrot.slane %v1375, 4
      %v1378 = vrot.slane %v879, 5
      %v1379 = vsel %vm728, %v1377, %v1378
      %v1380 = vrot.slane %v1280, 5
      %v1381 = vrot.slane %v1380, 4
      %v1382 = vrot.slane %v855, 5
      %v1383 = vsel %vm728, %v1381, %v1382
      %v1384 = vrot.slane %v1382, 4
      %v1385 = vrot.slane %v880, 5
      %v1386 = vsel %vm728, %v1384, %v1385
      %v1387 = vrot.slane %v1281, 5
      %v1388 = vrot.slane %v1387, 4
      %v1389 = vrot.slane %v857, 5
      %v1390 = vsel %vm728, %v1388, %v1389
      %v1391 = vrot.slane %v1389, 4
      %v1392 = vrot.slane %v881, 5
      %v1393 = vsel %vm728, %v1391, %v1392
      %v1394 = vrot.slane %v1282, 5
      %v1395 = vrot.slane %v1394, 4
      %v1396 = vrot.slane %v859, 5
      %v1397 = vsel %vm728, %v1395, %v1396
      %v1398 = vrot.slane %v1396, 4
      %v1399 = vrot.slane %v882, 5
      %v1400 = vsel %vm728, %v1398, %v1399
      %v1401 = vrot.slane %v1283, 5
      %v1402 = vrot.slane %v1401, 4
      %v1403 = vrot.slane %v861, 5
      %v1404 = vsel %vm728, %v1402, %v1403
      %v1405 = vrot.slane %v1403, 4
      %v1406 = vrot.slane %v883, 5
      %v1407 = vsel %vm728, %v1405, %v1406
      %v1408 = vrot.slane %v1284, 5
      %v1409 = vrot.slane %v1408, 4
      %v1410 = vrot.slane %v863, 5
      %v1411 = vsel %vm728, %v1409, %v1410
      %v1412 = vrot.slane %v1410, 4
      %v1413 = vrot.slane %v884, 5
      %v1414 = vsel %vm728, %v1412, %v1413
      %v1415 = vrot.slane %v1285, 5
      %v1416 = vrot.slane %v1415, 4
      %v1417 = vrot.slane %v865, 5
      %v1418 = vsel %vm728, %v1416, %v1417
      %v1419 = vrot.slane %v1417, 4
      %v1420 = vrot.slane %v885, 5
      %v1421 = vsel %vm728, %v1419, %v1420
      %v1422 = vrot.slane %v1286, 5
      %v1423 = vrot.slane %v1422, 4
      %v1424 = vrot.slane %v867, 5
      %v1425 = vsel %vm728, %v1423, %v1424
      %v1426 = vrot.slane %v1424, 4
      %v1427 = vrot.slane %v886, 5
      %v1428 = vsel %vm728, %v1426, %v1427
      %v1429 = vrot.slane %v1287, 5
      %v1430 = vrot.slane %v1429, 4
      %v1431 = vrot.slane %v869, 5
      %v1432 = vsel %vm728, %v1430, %v1431
      %v1433 = vrot.slane %v1431, 4
      %v1434 = vrot.slane %v887, 5
      %v1435 = vsel %vm728, %v1433, %v1434
      %v1436 = vrot.slane %v1288, 5
      %v1437 = vrot.slane %v1436, 4
      %v1438 = vrot.slane %v871, 5
      %v1439 = vsel %vm728, %v1437, %v1438
      %v1440 = vrot.slane %v1438, 4
      %v1441 = vrot.slane %v888, 5
      %v1442 = vsel %vm728, %v1440, %v1441
      %v1443 = vrot.slane %v1289, 5
      %v1444 = vrot.slane %v1443, 4
      %v1445 = vrot.slane %v873, 5
      %v1446 = vsel %vm728, %v1444, %v1445
      %v1447 = vrot.slane %v1445, 4
      %v1448 = vrot.slane %v889, 5
      %v1449 = vsel %vm728, %v1447, %v1448
      %s1450 = scalar_lea.vmem %s207, 24
      %v1451 = vld [vmem:[%s1450] sm:$0xf]
      %v1452 = vld [vmem:[%s1450 + $0x4] sm:$0xf]
      %v1453 = vld [vmem:[%s1450 + $0xc] sm:$0xf]
      %v1454 = vld [vmem:[%s1450 + $0x10] sm:$0xf]
      %v1455 = vld [vmem:[%s1450 + $0x18] sm:$0xf]
      %v1456 = vld [vmem:[%s1450 + $0x1c] sm:$0xf]
      %v1457 = vld [vmem:[%s1450 + $0x24] sm:$0xf]
      %v1458 = vld [vmem:[%s1450 + $0x28] sm:$0xf]
      %v1459 = vld [vmem:[%s1450 + $0x30] sm:$0xf]
      %v1460 = vld [vmem:[%s1450 + $0x34] sm:$0xf]
      %v1461 = vld [vmem:[%s1450 + $0x3c] sm:$0xf]
      %v1462 = vld [vmem:[%s1450 + $0x40] sm:$0xf]
      %v1463 = vld [vmem:[%s1450 + $0x48] sm:$0xf]
      %v1464 = vld [vmem:[%s1450 + $0x4c] sm:$0xf]
      %v1465 = vld [vmem:[%s1450 + $0x54] sm:$0xf]
      %v1466 = vld [vmem:[%s1450 + $0x58] sm:$0xf]
      %v1467 = vld [vmem:[%s1450 + $0x60] sm:$0xf]
      %v1468 = vld [vmem:[%s1450 + $0x64] sm:$0xf]
      %v1469 = vld [vmem:[%s1450 + $0x6c] sm:$0xf]
      %v1470 = vld [vmem:[%s1450 + $0x70] sm:$0xf]
      %v1471 = vld [vmem:[%s1450 + $0x78] sm:$0xf]
      %v1472 = vld [vmem:[%s1450 + $0x7c] sm:$0xf]
      %v1473 = vld [vmem:[%s1450 + $0x84] sm:$0xf]
      %v1474 = vld [vmem:[%s1450 + $0x88] sm:$0xf]
      %v1475 = vld [vmem:[%s1450 + $0x90] sm:$0xf]
      %v1476 = vld [vmem:[%s1450 + $0x94] sm:$0xf]
      %v1477 = vld [vmem:[%s1450 + $0x9c] sm:$0xf]
      %v1478 = vld [vmem:[%s1450 + $0xa0] sm:$0xf]
      %v1479 = vld [vmem:[%s1450 + $0xa8] sm:$0xf]
      %v1480 = vld [vmem:[%s1450 + $0xac] sm:$0xf]
      %v1481 = vld [vmem:[%s1450 + $0xb4] sm:$0xf]
      %v1482 = vld [vmem:[%s1450 + $0xb8] sm:$0xf]
      %v1483 = vld [vmem:[%s1450 + $0x8] sm:$0x1]
      %v1484 = vld [vmem:[%s1450 + $0x14] sm:$0x1]
      %v1485 = vld [vmem:[%s1450 + $0x20] sm:$0x1]
      %v1486 = vld [vmem:[%s1450 + $0x2c] sm:$0x1]
      %v1487 = vld [vmem:[%s1450 + $0x38] sm:$0x1]
      %v1488 = vld [vmem:[%s1450 + $0x44] sm:$0x1]
      %v1489 = vld [vmem:[%s1450 + $0x50] sm:$0x1]
      %v1490 = vld [vmem:[%s1450 + $0x5c] sm:$0x1]
      %v1491 = vld [vmem:[%s1450 + $0x68] sm:$0x1]
      %v1492 = vld [vmem:[%s1450 + $0x74] sm:$0x1]
      %v1493 = vld [vmem:[%s1450 + $0x80] sm:$0x1]
      %v1494 = vld [vmem:[%s1450 + $0x8c] sm:$0x1]
      %v1495 = vld [vmem:[%s1450 + $0x98] sm:$0x1]
      %v1496 = vld [vmem:[%s1450 + $0xa4] sm:$0x1]
      %v1497 = vld [vmem:[%s1450 + $0xb0] sm:$0x1]
      %v1498 = vld [vmem:[%s1450 + $0xbc] sm:$0x1]
      %v1500 = vshrl.u32 %v1451, 16
      %v1502 = vrot.slane %v1500, 4
      %v1503 = vshll.u32 %v1451, 16
      %v1505 = vrot.slane %v1503, 5
      %v1506 = vor.u32 %v1502, %v1505
      %v1507 = vrot.slane %v1506, 4
      %v1509 = vshll.u32 %v1452, 16
      %v1511 = vrot.slane %v1509, 5
      %v1512 = vsel %vm277, %v1507, %v1511
      %v1513 = vshrl.u32 %v1452, 16
      %v1515 = vrot.slane %v1513, 4
      %v1516 = vor.u32 %v1515, %v1511
      %v1517 = vrot.slane %v1516, 4
      %v1519 = vshll.u32 %v1483, 16
      %v1521 = vrot.slane %v1519, 5
      %v1522 = vsel %vm277, %v1517, %v1521
      %v1524 = vshrl.u32 %v1453, 16
      %v1526 = vrot.slane %v1524, 4
      %v1527 = vshll.u32 %v1453, 16
      %v1529 = vrot.slane %v1527, 5
      %v1530 = vor.u32 %v1526, %v1529
      %v1531 = vrot.slane %v1530, 4
      %v1533 = vshll.u32 %v1454, 16
      %v1535 = vrot.slane %v1533, 5
      %v1536 = vsel %vm277, %v1531, %v1535
      %v1537 = vshrl.u32 %v1454, 16
      %v1539 = vrot.slane %v1537, 4
      %v1540 = vor.u32 %v1539, %v1535
      %v1541 = vrot.slane %v1540, 4
      %v1543 = vshll.u32 %v1484, 16
      %v1545 = vrot.slane %v1543, 5
      %v1546 = vsel %vm277, %v1541, %v1545
      %v1548 = vshrl.u32 %v1455, 16
      %v1550 = vrot.slane %v1548, 4
      %v1551 = vshll.u32 %v1455, 16
      %v1553 = vrot.slane %v1551, 5
      %v1554 = vor.u32 %v1550, %v1553
      %v1555 = vrot.slane %v1554, 4
      %v1557 = vshll.u32 %v1456, 16
      %v1559 = vrot.slane %v1557, 5
      %v1560 = vsel %vm277, %v1555, %v1559
      %v1561 = vshrl.u32 %v1456, 16
      %v1563 = vrot.slane %v1561, 4
      %v1564 = vor.u32 %v1563, %v1559
      %v1565 = vrot.slane %v1564, 4
      %v1567 = vshll.u32 %v1485, 16
      %v1569 = vrot.slane %v1567, 5
      %v1570 = vsel %vm277, %v1565, %v1569
      %v1572 = vshrl.u32 %v1457, 16
      %v1574 = vrot.slane %v1572, 4
      %v1575 = vshll.u32 %v1457, 16
      %v1577 = vrot.slane %v1575, 5
      %v1578 = vor.u32 %v1574, %v1577
      %v1579 = vrot.slane %v1578, 4
      %v1581 = vshll.u32 %v1458, 16
      %v1583 = vrot.slane %v1581, 5
      %v1584 = vsel %vm277, %v1579, %v1583
      %v1585 = vshrl.u32 %v1458, 16
      %v1587 = vrot.slane %v1585, 4
      %v1588 = vor.u32 %v1587, %v1583
      %v1589 = vrot.slane %v1588, 4
      %v1591 = vshll.u32 %v1486, 16
      %v1593 = vrot.slane %v1591, 5
      %v1594 = vsel %vm277, %v1589, %v1593
      %v1596 = vshrl.u32 %v1459, 16
      %v1598 = vrot.slane %v1596, 4
      %v1599 = vshll.u32 %v1459, 16
      %v1601 = vrot.slane %v1599, 5
      %v1602 = vor.u32 %v1598, %v1601
      %v1603 = vrot.slane %v1602, 4
      %v1605 = vshll.u32 %v1460, 16
      %v1607 = vrot.slane %v1605, 5
      %v1608 = vsel %vm277, %v1603, %v1607
      %v1609 = vshrl.u32 %v1460, 16
      %v1611 = vrot.slane %v1609, 4
      %v1612 = vor.u32 %v1611, %v1607
      %v1613 = vrot.slane %v1612, 4
      %v1615 = vshll.u32 %v1487, 16
      %v1617 = vrot.slane %v1615, 5
      %v1618 = vsel %vm277, %v1613, %v1617
      %v1620 = vshrl.u32 %v1461, 16
      %v1622 = vrot.slane %v1620, 4
      %v1623 = vshll.u32 %v1461, 16
      %v1625 = vrot.slane %v1623, 5
      %v1626 = vor.u32 %v1622, %v1625
      %v1627 = vrot.slane %v1626, 4
      %v1629 = vshll.u32 %v1462, 16
      %v1631 = vrot.slane %v1629, 5
      %v1632 = vsel %vm277, %v1627, %v1631
      %v1633 = vshrl.u32 %v1462, 16
      %v1635 = vrot.slane %v1633, 4
      %v1636 = vor.u32 %v1635, %v1631
      %v1637 = vrot.slane %v1636, 4
      %v1639 = vshll.u32 %v1488, 16
      %v1641 = vrot.slane %v1639, 5
      %v1642 = vsel %vm277, %v1637, %v1641
      %v1644 = vshrl.u32 %v1463, 16
      %v1646 = vrot.slane %v1644, 4
      %v1647 = vshll.u32 %v1463, 16
      %v1649 = vrot.slane %v1647, 5
      %v1650 = vor.u32 %v1646, %v1649
      %v1651 = vrot.slane %v1650, 4
      %v1653 = vshll.u32 %v1464, 16
      %v1655 = vrot.slane %v1653, 5
      %v1656 = vsel %vm277, %v1651, %v1655
      %v1657 = vshrl.u32 %v1464, 16
      %v1659 = vrot.slane %v1657, 4
      %v1660 = vor.u32 %v1659, %v1655
      %v1661 = vrot.slane %v1660, 4
      %v1663 = vshll.u32 %v1489, 16
      %v1665 = vrot.slane %v1663, 5
      %v1666 = vsel %vm277, %v1661, %v1665
      %v1668 = vshrl.u32 %v1465, 16
      %v1670 = vrot.slane %v1668, 4
      %v1671 = vshll.u32 %v1465, 16
      %v1673 = vrot.slane %v1671, 5
      %v1674 = vor.u32 %v1670, %v1673
      %v1675 = vrot.slane %v1674, 4
      %v1677 = vshll.u32 %v1466, 16
      %v1679 = vrot.slane %v1677, 5
      %v1680 = vsel %vm277, %v1675, %v1679
      %v1681 = vshrl.u32 %v1466, 16
      %v1683 = vrot.slane %v1681, 4
      %v1684 = vor.u32 %v1683, %v1679
      %v1685 = vrot.slane %v1684, 4
      %v1687 = vshll.u32 %v1490, 16
      %v1689 = vrot.slane %v1687, 5
      %v1690 = vsel %vm277, %v1685, %v1689
      %v1692 = vshrl.u32 %v1467, 16
      %v1694 = vrot.slane %v1692, 4
      %v1695 = vshll.u32 %v1467, 16
      %v1697 = vrot.slane %v1695, 5
      %v1698 = vor.u32 %v1694, %v1697
      %v1699 = vrot.slane %v1698, 4
      %v1701 = vshll.u32 %v1468, 16
      %v1703 = vrot.slane %v1701, 5
      %v1704 = vsel %vm277, %v1699, %v1703
      %v1705 = vshrl.u32 %v1468, 16
      %v1707 = vrot.slane %v1705, 4
      %v1708 = vor.u32 %v1707, %v1703
      %v1709 = vrot.slane %v1708, 4
      %v1711 = vshll.u32 %v1491, 16
      %v1713 = vrot.slane %v1711, 5
      %v1714 = vsel %vm277, %v1709, %v1713
      %v1716 = vshrl.u32 %v1469, 16
      %v1718 = vrot.slane %v1716, 4
      %v1719 = vshll.u32 %v1469, 16
      %v1721 = vrot.slane %v1719, 5
      %v1722 = vor.u32 %v1718, %v1721
      %v1723 = vrot.slane %v1722, 4
      %v1725 = vshll.u32 %v1470, 16
      %v1727 = vrot.slane %v1725, 5
      %v1728 = vsel %vm277, %v1723, %v1727
      %v1729 = vshrl.u32 %v1470, 16
      %v1731 = vrot.slane %v1729, 4
      %v1732 = vor.u32 %v1731, %v1727
      %v1733 = vrot.slane %v1732, 4
      %v1735 = vshll.u32 %v1492, 16
      %v1737 = vrot.slane %v1735, 5
      %v1738 = vsel %vm277, %v1733, %v1737
      %v1740 = vshrl.u32 %v1471, 16
      %v1742 = vrot.slane %v1740, 4
      %v1743 = vshll.u32 %v1471, 16
      %v1745 = vrot.slane %v1743, 5
      %v1746 = vor.u32 %v1742, %v1745
      %v1747 = vrot.slane %v1746, 4
      %v1749 = vshll.u32 %v1472, 16
      %v1751 = vrot.slane %v1749, 5
      %v1752 = vsel %vm277, %v1747, %v1751
      %v1753 = vshrl.u32 %v1472, 16
      %v1755 = vrot.slane %v1753, 4
      %v1756 = vor.u32 %v1755, %v1751
      %v1757 = vrot.slane %v1756, 4
      %v1759 = vshll.u32 %v1493, 16
      %v1761 = vrot.slane %v1759, 5
      %v1762 = vsel %vm277, %v1757, %v1761
      %v1764 = vshrl.u32 %v1473, 16
      %v1766 = vrot.slane %v1764, 4
      %v1767 = vshll.u32 %v1473, 16
      %v1769 = vrot.slane %v1767, 5
      %v1770 = vor.u32 %v1766, %v1769
      %v1771 = vrot.slane %v1770, 4
      %v1773 = vshll.u32 %v1474, 16
      %v1775 = vrot.slane %v1773, 5
      %v1776 = vsel %vm277, %v1771, %v1775
      %v1777 = vshrl.u32 %v1474, 16
      %v1779 = vrot.slane %v1777, 4
      %v1780 = vor.u32 %v1779, %v1775
      %v1781 = vrot.slane %v1780, 4
      %v1783 = vshll.u32 %v1494, 16
      %v1785 = vrot.slane %v1783, 5
      %v1786 = vsel %vm277, %v1781, %v1785
      %v1788 = vshrl.u32 %v1475, 16
      %v1790 = vrot.slane %v1788, 4
      %v1791 = vshll.u32 %v1475, 16
      %v1793 = vrot.slane %v1791, 5
      %v1794 = vor.u32 %v1790, %v1793
      %v1795 = vrot.slane %v1794, 4
      %v1797 = vshll.u32 %v1476, 16
      %v1799 = vrot.slane %v1797, 5
      %v1800 = vsel %vm277, %v1795, %v1799
      %v1801 = vshrl.u32 %v1476, 16
      %v1803 = vrot.slane %v1801, 4
      %v1804 = vor.u32 %v1803, %v1799
      %v1805 = vrot.slane %v1804, 4
      %v1807 = vshll.u32 %v1495, 16
      %v1809 = vrot.slane %v1807, 5
      %v1810 = vsel %vm277, %v1805, %v1809
      %v1812 = vshrl.u32 %v1477, 16
      %v1814 = vrot.slane %v1812, 4
      %v1815 = vshll.u32 %v1477, 16
      %v1817 = vrot.slane %v1815, 5
      %v1818 = vor.u32 %v1814, %v1817
      %v1819 = vrot.slane %v1818, 4
      %v1821 = vshll.u32 %v1478, 16
      %v1823 = vrot.slane %v1821, 5
      %v1824 = vsel %vm277, %v1819, %v1823
      %v1825 = vshrl.u32 %v1478, 16
      %v1827 = vrot.slane %v1825, 4
      %v1828 = vor.u32 %v1827, %v1823
      %v1829 = vrot.slane %v1828, 4
      %v1831 = vshll.u32 %v1496, 16
      %v1833 = vrot.slane %v1831, 5
      %v1834 = vsel %vm277, %v1829, %v1833
      %v1836 = vshrl.u32 %v1479, 16
      %v1838 = vrot.slane %v1836, 4
      %v1839 = vshll.u32 %v1479, 16
      %v1841 = vrot.slane %v1839, 5
      %v1842 = vor.u32 %v1838, %v1841
      %v1843 = vrot.slane %v1842, 4
      %v1845 = vshll.u32 %v1480, 16
      %v1847 = vrot.slane %v1845, 5
      %v1848 = vsel %vm277, %v1843, %v1847
      %v1849 = vshrl.u32 %v1480, 16
      %v1851 = vrot.slane %v1849, 4
      %v1852 = vor.u32 %v1851, %v1847
      %v1853 = vrot.slane %v1852, 4
      %v1855 = vshll.u32 %v1497, 16
      %v1857 = vrot.slane %v1855, 5
      %v1858 = vsel %vm277, %v1853, %v1857
      %v1860 = vshrl.u32 %v1481, 16
      %v1862 = vrot.slane %v1860, 4
      %v1863 = vshll.u32 %v1481, 16
      %v1865 = vrot.slane %v1863, 5
      %v1866 = vor.u32 %v1862, %v1865
      %v1867 = vrot.slane %v1866, 4
      %v1869 = vshll.u32 %v1482, 16
      %v1871 = vrot.slane %v1869, 5
      %v1872 = vsel %vm277, %v1867, %v1871
      %v1873 = vshrl.u32 %v1482, 16
      %v1875 = vrot.slane %v1873, 4
      %v1876 = vor.u32 %v1875, %v1871
      %v1877 = vrot.slane %v1876, 4
      %v1879 = vshll.u32 %v1498, 16
      %v1881 = vrot.slane %v1879, 5
      %v1882 = vsel %vm277, %v1877, %v1881
      %v1883 = vld [vmem:[%s1450] sm:$0xe]
      %v1884 = vld [vmem:[%s1450 + $0xc] sm:$0xe]
      %v1885 = vld [vmem:[%s1450 + $0x18] sm:$0xe]
      %v1886 = vld [vmem:[%s1450 + $0x24] sm:$0xe]
      %v1887 = vld [vmem:[%s1450 + $0x30] sm:$0xe]
      %v1888 = vld [vmem:[%s1450 + $0x3c] sm:$0xe]
      %v1889 = vld [vmem:[%s1450 + $0x48] sm:$0xe]
      %v1890 = vld [vmem:[%s1450 + $0x54] sm:$0xe]
      %v1891 = vld [vmem:[%s1450 + $0x60] sm:$0xe]
      %v1892 = vld [vmem:[%s1450 + $0x6c] sm:$0xe]
      %v1893 = vld [vmem:[%s1450 + $0x78] sm:$0xe]
      %v1894 = vld [vmem:[%s1450 + $0x84] sm:$0xe]
      %v1895 = vld [vmem:[%s1450 + $0x90] sm:$0xe]
      %v1896 = vld [vmem:[%s1450 + $0x9c] sm:$0xe]
      %v1897 = vld [vmem:[%s1450 + $0xa8] sm:$0xe]
      %v1898 = vld [vmem:[%s1450 + $0xb4] sm:$0xe]
      %v1947 = vrot.slane %v1883, 5
      %v1948 = vrot.slane %v1947, 4
      %v1949 = vrot.slane %v1452, 5
      %v1950 = vsel %vm728, %v1948, %v1949
      %v1951 = vrot.slane %v1949, 4
      %v1952 = vrot.slane %v1483, 5
      %v1953 = vsel %vm728, %v1951, %v1952
      %v1954 = vrot.slane %v1884, 5
      %v1955 = vrot.slane %v1954, 4
      %v1956 = vrot.slane %v1454, 5
      %v1957 = vsel %vm728, %v1955, %v1956
      %v1958 = vrot.slane %v1956, 4
      %v1959 = vrot.slane %v1484, 5
      %v1960 = vsel %vm728, %v1958, %v1959
      %v1961 = vrot.slane %v1885, 5
      %v1962 = vrot.slane %v1961, 4
      %v1963 = vrot.slane %v1456, 5
      %v1964 = vsel %vm728, %v1962, %v1963
      %v1965 = vrot.slane %v1963, 4
      %v1966 = vrot.slane %v1485, 5
      %v1967 = vsel %vm728, %v1965, %v1966
      %v1968 = vrot.slane %v1886, 5
      %v1969 = vrot.slane %v1968, 4
      %v1970 = vrot.slane %v1458, 5
      %v1971 = vsel %vm728, %v1969, %v1970
      %v1972 = vrot.slane %v1970, 4
      %v1973 = vrot.slane %v1486, 5
      %v1974 = vsel %vm728, %v1972, %v1973
      %v1975 = vrot.slane %v1887, 5
      %v1976 = vrot.slane %v1975, 4
      %v1977 = vrot.slane %v1460, 5
      %v1978 = vsel %vm728, %v1976, %v1977
      %v1979 = vrot.slane %v1977, 4
      %v1980 = vrot.slane %v1487, 5
      %v1981 = vsel %vm728, %v1979, %v1980
      %v1982 = vrot.slane %v1888, 5
      %v1983 = vrot.slane %v1982, 4
      %v1984 = vrot.slane %v1462, 5
      %v1985 = vsel %vm728, %v1983, %v1984
      %v1986 = vrot.slane %v1984, 4
      %v1987 = vrot.slane %v1488, 5
      %v1988 = vsel %vm728, %v1986, %v1987
      %v1989 = vrot.slane %v1889, 5
      %v1990 = vrot.slane %v1989, 4
      %v1991 = vrot.slane %v1464, 5
      %v1992 = vsel %vm728, %v1990, %v1991
      %v1993 = vrot.slane %v1991, 4
      %v1994 = vrot.slane %v1489, 5
      %v1995 = vsel %vm728, %v1993, %v1994
      %v1996 = vrot.slane %v1890, 5
      %v1997 = vrot.slane %v1996, 4
      %v1998 = vrot.slane %v1466, 5
      %v1999 = vsel %vm728, %v1997, %v1998
      %v2000 = vrot.slane %v1998, 4
      %v2001 = vrot.slane %v1490, 5
      %v2002 = vsel %vm728, %v2000, %v2001
      %v2003 = vrot.slane %v1891, 5
      %v2004 = vrot.slane %v2003, 4
      %v2005 = vrot.slane %v1468, 5
      %v2006 = vsel %vm728, %v2004, %v2005
      %v2007 = vrot.slane %v2005, 4
      %v2008 = vrot.slane %v1491, 5
      %v2009 = vsel %vm728, %v2007, %v2008
      %v2010 = vrot.slane %v1892, 5
      %v2011 = vrot.slane %v2010, 4
      %v2012 = vrot.slane %v1470, 5
      %v2013 = vsel %vm728, %v2011, %v2012
      %v2014 = vrot.slane %v2012, 4
      %v2015 = vrot.slane %v1492, 5
      %v2016 = vsel %vm728, %v2014, %v2015
      %v2017 = vrot.slane %v1893, 5
      %v2018 = vrot.slane %v2017, 4
      %v2019 = vrot.slane %v1472, 5
      %v2020 = vsel %vm728, %v2018, %v2019
      %v2021 = vrot.slane %v2019, 4
      %v2022 = vrot.slane %v1493, 5
      %v2023 = vsel %vm728, %v2021, %v2022
      %v2024 = vrot.slane %v1894, 5
      %v2025 = vrot.slane %v2024, 4
      %v2026 = vrot.slane %v1474, 5
      %v2027 = vsel %vm728, %v2025, %v2026
      %v2028 = vrot.slane %v2026, 4
      %v2029 = vrot.slane %v1494, 5
      %v2030 = vsel %vm728, %v2028, %v2029
      %v2031 = vrot.slane %v1895, 5
      %v2032 = vrot.slane %v2031, 4
      %v2033 = vrot.slane %v1476, 5
      %v2034 = vsel %vm728, %v2032, %v2033
      %v2035 = vrot.slane %v2033, 4
      %v2036 = vrot.slane %v1495, 5
      %v2037 = vsel %vm728, %v2035, %v2036
      %v2038 = vrot.slane %v1896, 5
      %v2039 = vrot.slane %v2038, 4
      %v2040 = vrot.slane %v1478, 5
      %v2041 = vsel %vm728, %v2039, %v2040
      %v2042 = vrot.slane %v2040, 4
      %v2043 = vrot.slane %v1496, 5
      %v2044 = vsel %vm728, %v2042, %v2043
      %v2045 = vrot.slane %v1897, 5
      %v2046 = vrot.slane %v2045, 4
      %v2047 = vrot.slane %v1480, 5
      %v2048 = vsel %vm728, %v2046, %v2047
      %v2049 = vrot.slane %v2047, 4
      %v2050 = vrot.slane %v1497, 5
      %v2051 = vsel %vm728, %v2049, %v2050
      %v2052 = vrot.slane %v1898, 5
      %v2053 = vrot.slane %v2052, 4
      %v2054 = vrot.slane %v1482, 5
      %v2055 = vsel %vm728, %v2053, %v2054
      %v2056 = vrot.slane %v2054, 4
      %v2057 = vrot.slane %v1498, 5
      %v2058 = vsel %vm728, %v2056, %v2057
      %v2075 = vunpack.c.l.b16 %v227
      %v2076 = vunpack.c.l.b16 %v228
      %v2077 = vunpack.c.l.b16 %v229
      %v2078 = vunpack.c.l.b16 %v230
      %v2079 = vunpack.c.l.b16 %v231
      %v2080 = vunpack.c.l.b16 %v232
      %v2081 = vunpack.c.l.b16 %v233
      %v2082 = vunpack.c.l.b16 %v234
      %v2083 = vunpack.c.l.b16 %v235
      %v2084 = vunpack.c.l.b16 %v236
      %v2085 = vunpack.c.l.b16 %v237
      %v2086 = vunpack.c.l.b16 %v238
      %v2087 = vunpack.c.l.b16 %v239
      %v2088 = vunpack.c.l.b16 %v240
      %v2089 = vunpack.c.l.b16 %v241
      %v2090 = vunpack.c.l.b16 %v242
      %v2091 = vunpack.c.l.b16 %v243
      %v2092 = vunpack.c.l.b16 %v244
      %v2093 = vunpack.c.l.b16 %v245
      %v2094 = vunpack.c.l.b16 %v246
      %v2095 = vunpack.c.l.b16 %v247
      %v2096 = vunpack.c.l.b16 %v248
      %v2097 = vunpack.c.l.b16 %v249
      %v2098 = vunpack.c.l.b16 %v250
      %v2099 = vunpack.c.l.b16 %v251
      %v2100 = vunpack.c.l.b16 %v252
      %v2101 = vunpack.c.l.b16 %v253
      %v2102 = vunpack.c.l.b16 %v254
      %v2103 = vunpack.c.l.b16 %v255
      %v2104 = vunpack.c.l.b16 %v256
      %v2105 = vunpack.c.l.b16 %v257
      %v2106 = vunpack.c.l.b16 %v258
      %v2107 = vpack.c.b16 %v2076, %v2075
      %v2108 = vpack.c.b16 %v2078, %v2077
      %v2109 = vpack.c.b16 %v2080, %v2079
      %v2110 = vpack.c.b16 %v2082, %v2081
      %v2111 = vpack.c.b16 %v2084, %v2083
      %v2112 = vpack.c.b16 %v2086, %v2085
      %v2113 = vpack.c.b16 %v2088, %v2087
      %v2114 = vpack.c.b16 %v2090, %v2089
      %v2115 = vpack.c.b16 %v2092, %v2091
      %v2116 = vpack.c.b16 %v2094, %v2093
      %v2117 = vpack.c.b16 %v2096, %v2095
      %v2118 = vpack.c.b16 %v2098, %v2097
      %v2119 = vpack.c.b16 %v2100, %v2099
      %v2120 = vpack.c.b16 %v2102, %v2101
      %v2121 = vpack.c.b16 %v2104, %v2103
      %v2122 = vpack.c.b16 %v2106, %v2105
      %v2139 = vunpack.c.l.b16 %v291
      %v2140 = vunpack.c.l.b16 %v301
      %v2141 = vunpack.c.l.b16 %v315
      %v2142 = vunpack.c.l.b16 %v325
      %v2143 = vunpack.c.l.b16 %v339
      %v2144 = vunpack.c.l.b16 %v349
      %v2145 = vunpack.c.l.b16 %v363
      %v2146 = vunpack.c.l.b16 %v373
      %v2147 = vunpack.c.l.b16 %v387
      %v2148 = vunpack.c.l.b16 %v397
      %v2149 = vunpack.c.l.b16 %v411
      %v2150 = vunpack.c.l.b16 %v421
      %v2151 = vunpack.c.l.b16 %v435
      %v2152 = vunpack.c.l.b16 %v445
      %v2153 = vunpack.c.l.b16 %v459
      %v2154 = vunpack.c.l.b16 %v469
      %v2155 = vunpack.c.l.b16 %v483
      %v2156 = vunpack.c.l.b16 %v493
      %v2157 = vunpack.c.l.b16 %v507
      %v2158 = vunpack.c.l.b16 %v517
      %v2159 = vunpack.c.l.b16 %v531
      %v2160 = vunpack.c.l.b16 %v541
      %v2161 = vunpack.c.l.b16 %v555
      %v2162 = vunpack.c.l.b16 %v565
      %v2163 = vunpack.c.l.b16 %v579
      %v2164 = vunpack.c.l.b16 %v589
      %v2165 = vunpack.c.l.b16 %v603
      %v2166 = vunpack.c.l.b16 %v613
      %v2167 = vunpack.c.l.b16 %v627
      %v2168 = vunpack.c.l.b16 %v637
      %v2169 = vunpack.c.l.b16 %v651
      %v2170 = vunpack.c.l.b16 %v661
      %v2171 = vpack.c.b16 %v2140, %v2139
      %v2172 = vpack.c.b16 %v2142, %v2141
      %v2173 = vpack.c.b16 %v2144, %v2143
      %v2174 = vpack.c.b16 %v2146, %v2145
      %v2175 = vpack.c.b16 %v2148, %v2147
      %v2176 = vpack.c.b16 %v2150, %v2149
      %v2177 = vpack.c.b16 %v2152, %v2151
      %v2178 = vpack.c.b16 %v2154, %v2153
      %v2179 = vpack.c.b16 %v2156, %v2155
      %v2180 = vpack.c.b16 %v2158, %v2157
      %v2181 = vpack.c.b16 %v2160, %v2159
      %v2182 = vpack.c.b16 %v2162, %v2161
      %v2183 = vpack.c.b16 %v2164, %v2163
      %v2184 = vpack.c.b16 %v2166, %v2165
      %v2185 = vpack.c.b16 %v2168, %v2167
      %v2186 = vpack.c.b16 %v2170, %v2169
      %v2203 = vunpack.c.l.b16 %v732
      %v2204 = vunpack.c.l.b16 %v735
      %v2205 = vunpack.c.l.b16 %v739
      %v2206 = vunpack.c.l.b16 %v742
      %v2207 = vunpack.c.l.b16 %v746
      %v2208 = vunpack.c.l.b16 %v749
      %v2209 = vunpack.c.l.b16 %v753
      %v2210 = vunpack.c.l.b16 %v756
      %v2211 = vunpack.c.l.b16 %v760
      %v2212 = vunpack.c.l.b16 %v763
      %v2213 = vunpack.c.l.b16 %v767
      %v2214 = vunpack.c.l.b16 %v770
      %v2215 = vunpack.c.l.b16 %v774
      %v2216 = vunpack.c.l.b16 %v777
      %v2217 = vunpack.c.l.b16 %v781
      %v2218 = vunpack.c.l.b16 %v784
      %v2219 = vunpack.c.l.b16 %v788
      %v2220 = vunpack.c.l.b16 %v791
      %v2221 = vunpack.c.l.b16 %v795
      %v2222 = vunpack.c.l.b16 %v798
      %v2223 = vunpack.c.l.b16 %v802
      %v2224 = vunpack.c.l.b16 %v805
      %v2225 = vunpack.c.l.b16 %v809
      %v2226 = vunpack.c.l.b16 %v812
      %v2227 = vunpack.c.l.b16 %v816
      %v2228 = vunpack.c.l.b16 %v819
      %v2229 = vunpack.c.l.b16 %v823
      %v2230 = vunpack.c.l.b16 %v826
      %v2231 = vunpack.c.l.b16 %v830
      %v2232 = vunpack.c.l.b16 %v833
      %v2233 = vunpack.c.l.b16 %v837
      %v2234 = vunpack.c.l.b16 %v840
      %v2235 = vpack.c.b16 %v2204, %v2203
      %v2236 = vpack.c.b16 %v2206, %v2205
      %v2237 = vpack.c.b16 %v2208, %v2207
      %v2238 = vpack.c.b16 %v2210, %v2209
      %v2239 = vpack.c.b16 %v2212, %v2211
      %v2240 = vpack.c.b16 %v2214, %v2213
      %v2241 = vpack.c.b16 %v2216, %v2215
      %v2242 = vpack.c.b16 %v2218, %v2217
      %v2243 = vpack.c.b16 %v2220, %v2219
      %v2244 = vpack.c.b16 %v2222, %v2221
      %v2245 = vpack.c.b16 %v2224, %v2223
      %v2246 = vpack.c.b16 %v2226, %v2225
      %v2247 = vpack.c.b16 %v2228, %v2227
      %v2248 = vpack.c.b16 %v2230, %v2229
      %v2249 = vpack.c.b16 %v2232, %v2231
      %v2250 = vpack.c.b16 %v2234, %v2233
      %v2283 = vunpack.c.l.b16 %v842
      %v2284 = vunpack.c.l.b16 %v843
      %v2285 = vunpack.c.l.b16 %v844
      %v2286 = vunpack.c.l.b16 %v845
      %v2287 = vunpack.c.l.b16 %v846
      %v2288 = vunpack.c.l.b16 %v847
      %v2289 = vunpack.c.l.b16 %v848
      %v2290 = vunpack.c.l.b16 %v849
      %v2291 = vunpack.c.l.b16 %v850
      %v2292 = vunpack.c.l.b16 %v851
      %v2293 = vunpack.c.l.b16 %v852
      %v2294 = vunpack.c.l.b16 %v853
      %v2295 = vunpack.c.l.b16 %v854
      %v2296 = vunpack.c.l.b16 %v855
      %v2297 = vunpack.c.l.b16 %v856
      %v2298 = vunpack.c.l.b16 %v857
      %v2299 = vunpack.c.l.b16 %v858
      %v2300 = vunpack.c.l.b16 %v859
      %v2301 = vunpack.c.l.b16 %v860
      %v2302 = vunpack.c.l.b16 %v861
      %v2303 = vunpack.c.l.b16 %v862
      %v2304 = vunpack.c.l.b16 %v863
      %v2305 = vunpack.c.l.b16 %v864
      %v2306 = vunpack.c.l.b16 %v865
      %v2307 = vunpack.c.l.b16 %v866
      %v2308 = vunpack.c.l.b16 %v867
      %v2309 = vunpack.c.l.b16 %v868
      %v2310 = vunpack.c.l.b16 %v869
      %v2311 = vunpack.c.l.b16 %v870
      %v2312 = vunpack.c.l.b16 %v871
      %v2313 = vunpack.c.l.b16 %v872
      %v2314 = vunpack.c.l.b16 %v873
      %v2315 = vpack.c.b16 %v2284, %v2283
      %v2316 = vpack.c.b16 %v2286, %v2285
      %v2317 = vpack.c.b16 %v2288, %v2287
      %v2318 = vpack.c.b16 %v2290, %v2289
      %v2319 = vpack.c.b16 %v2292, %v2291
      %v2320 = vpack.c.b16 %v2294, %v2293
      %v2321 = vpack.c.b16 %v2296, %v2295
      %v2322 = vpack.c.b16 %v2298, %v2297
      %v2323 = vpack.c.b16 %v2300, %v2299
      %v2324 = vpack.c.b16 %v2302, %v2301
      %v2325 = vpack.c.b16 %v2304, %v2303
      %v2326 = vpack.c.b16 %v2306, %v2305
      %v2327 = vpack.c.b16 %v2308, %v2307
      %v2328 = vpack.c.b16 %v2310, %v2309
      %v2329 = vpack.c.b16 %v2312, %v2311
      %v2330 = vpack.c.b16 %v2314, %v2313
      %v2347 = vunpack.c.l.b16 %v903
      %v2348 = vunpack.c.l.b16 %v913
      %v2349 = vunpack.c.l.b16 %v927
      %v2350 = vunpack.c.l.b16 %v937
      %v2351 = vunpack.c.l.b16 %v951
      %v2352 = vunpack.c.l.b16 %v961
      %v2353 = vunpack.c.l.b16 %v975
      %v2354 = vunpack.c.l.b16 %v985
      %v2355 = vunpack.c.l.b16 %v999
      %v2356 = vunpack.c.l.b16 %v1009
      %v2357 = vunpack.c.l.b16 %v1023
      %v2358 = vunpack.c.l.b16 %v1033
      %v2359 = vunpack.c.l.b16 %v1047
      %v2360 = vunpack.c.l.b16 %v1057
      %v2361 = vunpack.c.l.b16 %v1071
      %v2362 = vunpack.c.l.b16 %v1081
      %v2363 = vunpack.c.l.b16 %v1095
      %v2364 = vunpack.c.l.b16 %v1105
      %v2365 = vunpack.c.l.b16 %v1119
      %v2366 = vunpack.c.l.b16 %v1129
      %v2367 = vunpack.c.l.b16 %v1143
      %v2368 = vunpack.c.l.b16 %v1153
      %v2369 = vunpack.c.l.b16 %v1167
      %v2370 = vunpack.c.l.b16 %v1177
      %v2371 = vunpack.c.l.b16 %v1191
      %v2372 = vunpack.c.l.b16 %v1201
      %v2373 = vunpack.c.l.b16 %v1215
      %v2374 = vunpack.c.l.b16 %v1225
      %v2375 = vunpack.c.l.b16 %v1239
      %v2376 = vunpack.c.l.b16 %v1249
      %v2377 = vunpack.c.l.b16 %v1263
      %v2378 = vunpack.c.l.b16 %v1273
      %v2379 = vpack.c.b16 %v2348, %v2347
      %v2380 = vpack.c.b16 %v2350, %v2349
      %v2381 = vpack.c.b16 %v2352, %v2351
      %v2382 = vpack.c.b16 %v2354, %v2353
      %v2383 = vpack.c.b16 %v2356, %v2355
      %v2384 = vpack.c.b16 %v2358, %v2357
      %v2385 = vpack.c.b16 %v2360, %v2359
      %v2386 = vpack.c.b16 %v2362, %v2361
      %v2387 = vpack.c.b16 %v2364, %v2363
      %v2388 = vpack.c.b16 %v2366, %v2365
      %v2389 = vpack.c.b16 %v2368, %v2367
      %v2390 = vpack.c.b16 %v2370, %v2369
      %v2391 = vpack.c.b16 %v2372, %v2371
      %v2392 = vpack.c.b16 %v2374, %v2373
      %v2393 = vpack.c.b16 %v2376, %v2375
      %v2394 = vpack.c.b16 %v2378, %v2377
      %v2411 = vunpack.c.l.b16 %v1341
      %v2412 = vunpack.c.l.b16 %v1344
      %v2413 = vunpack.c.l.b16 %v1348
      %v2414 = vunpack.c.l.b16 %v1351
      %v2415 = vunpack.c.l.b16 %v1355
      %v2416 = vunpack.c.l.b16 %v1358
      %v2417 = vunpack.c.l.b16 %v1362
      %v2418 = vunpack.c.l.b16 %v1365
      %v2419 = vunpack.c.l.b16 %v1369
      %v2420 = vunpack.c.l.b16 %v1372
      %v2421 = vunpack.c.l.b16 %v1376
      %v2422 = vunpack.c.l.b16 %v1379
      %v2423 = vunpack.c.l.b16 %v1383
      %v2424 = vunpack.c.l.b16 %v1386
      %v2425 = vunpack.c.l.b16 %v1390
      %v2426 = vunpack.c.l.b16 %v1393
      %v2427 = vunpack.c.l.b16 %v1397
      %v2428 = vunpack.c.l.b16 %v1400
      %v2429 = vunpack.c.l.b16 %v1404
      %v2430 = vunpack.c.l.b16 %v1407
      %v2431 = vunpack.c.l.b16 %v1411
      %v2432 = vunpack.c.l.b16 %v1414
      %v2433 = vunpack.c.l.b16 %v1418
      %v2434 = vunpack.c.l.b16 %v1421
      %v2435 = vunpack.c.l.b16 %v1425
      %v2436 = vunpack.c.l.b16 %v1428
      %v2437 = vunpack.c.l.b16 %v1432
      %v2438 = vunpack.c.l.b16 %v1435
      %v2439 = vunpack.c.l.b16 %v1439
      %v2440 = vunpack.c.l.b16 %v1442
      %v2441 = vunpack.c.l.b16 %v1446
      %v2442 = vunpack.c.l.b16 %v1449
      %v2443 = vpack.c.b16 %v2412, %v2411
      %v2444 = vpack.c.b16 %v2414, %v2413
      %v2445 = vpack.c.b16 %v2416, %v2415
      %v2446 = vpack.c.b16 %v2418, %v2417
      %v2447 = vpack.c.b16 %v2420, %v2419
      %v2448 = vpack.c.b16 %v2422, %v2421
      %v2449 = vpack.c.b16 %v2424, %v2423
      %v2450 = vpack.c.b16 %v2426, %v2425
      %v2451 = vpack.c.b16 %v2428, %v2427
      %v2452 = vpack.c.b16 %v2430, %v2429
      %v2453 = vpack.c.b16 %v2432, %v2431
      %v2454 = vpack.c.b16 %v2434, %v2433
      %v2455 = vpack.c.b16 %v2436, %v2435
      %v2456 = vpack.c.b16 %v2438, %v2437
      %v2457 = vpack.c.b16 %v2440, %v2439
      %v2458 = vpack.c.b16 %v2442, %v2441
      %v2491 = vunpack.c.l.b16 %v1451
      %v2492 = vunpack.c.l.b16 %v1452
      %v2493 = vunpack.c.l.b16 %v1453
      %v2494 = vunpack.c.l.b16 %v1454
      %v2495 = vunpack.c.l.b16 %v1455
      %v2496 = vunpack.c.l.b16 %v1456
      %v2497 = vunpack.c.l.b16 %v1457
      %v2498 = vunpack.c.l.b16 %v1458
      %v2499 = vunpack.c.l.b16 %v1459
      %v2500 = vunpack.c.l.b16 %v1460
      %v2501 = vunpack.c.l.b16 %v1461
      %v2502 = vunpack.c.l.b16 %v1462
      %v2503 = vunpack.c.l.b16 %v1463
      %v2504 = vunpack.c.l.b16 %v1464
      %v2505 = vunpack.c.l.b16 %v1465
      %v2506 = vunpack.c.l.b16 %v1466
      %v2507 = vunpack.c.l.b16 %v1467
      %v2508 = vunpack.c.l.b16 %v1468
      %v2509 = vunpack.c.l.b16 %v1469
      %v2510 = vunpack.c.l.b16 %v1470
      %v2511 = vunpack.c.l.b16 %v1471
      %v2512 = vunpack.c.l.b16 %v1472
      %v2513 = vunpack.c.l.b16 %v1473
      %v2514 = vunpack.c.l.b16 %v1474
      %v2515 = vunpack.c.l.b16 %v1475
      %v2516 = vunpack.c.l.b16 %v1476
      %v2517 = vunpack.c.l.b16 %v1477
      %v2518 = vunpack.c.l.b16 %v1478
      %v2519 = vunpack.c.l.b16 %v1479
      %v2520 = vunpack.c.l.b16 %v1480
      %v2521 = vunpack.c.l.b16 %v1481
      %v2522 = vunpack.c.l.b16 %v1482
      %v2523 = vpack.c.b16 %v2492, %v2491
      %v2524 = vpack.c.b16 %v2494, %v2493
      %v2525 = vpack.c.b16 %v2496, %v2495
      %v2526 = vpack.c.b16 %v2498, %v2497
      %v2527 = vpack.c.b16 %v2500, %v2499
      %v2528 = vpack.c.b16 %v2502, %v2501
      %v2529 = vpack.c.b16 %v2504, %v2503
      %v2530 = vpack.c.b16 %v2506, %v2505
      %v2531 = vpack.c.b16 %v2508, %v2507
      %v2532 = vpack.c.b16 %v2510, %v2509
      %v2533 = vpack.c.b16 %v2512, %v2511
      %v2534 = vpack.c.b16 %v2514, %v2513
      %v2535 = vpack.c.b16 %v2516, %v2515
      %v2536 = vpack.c.b16 %v2518, %v2517
      %v2537 = vpack.c.b16 %v2520, %v2519
      %v2538 = vpack.c.b16 %v2522, %v2521
      %v2555 = vunpack.c.l.b16 %v1512
      %v2556 = vunpack.c.l.b16 %v1522
      %v2557 = vunpack.c.l.b16 %v1536
      %v2558 = vunpack.c.l.b16 %v1546
      %v2559 = vunpack.c.l.b16 %v1560
      %v2560 = vunpack.c.l.b16 %v1570
      %v2561 = vunpack.c.l.b16 %v1584
      %v2562 = vunpack.c.l.b16 %v1594
      %v2563 = vunpack.c.l.b16 %v1608
      %v2564 = vunpack.c.l.b16 %v1618
      %v2565 = vunpack.c.l.b16 %v1632
      %v2566 = vunpack.c.l.b16 %v1642
      %v2567 = vunpack.c.l.b16 %v1656
      %v2568 = vunpack.c.l.b16 %v1666
      %v2569 = vunpack.c.l.b16 %v1680
      %v2570 = vunpack.c.l.b16 %v1690
      %v2571 = vunpack.c.l.b16 %v1704
      %v2572 = vunpack.c.l.b16 %v1714
      %v2573 = vunpack.c.l.b16 %v1728
      %v2574 = vunpack.c.l.b16 %v1738
      %v2575 = vunpack.c.l.b16 %v1752
      %v2576 = vunpack.c.l.b16 %v1762
      %v2577 = vunpack.c.l.b16 %v1776
      %v2578 = vunpack.c.l.b16 %v1786
      %v2579 = vunpack.c.l.b16 %v1800
      %v2580 = vunpack.c.l.b16 %v1810
      %v2581 = vunpack.c.l.b16 %v1824
      %v2582 = vunpack.c.l.b16 %v1834
      %v2583 = vunpack.c.l.b16 %v1848
      %v2584 = vunpack.c.l.b16 %v1858
      %v2585 = vunpack.c.l.b16 %v1872
      %v2586 = vunpack.c.l.b16 %v1882
      %v2587 = vpack.c.b16 %v2556, %v2555
      %v2588 = vpack.c.b16 %v2558, %v2557
      %v2589 = vpack.c.b16 %v2560, %v2559
      %v2590 = vpack.c.b16 %v2562, %v2561
      %v2591 = vpack.c.b16 %v2564, %v2563
      %v2592 = vpack.c.b16 %v2566, %v2565
      %v2593 = vpack.c.b16 %v2568, %v2567
      %v2594 = vpack.c.b16 %v2570, %v2569
      %v2595 = vpack.c.b16 %v2572, %v2571
      %v2596 = vpack.c.b16 %v2574, %v2573
      %v2597 = vpack.c.b16 %v2576, %v2575
      %v2598 = vpack.c.b16 %v2578, %v2577
      %v2599 = vpack.c.b16 %v2580, %v2579
      %v2600 = vpack.c.b16 %v2582, %v2581
      %v2601 = vpack.c.b16 %v2584, %v2583
      %v2602 = vpack.c.b16 %v2586, %v2585
      %v2619 = vunpack.c.l.b16 %v1950
      %v2620 = vunpack.c.l.b16 %v1953
      %v2621 = vunpack.c.l.b16 %v1957
      %v2622 = vunpack.c.l.b16 %v1960
      %v2623 = vunpack.c.l.b16 %v1964
      %v2624 = vunpack.c.l.b16 %v1967
      %v2625 = vunpack.c.l.b16 %v1971
      %v2626 = vunpack.c.l.b16 %v1974
      %v2627 = vunpack.c.l.b16 %v1978
      %v2628 = vunpack.c.l.b16 %v1981
      %v2629 = vunpack.c.l.b16 %v1985
      %v2630 = vunpack.c.l.b16 %v1988
      %v2631 = vunpack.c.l.b16 %v1992
      %v2632 = vunpack.c.l.b16 %v1995
      %v2633 = vunpack.c.l.b16 %v1999
      %v2634 = vunpack.c.l.b16 %v2002
      %v2635 = vunpack.c.l.b16 %v2006
      %v2636 = vunpack.c.l.b16 %v2009
      %v2637 = vunpack.c.l.b16 %v2013
      %v2638 = vunpack.c.l.b16 %v2016
      %v2639 = vunpack.c.l.b16 %v2020
      %v2640 = vunpack.c.l.b16 %v2023
      %v2641 = vunpack.c.l.b16 %v2027
      %v2642 = vunpack.c.l.b16 %v2030
      %v2643 = vunpack.c.l.b16 %v2034
      %v2644 = vunpack.c.l.b16 %v2037
      %v2645 = vunpack.c.l.b16 %v2041
      %v2646 = vunpack.c.l.b16 %v2044
      %v2647 = vunpack.c.l.b16 %v2048
      %v2648 = vunpack.c.l.b16 %v2051
      %v2649 = vunpack.c.l.b16 %v2055
      %v2650 = vunpack.c.l.b16 %v2058
      %v2651 = vpack.c.b16 %v2620, %v2619
      %v2652 = vpack.c.b16 %v2622, %v2621
      %v2653 = vpack.c.b16 %v2624, %v2623
      %v2654 = vpack.c.b16 %v2626, %v2625
      %v2655 = vpack.c.b16 %v2628, %v2627
      %v2656 = vpack.c.b16 %v2630, %v2629
      %v2657 = vpack.c.b16 %v2632, %v2631
      %v2658 = vpack.c.b16 %v2634, %v2633
      %v2659 = vpack.c.b16 %v2636, %v2635
      %v2660 = vpack.c.b16 %v2638, %v2637
      %v2661 = vpack.c.b16 %v2640, %v2639
      %v2662 = vpack.c.b16 %v2642, %v2641
      %v2663 = vpack.c.b16 %v2644, %v2643
      %v2664 = vpack.c.b16 %v2646, %v2645
      %v2665 = vpack.c.b16 %v2648, %v2647
      %v2666 = vpack.c.b16 %v2650, %v2649
      %v2683 = vld [vmem:[%s211] sm:$0xf]
      %v2684 = vld [vmem:[%s211 + $0x4] sm:$0xf]
      %v2685 = vld [vmem:[%s211 + $0x8] sm:$0xf]
      %v2686 = vld [vmem:[%s211 + $0xc] sm:$0xf]
      %v2687 = vld [vmem:[%s211 + $0x10] sm:$0xf]
      %v2688 = vld [vmem:[%s211 + $0x14] sm:$0xf]
      %v2689 = vld [vmem:[%s211 + $0x18] sm:$0xf]
      %v2690 = vld [vmem:[%s211 + $0x1c] sm:$0xf]
      %v2691 = vld [vmem:[%s211 + $0x20] sm:$0xf]
      %v2692 = vld [vmem:[%s211 + $0x24] sm:$0xf]
      %v2693 = vld [vmem:[%s211 + $0x28] sm:$0xf]
      %v2694 = vld [vmem:[%s211 + $0x2c] sm:$0xf]
      %v2695 = vld [vmem:[%s211 + $0x30] sm:$0xf]
      %v2696 = vld [vmem:[%s211 + $0x34] sm:$0xf]
      %v2697 = vld [vmem:[%s211 + $0x38] sm:$0xf]
      %v2698 = vld [vmem:[%s211 + $0x3c] sm:$0xf]
      %v2699 = vld [vmem:[%s211 + $0x40] sm:$0xf]
      %v2700 = vld [vmem:[%s211 + $0x44] sm:$0xf]
      %v2701 = vld [vmem:[%s211 + $0x48] sm:$0xf]
      %v2702 = vld [vmem:[%s211 + $0x4c] sm:$0xf]
      %v2703 = vld [vmem:[%s211 + $0x50] sm:$0xf]
      %v2704 = vld [vmem:[%s211 + $0x54] sm:$0xf]
      %v2705 = vld [vmem:[%s211 + $0x58] sm:$0xf]
      %v2706 = vld [vmem:[%s211 + $0x5c] sm:$0xf]
      %v2707 = vld [vmem:[%s211 + $0x60] sm:$0xf]
      %v2708 = vld [vmem:[%s211 + $0x64] sm:$0xf]
      %v2709 = vld [vmem:[%s211 + $0x68] sm:$0xf]
      %v2710 = vld [vmem:[%s211 + $0x6c] sm:$0xf]
      %v2711 = vld [vmem:[%s211 + $0x70] sm:$0xf]
      %v2712 = vld [vmem:[%s211 + $0x74] sm:$0xf]
      %v2713 = vld [vmem:[%s211 + $0x78] sm:$0xf]
      %v2714 = vld [vmem:[%s211 + $0x7c] sm:$0xf]
      %v2715 = vld [vmem:[%s211 + $0x80] sm:$0xf]
      %v2716 = vld [vmem:[%s211 + $0x84] sm:$0xf]
      %v2717 = vld [vmem:[%s211 + $0x88] sm:$0xf]
      %v2718 = vld [vmem:[%s211 + $0x8c] sm:$0xf]
      %v2719 = vld [vmem:[%s211 + $0x90] sm:$0xf]
      %v2720 = vld [vmem:[%s211 + $0x94] sm:$0xf]
      %v2721 = vld [vmem:[%s211 + $0x98] sm:$0xf]
      %v2722 = vld [vmem:[%s211 + $0x9c] sm:$0xf]
      %v2723 = vld [vmem:[%s211 + $0xa0] sm:$0xf]
      %v2724 = vld [vmem:[%s211 + $0xa4] sm:$0xf]
      %v2725 = vld [vmem:[%s211 + $0xa8] sm:$0xf]
      %v2726 = vld [vmem:[%s211 + $0xac] sm:$0xf]
      %v2727 = vld [vmem:[%s211 + $0xb0] sm:$0xf]
      %v2728 = vld [vmem:[%s211 + $0xb4] sm:$0xf]
      %v2729 = vld [vmem:[%s211 + $0xb8] sm:$0xf]
      %v2730 = vld [vmem:[%s211 + $0xbc] sm:$0xf]
      %v2731 = vld [vmem:[%s211 + $0xc0] sm:$0xf]
      %v2732 = vld [vmem:[%s211 + $0xc4] sm:$0xf]
      %v2733 = vld [vmem:[%s211 + $0xc8] sm:$0xf]
      %v2734 = vld [vmem:[%s211 + $0xcc] sm:$0xf]
      %v2735 = vld [vmem:[%s211 + $0xd0] sm:$0xf]
      %v2736 = vld [vmem:[%s211 + $0xd4] sm:$0xf]
      %v2737 = vld [vmem:[%s211 + $0xd8] sm:$0xf]
      %v2738 = vld [vmem:[%s211 + $0xdc] sm:$0xf]
      %v2739 = vld [vmem:[%s211 + $0xe0] sm:$0xf]
      %v2740 = vld [vmem:[%s211 + $0xe4] sm:$0xf]
      %v2741 = vld [vmem:[%s211 + $0xe8] sm:$0xf]
      %v2742 = vld [vmem:[%s211 + $0xec] sm:$0xf]
      %v2743 = vld [vmem:[%s211 + $0xf0] sm:$0xf]
      %v2744 = vld [vmem:[%s211 + $0xf4] sm:$0xf]
      %v2745 = vld [vmem:[%s211 + $0xf8] sm:$0xf]
      %v2746 = vld [vmem:[%s211 + $0xfc] sm:$0xf]
      %v2747 = vld [vmem:[%s211 + $0x100] sm:$0xf]
      %v2748 = vld [vmem:[%s211 + $0x104] sm:$0xf]
      %v2749 = vld [vmem:[%s211 + $0x108] sm:$0xf]
      %v2750 = vld [vmem:[%s211 + $0x10c] sm:$0xf]
      %v2751 = vld [vmem:[%s211 + $0x110] sm:$0xf]
      %v2752 = vld [vmem:[%s211 + $0x114] sm:$0xf]
      %v2753 = vld [vmem:[%s211 + $0x118] sm:$0xf]
      %v2754 = vld [vmem:[%s211 + $0x11c] sm:$0xf]
      %v2755 = vld [vmem:[%s211 + $0x120] sm:$0xf]
      %v2756 = vld [vmem:[%s211 + $0x124] sm:$0xf]
      %v2757 = vld [vmem:[%s211 + $0x128] sm:$0xf]
      %v2758 = vld [vmem:[%s211 + $0x12c] sm:$0xf]
      %v2759 = vld [vmem:[%s211 + $0x130] sm:$0xf]
      %v2760 = vld [vmem:[%s211 + $0x134] sm:$0xf]
      %v2761 = vld [vmem:[%s211 + $0x138] sm:$0xf]
      %v2762 = vld [vmem:[%s211 + $0x13c] sm:$0xf]
      %v2763 = vld [vmem:[%s211 + $0x140] sm:$0xf]
      %v2764 = vld [vmem:[%s211 + $0x144] sm:$0xf]
      %v2765 = vld [vmem:[%s211 + $0x148] sm:$0xf]
      %v2766 = vld [vmem:[%s211 + $0x14c] sm:$0xf]
      %v2767 = vld [vmem:[%s211 + $0x150] sm:$0xf]
      %v2768 = vld [vmem:[%s211 + $0x154] sm:$0xf]
      %v2769 = vld [vmem:[%s211 + $0x158] sm:$0xf]
      %v2770 = vld [vmem:[%s211 + $0x15c] sm:$0xf]
      %v2771 = vld [vmem:[%s211 + $0x160] sm:$0xf]
      %v2772 = vld [vmem:[%s211 + $0x164] sm:$0xf]
      %v2773 = vld [vmem:[%s211 + $0x168] sm:$0xf]
      %v2774 = vld [vmem:[%s211 + $0x16c] sm:$0xf]
      %v2775 = vld [vmem:[%s211 + $0x170] sm:$0xf]
      %v2776 = vld [vmem:[%s211 + $0x174] sm:$0xf]
      %v2777 = vld [vmem:[%s211 + $0x178] sm:$0xf]
      %v2778 = vld [vmem:[%s211 + $0x17c] sm:$0xf]
      %v2779 = vld [vmem:[%s211 + $0x180] sm:$0xf]
      %v2780 = vld [vmem:[%s211 + $0x184] sm:$0xf]
      %v2781 = vld [vmem:[%s211 + $0x188] sm:$0xf]
      %v2782 = vld [vmem:[%s211 + $0x18c] sm:$0xf]
      %v2783 = vld [vmem:[%s211 + $0x190] sm:$0xf]
      %v2784 = vld [vmem:[%s211 + $0x194] sm:$0xf]
      %v2785 = vld [vmem:[%s211 + $0x198] sm:$0xf]
      %v2786 = vld [vmem:[%s211 + $0x19c] sm:$0xf]
      %v2787 = vld [vmem:[%s211 + $0x1a0] sm:$0xf]
      %v2788 = vld [vmem:[%s211 + $0x1a4] sm:$0xf]
      %v2789 = vld [vmem:[%s211 + $0x1a8] sm:$0xf]
      %v2790 = vld [vmem:[%s211 + $0x1ac] sm:$0xf]
      %v2791 = vld [vmem:[%s211 + $0x1b0] sm:$0xf]
      %v2792 = vld [vmem:[%s211 + $0x1b4] sm:$0xf]
      %v2793 = vld [vmem:[%s211 + $0x1b8] sm:$0xf]
      %v2794 = vld [vmem:[%s211 + $0x1bc] sm:$0xf]
      %v2795 = vld [vmem:[%s211 + $0x1c0] sm:$0xf]
      %v2796 = vld [vmem:[%s211 + $0x1c4] sm:$0xf]
      %v2797 = vld [vmem:[%s211 + $0x1c8] sm:$0xf]
      %v2798 = vld [vmem:[%s211 + $0x1cc] sm:$0xf]
      %v2799 = vld [vmem:[%s211 + $0x1d0] sm:$0xf]
      %v2800 = vld [vmem:[%s211 + $0x1d4] sm:$0xf]
      %v2801 = vld [vmem:[%s211 + $0x1d8] sm:$0xf]
      %v2802 = vld [vmem:[%s211 + $0x1dc] sm:$0xf]
      %v2803 = vld [vmem:[%s211 + $0x1e0] sm:$0xf]
      %v2804 = vld [vmem:[%s211 + $0x1e4] sm:$0xf]
      %v2805 = vld [vmem:[%s211 + $0x1e8] sm:$0xf]
      %v2806 = vld [vmem:[%s211 + $0x1ec] sm:$0xf]
      %v2807 = vld [vmem:[%s211 + $0x1f0] sm:$0xf]
      %v2808 = vld [vmem:[%s211 + $0x1f4] sm:$0xf]
      %v2809 = vld [vmem:[%s211 + $0x1f8] sm:$0xf]
      %v2810 = vld [vmem:[%s211 + $0x1fc] sm:$0xf]
      %v2811 = vld [vmem:[%s211 + $0x200] sm:$0xf]
      %v2812 = vld [vmem:[%s211 + $0x204] sm:$0xf]
      %v2813 = vld [vmem:[%s211 + $0x208] sm:$0xf]
      %v2814 = vld [vmem:[%s211 + $0x20c] sm:$0xf]
      %v2815 = vld [vmem:[%s211 + $0x210] sm:$0xf]
      %v2816 = vld [vmem:[%s211 + $0x214] sm:$0xf]
      %v2817 = vld [vmem:[%s211 + $0x218] sm:$0xf]
      %v2818 = vld [vmem:[%s211 + $0x21c] sm:$0xf]
      %v2819 = vld [vmem:[%s211 + $0x220] sm:$0xf]
      %v2820 = vld [vmem:[%s211 + $0x224] sm:$0xf]
      %v2821 = vld [vmem:[%s211 + $0x228] sm:$0xf]
      %v2822 = vld [vmem:[%s211 + $0x22c] sm:$0xf]
      %v2823 = vld [vmem:[%s211 + $0x230] sm:$0xf]
      %v2824 = vld [vmem:[%s211 + $0x234] sm:$0xf]
      %v2825 = vld [vmem:[%s211 + $0x238] sm:$0xf]
      %v2826 = vld [vmem:[%s211 + $0x23c] sm:$0xf]
      %v2971 = vunpack.c.l.b16 %v2683
      %v2972 = vunpack.c.l.b16 %v2684
      %v2973 = vunpack.c.l.b16 %v2685
      %v2974 = vunpack.c.l.b16 %v2686
      %v2975 = vunpack.c.l.b16 %v2687
      %v2976 = vunpack.c.l.b16 %v2688
      %v2977 = vunpack.c.l.b16 %v2689
      %v2978 = vunpack.c.l.b16 %v2690
      %v2979 = vunpack.c.l.b16 %v2691
      %v2980 = vunpack.c.l.b16 %v2692
      %v2981 = vunpack.c.l.b16 %v2693
      %v2982 = vunpack.c.l.b16 %v2694
      %v2983 = vunpack.c.l.b16 %v2695
      %v2984 = vunpack.c.l.b16 %v2696
      %v2985 = vunpack.c.l.b16 %v2697
      %v2986 = vunpack.c.l.b16 %v2698
      %v2987 = vunpack.c.l.b16 %v2699
      %v2988 = vunpack.c.l.b16 %v2700
      %v2989 = vunpack.c.l.b16 %v2701
      %v2990 = vunpack.c.l.b16 %v2702
      %v2991 = vunpack.c.l.b16 %v2703
      %v2992 = vunpack.c.l.b16 %v2704
      %v2993 = vunpack.c.l.b16 %v2705
      %v2994 = vunpack.c.l.b16 %v2706
      %v2995 = vunpack.c.l.b16 %v2707
      %v2996 = vunpack.c.l.b16 %v2708
      %v2997 = vunpack.c.l.b16 %v2709
      %v2998 = vunpack.c.l.b16 %v2710
      %v2999 = vunpack.c.l.b16 %v2711
      %v3000 = vunpack.c.l.b16 %v2712
      %v3001 = vunpack.c.l.b16 %v2713
      %v3002 = vunpack.c.l.b16 %v2714
      %v3003 = vunpack.c.l.b16 %v2715
      %v3004 = vunpack.c.l.b16 %v2716
      %v3005 = vunpack.c.l.b16 %v2717
      %v3006 = vunpack.c.l.b16 %v2718
      %v3007 = vunpack.c.l.b16 %v2719
      %v3008 = vunpack.c.l.b16 %v2720
      %v3009 = vunpack.c.l.b16 %v2721
      %v3010 = vunpack.c.l.b16 %v2722
      %v3011 = vunpack.c.l.b16 %v2723
      %v3012 = vunpack.c.l.b16 %v2724
      %v3013 = vunpack.c.l.b16 %v2725
      %v3014 = vunpack.c.l.b16 %v2726
      %v3015 = vunpack.c.l.b16 %v2727
      %v3016 = vunpack.c.l.b16 %v2728
      %v3017 = vunpack.c.l.b16 %v2729
      %v3018 = vunpack.c.l.b16 %v2730
      %v3019 = vunpack.c.l.b16 %v2731
      %v3020 = vunpack.c.l.b16 %v2732
      %v3021 = vunpack.c.l.b16 %v2733
      %v3022 = vunpack.c.l.b16 %v2734
      %v3023 = vunpack.c.l.b16 %v2735
      %v3024 = vunpack.c.l.b16 %v2736
      %v3025 = vunpack.c.l.b16 %v2737
      %v3026 = vunpack.c.l.b16 %v2738
      %v3027 = vunpack.c.l.b16 %v2739
      %v3028 = vunpack.c.l.b16 %v2740
      %v3029 = vunpack.c.l.b16 %v2741
      %v3030 = vunpack.c.l.b16 %v2742
      %v3031 = vunpack.c.l.b16 %v2743
      %v3032 = vunpack.c.l.b16 %v2744
      %v3033 = vunpack.c.l.b16 %v2745
      %v3034 = vunpack.c.l.b16 %v2746
      %v3035 = vunpack.c.l.b16 %v2747
      %v3036 = vunpack.c.l.b16 %v2748
      %v3037 = vunpack.c.l.b16 %v2749
      %v3038 = vunpack.c.l.b16 %v2750
      %v3039 = vunpack.c.l.b16 %v2751
      %v3040 = vunpack.c.l.b16 %v2752
      %v3041 = vunpack.c.l.b16 %v2753
      %v3042 = vunpack.c.l.b16 %v2754
      %v3043 = vunpack.c.l.b16 %v2755
      %v3044 = vunpack.c.l.b16 %v2756
      %v3045 = vunpack.c.l.b16 %v2757
      %v3046 = vunpack.c.l.b16 %v2758
      %v3047 = vunpack.c.l.b16 %v2759
      %v3048 = vunpack.c.l.b16 %v2760
      %v3049 = vunpack.c.l.b16 %v2761
      %v3050 = vunpack.c.l.b16 %v2762
      %v3051 = vunpack.c.l.b16 %v2763
      %v3052 = vunpack.c.l.b16 %v2764
      %v3053 = vunpack.c.l.b16 %v2765
      %v3054 = vunpack.c.l.b16 %v2766
      %v3055 = vunpack.c.l.b16 %v2767
      %v3056 = vunpack.c.l.b16 %v2768
      %v3057 = vunpack.c.l.b16 %v2769
      %v3058 = vunpack.c.l.b16 %v2770
      %v3059 = vunpack.c.l.b16 %v2771
      %v3060 = vunpack.c.l.b16 %v2772
      %v3061 = vunpack.c.l.b16 %v2773
      %v3062 = vunpack.c.l.b16 %v2774
      %v3063 = vunpack.c.l.b16 %v2775
      %v3064 = vunpack.c.l.b16 %v2776
      %v3065 = vunpack.c.l.b16 %v2777
      %v3066 = vunpack.c.l.b16 %v2778
      %v3067 = vunpack.c.l.b16 %v2779
      %v3068 = vunpack.c.l.b16 %v2780
      %v3069 = vunpack.c.l.b16 %v2781
      %v3070 = vunpack.c.l.b16 %v2782
      %v3071 = vunpack.c.l.b16 %v2783
      %v3072 = vunpack.c.l.b16 %v2784
      %v3073 = vunpack.c.l.b16 %v2785
      %v3074 = vunpack.c.l.b16 %v2786
      %v3075 = vunpack.c.l.b16 %v2787
      %v3076 = vunpack.c.l.b16 %v2788
      %v3077 = vunpack.c.l.b16 %v2789
      %v3078 = vunpack.c.l.b16 %v2790
      %v3079 = vunpack.c.l.b16 %v2791
      %v3080 = vunpack.c.l.b16 %v2792
      %v3081 = vunpack.c.l.b16 %v2793
      %v3082 = vunpack.c.l.b16 %v2794
      %v3083 = vunpack.c.l.b16 %v2795
      %v3084 = vunpack.c.l.b16 %v2796
      %v3085 = vunpack.c.l.b16 %v2797
      %v3086 = vunpack.c.l.b16 %v2798
      %v3087 = vunpack.c.l.b16 %v2799
      %v3088 = vunpack.c.l.b16 %v2800
      %v3089 = vunpack.c.l.b16 %v2801
      %v3090 = vunpack.c.l.b16 %v2802
      %v3091 = vunpack.c.l.b16 %v2803
      %v3092 = vunpack.c.l.b16 %v2804
      %v3093 = vunpack.c.l.b16 %v2805
      %v3094 = vunpack.c.l.b16 %v2806
      %v3095 = vunpack.c.l.b16 %v2807
      %v3096 = vunpack.c.l.b16 %v2808
      %v3097 = vunpack.c.l.b16 %v2809
      %v3098 = vunpack.c.l.b16 %v2810
      %v3099 = vunpack.c.l.b16 %v2811
      %v3100 = vunpack.c.l.b16 %v2812
      %v3101 = vunpack.c.l.b16 %v2813
      %v3102 = vunpack.c.l.b16 %v2814
      %v3103 = vunpack.c.l.b16 %v2815
      %v3104 = vunpack.c.l.b16 %v2816
      %v3105 = vunpack.c.l.b16 %v2817
      %v3106 = vunpack.c.l.b16 %v2818
      %v3107 = vunpack.c.l.b16 %v2819
      %v3108 = vunpack.c.l.b16 %v2820
      %v3109 = vunpack.c.l.b16 %v2821
      %v3110 = vunpack.c.l.b16 %v2822
      %v3111 = vunpack.c.l.b16 %v2823
      %v3112 = vunpack.c.l.b16 %v2824
      %v3113 = vunpack.c.l.b16 %v2825
      %v3114 = vunpack.c.l.b16 %v2826
      %v3115 = vpack.c.b16 %v2972, %v2971
      %v3116 = vpack.c.b16 %v2974, %v2973
      %v3117 = vpack.c.b16 %v2976, %v2975
      %v3118 = vpack.c.b16 %v2978, %v2977
      %v3119 = vpack.c.b16 %v2980, %v2979
      %v3120 = vpack.c.b16 %v2982, %v2981
      %v3121 = vpack.c.b16 %v2984, %v2983
      %v3122 = vpack.c.b16 %v2986, %v2985
      %v3123 = vpack.c.b16 %v2988, %v2987
      %v3124 = vpack.c.b16 %v2990, %v2989
      %v3125 = vpack.c.b16 %v2992, %v2991
      %v3126 = vpack.c.b16 %v2994, %v2993
      %v3127 = vpack.c.b16 %v2996, %v2995
      %v3128 = vpack.c.b16 %v2998, %v2997
      %v3129 = vpack.c.b16 %v3000, %v2999
      %v3130 = vpack.c.b16 %v3002, %v3001
      %v3131 = vpack.c.b16 %v3004, %v3003
      %v3132 = vpack.c.b16 %v3006, %v3005
      %v3133 = vpack.c.b16 %v3008, %v3007
      %v3134 = vpack.c.b16 %v3010, %v3009
      %v3135 = vpack.c.b16 %v3012, %v3011
      %v3136 = vpack.c.b16 %v3014, %v3013
      %v3137 = vpack.c.b16 %v3016, %v3015
      %v3138 = vpack.c.b16 %v3018, %v3017
      %v3139 = vpack.c.b16 %v3020, %v3019
      %v3140 = vpack.c.b16 %v3022, %v3021
      %v3141 = vpack.c.b16 %v3024, %v3023
      %v3142 = vpack.c.b16 %v3026, %v3025
      %v3143 = vpack.c.b16 %v3028, %v3027
      %v3144 = vpack.c.b16 %v3030, %v3029
      %v3145 = vpack.c.b16 %v3032, %v3031
      %v3146 = vpack.c.b16 %v3034, %v3033
      %v3147 = vpack.c.b16 %v3036, %v3035
      %v3148 = vpack.c.b16 %v3038, %v3037
      %v3149 = vpack.c.b16 %v3040, %v3039
      %v3150 = vpack.c.b16 %v3042, %v3041
      %v3151 = vpack.c.b16 %v3044, %v3043
      %v3152 = vpack.c.b16 %v3046, %v3045
      %v3153 = vpack.c.b16 %v3048, %v3047
      %v3154 = vpack.c.b16 %v3050, %v3049
      %v3155 = vpack.c.b16 %v3052, %v3051
      %v3156 = vpack.c.b16 %v3054, %v3053
      %v3157 = vpack.c.b16 %v3056, %v3055
      %v3158 = vpack.c.b16 %v3058, %v3057
      %v3159 = vpack.c.b16 %v3060, %v3059
      %v3160 = vpack.c.b16 %v3062, %v3061
      %v3161 = vpack.c.b16 %v3064, %v3063
      %v3162 = vpack.c.b16 %v3066, %v3065
      %v3163 = vpack.c.b16 %v3068, %v3067
      %v3164 = vpack.c.b16 %v3070, %v3069
      %v3165 = vpack.c.b16 %v3072, %v3071
      %v3166 = vpack.c.b16 %v3074, %v3073
      %v3167 = vpack.c.b16 %v3076, %v3075
      %v3168 = vpack.c.b16 %v3078, %v3077
      %v3169 = vpack.c.b16 %v3080, %v3079
      %v3170 = vpack.c.b16 %v3082, %v3081
      %v3171 = vpack.c.b16 %v3084, %v3083
      %v3172 = vpack.c.b16 %v3086, %v3085
      %v3173 = vpack.c.b16 %v3088, %v3087
      %v3174 = vpack.c.b16 %v3090, %v3089
      %v3175 = vpack.c.b16 %v3092, %v3091
      %v3176 = vpack.c.b16 %v3094, %v3093
      %v3177 = vpack.c.b16 %v3096, %v3095
      %v3178 = vpack.c.b16 %v3098, %v3097
      %v3179 = vpack.c.b16 %v3100, %v3099
      %v3180 = vpack.c.b16 %v3102, %v3101
      %v3181 = vpack.c.b16 %v3104, %v3103
      %v3182 = vpack.c.b16 %v3106, %v3105
      %v3183 = vpack.c.b16 %v3108, %v3107
      %v3184 = vpack.c.b16 %v3110, %v3109
      %v3185 = vpack.c.b16 %v3112, %v3111
      %v3186 = vpack.c.b16 %v3114, %v3113
      %3259 = vmatpush.bf16.msra.mxu0 %v3122
      %3260 = vmatpush.bf16.msra.mxu0 %v3121
      %3261 = vmatpush.bf16.msra.mxu0 %v3120
      %3262 = vmatpush.bf16.msra.mxu0 %v3119
      %3263 = vmatpush.bf16.msra.mxu0 %v3118
      %3264 = vmatpush.bf16.msra.mxu0 %v3117
      %3265 = vmatpush.bf16.msra.mxu0 %v3116
      %3266 = vmatpush.bf16.msra.mxu0 %v3115
      %3267 = vmatmul.bf16.gmra.mxu0 %v2107
      %v3268 = vpop.f32.mrf.mxu0
      %v3269 = vadd.f32 0.0, %v3268
      %v3270 = vpop.f32.mrf.mxu0
      %v3271 = vadd.f32 0.0, %v3270
      %3272 = vmatmul.bf16.gmra.mxu0 %v2108
      %v3273 = vpop.f32.mrf.mxu0
      %v3274 = vadd.f32 0.0, %v3273
      %v3275 = vpop.f32.mrf.mxu0
      %v3276 = vadd.f32 0.0, %v3275
      %3277 = vmatmul.bf16.gmra.mxu0 %v2109
      %v3278 = vpop.f32.mrf.mxu0
      %v3279 = vadd.f32 0.0, %v3278
      %v3280 = vpop.f32.mrf.mxu0
      %v3281 = vadd.f32 0.0, %v3280
      %3282 = vmatmul.bf16.gmra.mxu0 %v2110
      %v3283 = vpop.f32.mrf.mxu0
      %v3284 = vadd.f32 0.0, %v3283
      %v3285 = vpop.f32.mrf.mxu0
      %v3286 = vadd.f32 0.0, %v3285
      %3287 = vmatmul.bf16.gmra.mxu0 %v2111
      %v3288 = vpop.f32.mrf.mxu0
      %v3289 = vadd.f32 0.0, %v3288
      %v3290 = vpop.f32.mrf.mxu0
      %v3291 = vadd.f32 0.0, %v3290
      %3292 = vmatmul.bf16.gmra.mxu0 %v2112
      %v3293 = vpop.f32.mrf.mxu0
      %v3294 = vadd.f32 0.0, %v3293
      %v3295 = vpop.f32.mrf.mxu0
      %v3296 = vadd.f32 0.0, %v3295
      %3297 = vmatmul.bf16.gmra.mxu0 %v2113
      %v3298 = vpop.f32.mrf.mxu0
      %v3299 = vadd.f32 0.0, %v3298
      %v3300 = vpop.f32.mrf.mxu0
      %v3301 = vadd.f32 0.0, %v3300
      %3302 = vmatmul.bf16.gmra.mxu0 %v2114
      %v3303 = vpop.f32.mrf.mxu0
      %v3304 = vadd.f32 0.0, %v3303
      %v3305 = vpop.f32.mrf.mxu0
      %v3306 = vadd.f32 0.0, %v3305
      %3307 = vmatmul.bf16.gmra.mxu0 %v2115
      %v3308 = vpop.f32.mrf.mxu0
      %v3309 = vadd.f32 0.0, %v3308
      %v3310 = vpop.f32.mrf.mxu0
      %v3311 = vadd.f32 0.0, %v3310
      %3312 = vmatmul.bf16.gmra.mxu0 %v2116
      %v3313 = vpop.f32.mrf.mxu0
      %v3314 = vadd.f32 0.0, %v3313
      %v3315 = vpop.f32.mrf.mxu0
      %v3316 = vadd.f32 0.0, %v3315
      %3317 = vmatmul.bf16.gmra.mxu0 %v2117
      %v3318 = vpop.f32.mrf.mxu0
      %v3319 = vadd.f32 0.0, %v3318
      %v3320 = vpop.f32.mrf.mxu0
      %v3321 = vadd.f32 0.0, %v3320
      %3322 = vmatmul.bf16.gmra.mxu0 %v2118
      %v3323 = vpop.f32.mrf.mxu0
      %v3324 = vadd.f32 0.0, %v3323
      %v3325 = vpop.f32.mrf.mxu0
      %v3326 = vadd.f32 0.0, %v3325
      %3327 = vmatmul.bf16.gmra.mxu0 %v2119
      %v3328 = vpop.f32.mrf.mxu0
      %v3329 = vadd.f32 0.0, %v3328
      %v3330 = vpop.f32.mrf.mxu0
      %v3331 = vadd.f32 0.0, %v3330
      %3332 = vmatmul.bf16.gmra.mxu0 %v2120
      %v3333 = vpop.f32.mrf.mxu0
      %v3334 = vadd.f32 0.0, %v3333
      %v3335 = vpop.f32.mrf.mxu0
      %v3336 = vadd.f32 0.0, %v3335
      %3337 = vmatmul.bf16.gmra.mxu0 %v2121
      %v3338 = vpop.f32.mrf.mxu0
      %v3339 = vadd.f32 0.0, %v3338
      %v3340 = vpop.f32.mrf.mxu0
      %v3341 = vadd.f32 0.0, %v3340
      %3342 = vmatmul.bf16.gmra.mxu0 %v2122
      %v3343 = vpop.f32.mrf.mxu0
      %v3344 = vadd.f32 0.0, %v3343
      %v3345 = vpop.f32.mrf.mxu0
      %v3346 = vadd.f32 0.0, %v3345
      %3347 = vdwg.mxu0
      %3348 = vmatpush.bf16.msra.mxu0 %v3130
      %3349 = vmatpush.bf16.msra.mxu0 %v3129
      %3350 = vmatpush.bf16.msra.mxu0 %v3128
      %3351 = vmatpush.bf16.msra.mxu0 %v3127
      %3352 = vmatpush.bf16.msra.mxu0 %v3126
      %3353 = vmatpush.bf16.msra.mxu0 %v3125
      %3354 = vmatpush.bf16.msra.mxu0 %v3124
      %3355 = vmatpush.bf16.msra.mxu0 %v3123
      %3356 = vmatmul.bf16.gmra.mxu0 %v2171
      %v3357 = vpop.f32.mrf.mxu0
      %v3358 = vadd.f32 %v3269, %v3357
      %v3359 = vpop.f32.mrf.mxu0
      %v3360 = vadd.f32 %v3271, %v3359
      %3361 = vmatmul.bf16.gmra.mxu0 %v2172
      %v3362 = vpop.f32.mrf.mxu0
      %v3363 = vadd.f32 %v3274, %v3362
      %v3364 = vpop.f32.mrf.mxu0
      %v3365 = vadd.f32 %v3276, %v3364
      %3366 = vmatmul.bf16.gmra.mxu0 %v2173
      %v3367 = vpop.f32.mrf.mxu0
      %v3368 = vadd.f32 %v3279, %v3367
      %v3369 = vpop.f32.mrf.mxu0
      %v3370 = vadd.f32 %v3281, %v3369
      %3371 = vmatmul.bf16.gmra.mxu0 %v2174
      %v3372 = vpop.f32.mrf.mxu0
      %v3373 = vadd.f32 %v3284, %v3372
      %v3374 = vpop.f32.mrf.mxu0
      %v3375 = vadd.f32 %v3286, %v3374
      %3376 = vmatmul.bf16.gmra.mxu0 %v2175
      %v3377 = vpop.f32.mrf.mxu0
      %v3378 = vadd.f32 %v3289, %v3377
      %v3379 = vpop.f32.mrf.mxu0
      %v3380 = vadd.f32 %v3291, %v3379
      %3381 = vmatmul.bf16.gmra.mxu0 %v2176
      %v3382 = vpop.f32.mrf.mxu0
      %v3383 = vadd.f32 %v3294, %v3382
      %v3384 = vpop.f32.mrf.mxu0
      %v3385 = vadd.f32 %v3296, %v3384
      %3386 = vmatmul.bf16.gmra.mxu0 %v2177
      %v3387 = vpop.f32.mrf.mxu0
      %v3388 = vadd.f32 %v3299, %v3387
      %v3389 = vpop.f32.mrf.mxu0
      %v3390 = vadd.f32 %v3301, %v3389
      %3391 = vmatmul.bf16.gmra.mxu0 %v2178
      %v3392 = vpop.f32.mrf.mxu0
      %v3393 = vadd.f32 %v3304, %v3392
      %v3394 = vpop.f32.mrf.mxu0
      %v3395 = vadd.f32 %v3306, %v3394
      %3396 = vmatmul.bf16.gmra.mxu0 %v2179
      %v3397 = vpop.f32.mrf.mxu0
      %v3398 = vadd.f32 %v3309, %v3397
      %v3399 = vpop.f32.mrf.mxu0
      %v3400 = vadd.f32 %v3311, %v3399
      %3401 = vmatmul.bf16.gmra.mxu0 %v2180
      %v3402 = vpop.f32.mrf.mxu0
      %v3403 = vadd.f32 %v3314, %v3402
      %v3404 = vpop.f32.mrf.mxu0
      %v3405 = vadd.f32 %v3316, %v3404
      %3406 = vmatmul.bf16.gmra.mxu0 %v2181
      %v3407 = vpop.f32.mrf.mxu0
      %v3408 = vadd.f32 %v3319, %v3407
      %v3409 = vpop.f32.mrf.mxu0
      %v3410 = vadd.f32 %v3321, %v3409
      %3411 = vmatmul.bf16.gmra.mxu0 %v2182
      %v3412 = vpop.f32.mrf.mxu0
      %v3413 = vadd.f32 %v3324, %v3412
      %v3414 = vpop.f32.mrf.mxu0
      %v3415 = vadd.f32 %v3326, %v3414
      %3416 = vmatmul.bf16.gmra.mxu0 %v2183
      %v3417 = vpop.f32.mrf.mxu0
      %v3418 = vadd.f32 %v3329, %v3417
      %v3419 = vpop.f32.mrf.mxu0
      %v3420 = vadd.f32 %v3331, %v3419
      %3421 = vmatmul.bf16.gmra.mxu0 %v2184
      %v3422 = vpop.f32.mrf.mxu0
      %v3423 = vadd.f32 %v3334, %v3422
      %v3424 = vpop.f32.mrf.mxu0
      %v3425 = vadd.f32 %v3336, %v3424
      %3426 = vmatmul.bf16.gmra.mxu0 %v2185
      %v3427 = vpop.f32.mrf.mxu0
      %v3428 = vadd.f32 %v3339, %v3427
      %v3429 = vpop.f32.mrf.mxu0
      %v3430 = vadd.f32 %v3341, %v3429
      %3431 = vmatmul.bf16.gmra.mxu0 %v2186
      %v3432 = vpop.f32.mrf.mxu0
      %v3433 = vadd.f32 %v3344, %v3432
      %v3434 = vpop.f32.mrf.mxu0
      %v3435 = vadd.f32 %v3346, %v3434
      %3436 = vdwg.mxu0
      %3437 = vmatpush.bf16.msra.mxu0 %v3138
      %3438 = vmatpush.bf16.msra.mxu0 %v3137
      %3439 = vmatpush.bf16.msra.mxu0 %v3136
      %3440 = vmatpush.bf16.msra.mxu0 %v3135
      %3441 = vmatpush.bf16.msra.mxu0 %v3134
      %3442 = vmatpush.bf16.msra.mxu0 %v3133
      %3443 = vmatpush.bf16.msra.mxu0 %v3132
      %3444 = vmatpush.bf16.msra.mxu0 %v3131
      %3445 = vmatmul.bf16.gmra.mxu0 %v2235
      %v3446 = vpop.f32.mrf.mxu0
      %v3447 = vadd.f32 %v3358, %v3446
      %v3448 = vpop.f32.mrf.mxu0
      %v3449 = vadd.f32 %v3360, %v3448
      %3450 = vmatmul.bf16.gmra.mxu0 %v2236
      %v3451 = vpop.f32.mrf.mxu0
      %v3452 = vadd.f32 %v3363, %v3451
      %v3453 = vpop.f32.mrf.mxu0
      %v3454 = vadd.f32 %v3365, %v3453
      %3455 = vmatmul.bf16.gmra.mxu0 %v2237
      %v3456 = vpop.f32.mrf.mxu0
      %v3457 = vadd.f32 %v3368, %v3456
      %v3458 = vpop.f32.mrf.mxu0
      %v3459 = vadd.f32 %v3370, %v3458
      %3460 = vmatmul.bf16.gmra.mxu0 %v2238
      %v3461 = vpop.f32.mrf.mxu0
      %v3462 = vadd.f32 %v3373, %v3461
      %v3463 = vpop.f32.mrf.mxu0
      %v3464 = vadd.f32 %v3375, %v3463
      %3465 = vmatmul.bf16.gmra.mxu0 %v2239
      %v3466 = vpop.f32.mrf.mxu0
      %v3467 = vadd.f32 %v3378, %v3466
      %v3468 = vpop.f32.mrf.mxu0
      %v3469 = vadd.f32 %v3380, %v3468
      %3470 = vmatmul.bf16.gmra.mxu0 %v2240
      %v3471 = vpop.f32.mrf.mxu0
      %v3472 = vadd.f32 %v3383, %v3471
      %v3473 = vpop.f32.mrf.mxu0
      %v3474 = vadd.f32 %v3385, %v3473
      %3475 = vmatmul.bf16.gmra.mxu0 %v2241
      %v3476 = vpop.f32.mrf.mxu0
      %v3477 = vadd.f32 %v3388, %v3476
      %v3478 = vpop.f32.mrf.mxu0
      %v3479 = vadd.f32 %v3390, %v3478
      %3480 = vmatmul.bf16.gmra.mxu0 %v2242
      %v3481 = vpop.f32.mrf.mxu0
      %v3482 = vadd.f32 %v3393, %v3481
      %v3483 = vpop.f32.mrf.mxu0
      %v3484 = vadd.f32 %v3395, %v3483
      %3485 = vmatmul.bf16.gmra.mxu0 %v2243
      %v3486 = vpop.f32.mrf.mxu0
      %v3487 = vadd.f32 %v3398, %v3486
      %v3488 = vpop.f32.mrf.mxu0
      %v3489 = vadd.f32 %v3400, %v3488
      %3490 = vmatmul.bf16.gmra.mxu0 %v2244
      %v3491 = vpop.f32.mrf.mxu0
      %v3492 = vadd.f32 %v3403, %v3491
      %v3493 = vpop.f32.mrf.mxu0
      %v3494 = vadd.f32 %v3405, %v3493
      %3495 = vmatmul.bf16.gmra.mxu0 %v2245
      %v3496 = vpop.f32.mrf.mxu0
      %v3497 = vadd.f32 %v3408, %v3496
      %v3498 = vpop.f32.mrf.mxu0
      %v3499 = vadd.f32 %v3410, %v3498
      %3500 = vmatmul.bf16.gmra.mxu0 %v2246
      %v3501 = vpop.f32.mrf.mxu0
      %v3502 = vadd.f32 %v3413, %v3501
      %v3503 = vpop.f32.mrf.mxu0
      %v3504 = vadd.f32 %v3415, %v3503
      %3505 = vmatmul.bf16.gmra.mxu0 %v2247
      %v3506 = vpop.f32.mrf.mxu0
      %v3507 = vadd.f32 %v3418, %v3506
      %v3508 = vpop.f32.mrf.mxu0
      %v3509 = vadd.f32 %v3420, %v3508
      %3510 = vmatmul.bf16.gmra.mxu0 %v2248
      %v3511 = vpop.f32.mrf.mxu0
      %v3512 = vadd.f32 %v3423, %v3511
      %v3513 = vpop.f32.mrf.mxu0
      %v3514 = vadd.f32 %v3425, %v3513
      %3515 = vmatmul.bf16.gmra.mxu0 %v2249
      %v3516 = vpop.f32.mrf.mxu0
      %v3517 = vadd.f32 %v3428, %v3516
      %v3518 = vpop.f32.mrf.mxu0
      %v3519 = vadd.f32 %v3430, %v3518
      %3520 = vmatmul.bf16.gmra.mxu0 %v2250
      %v3521 = vpop.f32.mrf.mxu0
      %v3522 = vadd.f32 %v3433, %v3521
      %v3523 = vpop.f32.mrf.mxu0
      %v3524 = vadd.f32 %v3435, %v3523
      %3525 = vdwg.mxu0
      %3526 = vmatpush.bf16.msra.mxu0 %v3146
      %3527 = vmatpush.bf16.msra.mxu0 %v3145
      %3528 = vmatpush.bf16.msra.mxu0 %v3144
      %3529 = vmatpush.bf16.msra.mxu0 %v3143
      %3530 = vmatpush.bf16.msra.mxu0 %v3142
      %3531 = vmatpush.bf16.msra.mxu0 %v3141
      %3532 = vmatpush.bf16.msra.mxu0 %v3140
      %3533 = vmatpush.bf16.msra.mxu0 %v3139
      %3534 = vmatmul.bf16.gmra.mxu0 %v2315
      %v3535 = vpop.f32.mrf.mxu0
      %v3536 = vadd.f32 %v3447, %v3535
      %v3537 = vpop.f32.mrf.mxu0
      %v3538 = vadd.f32 %v3449, %v3537
      %3539 = vmatmul.bf16.gmra.mxu0 %v2316
      %v3540 = vpop.f32.mrf.mxu0
      %v3541 = vadd.f32 %v3452, %v3540
      %v3542 = vpop.f32.mrf.mxu0
      %v3543 = vadd.f32 %v3454, %v3542
      %3544 = vmatmul.bf16.gmra.mxu0 %v2317
      %v3545 = vpop.f32.mrf.mxu0
      %v3546 = vadd.f32 %v3457, %v3545
      %v3547 = vpop.f32.mrf.mxu0
      %v3548 = vadd.f32 %v3459, %v3547
      %3549 = vmatmul.bf16.gmra.mxu0 %v2318
      %v3550 = vpop.f32.mrf.mxu0
      %v3551 = vadd.f32 %v3462, %v3550
      %v3552 = vpop.f32.mrf.mxu0
      %v3553 = vadd.f32 %v3464, %v3552
      %3554 = vmatmul.bf16.gmra.mxu0 %v2319
      %v3555 = vpop.f32.mrf.mxu0
      %v3556 = vadd.f32 %v3467, %v3555
      %v3557 = vpop.f32.mrf.mxu0
      %v3558 = vadd.f32 %v3469, %v3557
      %3559 = vmatmul.bf16.gmra.mxu0 %v2320
      %v3560 = vpop.f32.mrf.mxu0
      %v3561 = vadd.f32 %v3472, %v3560
      %v3562 = vpop.f32.mrf.mxu0
      %v3563 = vadd.f32 %v3474, %v3562
      %3564 = vmatmul.bf16.gmra.mxu0 %v2321
      %v3565 = vpop.f32.mrf.mxu0
      %v3566 = vadd.f32 %v3477, %v3565
      %v3567 = vpop.f32.mrf.mxu0
      %v3568 = vadd.f32 %v3479, %v3567
      %3569 = vmatmul.bf16.gmra.mxu0 %v2322
      %v3570 = vpop.f32.mrf.mxu0
      %v3571 = vadd.f32 %v3482, %v3570
      %v3572 = vpop.f32.mrf.mxu0
      %v3573 = vadd.f32 %v3484, %v3572
      %3574 = vmatmul.bf16.gmra.mxu0 %v2323
      %v3575 = vpop.f32.mrf.mxu0
      %v3576 = vadd.f32 %v3487, %v3575
      %v3577 = vpop.f32.mrf.mxu0
      %v3578 = vadd.f32 %v3489, %v3577
      %3579 = vmatmul.bf16.gmra.mxu0 %v2324
      %v3580 = vpop.f32.mrf.mxu0
      %v3581 = vadd.f32 %v3492, %v3580
      %v3582 = vpop.f32.mrf.mxu0
      %v3583 = vadd.f32 %v3494, %v3582
      %3584 = vmatmul.bf16.gmra.mxu0 %v2325
      %v3585 = vpop.f32.mrf.mxu0
      %v3586 = vadd.f32 %v3497, %v3585
      %v3587 = vpop.f32.mrf.mxu0
      %v3588 = vadd.f32 %v3499, %v3587
      %3589 = vmatmul.bf16.gmra.mxu0 %v2326
      %v3590 = vpop.f32.mrf.mxu0
      %v3591 = vadd.f32 %v3502, %v3590
      %v3592 = vpop.f32.mrf.mxu0
      %v3593 = vadd.f32 %v3504, %v3592
      %3594 = vmatmul.bf16.gmra.mxu0 %v2327
      %v3595 = vpop.f32.mrf.mxu0
      %v3596 = vadd.f32 %v3507, %v3595
      %v3597 = vpop.f32.mrf.mxu0
      %v3598 = vadd.f32 %v3509, %v3597
      %3599 = vmatmul.bf16.gmra.mxu0 %v2328
      %v3600 = vpop.f32.mrf.mxu0
      %v3601 = vadd.f32 %v3512, %v3600
      %v3602 = vpop.f32.mrf.mxu0
      %v3603 = vadd.f32 %v3514, %v3602
      %3604 = vmatmul.bf16.gmra.mxu0 %v2329
      %v3605 = vpop.f32.mrf.mxu0
      %v3606 = vadd.f32 %v3517, %v3605
      %v3607 = vpop.f32.mrf.mxu0
      %v3608 = vadd.f32 %v3519, %v3607
      %3609 = vmatmul.bf16.gmra.mxu0 %v2330
      %v3610 = vpop.f32.mrf.mxu0
      %v3611 = vadd.f32 %v3522, %v3610
      %v3612 = vpop.f32.mrf.mxu0
      %v3613 = vadd.f32 %v3524, %v3612
      %3614 = vdwg.mxu0
      %3615 = vmatpush.bf16.msra.mxu0 %v3154
      %3616 = vmatpush.bf16.msra.mxu0 %v3153
      %3617 = vmatpush.bf16.msra.mxu0 %v3152
      %3618 = vmatpush.bf16.msra.mxu0 %v3151
      %3619 = vmatpush.bf16.msra.mxu0 %v3150
      %3620 = vmatpush.bf16.msra.mxu0 %v3149
      %3621 = vmatpush.bf16.msra.mxu0 %v3148
      %3622 = vmatpush.bf16.msra.mxu0 %v3147
      %3623 = vmatmul.bf16.gmra.mxu0 %v2379
      %v3624 = vpop.f32.mrf.mxu0
      %v3625 = vadd.f32 %v3536, %v3624
      %v3626 = vpop.f32.mrf.mxu0
      %v3627 = vadd.f32 %v3538, %v3626
      %3628 = vmatmul.bf16.gmra.mxu0 %v2380
      %v3629 = vpop.f32.mrf.mxu0
      %v3630 = vadd.f32 %v3541, %v3629
      %v3631 = vpop.f32.mrf.mxu0
      %v3632 = vadd.f32 %v3543, %v3631
      %3633 = vmatmul.bf16.gmra.mxu0 %v2381
      %v3634 = vpop.f32.mrf.mxu0
      %v3635 = vadd.f32 %v3546, %v3634
      %v3636 = vpop.f32.mrf.mxu0
      %v3637 = vadd.f32 %v3548, %v3636
      %3638 = vmatmul.bf16.gmra.mxu0 %v2382
      %v3639 = vpop.f32.mrf.mxu0
      %v3640 = vadd.f32 %v3551, %v3639
      %v3641 = vpop.f32.mrf.mxu0
      %v3642 = vadd.f32 %v3553, %v3641
      %3643 = vmatmul.bf16.gmra.mxu0 %v2383
      %v3644 = vpop.f32.mrf.mxu0
      %v3645 = vadd.f32 %v3556, %v3644
      %v3646 = vpop.f32.mrf.mxu0
      %v3647 = vadd.f32 %v3558, %v3646
      %3648 = vmatmul.bf16.gmra.mxu0 %v2384
      %v3649 = vpop.f32.mrf.mxu0
      %v3650 = vadd.f32 %v3561, %v3649
      %v3651 = vpop.f32.mrf.mxu0
      %v3652 = vadd.f32 %v3563, %v3651
      %3653 = vmatmul.bf16.gmra.mxu0 %v2385
      %v3654 = vpop.f32.mrf.mxu0
      %v3655 = vadd.f32 %v3566, %v3654
      %v3656 = vpop.f32.mrf.mxu0
      %v3657 = vadd.f32 %v3568, %v3656
      %3658 = vmatmul.bf16.gmra.mxu0 %v2386
      %v3659 = vpop.f32.mrf.mxu0
      %v3660 = vadd.f32 %v3571, %v3659
      %v3661 = vpop.f32.mrf.mxu0
      %v3662 = vadd.f32 %v3573, %v3661
      %3663 = vmatmul.bf16.gmra.mxu0 %v2387
      %v3664 = vpop.f32.mrf.mxu0
      %v3665 = vadd.f32 %v3576, %v3664
      %v3666 = vpop.f32.mrf.mxu0
      %v3667 = vadd.f32 %v3578, %v3666
      %3668 = vmatmul.bf16.gmra.mxu0 %v2388
      %v3669 = vpop.f32.mrf.mxu0
      %v3670 = vadd.f32 %v3581, %v3669
      %v3671 = vpop.f32.mrf.mxu0
      %v3672 = vadd.f32 %v3583, %v3671
      %3673 = vmatmul.bf16.gmra.mxu0 %v2389
      %v3674 = vpop.f32.mrf.mxu0
      %v3675 = vadd.f32 %v3586, %v3674
      %v3676 = vpop.f32.mrf.mxu0
      %v3677 = vadd.f32 %v3588, %v3676
      %3678 = vmatmul.bf16.gmra.mxu0 %v2390
      %v3679 = vpop.f32.mrf.mxu0
      %v3680 = vadd.f32 %v3591, %v3679
      %v3681 = vpop.f32.mrf.mxu0
      %v3682 = vadd.f32 %v3593, %v3681
      %3683 = vmatmul.bf16.gmra.mxu0 %v2391
      %v3684 = vpop.f32.mrf.mxu0
      %v3685 = vadd.f32 %v3596, %v3684
      %v3686 = vpop.f32.mrf.mxu0
      %v3687 = vadd.f32 %v3598, %v3686
      %3688 = vmatmul.bf16.gmra.mxu0 %v2392
      %v3689 = vpop.f32.mrf.mxu0
      %v3690 = vadd.f32 %v3601, %v3689
      %v3691 = vpop.f32.mrf.mxu0
      %v3692 = vadd.f32 %v3603, %v3691
      %3693 = vmatmul.bf16.gmra.mxu0 %v2393
      %v3694 = vpop.f32.mrf.mxu0
      %v3695 = vadd.f32 %v3606, %v3694
      %v3696 = vpop.f32.mrf.mxu0
      %v3697 = vadd.f32 %v3608, %v3696
      %3698 = vmatmul.bf16.gmra.mxu0 %v2394
      %v3699 = vpop.f32.mrf.mxu0
      %v3700 = vadd.f32 %v3611, %v3699
      %v3701 = vpop.f32.mrf.mxu0
      %v3702 = vadd.f32 %v3613, %v3701
      %3703 = vdwg.mxu0
      %3704 = vmatpush.bf16.msra.mxu0 %v3162
      %3705 = vmatpush.bf16.msra.mxu0 %v3161
      %3706 = vmatpush.bf16.msra.mxu0 %v3160
      %3707 = vmatpush.bf16.msra.mxu0 %v3159
      %3708 = vmatpush.bf16.msra.mxu0 %v3158
      %3709 = vmatpush.bf16.msra.mxu0 %v3157
      %3710 = vmatpush.bf16.msra.mxu0 %v3156
      %3711 = vmatpush.bf16.msra.mxu0 %v3155
      %3712 = vmatmul.bf16.gmra.mxu0 %v2443
      %v3713 = vpop.f32.mrf.mxu0
      %v3714 = vadd.f32 %v3625, %v3713
      %v3715 = vpop.f32.mrf.mxu0
      %v3716 = vadd.f32 %v3627, %v3715
      %3717 = vmatmul.bf16.gmra.mxu0 %v2444
      %v3718 = vpop.f32.mrf.mxu0
      %v3719 = vadd.f32 %v3630, %v3718
      %v3720 = vpop.f32.mrf.mxu0
      %v3721 = vadd.f32 %v3632, %v3720
      %3722 = vmatmul.bf16.gmra.mxu0 %v2445
      %v3723 = vpop.f32.mrf.mxu0
      %v3724 = vadd.f32 %v3635, %v3723
      %v3725 = vpop.f32.mrf.mxu0
      %v3726 = vadd.f32 %v3637, %v3725
      %3727 = vmatmul.bf16.gmra.mxu0 %v2446
      %v3728 = vpop.f32.mrf.mxu0
      %v3729 = vadd.f32 %v3640, %v3728
      %v3730 = vpop.f32.mrf.mxu0
      %v3731 = vadd.f32 %v3642, %v3730
      %3732 = vmatmul.bf16.gmra.mxu0 %v2447
      %v3733 = vpop.f32.mrf.mxu0
      %v3734 = vadd.f32 %v3645, %v3733
      %v3735 = vpop.f32.mrf.mxu0
      %v3736 = vadd.f32 %v3647, %v3735
      %3737 = vmatmul.bf16.gmra.mxu0 %v2448
      %v3738 = vpop.f32.mrf.mxu0
      %v3739 = vadd.f32 %v3650, %v3738
      %v3740 = vpop.f32.mrf.mxu0
      %v3741 = vadd.f32 %v3652, %v3740
      %3742 = vmatmul.bf16.gmra.mxu0 %v2449
      %v3743 = vpop.f32.mrf.mxu0
      %v3744 = vadd.f32 %v3655, %v3743
      %v3745 = vpop.f32.mrf.mxu0
      %v3746 = vadd.f32 %v3657, %v3745
      %3747 = vmatmul.bf16.gmra.mxu0 %v2450
      %v3748 = vpop.f32.mrf.mxu0
      %v3749 = vadd.f32 %v3660, %v3748
      %v3750 = vpop.f32.mrf.mxu0
      %v3751 = vadd.f32 %v3662, %v3750
      %3752 = vmatmul.bf16.gmra.mxu0 %v2451
      %v3753 = vpop.f32.mrf.mxu0
      %v3754 = vadd.f32 %v3665, %v3753
      %v3755 = vpop.f32.mrf.mxu0
      %v3756 = vadd.f32 %v3667, %v3755
      %3757 = vmatmul.bf16.gmra.mxu0 %v2452
      %v3758 = vpop.f32.mrf.mxu0
      %v3759 = vadd.f32 %v3670, %v3758
      %v3760 = vpop.f32.mrf.mxu0
      %v3761 = vadd.f32 %v3672, %v3760
      %3762 = vmatmul.bf16.gmra.mxu0 %v2453
      %v3763 = vpop.f32.mrf.mxu0
      %v3764 = vadd.f32 %v3675, %v3763
      %v3765 = vpop.f32.mrf.mxu0
      %v3766 = vadd.f32 %v3677, %v3765
      %3767 = vmatmul.bf16.gmra.mxu0 %v2454
      %v3768 = vpop.f32.mrf.mxu0
      %v3769 = vadd.f32 %v3680, %v3768
      %v3770 = vpop.f32.mrf.mxu0
      %v3771 = vadd.f32 %v3682, %v3770
      %3772 = vmatmul.bf16.gmra.mxu0 %v2455
      %v3773 = vpop.f32.mrf.mxu0
      %v3774 = vadd.f32 %v3685, %v3773
      %v3775 = vpop.f32.mrf.mxu0
      %v3776 = vadd.f32 %v3687, %v3775
      %3777 = vmatmul.bf16.gmra.mxu0 %v2456
      %v3778 = vpop.f32.mrf.mxu0
      %v3779 = vadd.f32 %v3690, %v3778
      %v3780 = vpop.f32.mrf.mxu0
      %v3781 = vadd.f32 %v3692, %v3780
      %3782 = vmatmul.bf16.gmra.mxu0 %v2457
      %v3783 = vpop.f32.mrf.mxu0
      %v3784 = vadd.f32 %v3695, %v3783
      %v3785 = vpop.f32.mrf.mxu0
      %v3786 = vadd.f32 %v3697, %v3785
      %3787 = vmatmul.bf16.gmra.mxu0 %v2458
      %v3788 = vpop.f32.mrf.mxu0
      %v3789 = vadd.f32 %v3700, %v3788
      %v3790 = vpop.f32.mrf.mxu0
      %v3791 = vadd.f32 %v3702, %v3790
      %3792 = vdwg.mxu0
      %3793 = vmatpush.bf16.msra.mxu0 %v3170
      %3794 = vmatpush.bf16.msra.mxu0 %v3169
      %3795 = vmatpush.bf16.msra.mxu0 %v3168
      %3796 = vmatpush.bf16.msra.mxu0 %v3167
      %3797 = vmatpush.bf16.msra.mxu0 %v3166
      %3798 = vmatpush.bf16.msra.mxu0 %v3165
      %3799 = vmatpush.bf16.msra.mxu0 %v3164
      %3800 = vmatpush.bf16.msra.mxu0 %v3163
      %3801 = vmatmul.bf16.gmra.mxu0 %v2523
      %v3802 = vpop.f32.mrf.mxu0
      %v3803 = vadd.f32 %v3714, %v3802
      %v3804 = vpop.f32.mrf.mxu0
      %v3805 = vadd.f32 %v3716, %v3804
      %3806 = vmatmul.bf16.gmra.mxu0 %v2524
      %v3807 = vpop.f32.mrf.mxu0
      %v3808 = vadd.f32 %v3719, %v3807
      %v3809 = vpop.f32.mrf.mxu0
      %v3810 = vadd.f32 %v3721, %v3809
      %3811 = vmatmul.bf16.gmra.mxu0 %v2525
      %v3812 = vpop.f32.mrf.mxu0
      %v3813 = vadd.f32 %v3724, %v3812
      %v3814 = vpop.f32.mrf.mxu0
      %v3815 = vadd.f32 %v3726, %v3814
      %3816 = vmatmul.bf16.gmra.mxu0 %v2526
      %v3817 = vpop.f32.mrf.mxu0
      %v3818 = vadd.f32 %v3729, %v3817
      %v3819 = vpop.f32.mrf.mxu0
      %v3820 = vadd.f32 %v3731, %v3819
      %3821 = vmatmul.bf16.gmra.mxu0 %v2527
      %v3822 = vpop.f32.mrf.mxu0
      %v3823 = vadd.f32 %v3734, %v3822
      %v3824 = vpop.f32.mrf.mxu0
      %v3825 = vadd.f32 %v3736, %v3824
      %3826 = vmatmul.bf16.gmra.mxu0 %v2528
      %v3827 = vpop.f32.mrf.mxu0
      %v3828 = vadd.f32 %v3739, %v3827
      %v3829 = vpop.f32.mrf.mxu0
      %v3830 = vadd.f32 %v3741, %v3829
      %3831 = vmatmul.bf16.gmra.mxu0 %v2529
      %v3832 = vpop.f32.mrf.mxu0
      %v3833 = vadd.f32 %v3744, %v3832
      %v3834 = vpop.f32.mrf.mxu0
      %v3835 = vadd.f32 %v3746, %v3834
      %3836 = vmatmul.bf16.gmra.mxu0 %v2530
      %v3837 = vpop.f32.mrf.mxu0
      %v3838 = vadd.f32 %v3749, %v3837
      %v3839 = vpop.f32.mrf.mxu0
      %v3840 = vadd.f32 %v3751, %v3839
      %3841 = vmatmul.bf16.gmra.mxu0 %v2531
      %v3842 = vpop.f32.mrf.mxu0
      %v3843 = vadd.f32 %v3754, %v3842
      %v3844 = vpop.f32.mrf.mxu0
      %v3845 = vadd.f32 %v3756, %v3844
      %3846 = vmatmul.bf16.gmra.mxu0 %v2532
      %v3847 = vpop.f32.mrf.mxu0
      %v3848 = vadd.f32 %v3759, %v3847
      %v3849 = vpop.f32.mrf.mxu0
      %v3850 = vadd.f32 %v3761, %v3849
      %3851 = vmatmul.bf16.gmra.mxu0 %v2533
      %v3852 = vpop.f32.mrf.mxu0
      %v3853 = vadd.f32 %v3764, %v3852
      %v3854 = vpop.f32.mrf.mxu0
      %v3855 = vadd.f32 %v3766, %v3854
      %3856 = vmatmul.bf16.gmra.mxu0 %v2534
      %v3857 = vpop.f32.mrf.mxu0
      %v3858 = vadd.f32 %v3769, %v3857
      %v3859 = vpop.f32.mrf.mxu0
      %v3860 = vadd.f32 %v3771, %v3859
      %3861 = vmatmul.bf16.gmra.mxu0 %v2535
      %v3862 = vpop.f32.mrf.mxu0
      %v3863 = vadd.f32 %v3774, %v3862
      %v3864 = vpop.f32.mrf.mxu0
      %v3865 = vadd.f32 %v3776, %v3864
      %3866 = vmatmul.bf16.gmra.mxu0 %v2536
      %v3867 = vpop.f32.mrf.mxu0
      %v3868 = vadd.f32 %v3779, %v3867
      %v3869 = vpop.f32.mrf.mxu0
      %v3870 = vadd.f32 %v3781, %v3869
      %3871 = vmatmul.bf16.gmra.mxu0 %v2537
      %v3872 = vpop.f32.mrf.mxu0
      %v3873 = vadd.f32 %v3784, %v3872
      %v3874 = vpop.f32.mrf.mxu0
      %v3875 = vadd.f32 %v3786, %v3874
      %3876 = vmatmul.bf16.gmra.mxu0 %v2538
      %v3877 = vpop.f32.mrf.mxu0
      %v3878 = vadd.f32 %v3789, %v3877
      %v3879 = vpop.f32.mrf.mxu0
      %v3880 = vadd.f32 %v3791, %v3879
      %3881 = vdwg.mxu0
      %3882 = vmatpush.bf16.msra.mxu0 %v3178
      %3883 = vmatpush.bf16.msra.mxu0 %v3177
      %3884 = vmatpush.bf16.msra.mxu0 %v3176
      %3885 = vmatpush.bf16.msra.mxu0 %v3175
      %3886 = vmatpush.bf16.msra.mxu0 %v3174
      %3887 = vmatpush.bf16.msra.mxu0 %v3173
      %3888 = vmatpush.bf16.msra.mxu0 %v3172
      %3889 = vmatpush.bf16.msra.mxu0 %v3171
      %3890 = vmatmul.bf16.gmra.mxu0 %v2587
      %v3891 = vpop.f32.mrf.mxu0
      %v3892 = vadd.f32 %v3803, %v3891
      %v3893 = vpop.f32.mrf.mxu0
      %v3894 = vadd.f32 %v3805, %v3893
      %3895 = vmatmul.bf16.gmra.mxu0 %v2588
      %v3896 = vpop.f32.mrf.mxu0
      %v3897 = vadd.f32 %v3808, %v3896
      %v3898 = vpop.f32.mrf.mxu0
      %v3899 = vadd.f32 %v3810, %v3898
      %3900 = vmatmul.bf16.gmra.mxu0 %v2589
      %v3901 = vpop.f32.mrf.mxu0
      %v3902 = vadd.f32 %v3813, %v3901
      %v3903 = vpop.f32.mrf.mxu0
      %v3904 = vadd.f32 %v3815, %v3903
      %3905 = vmatmul.bf16.gmra.mxu0 %v2590
      %v3906 = vpop.f32.mrf.mxu0
      %v3907 = vadd.f32 %v3818, %v3906
      %v3908 = vpop.f32.mrf.mxu0
      %v3909 = vadd.f32 %v3820, %v3908
      %3910 = vmatmul.bf16.gmra.mxu0 %v2591
      %v3911 = vpop.f32.mrf.mxu0
      %v3912 = vadd.f32 %v3823, %v3911
      %v3913 = vpop.f32.mrf.mxu0
      %v3914 = vadd.f32 %v3825, %v3913
      %3915 = vmatmul.bf16.gmra.mxu0 %v2592
      %v3916 = vpop.f32.mrf.mxu0
      %v3917 = vadd.f32 %v3828, %v3916
      %v3918 = vpop.f32.mrf.mxu0
      %v3919 = vadd.f32 %v3830, %v3918
      %3920 = vmatmul.bf16.gmra.mxu0 %v2593
      %v3921 = vpop.f32.mrf.mxu0
      %v3922 = vadd.f32 %v3833, %v3921
      %v3923 = vpop.f32.mrf.mxu0
      %v3924 = vadd.f32 %v3835, %v3923
      %3925 = vmatmul.bf16.gmra.mxu0 %v2594
      %v3926 = vpop.f32.mrf.mxu0
      %v3927 = vadd.f32 %v3838, %v3926
      %v3928 = vpop.f32.mrf.mxu0
      %v3929 = vadd.f32 %v3840, %v3928
      %3930 = vmatmul.bf16.gmra.mxu0 %v2595
      %v3931 = vpop.f32.mrf.mxu0
      %v3932 = vadd.f32 %v3843, %v3931
      %v3933 = vpop.f32.mrf.mxu0
      %v3934 = vadd.f32 %v3845, %v3933
      %3935 = vmatmul.bf16.gmra.mxu0 %v2596
      %v3936 = vpop.f32.mrf.mxu0
      %v3937 = vadd.f32 %v3848, %v3936
      %v3938 = vpop.f32.mrf.mxu0
      %v3939 = vadd.f32 %v3850, %v3938
      %3940 = vmatmul.bf16.gmra.mxu0 %v2597
      %v3941 = vpop.f32.mrf.mxu0
      %v3942 = vadd.f32 %v3853, %v3941
      %v3943 = vpop.f32.mrf.mxu0
      %v3944 = vadd.f32 %v3855, %v3943
      %3945 = vmatmul.bf16.gmra.mxu0 %v2598
      %v3946 = vpop.f32.mrf.mxu0
      %v3947 = vadd.f32 %v3858, %v3946
      %v3948 = vpop.f32.mrf.mxu0
      %v3949 = vadd.f32 %v3860, %v3948
      %3950 = vmatmul.bf16.gmra.mxu0 %v2599
      %v3951 = vpop.f32.mrf.mxu0
      %v3952 = vadd.f32 %v3863, %v3951
      %v3953 = vpop.f32.mrf.mxu0
      %v3954 = vadd.f32 %v3865, %v3953
      %3955 = vmatmul.bf16.gmra.mxu0 %v2600
      %v3956 = vpop.f32.mrf.mxu0
      %v3957 = vadd.f32 %v3868, %v3956
      %v3958 = vpop.f32.mrf.mxu0
      %v3959 = vadd.f32 %v3870, %v3958
      %3960 = vmatmul.bf16.gmra.mxu0 %v2601
      %v3961 = vpop.f32.mrf.mxu0
      %v3962 = vadd.f32 %v3873, %v3961
      %v3963 = vpop.f32.mrf.mxu0
      %v3964 = vadd.f32 %v3875, %v3963
      %3965 = vmatmul.bf16.gmra.mxu0 %v2602
      %v3966 = vpop.f32.mrf.mxu0
      %v3967 = vadd.f32 %v3878, %v3966
      %v3968 = vpop.f32.mrf.mxu0
      %v3969 = vadd.f32 %v3880, %v3968
      %3970 = vdwg.mxu0
      %3971 = vmatpush.bf16.msra.mxu0 %v3186
      %3972 = vmatpush.bf16.msra.mxu0 %v3185
      %3973 = vmatpush.bf16.msra.mxu0 %v3184
      %3974 = vmatpush.bf16.msra.mxu0 %v3183
      %3975 = vmatpush.bf16.msra.mxu0 %v3182
      %3976 = vmatpush.bf16.msra.mxu0 %v3181
      %3977 = vmatpush.bf16.msra.mxu0 %v3180
      %3978 = vmatpush.bf16.msra.mxu0 %v3179
      %3979 = vmatmul.bf16.gmra.mxu0 %v2651
      %v3980 = vpop.f32.mrf.mxu0
      %v3981 = vadd.f32 %v3892, %v3980
      %v3982 = vpop.f32.mrf.mxu0
      %v3983 = vadd.f32 %v3894, %v3982
      %3984 = vmatmul.bf16.gmra.mxu0 %v2652
      %v3985 = vpop.f32.mrf.mxu0
      %v3986 = vadd.f32 %v3897, %v3985
      %v3987 = vpop.f32.mrf.mxu0
      %v3988 = vadd.f32 %v3899, %v3987
      %3989 = vmatmul.bf16.gmra.mxu0 %v2653
      %v3990 = vpop.f32.mrf.mxu0
      %v3991 = vadd.f32 %v3902, %v3990
      %v3992 = vpop.f32.mrf.mxu0
      %v3993 = vadd.f32 %v3904, %v3992
      %3994 = vmatmul.bf16.gmra.mxu0 %v2654
      %v3995 = vpop.f32.mrf.mxu0
      %v3996 = vadd.f32 %v3907, %v3995
      %v3997 = vpop.f32.mrf.mxu0
      %v3998 = vadd.f32 %v3909, %v3997
      %3999 = vmatmul.bf16.gmra.mxu0 %v2655
      %v4000 = vpop.f32.mrf.mxu0
      %v4001 = vadd.f32 %v3912, %v4000
      %v4002 = vpop.f32.mrf.mxu0
      %v4003 = vadd.f32 %v3914, %v4002
      %4004 = vmatmul.bf16.gmra.mxu0 %v2656
      %v4005 = vpop.f32.mrf.mxu0
      %v4006 = vadd.f32 %v3917, %v4005
      %v4007 = vpop.f32.mrf.mxu0
      %v4008 = vadd.f32 %v3919, %v4007
      %4009 = vmatmul.bf16.gmra.mxu0 %v2657
      %v4010 = vpop.f32.mrf.mxu0
      %v4011 = vadd.f32 %v3922, %v4010
      %v4012 = vpop.f32.mrf.mxu0
      %v4013 = vadd.f32 %v3924, %v4012
      %4014 = vmatmul.bf16.gmra.mxu0 %v2658
      %v4015 = vpop.f32.mrf.mxu0
      %v4016 = vadd.f32 %v3927, %v4015
      %v4017 = vpop.f32.mrf.mxu0
      %v4018 = vadd.f32 %v3929, %v4017
      %4019 = vmatmul.bf16.gmra.mxu0 %v2659
      %v4020 = vpop.f32.mrf.mxu0
      %v4021 = vadd.f32 %v3932, %v4020
      %v4022 = vpop.f32.mrf.mxu0
      %v4023 = vadd.f32 %v3934, %v4022
      %4024 = vmatmul.bf16.gmra.mxu0 %v2660
      %v4025 = vpop.f32.mrf.mxu0
      %v4026 = vadd.f32 %v3937, %v4025
      %v4027 = vpop.f32.mrf.mxu0
      %v4028 = vadd.f32 %v3939, %v4027
      %4029 = vmatmul.bf16.gmra.mxu0 %v2661
      %v4030 = vpop.f32.mrf.mxu0
      %v4031 = vadd.f32 %v3942, %v4030
      %v4032 = vpop.f32.mrf.mxu0
      %v4033 = vadd.f32 %v3944, %v4032
      %4034 = vmatmul.bf16.gmra.mxu0 %v2662
      %v4035 = vpop.f32.mrf.mxu0
      %v4036 = vadd.f32 %v3947, %v4035
      %v4037 = vpop.f32.mrf.mxu0
      %v4038 = vadd.f32 %v3949, %v4037
      %4039 = vmatmul.bf16.gmra.mxu0 %v2663
      %v4040 = vpop.f32.mrf.mxu0
      %v4041 = vadd.f32 %v3952, %v4040
      %v4042 = vpop.f32.mrf.mxu0
      %v4043 = vadd.f32 %v3954, %v4042
      %4044 = vmatmul.bf16.gmra.mxu0 %v2664
      %v4045 = vpop.f32.mrf.mxu0
      %v4046 = vadd.f32 %v3957, %v4045
      %v4047 = vpop.f32.mrf.mxu0
      %v4048 = vadd.f32 %v3959, %v4047
      %4049 = vmatmul.bf16.gmra.mxu0 %v2665
      %v4050 = vpop.f32.mrf.mxu0
      %v4051 = vadd.f32 %v3962, %v4050
      %v4052 = vpop.f32.mrf.mxu0
      %v4053 = vadd.f32 %v3964, %v4052
      %4054 = vmatmul.bf16.gmra.mxu0 %v2666
      %v4055 = vpop.f32.mrf.mxu0
      %v4056 = vadd.f32 %v3967, %v4055
      %v4057 = vpop.f32.mrf.mxu0
      %v4058 = vadd.f32 %v3969, %v4057
      %4059 = vdwg.mxu0
      %v4060 = vpack.c.bf16 %v3981, %v3981
      %v4061 = vpack.c.bf16 %v3983, %v3983
      %v4062 = vpack.c.bf16 %v3986, %v3986
      %v4063 = vpack.c.bf16 %v3988, %v3988
      %v4064 = vpack.c.bf16 %v3991, %v3991
      %v4065 = vpack.c.bf16 %v3993, %v3993
      %v4066 = vpack.c.bf16 %v3996, %v3996
      %v4067 = vpack.c.bf16 %v3998, %v3998
      %v4068 = vpack.c.bf16 %v4001, %v4001
      %v4069 = vpack.c.bf16 %v4003, %v4003
      %v4070 = vpack.c.bf16 %v4006, %v4006
      %v4071 = vpack.c.bf16 %v4008, %v4008
      %v4072 = vpack.c.bf16 %v4011, %v4011
      %v4073 = vpack.c.bf16 %v4013, %v4013
      %v4074 = vpack.c.bf16 %v4016, %v4016
      %v4075 = vpack.c.bf16 %v4018, %v4018
      %v4076 = vpack.c.bf16 %v4021, %v4021
      %v4077 = vpack.c.bf16 %v4023, %v4023
      %v4078 = vpack.c.bf16 %v4026, %v4026
      %v4079 = vpack.c.bf16 %v4028, %v4028
      %v4080 = vpack.c.bf16 %v4031, %v4031
      %v4081 = vpack.c.bf16 %v4033, %v4033
      %v4082 = vpack.c.bf16 %v4036, %v4036
      %v4083 = vpack.c.bf16 %v4038, %v4038
      %v4084 = vpack.c.bf16 %v4041, %v4041
      %v4085 = vpack.c.bf16 %v4043, %v4043
      %v4086 = vpack.c.bf16 %v4046, %v4046
      %v4087 = vpack.c.bf16 %v4048, %v4048
      %v4088 = vpack.c.bf16 %v4051, %v4051
      %v4089 = vpack.c.bf16 %v4053, %v4053
      %v4090 = vpack.c.bf16 %v4056, %v4056
      %v4091 = vpack.c.bf16 %v4058, %v4058
      %4092 = vst [vmem:[%s219] sm:$0xf] %v4060
      %4093 = vst [vmem:[%s219 + $0x4] sm:$0xf] %v4061
      %4094 = vst [vmem:[%s219 + $0x8] sm:$0xf] %v4062
      %4095 = vst [vmem:[%s219 + $0xc] sm:$0xf] %v4063
      %4096 = vst [vmem:[%s219 + $0x10] sm:$0xf] %v4064
      %4097 = vst [vmem:[%s219 + $0x14] sm:$0xf] %v4065
      %4098 = vst [vmem:[%s219 + $0x18] sm:$0xf] %v4066
      %4099 = vst [vmem:[%s219 + $0x1c] sm:$0xf] %v4067
      %4100 = vst [vmem:[%s219 + $0x20] sm:$0xf] %v4068
      %4101 = vst [vmem:[%s219 + $0x24] sm:$0xf] %v4069
      %4102 = vst [vmem:[%s219 + $0x28] sm:$0xf] %v4070
      %4103 = vst [vmem:[%s219 + $0x2c] sm:$0xf] %v4071
      %4104 = vst [vmem:[%s219 + $0x30] sm:$0xf] %v4072
      %4105 = vst [vmem:[%s219 + $0x34] sm:$0xf] %v4073
      %4106 = vst [vmem:[%s219 + $0x38] sm:$0xf] %v4074
      %4107 = vst [vmem:[%s219 + $0x3c] sm:$0xf] %v4075
      %4108 = vst [vmem:[%s219 + $0x40] sm:$0xf] %v4076
      %4109 = vst [vmem:[%s219 + $0x44] sm:$0xf] %v4077
      %4110 = vst [vmem:[%s219 + $0x48] sm:$0xf] %v4078
      %4111 = vst [vmem:[%s219 + $0x4c] sm:$0xf] %v4079
      %4112 = vst [vmem:[%s219 + $0x50] sm:$0xf] %v4080
      %4113 = vst [vmem:[%s219 + $0x54] sm:$0xf] %v4081
      %4114 = vst [vmem:[%s219 + $0x58] sm:$0xf] %v4082
      %4115 = vst [vmem:[%s219 + $0x5c] sm:$0xf] %v4083
      %4116 = vst [vmem:[%s219 + $0x60] sm:$0xf] %v4084
      %4117 = vst [vmem:[%s219 + $0x64] sm:$0xf] %v4085
      %4118 = vst [vmem:[%s219 + $0x68] sm:$0xf] %v4086
      %4119 = vst [vmem:[%s219 + $0x6c] sm:$0xf] %v4087
      %4120 = vst [vmem:[%s219 + $0x70] sm:$0xf] %v4088
      %4121 = vst [vmem:[%s219 + $0x74] sm:$0xf] %v4089
      %4122 = vst [vmem:[%s219 + $0x78] sm:$0xf] %v4090
      %4123 = vst [vmem:[%s219 + $0x7c] sm:$0xf] %v4091
      %v4124 = vadd.f32 %v3981, %v3983
      %v4125 = vadd.f32 %v4124, %v3986
      %v4126 = vadd.f32 %v4125, %v3988
      %v4127 = vadd.f32 %v4126, %v3991
      %v4128 = vadd.f32 %v4127, %v3993
      %v4129 = vadd.f32 %v4128, %v3996
      %v4130 = vadd.f32 %v4129, %v3998
      %v4131 = vadd.f32 %v4130, %v4001
      %v4132 = vadd.f32 %v4131, %v4003
      %v4133 = vadd.f32 %v4132, %v4006
      %v4134 = vadd.f32 %v4133, %v4008
      %v4135 = vadd.f32 %v4134, %v4011
      %v4136 = vadd.f32 %v4135, %v4013
      %v4137 = vadd.f32 %v4136, %v4016
      %v4138 = vadd.f32 %v4137, %v4018
      %v4139 = vadd.f32 %v4138, %v4021
      %v4140 = vadd.f32 %v4139, %v4023
      %v4141 = vadd.f32 %v4140, %v4026
      %v4142 = vadd.f32 %v4141, %v4028
      %v4143 = vadd.f32 %v4142, %v4031
      %v4144 = vadd.f32 %v4143, %v4033
      %v4145 = vadd.f32 %v4144, %v4036
      %v4146 = vadd.f32 %v4145, %v4038
      %v4147 = vadd.f32 %v4146, %v4041
      %v4148 = vadd.f32 %v4147, %v4043
      %v4149 = vadd.f32 %v4148, %v4046
      %v4150 = vadd.f32 %v4149, %v4048
      %v4151 = vadd.f32 %v4150, %v4051
      %v4152 = vadd.f32 %v4151, %v4053
      %v4153 = vadd.f32 %v4152, %v4056
      %v4154 = vadd.f32 %v4153, %v4058
      %v4155 = vrot.slane %v4154, 4
      %v4156 = vadd.f32 %v4154, %v4155
      %v4157 = vrot.slane %v4156, 2
      %v4158 = vadd.f32 %v4156, %v4157
      %v4159 = vrot.slane %v4158, 1
      %v4160 = vadd.f32 %v4158, %v4159
      %v4161 = vrcp.pop 256.0
      %v4162 = vmul.f32 256.0, %v4161
      %v4163 = vsub.f32 1.0, %v4162
      %v4164 = vmul.f32 %v4161, %v4163
      %v4165 = vadd.f32 %v4161, %v4164
      %vm4166 = vweird.f32 %v4161
      %v4167 = vsel %vm4166, %v4161, %v4165
      %v4168 = vmul.f32 %v4160, %v4167
      %4169 = vst [vmem:[%s226] sm:$0x1] %v4168
      %v4170 = vsub.f32 %v3981, %v4168
      %v4171 = vsub.f32 %v3983, %v4168
      %v4172 = vsub.f32 %v3986, %v4168
      %v4173 = vsub.f32 %v3988, %v4168
      %v4174 = vsub.f32 %v3991, %v4168
      %v4175 = vsub.f32 %v3993, %v4168
      %v4176 = vsub.f32 %v3996, %v4168
      %v4177 = vsub.f32 %v3998, %v4168
      %v4178 = vsub.f32 %v4001, %v4168
      %v4179 = vsub.f32 %v4003, %v4168
      %v4180 = vsub.f32 %v4006, %v4168
      %v4181 = vsub.f32 %v4008, %v4168
      %v4182 = vsub.f32 %v4011, %v4168
      %v4183 = vsub.f32 %v4013, %v4168
      %v4184 = vsub.f32 %v4016, %v4168
      %v4185 = vsub.f32 %v4018, %v4168
      %v4186 = vsub.f32 %v4021, %v4168
      %v4187 = vsub.f32 %v4023, %v4168
      %v4188 = vsub.f32 %v4026, %v4168
      %v4189 = vsub.f32 %v4028, %v4168
      %v4190 = vsub.f32 %v4031, %v4168
      %v4191 = vsub.f32 %v4033, %v4168
      %v4192 = vsub.f32 %v4036, %v4168
      %v4193 = vsub.f32 %v4038, %v4168
      %v4194 = vsub.f32 %v4041, %v4168
      %v4195 = vsub.f32 %v4043, %v4168
      %v4196 = vsub.f32 %v4046, %v4168
      %v4197 = vsub.f32 %v4048, %v4168
      %v4198 = vsub.f32 %v4051, %v4168
      %v4199 = vsub.f32 %v4053, %v4168
      %v4200 = vsub.f32 %v4056, %v4168
      %v4201 = vsub.f32 %v4058, %v4168
      %v4202 = vmul.f32 %v4170, %v4170
      %v4203 = vmul.f32 %v4171, %v4171
      %v4204 = vmul.f32 %v4172, %v4172
      %v4205 = vmul.f32 %v4173, %v4173
      %v4206 = vmul.f32 %v4174, %v4174
      %v4207 = vmul.f32 %v4175, %v4175
      %v4208 = vmul.f32 %v4176, %v4176
      %v4209 = vmul.f32 %v4177, %v4177
      %v4210 = vmul.f32 %v4178, %v4178
      %v4211 = vmul.f32 %v4179, %v4179
      %v4212 = vmul.f32 %v4180, %v4180
      %v4213 = vmul.f32 %v4181, %v4181
      %v4214 = vmul.f32 %v4182, %v4182
      %v4215 = vmul.f32 %v4183, %v4183
      %v4216 = vmul.f32 %v4184, %v4184
      %v4217 = vmul.f32 %v4185, %v4185
      %v4218 = vmul.f32 %v4186, %v4186
      %v4219 = vmul.f32 %v4187, %v4187
      %v4220 = vmul.f32 %v4188, %v4188
      %v4221 = vmul.f32 %v4189, %v4189
      %v4222 = vmul.f32 %v4190, %v4190
      %v4223 = vmul.f32 %v4191, %v4191
      %v4224 = vmul.f32 %v4192, %v4192
      %v4225 = vmul.f32 %v4193, %v4193
      %v4226 = vmul.f32 %v4194, %v4194
      %v4227 = vmul.f32 %v4195, %v4195
      %v4228 = vmul.f32 %v4196, %v4196
      %v4229 = vmul.f32 %v4197, %v4197
      %v4230 = vmul.f32 %v4198, %v4198
      %v4231 = vmul.f32 %v4199, %v4199
      %v4232 = vmul.f32 %v4200, %v4200
      %v4233 = vmul.f32 %v4201, %v4201
      %v4234 = vadd.f32 %v4202, %v4203
      %v4235 = vadd.f32 %v4234, %v4204
      %v4236 = vadd.f32 %v4235, %v4205
      %v4237 = vadd.f32 %v4236, %v4206
      %v4238 = vadd.f32 %v4237, %v4207
      %v4239 = vadd.f32 %v4238, %v4208
      %v4240 = vadd.f32 %v4239, %v4209
      %v4241 = vadd.f32 %v4240, %v4210
      %v4242 = vadd.f32 %v4241, %v4211
      %v4243 = vadd.f32 %v4242, %v4212
      %v4244 = vadd.f32 %v4243, %v4213
      %v4245 = vadd.f32 %v4244, %v4214
      %v4246 = vadd.f32 %v4245, %v4215
      %v4247 = vadd.f32 %v4246, %v4216
      %v4248 = vadd.f32 %v4247, %v4217
      %v4249 = vadd.f32 %v4248, %v4218
      %v4250 = vadd.f32 %v4249, %v4219
      %v4251 = vadd.f32 %v4250, %v4220
      %v4252 = vadd.f32 %v4251, %v4221
      %v4253 = vadd.f32 %v4252, %v4222
      %v4254 = vadd.f32 %v4253, %v4223
      %v4255 = vadd.f32 %v4254, %v4224
      %v4256 = vadd.f32 %v4255, %v4225
      %v4257 = vadd.f32 %v4256, %v4226
      %v4258 = vadd.f32 %v4257, %v4227
      %v4259 = vadd.f32 %v4258, %v4228
      %v4260 = vadd.f32 %v4259, %v4229
      %v4261 = vadd.f32 %v4260, %v4230
      %v4262 = vadd.f32 %v4261, %v4231
      %v4263 = vadd.f32 %v4262, %v4232
      %v4264 = vadd.f32 %v4263, %v4233
      %v4265 = vrot.slane %v4264, 4
      %v4266 = vadd.f32 %v4264, %v4265
      %v4267 = vrot.slane %v4266, 2
      %v4268 = vadd.f32 %v4266, %v4267
      %v4269 = vrot.slane %v4268, 1
      %v4270 = vadd.f32 %v4268, %v4269
      %4271 = vst [vmem:[%s226 + $0x1] sm:$0x1] %v4270
      %p4272 = scmp.lt.s32.totalorder %s19, 1
      %s4273 = scalar_select %p4272, %s19, 1
      %p4274 = scmp.lt.s32.totalorder %s20, 0
      %s4275 = scalar_select %p4274, %s20, 0
      %s4276 = smul.addr %s4273, 32
      %s4277 = sadd.s32 %s4275, %s4276
      %s4278 = smul.addr %s4277, 4
      %s4279 = scalar_lea.vmem %s2, %s4278
      %p4280 = scmp.lt.s32.totalorder %s19, 1
      %s4281 = scalar_select %p4280, %s19, 1
      %p4282 = scmp.lt.s32.totalorder %s20, 0
      %s4283 = scalar_select %p4282, %s20, 0
      %s4284 = sadd.s32 %s4283, %s4281
      %s4285 = smul.addr %s4284, 2
      %s4286 = scalar_lea.vmem %s3, %s4285
      // Predicated region
      $region29: #{bridge_forward.3} parent=27 // pred_check
        %p4287 = pneg %p99
      $region30: #{bridge_forward.3} parent=27 // pred_check_branch
        %4289 = sbr.rel (%p4287) target = $region32
      $region31: #{bridge_forward.3} parent=27 // pred_region
        _
      $region32: #{bridge_forward.3} parent=27 // pred_fallthru
        _
      // Predicated region
      $region33: #{bridge_forward.3} parent=27 // pred_check
        %p4290 = pneg %p127
      $region34: #{bridge_forward.3} parent=27 // pred_check_branch
        %4292 = sbr.rel (%p4290) target = $region36
      $region35: #{bridge_forward.3} parent=27 // pred_region
        _
      $region36: #{bridge_forward.3} parent=27 // pred_fallthru
        _
    $region28: #{bridge_forward.3} parent=5 // pred_fallthru
      _
    %p4293 = scmp.le.s32.totalorder 2, %s10
    // Predicated region
    $region37: #{bridge_forward.3} parent=5 // pred_check
      %p4294 = pneg %p4293
    $region38: #{bridge_forward.3} parent=5 // pred_check_branch
      %4296 = sbr.rel (%p4294) target = $region40
    $region39: #{bridge_forward.3} parent=5 // pred_region
      %s4297 = ssub.s32 %s10, 2
      // Predicated region
      $region41: #{bridge_forward.3} parent=39 // pred_check
        %p4298 = pneg %p105
      $region42: #{bridge_forward.3} parent=39 // pred_check_branch
        %4300 = sbr.rel (%p4298) target = $region44
      $region43: #{bridge_forward.3} parent=39 // pred_region
        %p4301 = scmp.lt.s32.totalorder %s21, 1
        %s4302 = scalar_select %p4301, %s21, 1
        %p4303 = scmp.lt.s32.totalorder %s22, 0
        %s4304 = scalar_select %p4303, %s22, 0
        %s4305 = smul.addr %s4302, 32
        %s4306 = sadd.s32 %s4304, %s4305
        %s4307 = smul.addr %s4306, 4
        %s4308 = scalar_lea.vmem %s2, %s4307
      $region44: #{bridge_forward.3} parent=39 // pred_fallthru
        _
      // Predicated region
      $region45: #{bridge_forward.3} parent=39 // pred_check
        %p4309 = pneg %p133
      $region46: #{bridge_forward.3} parent=39 // pred_check_branch
        %4311 = sbr.rel (%p4309) target = $region48
      $region47: #{bridge_forward.3} parent=39 // pred_region
        %p4312 = scmp.lt.s32.totalorder %s21, 1
        %s4313 = scalar_select %p4312, %s21, 1
        %p4314 = scmp.lt.s32.totalorder %s22, 0
        %s4315 = scalar_select %p4314, %s22, 0
        %s4316 = sadd.s32 %s4315, %s4313
        %s4317 = smul.addr %s4316, 2
        %s4318 = scalar_lea.vmem %s3, %s4317
      $region48: #{bridge_forward.3} parent=39 // pred_fallthru
        _
    $region40: #{bridge_forward.3} parent=5 // pred_fallthru
      _
  $region6: #{bridge_forward.3} parent=0 // loop_footer
    %s14 = sadd.s32 1, %s10
  $region7: #{bridge_forward.3} parent=0 // loop_footer_branch
    %9 = sbr.rel target = $region3
  $region8: #{bridge_forward.3} parent=0 // loop_exit
    _

// kernel: bridge_forward.4
$region0: #{bridge_forward.4}
  #allocation0 [shape = 'u32[]', space=smem, size = 0x4, offset = 0x4, fixed_abs, tag = 'smem constant byte address 0x4 - core index']
  #allocation1 [shape = 'u32[72,128]{1,0:T(1,128)}', space=vmem, size = 0x9000, scoped, tag = 'internal scratch']
  #allocation2 [shape = 'bf16[1,18,18,128]{3,2,1,0:T(8,128)(2,1)}', space=vmem, size = 0x1b000, scoped, tag = 'scratch operand']
  %s0 = inlined_call_operand.vmem [shape: bf16[2,16,16,128], index: 0, kind: input, shape index: {}]
  %s1 = inlined_call_operand.vmem [shape: f32[1,128], index: 1, kind: input, shape index: {}]
  %s2 = inlined_call_operand.vmem [shape: f32[1,128], index: 2, kind: input, shape index: {}]
  %s3 = inlined_call_operand.vmem [shape: bf16[1152,128], index: 3, kind: input, shape index: {}]
  %s4 = inlined_call_operand.vmem [shape: f32[2,16,16,128], index: 4, kind: output, shape index: {0}]
  %s5 = inlined_call_operand.vmem [shape: f32[2,2,128], index: 5, kind: output, shape index: {1}]
  %6 = xla_tuple %s4, %s5
  %s7 = sld [smem:[#allocation0]]
  $region57: #{bridge_forward.4} parent=0
    _
  %s9 = ssub.s32 1, %s7
  %s10 = scalar_select 0, %s9, %s7
  loop: start=0, step=1, limit=4
  $region2: #{bridge_forward.4} parent=0 // loop_pre_header
    _
  $region3: #{bridge_forward.4} parent=0 // loop_header
    %s12 = sphi 0, %s16
    %p13 = scmp.ge.s32.totalorder %s12, 4
    %s19 = sphi 0, %s31
    %s20 = sphi 0, %s27
    %s21 = sphi 0, %s19
    %s22 = sphi 0, %s20
    %s23 = sphi 0, %s21
    %s24 = sphi 0, %s22
    %s34 = sphi 0, %s36
    %s37 = sphi 0, %s34
    %s38 = sphi 0, %s37
    %s54 = sphi 0, %s38
    %s58 = sphi 0, %s58
    %s60 = sphi 0, %s58
    %s61 = sphi 0, %s60
    %s75 = sphi 0, %s61
    %s79 = sphi 0, %s79
    %s81 = sphi 0, %s79
    %s82 = sphi 0, %s81
    %s96 = sphi 0, %s82
    %s102 = sphi 0, %s104
    %s105 = sphi 0, %s102
    %s106 = sphi 0, %s105
    %s122 = sphi 0, %s106
    %s130 = sphi 0, %s132
    %s133 = sphi 0, %s130
    %s134 = sphi 0, %s133
    %s150 = sphi 0, %s134
    %s158 = sphi 0, %s160
    %s161 = sphi 0, %s158
    %s162 = sphi 0, %s161
    %s178 = sphi 0, %s162
  $region4: #{bridge_forward.4} parent=0 // loop_header_branch
    %15 = sbr.rel (%p13) target = $region8
  $region5: #{bridge_forward.4} parent=0 // loop_body
    %s17 = ssub.s32 %s12, 1
    %s18 = ssub.s32 %s12, 2
    %s25 = sadd.s32 1, %s20
    %p26 = scmp.ge.s32.totalorder %s25, 1
    %s27 = scalar_select %p26, 0, %s25
    %s28 = sadd.s32 1, %s19
    %s29 = scalar_select %p26, %s28, %s19
    %p30 = scmp.ge.s32.totalorder %s29, 2
    %s31 = scalar_select %p30, 0, %s29
    %s32 = ssub.s32 %s19, %s31
    %p33 = scmp.eq.s32.totalorder %s32, 0
    %s35 = sadd.s32 %s34, 1
    %s36 = scalar_select %p33, %s34, %s35
    %p39 = pneg %p33
    %p40 = scmp.eq.s32.totalorder %s12, 1
    %p41 = por %p39, %p40
    %p42 = scmp.ne.s32.totalorder %s34, %s37
    %p43 = scmp.eq.s32.totalorder %s12, 0
    %p44 = por %p42, %p43
    %p45 = scmp.ne.s32.totalorder %s34, %s37
    %p46 = scmp.eq.s32.totalorder %s17, 1
    %p47 = por %p45, %p46
    %p48 = scmp.ne.s32.totalorder %s37, %s38
    %p49 = scmp.eq.s32.totalorder %s17, 0
    %p50 = por %p48, %p49
    %p51 = scmp.ne.s32.totalorder %s37, %s38
    %p52 = scmp.eq.s32.totalorder %s18, 1
    %p53 = por %p51, %p52
    %p55 = scmp.ne.s32.totalorder %s38, %s54
    %p56 = scmp.eq.s32.totalorder %s18, 0
    %p57 = por %p55, %p56
    %s59 = sadd.s32 %s58, 1
    %p62 = scmp.eq.s32.totalorder %s12, 1
    %p63 = scmp.ne.s32.totalorder %s58, %s60
    %p64 = scmp.eq.s32.totalorder %s12, 0
    %p65 = por %p63, %p64
    %p66 = scmp.ne.s32.totalorder %s58, %s60
    %p67 = scmp.eq.s32.totalorder %s17, 1
    %p68 = por %p66, %p67
    %p69 = scmp.ne.s32.totalorder %s60, %s61
    %p70 = scmp.eq.s32.totalorder %s17, 0
    %p71 = por %p69, %p70
    %p72 = scmp.ne.s32.totalorder %s60, %s61
    %p73 = scmp.eq.s32.totalorder %s18, 1
    %p74 = por %p72, %p73
    %p76 = scmp.ne.s32.totalorder %s61, %s75
    %p77 = scmp.eq.s32.totalorder %s18, 0
    %p78 = por %p76, %p77
    %s80 = sadd.s32 %s79, 1
    %p83 = scmp.eq.s32.totalorder %s12, 1
    %p84 = scmp.ne.s32.totalorder %s79, %s81
    %p85 = scmp.eq.s32.totalorder %s12, 0
    %p86 = por %p84, %p85
    %p87 = scmp.ne.s32.totalorder %s79, %s81
    %p88 = scmp.eq.s32.totalorder %s17, 1
    %p89 = por %p87, %p88
    %p90 = scmp.ne.s32.totalorder %s81, %s82
    %p91 = scmp.eq.s32.totalorder %s17, 0
    %p92 = por %p90, %p91
    %p93 = scmp.ne.s32.totalorder %s81, %s82
    %p94 = scmp.eq.s32.totalorder %s18, 1
    %p95 = por %p93, %p94
    %p97 = scmp.ne.s32.totalorder %s82, %s96
    %p98 = scmp.eq.s32.totalorder %s18, 0
    %p99 = por %p97, %p98
    %s100 = ssub.s32 %s20, %s27
    %p101 = scmp.eq.s32.totalorder %s100, 0
    %s103 = sadd.s32 %s102, 1
    %s104 = scalar_select %p101, %s102, %s103
    %p107 = pneg %p101
    %p108 = scmp.eq.s32.totalorder %s12, 1
    %p109 = por %p107, %p108
    %p110 = scmp.ne.s32.totalorder %s102, %s105
    %p111 = scmp.eq.s32.totalorder %s12, 0
    %p112 = por %p110, %p111
    %p113 = scmp.ne.s32.totalorder %s102, %s105
    %p114 = scmp.eq.s32.totalorder %s17, 1
    %p115 = por %p113, %p114
    %p116 = scmp.ne.s32.totalorder %s105, %s106
    %p117 = scmp.eq.s32.totalorder %s17, 0
    %p118 = por %p116, %p117
    %p119 = scmp.ne.s32.totalorder %s105, %s106
    %p120 = scmp.eq.s32.totalorder %s18, 1
    %p121 = por %p119, %p120
    %p123 = scmp.ne.s32.totalorder %s106, %s122
    %p124 = scmp.eq.s32.totalorder %s18, 0
    %p125 = por %p123, %p124
    %s126 = ssub.s32 %s19, %s31
    %s127 = ssub.s32 %s20, %s27
    %s128 = sor.u32 %s126, %s127
    %p129 = scmp.eq.s32.totalorder %s128, 0
    %s131 = sadd.s32 %s130, 1
    %s132 = scalar_select %p129, %s130, %s131
    %p135 = pneg %p129
    %p136 = scmp.eq.s32.totalorder %s12, 1
    %p137 = por %p135, %p136
    %p138 = scmp.ne.s32.totalorder %s130, %s133
    %p139 = scmp.eq.s32.totalorder %s12, 0
    %p140 = por %p138, %p139
    %p141 = scmp.ne.s32.totalorder %s130, %s133
    %p142 = scmp.eq.s32.totalorder %s17, 1
    %p143 = por %p141, %p142
    %p144 = scmp.ne.s32.totalorder %s133, %s134
    %p145 = scmp.eq.s32.totalorder %s17, 0
    %p146 = por %p144, %p145
    %p147 = scmp.ne.s32.totalorder %s133, %s134
    %p148 = scmp.eq.s32.totalorder %s18, 1
    %p149 = por %p147, %p148
    %p151 = scmp.ne.s32.totalorder %s134, %s150
    %p152 = scmp.eq.s32.totalorder %s18, 0
    %p153 = por %p151, %p152
    %s154 = ssub.s32 %s19, %s31
    %s155 = ssub.s32 %s20, %s27
    %s156 = sor.u32 %s154, %s155
    %p157 = scmp.eq.s32.totalorder %s156, 0
    %s159 = sadd.s32 %s158, 1
    %s160 = scalar_select %p157, %s158, %s159
    %p163 = pneg %p157
    %p164 = scmp.eq.s32.totalorder %s12, 1
    %p165 = por %p163, %p164
    %p166 = scmp.ne.s32.totalorder %s158, %s161
    %p167 = scmp.eq.s32.totalorder %s12, 0
    %p168 = por %p166, %p167
    %p169 = scmp.ne.s32.totalorder %s158, %s161
    %p170 = scmp.eq.s32.totalorder %s17, 1
    %p171 = por %p169, %p170
    %p172 = scmp.ne.s32.totalorder %s161, %s162
    %p173 = scmp.eq.s32.totalorder %s17, 0
    %p174 = por %p172, %p173
    %p175 = scmp.ne.s32.totalorder %s161, %s162
    %p176 = scmp.eq.s32.totalorder %s18, 1
    %p177 = por %p175, %p176
    %p179 = scmp.ne.s32.totalorder %s162, %s178
    %p180 = scmp.eq.s32.totalorder %s18, 0
    %p181 = por %p179, %p180
    %p182 = scmp.le.s32.totalorder 1, %s12
    %p183 = scmp.lt.s32.totalorder %s12, 3
    %p184 = pnand %p182, %p183
    %p185 = pneg %p184
    // Predicated region
    $region9: #{bridge_forward.4} parent=5 // pred_check
      _
    $region10: #{bridge_forward.4} parent=5 // pred_check_branch
      %187 = sbr.rel (%p184) target = $region12
    $region11: #{bridge_forward.4} parent=5 // pred_region
      %s188 = ssub.s32 %s12, 1
      // Predicated region
      $region13: #{bridge_forward.4} parent=11 // pred_check
        %p189 = pneg %p71
      $region14: #{bridge_forward.4} parent=11 // pred_check_branch
        %191 = sbr.rel (%p189) target = $region16
      $region15: #{bridge_forward.4} parent=11 // pred_region
        _
      $region16: #{bridge_forward.4} parent=11 // pred_fallthru
        _
      // Predicated region
      $region17: #{bridge_forward.4} parent=11 // pred_check
        %p192 = pneg %p92
      $region18: #{bridge_forward.4} parent=11 // pred_check_branch
        %194 = sbr.rel (%p192) target = $region20
      $region19: #{bridge_forward.4} parent=11 // pred_region
        _
      $region20: #{bridge_forward.4} parent=11 // pred_fallthru
        _
      // Predicated region
      $region21: #{bridge_forward.4} parent=11 // pred_check
        %p195 = pneg %p118
      $region22: #{bridge_forward.4} parent=11 // pred_check_branch
        %197 = sbr.rel (%p195) target = $region24
      $region23: #{bridge_forward.4} parent=11 // pred_region
        %p198 = scmp.lt.s32.totalorder %s22, 0
        %s199 = scalar_select %p198, %s22, 0
        %s200 = smul.addr %s199, 4
        %s201 = scalar_lea.vmem %s3, %s200
      $region24: #{bridge_forward.4} parent=11 // pred_fallthru
        _
    $region12: #{bridge_forward.4} parent=5 // pred_fallthru
      _
    %p202 = scmp.lt.s32.totalorder %s12, 2
    // Predicated region
    $region25: #{bridge_forward.4} parent=5 // pred_check
      %p203 = pneg %p202
    $region26: #{bridge_forward.4} parent=5 // pred_check_branch
      %205 = sbr.rel (%p203) target = $region28
    $region27: #{bridge_forward.4} parent=5 // pred_region
      // Predicated region
      $region29: #{bridge_forward.4} parent=27 // pred_check
        %p206 = pneg %p44
      $region30: #{bridge_forward.4} parent=27 // pred_check_branch
        %208 = sbr.rel (%p206) target = $region32
      $region31: #{bridge_forward.4} parent=27 // pred_region
        %p209 = scmp.lt.s32.totalorder %s19, 1
        %s210 = scalar_select %p209, %s19, 1
        %s211 = smul.addr %s210, 32
        %s212 = smul.addr %s211, 4
        %s213 = scalar_lea.vmem %s0, %s212
      $region32: #{bridge_forward.4} parent=27 // pred_fallthru
        _
    $region28: #{bridge_forward.4} parent=5 // pred_fallthru
      _
    %p214 = scmp.le.s32.totalorder 1, %s12
    %p215 = scmp.lt.s32.totalorder %s12, 3
    %p216 = pnand %p214, %p215
    %p217 = pneg %p216
    // Predicated region
    $region33: #{bridge_forward.4} parent=5 // pred_check
      _
    $region34: #{bridge_forward.4} parent=5 // pred_check_branch
      %219 = sbr.rel (%p216) target = $region36
    $region35: #{bridge_forward.4} parent=5 // pred_region
      %s220 = ssub.s32 %s12, 1
      %p221 = scmp.lt.s32.totalorder %s21, 1
      %s222 = scalar_select %p221, %s21, 1
      %s223 = smul.addr %s222, 32
      %s224 = smul.addr %s223, 4
      %s225 = scalar_lea.vmem %s0, %s224
      %p226 = pneg %p50
      %p227 = pneg %p47
      %p228 = pneg %p71
      %p229 = pneg %p68
      %p230 = pneg %p92
      %p231 = pneg %p89
      %p232 = scmp.lt.s32.totalorder %s22, 0
      %s233 = scalar_select %p232, %s22, 0
      %s234 = smul.addr %s233, 4
      %s235 = scalar_lea.vmem %s3, %s234
      %p236 = pneg %p118
      %p237 = pneg %p115
      %p238 = pneg %p146
      %p239 = pneg %p143
      %p240 = scmp.lt.s32.totalorder %s21, 1
      %s241 = scalar_select %p240, %s21, 1
      %p242 = scmp.lt.s32.totalorder %s22, 0
      %s243 = scalar_select %p242, %s22, 0
      %s244 = smul.addr %s241, 32
      %s245 = sadd.s32 %s243, %s244
      %s246 = smul.addr %s245, 8
      %s247 = scalar_lea.vmem %s4, %s246
      %p248 = pneg %p174
      %p249 = pneg %p171
      %p250 = scmp.lt.s32.totalorder %s21, 1
      %s251 = scalar_select %p250, %s21, 1
      %p252 = scmp.lt.s32.totalorder %s22, 0
      %s253 = scalar_select %p252, %s22, 0
      %s254 = sadd.s32 %s253, %s251
      %s255 = smul.addr %s254, 2
      %s256 = scalar_lea.vmem %s5, %s255
      %p257 = scmp.lt.s32.totalorder %s21, 1
      %s258 = scalar_select %p257, %s21, 1
      %s259 = smul.addr %s258, 32
      %s260 = smul.addr %s259, 4
      %s261 = scalar_lea.vmem %s0, %s260
      %p262 = scmp.lt.s32.totalorder %s22, 0
      %s263 = scalar_select %p262, %s22, 0
      %s264 = smul.addr %s263, 4
      %s265 = scalar_lea.vmem %s3, %s264
      %p266 = scmp.lt.s32.totalorder %s21, 1
      %s267 = scalar_select %p266, %s21, 1
      %p268 = scmp.lt.s32.totalorder %s22, 0
      %s269 = scalar_select %p268, %s22, 0
      %s270 = smul.addr %s267, 32
      %s271 = sadd.s32 %s269, %s270
      %s272 = smul.addr %s271, 8
      %s273 = scalar_lea.vmem %s4, %s272
      %p274 = scmp.lt.s32.totalorder %s21, 1
      %s275 = scalar_select %p274, %s21, 1
      %p276 = scmp.lt.s32.totalorder %s22, 0
      %s277 = scalar_select %p276, %s22, 0
      %s278 = sadd.s32 %s277, %s275
      %s279 = smul.addr %s278, 2
      %s280 = scalar_lea.vmem %s5, %s279
      %v282 = vld [vmem:[%s1] sm:$0x1]
      %v283 = vld [vmem:[%s2] sm:$0x1]
      %v284 = vld [vmem:[%s261] sm:$0xf]
      %v285 = vld [vmem:[%s261 + $0x4] sm:$0xf]
      %v286 = vld [vmem:[%s261 + $0x8] sm:$0xf]
      %v287 = vld [vmem:[%s261 + $0xc] sm:$0xf]
      %v288 = vld [vmem:[%s261 + $0x10] sm:$0xf]
      %v289 = vld [vmem:[%s261 + $0x14] sm:$0xf]
      %v290 = vld [vmem:[%s261 + $0x18] sm:$0xf]
      %v291 = vld [vmem:[%s261 + $0x1c] sm:$0xf]
      %v292 = vld [vmem:[%s261 + $0x20] sm:$0xf]
      %v293 = vld [vmem:[%s261 + $0x24] sm:$0xf]
      %v294 = vld [vmem:[%s261 + $0x28] sm:$0xf]
      %v295 = vld [vmem:[%s261 + $0x2c] sm:$0xf]
      %v296 = vld [vmem:[%s261 + $0x30] sm:$0xf]
      %v297 = vld [vmem:[%s261 + $0x34] sm:$0xf]
      %v298 = vld [vmem:[%s261 + $0x38] sm:$0xf]
      %v299 = vld [vmem:[%s261 + $0x3c] sm:$0xf]
      %v300 = vld [vmem:[%s261 + $0x40] sm:$0xf]
      %v301 = vld [vmem:[%s261 + $0x44] sm:$0xf]
      %v302 = vld [vmem:[%s261 + $0x48] sm:$0xf]
      %v303 = vld [vmem:[%s261 + $0x4c] sm:$0xf]
      %v304 = vld [vmem:[%s261 + $0x50] sm:$0xf]
      %v305 = vld [vmem:[%s261 + $0x54] sm:$0xf]
      %v306 = vld [vmem:[%s261 + $0x58] sm:$0xf]
      %v307 = vld [vmem:[%s261 + $0x5c] sm:$0xf]
      %v308 = vld [vmem:[%s261 + $0x60] sm:$0xf]
      %v309 = vld [vmem:[%s261 + $0x64] sm:$0xf]
      %v310 = vld [vmem:[%s261 + $0x68] sm:$0xf]
      %v311 = vld [vmem:[%s261 + $0x6c] sm:$0xf]
      %v312 = vld [vmem:[%s261 + $0x70] sm:$0xf]
      %v313 = vld [vmem:[%s261 + $0x74] sm:$0xf]
      %v314 = vld [vmem:[%s261 + $0x78] sm:$0xf]
      %v315 = vld [vmem:[%s261 + $0x7c] sm:$0xf]
      %v316 = vunpack.c.l.bf16 %v284
      %v317 = vunpack.c.l.bf16 %v285
      %v318 = vunpack.c.l.bf16 %v286
      %v319 = vunpack.c.l.bf16 %v287
      %v320 = vunpack.c.l.bf16 %v288
      %v321 = vunpack.c.l.bf16 %v289
      %v322 = vunpack.c.l.bf16 %v290
      %v323 = vunpack.c.l.bf16 %v291
      %v324 = vunpack.c.l.bf16 %v292
      %v325 = vunpack.c.l.bf16 %v293
      %v326 = vunpack.c.l.bf16 %v294
      %v327 = vunpack.c.l.bf16 %v295
      %v328 = vunpack.c.l.bf16 %v296
      %v329 = vunpack.c.l.bf16 %v297
      %v330 = vunpack.c.l.bf16 %v298
      %v331 = vunpack.c.l.bf16 %v299
      %v332 = vunpack.c.l.bf16 %v300
      %v333 = vunpack.c.l.bf16 %v301
      %v334 = vunpack.c.l.bf16 %v302
      %v335 = vunpack.c.l.bf16 %v303
      %v336 = vunpack.c.l.bf16 %v304
      %v337 = vunpack.c.l.bf16 %v305
      %v338 = vunpack.c.l.bf16 %v306
      %v339 = vunpack.c.l.bf16 %v307
      %v340 = vunpack.c.l.bf16 %v308
      %v341 = vunpack.c.l.bf16 %v309
      %v342 = vunpack.c.l.bf16 %v310
      %v343 = vunpack.c.l.bf16 %v311
      %v344 = vunpack.c.l.bf16 %v312
      %v345 = vunpack.c.l.bf16 %v313
      %v346 = vunpack.c.l.bf16 %v314
      %v347 = vunpack.c.l.bf16 %v315
      %v349 = vperm.slane %v282, 0
      %v351 = vmul.f32 %v316, %v349
      %v352 = vmul.f32 %v317, %v349
      %v353 = vmul.f32 %v318, %v349
      %v354 = vmul.f32 %v319, %v349
      %v355 = vmul.f32 %v320, %v349
      %v356 = vmul.f32 %v321, %v349
      %v357 = vmul.f32 %v322, %v349
      %v358 = vmul.f32 %v323, %v349
      %v359 = vmul.f32 %v324, %v349
      %v360 = vmul.f32 %v325, %v349
      %v361 = vmul.f32 %v326, %v349
      %v362 = vmul.f32 %v327, %v349
      %v363 = vmul.f32 %v328, %v349
      %v364 = vmul.f32 %v329, %v349
      %v365 = vmul.f32 %v330, %v349
      %v366 = vmul.f32 %v331, %v349
      %v367 = vmul.f32 %v332, %v349
      %v368 = vmul.f32 %v333, %v349
      %v369 = vmul.f32 %v334, %v349
      %v370 = vmul.f32 %v335, %v349
      %v371 = vmul.f32 %v336, %v349
      %v372 = vmul.f32 %v337, %v349
      %v373 = vmul.f32 %v338, %v349
      %v374 = vmul.f32 %v339, %v349
      %v375 = vmul.f32 %v340, %v349
      %v376 = vmul.f32 %v341, %v349
      %v377 = vmul.f32 %v342, %v349
      %v378 = vmul.f32 %v343, %v349
      %v379 = vmul.f32 %v344, %v349
      %v380 = vmul.f32 %v345, %v349
      %v381 = vmul.f32 %v346, %v349
      %v382 = vmul.f32 %v347, %v349
      %v384 = vperm.slane %v283, 0
      %v386 = vadd.f32 %v351, %v384
      %v387 = vadd.f32 %v352, %v384
      %v388 = vadd.f32 %v353, %v384
      %v389 = vadd.f32 %v354, %v384
      %v390 = vadd.f32 %v355, %v384
      %v391 = vadd.f32 %v356, %v384
      %v392 = vadd.f32 %v357, %v384
      %v393 = vadd.f32 %v358, %v384
      %v394 = vadd.f32 %v359, %v384
      %v395 = vadd.f32 %v360, %v384
      %v396 = vadd.f32 %v361, %v384
      %v397 = vadd.f32 %v362, %v384
      %v398 = vadd.f32 %v363, %v384
      %v399 = vadd.f32 %v364, %v384
      %v400 = vadd.f32 %v365, %v384
      %v401 = vadd.f32 %v366, %v384
      %v402 = vadd.f32 %v367, %v384
      %v403 = vadd.f32 %v368, %v384
      %v404 = vadd.f32 %v369, %v384
      %v405 = vadd.f32 %v370, %v384
      %v406 = vadd.f32 %v371, %v384
      %v407 = vadd.f32 %v372, %v384
      %v408 = vadd.f32 %v373, %v384
      %v409 = vadd.f32 %v374, %v384
      %v410 = vadd.f32 %v375, %v384
      %v411 = vadd.f32 %v376, %v384
      %v412 = vadd.f32 %v377, %v384
      %v413 = vadd.f32 %v378, %v384
      %v414 = vadd.f32 %v379, %v384
      %v415 = vadd.f32 %v380, %v384
      %v416 = vadd.f32 %v381, %v384
      %v417 = vadd.f32 %v382, %v384
      %v418 = vmax.f32 %v386, 0.0
      %v419 = vmax.f32 %v387, 0.0
      %v420 = vmax.f32 %v388, 0.0
      %v421 = vmax.f32 %v389, 0.0
      %v422 = vmax.f32 %v390, 0.0
      %v423 = vmax.f32 %v391, 0.0
      %v424 = vmax.f32 %v392, 0.0
      %v425 = vmax.f32 %v393, 0.0
      %v426 = vmax.f32 %v394, 0.0
      %v427 = vmax.f32 %v395, 0.0
      %v428 = vmax.f32 %v396, 0.0
      %v429 = vmax.f32 %v397, 0.0
      %v430 = vmax.f32 %v398, 0.0
      %v431 = vmax.f32 %v399, 0.0
      %v432 = vmax.f32 %v400, 0.0
      %v433 = vmax.f32 %v401, 0.0
      %v434 = vmax.f32 %v402, 0.0
      %v435 = vmax.f32 %v403, 0.0
      %v436 = vmax.f32 %v404, 0.0
      %v437 = vmax.f32 %v405, 0.0
      %v438 = vmax.f32 %v406, 0.0
      %v439 = vmax.f32 %v407, 0.0
      %v440 = vmax.f32 %v408, 0.0
      %v441 = vmax.f32 %v409, 0.0
      %v442 = vmax.f32 %v410, 0.0
      %v443 = vmax.f32 %v411, 0.0
      %v444 = vmax.f32 %v412, 0.0
      %v445 = vmax.f32 %v413, 0.0
      %v446 = vmax.f32 %v414, 0.0
      %v447 = vmax.f32 %v415, 0.0
      %v448 = vmax.f32 %v416, 0.0
      %v449 = vmax.f32 %v417, 0.0
      %450 = vst [vmem:[#allocation2] sm:$0xf] 0
      %451 = vst [vmem:[#allocation2 + $0x4] sm:$0xf] 0
      %452 = vst [vmem:[#allocation2 + $0x8] sm:$0x1] 0
      %453 = vst [vmem:[#allocation2 + $0xc] sm:$0xf] 0
      %454 = vst [vmem:[#allocation2 + $0x10] sm:$0xf] 0
      %455 = vst [vmem:[#allocation2 + $0x14] sm:$0x1] 0
      %456 = vst [vmem:[#allocation2 + $0x18] sm:$0xf] 0
      %457 = vst [vmem:[#allocation2 + $0x1c] sm:$0xf] 0
      %458 = vst [vmem:[#allocation2 + $0x20] sm:$0x1] 0
      %459 = vst [vmem:[#allocation2 + $0x24] sm:$0xf] 0
      %460 = vst [vmem:[#allocation2 + $0x28] sm:$0xf] 0
      %461 = vst [vmem:[#allocation2 + $0x2c] sm:$0x1] 0
      %462 = vst [vmem:[#allocation2 + $0x30] sm:$0xf] 0
      %463 = vst [vmem:[#allocation2 + $0x34] sm:$0xf] 0
      %464 = vst [vmem:[#allocation2 + $0x38] sm:$0x1] 0
      %465 = vst [vmem:[#allocation2 + $0x3c] sm:$0xf] 0
      %466 = vst [vmem:[#allocation2 + $0x40] sm:$0xf] 0
      %467 = vst [vmem:[#allocation2 + $0x44] sm:$0x1] 0
      %468 = vst [vmem:[#allocation2 + $0x48] sm:$0xf] 0
      %469 = vst [vmem:[#allocation2 + $0x4c] sm:$0xf] 0
      %470 = vst [vmem:[#allocation2 + $0x50] sm:$0x1] 0
      %471 = vst [vmem:[#allocation2 + $0x54] sm:$0xf] 0
      %472 = vst [vmem:[#allocation2 + $0x58] sm:$0xf] 0
      %473 = vst [vmem:[#allocation2 + $0x5c] sm:$0x1] 0
      %474 = vst [vmem:[#allocation2 + $0x60] sm:$0xf] 0
      %475 = vst [vmem:[#allocation2 + $0x64] sm:$0xf] 0
      %476 = vst [vmem:[#allocation2 + $0x68] sm:$0x1] 0
      %477 = vst [vmem:[#allocation2 + $0x6c] sm:$0xf] 0
      %478 = vst [vmem:[#allocation2 + $0x70] sm:$0xf] 0
      %479 = vst [vmem:[#allocation2 + $0x74] sm:$0x1] 0
      %480 = vst [vmem:[#allocation2 + $0x78] sm:$0xf] 0
      %481 = vst [vmem:[#allocation2 + $0x7c] sm:$0xf] 0
      %482 = vst [vmem:[#allocation2 + $0x80] sm:$0x1] 0
      %483 = vst [vmem:[#allocation2 + $0x84] sm:$0xf] 0
      %484 = vst [vmem:[#allocation2 + $0x88] sm:$0xf] 0
      %485 = vst [vmem:[#allocation2 + $0x8c] sm:$0x1] 0
      %486 = vst [vmem:[#allocation2 + $0x90] sm:$0xf] 0
      %487 = vst [vmem:[#allocation2 + $0x94] sm:$0xf] 0
      %488 = vst [vmem:[#allocation2 + $0x98] sm:$0x1] 0
      %489 = vst [vmem:[#allocation2 + $0x9c] sm:$0xf] 0
      %490 = vst [vmem:[#allocation2 + $0xa0] sm:$0xf] 0
      %491 = vst [vmem:[#allocation2 + $0xa4] sm:$0x1] 0
      %492 = vst [vmem:[#allocation2 + $0xa8] sm:$0xf] 0
      %493 = vst [vmem:[#allocation2 + $0xac] sm:$0xf] 0
      %494 = vst [vmem:[#allocation2 + $0xb0] sm:$0x1] 0
      %495 = vst [vmem:[#allocation2 + $0xb4] sm:$0xf] 0
      %496 = vst [vmem:[#allocation2 + $0xb8] sm:$0xf] 0
      %497 = vst [vmem:[#allocation2 + $0xbc] sm:$0x1] 0
      %498 = vst [vmem:[#allocation2 + $0xc0] sm:$0xf] 0
      %499 = vst [vmem:[#allocation2 + $0xc4] sm:$0xf] 0
      %500 = vst [vmem:[#allocation2 + $0xc8] sm:$0x1] 0
      %501 = vst [vmem:[#allocation2 + $0xcc] sm:$0xf] 0
      %502 = vst [vmem:[#allocation2 + $0xd0] sm:$0xf] 0
      %503 = vst [vmem:[#allocation2 + $0xd4] sm:$0x1] 0
      %v504 = vpack.c.bf16 %v418, %v418
      %v505 = vpack.c.bf16 %v419, %v419
      %v506 = vpack.c.bf16 %v420, %v420
      %v507 = vpack.c.bf16 %v421, %v421
      %v508 = vpack.c.bf16 %v422, %v422
      %v509 = vpack.c.bf16 %v423, %v423
      %v510 = vpack.c.bf16 %v424, %v424
      %v511 = vpack.c.bf16 %v425, %v425
      %v512 = vpack.c.bf16 %v426, %v426
      %v513 = vpack.c.bf16 %v427, %v427
      %v514 = vpack.c.bf16 %v428, %v428
      %v515 = vpack.c.bf16 %v429, %v429
      %v516 = vpack.c.bf16 %v430, %v430
      %v517 = vpack.c.bf16 %v431, %v431
      %v518 = vpack.c.bf16 %v432, %v432
      %v519 = vpack.c.bf16 %v433, %v433
      %v520 = vpack.c.bf16 %v434, %v434
      %v521 = vpack.c.bf16 %v435, %v435
      %v522 = vpack.c.bf16 %v436, %v436
      %v523 = vpack.c.bf16 %v437, %v437
      %v524 = vpack.c.bf16 %v438, %v438
      %v525 = vpack.c.bf16 %v439, %v439
      %v526 = vpack.c.bf16 %v440, %v440
      %v527 = vpack.c.bf16 %v441, %v441
      %v528 = vpack.c.bf16 %v442, %v442
      %v529 = vpack.c.bf16 %v443, %v443
      %v530 = vpack.c.bf16 %v444, %v444
      %v531 = vpack.c.bf16 %v445, %v445
      %v532 = vpack.c.bf16 %v446, %v446
      %v533 = vpack.c.bf16 %v447, %v447
      %v534 = vpack.c.bf16 %v448, %v448
      %v535 = vpack.c.bf16 %v449, %v449
      %vm536 = vsmask.f32 256
      %vm537 = vsmask.f32 4368
      %vm538 = vmor %vm536, %vm537
      %v540 = vshrl.u32 %v504, 16
      %v542 = vrot.slane %v540, 7
      %v543 = vshll.u32 %v504, 16
      %v545 = vor.u32 %v542, %v543
      %v546 = vrot.slane %v542, 4
      %v548 = vshrl.u32 %v505, 16
      %v550 = vrot.slane %v548, 7
      %v551 = vshll.u32 %v505, 16
      %v553 = vor.u32 %v550, %v551
      %v554 = vsel %vm538, %v546, %v553
      %v555 = vrot.slane %v550, 4
      %v557 = vshrl.u32 %v506, 16
      %v559 = vrot.slane %v557, 7
      %v560 = vshll.u32 %v506, 16
      %v562 = vor.u32 %v559, %v560
      %v563 = vrot.slane %v559, 4
      %v565 = vshrl.u32 %v507, 16
      %v567 = vrot.slane %v565, 7
      %v568 = vshll.u32 %v507, 16
      %v570 = vor.u32 %v567, %v568
      %v571 = vsel %vm538, %v563, %v570
      %v572 = vrot.slane %v567, 4
      %v574 = vshrl.u32 %v508, 16
      %v576 = vrot.slane %v574, 7
      %v577 = vshll.u32 %v508, 16
      %v579 = vor.u32 %v576, %v577
      %v580 = vrot.slane %v576, 4
      %v582 = vshrl.u32 %v509, 16
      %v584 = vrot.slane %v582, 7
      %v585 = vshll.u32 %v509, 16
      %v587 = vor.u32 %v584, %v585
      %v588 = vsel %vm538, %v580, %v587
      %v589 = vrot.slane %v584, 4
      %v591 = vshrl.u32 %v510, 16
      %v593 = vrot.slane %v591, 7
      %v594 = vshll.u32 %v510, 16
      %v596 = vor.u32 %v593, %v594
      %v597 = vrot.slane %v593, 4
      %v599 = vshrl.u32 %v511, 16
      %v601 = vrot.slane %v599, 7
      %v602 = vshll.u32 %v511, 16
      %v604 = vor.u32 %v601, %v602
      %v605 = vsel %vm538, %v597, %v604
      %v606 = vrot.slane %v601, 4
      %v608 = vshrl.u32 %v512, 16
      %v610 = vrot.slane %v608, 7
      %v611 = vshll.u32 %v512, 16
      %v613 = vor.u32 %v610, %v611
      %v614 = vrot.slane %v610, 4
      %v616 = vshrl.u32 %v513, 16
      %v618 = vrot.slane %v616, 7
      %v619 = vshll.u32 %v513, 16
      %v621 = vor.u32 %v618, %v619
      %v622 = vsel %vm538, %v614, %v621
      %v623 = vrot.slane %v618, 4
      %v625 = vshrl.u32 %v514, 16
      %v627 = vrot.slane %v625, 7
      %v628 = vshll.u32 %v514, 16
      %v630 = vor.u32 %v627, %v628
      %v631 = vrot.slane %v627, 4
      %v633 = vshrl.u32 %v515, 16
      %v635 = vrot.slane %v633, 7
      %v636 = vshll.u32 %v515, 16
      %v638 = vor.u32 %v635, %v636
      %v639 = vsel %vm538, %v631, %v638
      %v640 = vrot.slane %v635, 4
      %v642 = vshrl.u32 %v516, 16
      %v644 = vrot.slane %v642, 7
      %v645 = vshll.u32 %v516, 16
      %v647 = vor.u32 %v644, %v645
      %v648 = vrot.slane %v644, 4
      %v650 = vshrl.u32 %v517, 16
      %v652 = vrot.slane %v650, 7
      %v653 = vshll.u32 %v517, 16
      %v655 = vor.u32 %v652, %v653
      %v656 = vsel %vm538, %v648, %v655
      %v657 = vrot.slane %v652, 4
      %v659 = vshrl.u32 %v518, 16
      %v661 = vrot.slane %v659, 7
      %v662 = vshll.u32 %v518, 16
      %v664 = vor.u32 %v661, %v662
      %v665 = vrot.slane %v661, 4
      %v667 = vshrl.u32 %v519, 16
      %v669 = vrot.slane %v667, 7
      %v670 = vshll.u32 %v519, 16
      %v672 = vor.u32 %v669, %v670
      %v673 = vsel %vm538, %v665, %v672
      %v674 = vrot.slane %v669, 4
      %v676 = vshrl.u32 %v520, 16
      %v678 = vrot.slane %v676, 7
      %v679 = vshll.u32 %v520, 16
      %v681 = vor.u32 %v678, %v679
      %v682 = vrot.slane %v678, 4
      %v684 = vshrl.u32 %v521, 16
      %v686 = vrot.slane %v684, 7
      %v687 = vshll.u32 %v521, 16
      %v689 = vor.u32 %v686, %v687
      %v690 = vsel %vm538, %v682, %v689
      %v691 = vrot.slane %v686, 4
      %v693 = vshrl.u32 %v522, 16
      %v695 = vrot.slane %v693, 7
      %v696 = vshll.u32 %v522, 16
      %v698 = vor.u32 %v695, %v696
      %v699 = vrot.slane %v695, 4
      %v701 = vshrl.u32 %v523, 16
      %v703 = vrot.slane %v701, 7
      %v704 = vshll.u32 %v523, 16
      %v706 = vor.u32 %v703, %v704
      %v707 = vsel %vm538, %v699, %v706
      %v708 = vrot.slane %v703, 4
      %v710 = vshrl.u32 %v524, 16
      %v712 = vrot.slane %v710, 7
      %v713 = vshll.u32 %v524, 16
      %v715 = vor.u32 %v712, %v713
      %v716 = vrot.slane %v712, 4
      %v718 = vshrl.u32 %v525, 16
      %v720 = vrot.slane %v718, 7
      %v721 = vshll.u32 %v525, 16
      %v723 = vor.u32 %v720, %v721
      %v724 = vsel %vm538, %v716, %v723
      %v725 = vrot.slane %v720, 4
      %v727 = vshrl.u32 %v526, 16
      %v729 = vrot.slane %v727, 7
      %v730 = vshll.u32 %v526, 16
      %v732 = vor.u32 %v729, %v730
      %v733 = vrot.slane %v729, 4
      %v735 = vshrl.u32 %v527, 16
      %v737 = vrot.slane %v735, 7
      %v738 = vshll.u32 %v527, 16
      %v740 = vor.u32 %v737, %v738
      %v741 = vsel %vm538, %v733, %v740
      %v742 = vrot.slane %v737, 4
      %v744 = vshrl.u32 %v528, 16
      %v746 = vrot.slane %v744, 7
      %v747 = vshll.u32 %v528, 16
      %v749 = vor.u32 %v746, %v747
      %v750 = vrot.slane %v746, 4
      %v752 = vshrl.u32 %v529, 16
      %v754 = vrot.slane %v752, 7
      %v755 = vshll.u32 %v529, 16
      %v757 = vor.u32 %v754, %v755
      %v758 = vsel %vm538, %v750, %v757
      %v759 = vrot.slane %v754, 4
      %v761 = vshrl.u32 %v530, 16
      %v763 = vrot.slane %v761, 7
      %v764 = vshll.u32 %v530, 16
      %v766 = vor.u32 %v763, %v764
      %v767 = vrot.slane %v763, 4
      %v769 = vshrl.u32 %v531, 16
      %v771 = vrot.slane %v769, 7
      %v772 = vshll.u32 %v531, 16
      %v774 = vor.u32 %v771, %v772
      %v775 = vsel %vm538, %v767, %v774
      %v776 = vrot.slane %v771, 4
      %v778 = vshrl.u32 %v532, 16
      %v780 = vrot.slane %v778, 7
      %v781 = vshll.u32 %v532, 16
      %v783 = vor.u32 %v780, %v781
      %v784 = vrot.slane %v780, 4
      %v786 = vshrl.u32 %v533, 16
      %v788 = vrot.slane %v786, 7
      %v789 = vshll.u32 %v533, 16
      %v791 = vor.u32 %v788, %v789
      %v792 = vsel %vm538, %v784, %v791
      %v793 = vrot.slane %v788, 4
      %v795 = vshrl.u32 %v534, 16
      %v797 = vrot.slane %v795, 7
      %v798 = vshll.u32 %v534, 16
      %v800 = vor.u32 %v797, %v798
      %v801 = vrot.slane %v797, 4
      %v803 = vshrl.u32 %v535, 16
      %v805 = vrot.slane %v803, 7
      %v806 = vshll.u32 %v535, 16
      %v808 = vor.u32 %v805, %v806
      %v809 = vsel %vm538, %v801, %v808
      %v810 = vrot.slane %v805, 4
      %s859 = scalar_lea.vmem [#allocation2], 12
      %vm860 = vcmask 1043456
      %vm861 = vsmask.f32 7938
      %vm862 = vmand %vm860, %vm861
      %v863 = vld [vmem:[%s859] sm:$0xf]
      %v864 = vsel %vm862, %v545, %v863
      %865 = vst [vmem:[%s859] sm:$0xf] %v864
      %866 = vst [vmem:[%s859 + $0x4] sm:$0xf] %v554
      %vm867 = vcmask 1040384
      %vm868 = vmand %vm867, %vm536
      %v869 = vld [vmem:[%s859 + $0x8] sm:$0x1]
      %v870 = vsel %vm868, %v555, %v869
      %871 = vst [vmem:[%s859 + $0x8] sm:$0x1] %v870
      %v872 = vld [vmem:[%s859 + $0xc] sm:$0xf]
      %v873 = vsel %vm862, %v562, %v872
      %874 = vst [vmem:[%s859 + $0xc] sm:$0xf] %v873
      %875 = vst [vmem:[%s859 + $0x10] sm:$0xf] %v571
      %v876 = vld [vmem:[%s859 + $0x14] sm:$0x1]
      %v877 = vsel %vm868, %v572, %v876
      %878 = vst [vmem:[%s859 + $0x14] sm:$0x1] %v877
      %v879 = vld [vmem:[%s859 + $0x18] sm:$0xf]
      %v880 = vsel %vm862, %v579, %v879
      %881 = vst [vmem:[%s859 + $0x18] sm:$0xf] %v880
      %882 = vst [vmem:[%s859 + $0x1c] sm:$0xf] %v588
      %v883 = vld [vmem:[%s859 + $0x20] sm:$0x1]
      %v884 = vsel %vm868, %v589, %v883
      %885 = vst [vmem:[%s859 + $0x20] sm:$0x1] %v884
      %v886 = vld [vmem:[%s859 + $0x24] sm:$0xf]
      %v887 = vsel %vm862, %v596, %v886
      %888 = vst [vmem:[%s859 + $0x24] sm:$0xf] %v887
      %889 = vst [vmem:[%s859 + $0x28] sm:$0xf] %v605
      %v890 = vld [vmem:[%s859 + $0x2c] sm:$0x1]
      %v891 = vsel %vm868, %v606, %v890
      %892 = vst [vmem:[%s859 + $0x2c] sm:$0x1] %v891
      %v893 = vld [vmem:[%s859 + $0x30] sm:$0xf]
      %v894 = vsel %vm862, %v613, %v893
      %895 = vst [vmem:[%s859 + $0x30] sm:$0xf] %v894
      %896 = vst [vmem:[%s859 + $0x34] sm:$0xf] %v622
      %v897 = vld [vmem:[%s859 + $0x38] sm:$0x1]
      %v898 = vsel %vm868, %v623, %v897
      %899 = vst [vmem:[%s859 + $0x38] sm:$0x1] %v898
      %v900 = vld [vmem:[%s859 + $0x3c] sm:$0xf]
      %v901 = vsel %vm862, %v630, %v900
      %902 = vst [vmem:[%s859 + $0x3c] sm:$0xf] %v901
      %903 = vst [vmem:[%s859 + $0x40] sm:$0xf] %v639
      %v904 = vld [vmem:[%s859 + $0x44] sm:$0x1]
      %v905 = vsel %vm868, %v640, %v904
      %906 = vst [vmem:[%s859 + $0x44] sm:$0x1] %v905
      %v907 = vld [vmem:[%s859 + $0x48] sm:$0xf]
      %v908 = vsel %vm862, %v647, %v907
      %909 = vst [vmem:[%s859 + $0x48] sm:$0xf] %v908
      %910 = vst [vmem:[%s859 + $0x4c] sm:$0xf] %v656
      %v911 = vld [vmem:[%s859 + $0x50] sm:$0x1]
      %v912 = vsel %vm868, %v657, %v911
      %913 = vst [vmem:[%s859 + $0x50] sm:$0x1] %v912
      %v914 = vld [vmem:[%s859 + $0x54] sm:$0xf]
      %v915 = vsel %vm862, %v664, %v914
      %916 = vst [vmem:[%s859 + $0x54] sm:$0xf] %v915
      %917 = vst [vmem:[%s859 + $0x58] sm:$0xf] %v673
      %v918 = vld [vmem:[%s859 + $0x5c] sm:$0x1]
      %v919 = vsel %vm868, %v674, %v918
      %920 = vst [vmem:[%s859 + $0x5c] sm:$0x1] %v919
      %v921 = vld [vmem:[%s859 + $0x60] sm:$0xf]
      %v922 = vsel %vm862, %v681, %v921
      %923 = vst [vmem:[%s859 + $0x60] sm:$0xf] %v922
      %924 = vst [vmem:[%s859 + $0x64] sm:$0xf] %v690
      %v925 = vld [vmem:[%s859 + $0x68] sm:$0x1]
      %v926 = vsel %vm868, %v691, %v925
      %927 = vst [vmem:[%s859 + $0x68] sm:$0x1] %v926
      %v928 = vld [vmem:[%s859 + $0x6c] sm:$0xf]
      %v929 = vsel %vm862, %v698, %v928
      %930 = vst [vmem:[%s859 + $0x6c] sm:$0xf] %v929
      %931 = vst [vmem:[%s859 + $0x70] sm:$0xf] %v707
      %v932 = vld [vmem:[%s859 + $0x74] sm:$0x1]
      %v933 = vsel %vm868, %v708, %v932
      %934 = vst [vmem:[%s859 + $0x74] sm:$0x1] %v933
      %v935 = vld [vmem:[%s859 + $0x78] sm:$0xf]
      %v936 = vsel %vm862, %v715, %v935
      %937 = vst [vmem:[%s859 + $0x78] sm:$0xf] %v936
      %938 = vst [vmem:[%s859 + $0x7c] sm:$0xf] %v724
      %v939 = vld [vmem:[%s859 + $0x80] sm:$0x1]
      %v940 = vsel %vm868, %v725, %v939
      %941 = vst [vmem:[%s859 + $0x80] sm:$0x1] %v940
      %v942 = vld [vmem:[%s859 + $0x84] sm:$0xf]
      %v943 = vsel %vm862, %v732, %v942
      %944 = vst [vmem:[%s859 + $0x84] sm:$0xf] %v943
      %945 = vst [vmem:[%s859 + $0x88] sm:$0xf] %v741
      %v946 = vld [vmem:[%s859 + $0x8c] sm:$0x1]
      %v947 = vsel %vm868, %v742, %v946
      %948 = vst [vmem:[%s859 + $0x8c] sm:$0x1] %v947
      %v949 = vld [vmem:[%s859 + $0x90] sm:$0xf]
      %v950 = vsel %vm862, %v749, %v949
      %951 = vst [vmem:[%s859 + $0x90] sm:$0xf] %v950
      %952 = vst [vmem:[%s859 + $0x94] sm:$0xf] %v758
      %v953 = vld [vmem:[%s859 + $0x98] sm:$0x1]
      %v954 = vsel %vm868, %v759, %v953
      %955 = vst [vmem:[%s859 + $0x98] sm:$0x1] %v954
      %v956 = vld [vmem:[%s859 + $0x9c] sm:$0xf]
      %v957 = vsel %vm862, %v766, %v956
      %958 = vst [vmem:[%s859 + $0x9c] sm:$0xf] %v957
      %959 = vst [vmem:[%s859 + $0xa0] sm:$0xf] %v775
      %v960 = vld [vmem:[%s859 + $0xa4] sm:$0x1]
      %v961 = vsel %vm868, %v776, %v960
      %962 = vst [vmem:[%s859 + $0xa4] sm:$0x1] %v961
      %v963 = vld [vmem:[%s859 + $0xa8] sm:$0xf]
      %v964 = vsel %vm862, %v783, %v963
      %965 = vst [vmem:[%s859 + $0xa8] sm:$0xf] %v964
      %966 = vst [vmem:[%s859 + $0xac] sm:$0xf] %v792
      %v967 = vld [vmem:[%s859 + $0xb0] sm:$0x1]
      %v968 = vsel %vm868, %v793, %v967
      %969 = vst [vmem:[%s859 + $0xb0] sm:$0x1] %v968
      %v970 = vld [vmem:[%s859 + $0xb4] sm:$0xf]
      %v971 = vsel %vm862, %v800, %v970
      %972 = vst [vmem:[%s859 + $0xb4] sm:$0xf] %v971
      %973 = vst [vmem:[%s859 + $0xb8] sm:$0xf] %v809
      %v974 = vld [vmem:[%s859 + $0xbc] sm:$0x1]
      %v975 = vsel %vm868, %v810, %v974
      %976 = vst [vmem:[%s859 + $0xbc] sm:$0x1] %v975
      %v977 = vld [vmem:[#allocation2] sm:$0xf]
      %v978 = vld [vmem:[#allocation2 + $0x4] sm:$0xf]
      %v979 = vld [vmem:[#allocation2 + $0xc] sm:$0xf]
      %v980 = vld [vmem:[#allocation2 + $0x10] sm:$0xf]
      %v981 = vld [vmem:[#allocation2 + $0x18] sm:$0xf]
      %v982 = vld [vmem:[#allocation2 + $0x1c] sm:$0xf]
      %v983 = vld [vmem:[#allocation2 + $0x24] sm:$0xf]
      %v984 = vld [vmem:[#allocation2 + $0x28] sm:$0xf]
      %v985 = vld [vmem:[#allocation2 + $0x30] sm:$0xf]
      %v986 = vld [vmem:[#allocation2 + $0x34] sm:$0xf]
      %v987 = vld [vmem:[#allocation2 + $0x3c] sm:$0xf]
      %v988 = vld [vmem:[#allocation2 + $0x40] sm:$0xf]
      %v989 = vld [vmem:[#allocation2 + $0x48] sm:$0xf]
      %v990 = vld [vmem:[#allocation2 + $0x4c] sm:$0xf]
      %v991 = vld [vmem:[#allocation2 + $0x54] sm:$0xf]
      %v992 = vld [vmem:[#allocation2 + $0x58] sm:$0xf]
      %v993 = vld [vmem:[#allocation2 + $0x60] sm:$0xf]
      %v994 = vld [vmem:[#allocation2 + $0x64] sm:$0xf]
      %v995 = vld [vmem:[#allocation2 + $0x6c] sm:$0xf]
      %v996 = vld [vmem:[#allocation2 + $0x70] sm:$0xf]
      %v997 = vld [vmem:[#allocation2 + $0x78] sm:$0xf]
      %v998 = vld [vmem:[#allocation2 + $0x7c] sm:$0xf]
      %v999 = vld [vmem:[#allocation2 + $0x84] sm:$0xf]
      %v1000 = vld [vmem:[#allocation2 + $0x88] sm:$0xf]
      %v1001 = vld [vmem:[#allocation2 + $0x90] sm:$0xf]
      %v1002 = vld [vmem:[#allocation2 + $0x94] sm:$0xf]
      %v1003 = vld [vmem:[#allocation2 + $0x9c] sm:$0xf]
      %v1004 = vld [vmem:[#allocation2 + $0xa0] sm:$0xf]
      %v1005 = vld [vmem:[#allocation2 + $0xa8] sm:$0xf]
      %v1006 = vld [vmem:[#allocation2 + $0xac] sm:$0xf]
      %v1007 = vld [vmem:[#allocation2 + $0xb4] sm:$0xf]
      %v1008 = vld [vmem:[#allocation2 + $0xb8] sm:$0xf]
      %v1009 = vld [vmem:[#allocation2 + $0x8] sm:$0x1]
      %v1010 = vld [vmem:[#allocation2 + $0x14] sm:$0x1]
      %v1011 = vld [vmem:[#allocation2 + $0x20] sm:$0x1]
      %v1012 = vld [vmem:[#allocation2 + $0x2c] sm:$0x1]
      %v1013 = vld [vmem:[#allocation2 + $0x38] sm:$0x1]
      %v1014 = vld [vmem:[#allocation2 + $0x44] sm:$0x1]
      %v1015 = vld [vmem:[#allocation2 + $0x50] sm:$0x1]
      %v1016 = vld [vmem:[#allocation2 + $0x5c] sm:$0x1]
      %v1017 = vld [vmem:[#allocation2 + $0x68] sm:$0x1]
      %v1018 = vld [vmem:[#allocation2 + $0x74] sm:$0x1]
      %v1019 = vld [vmem:[#allocation2 + $0x80] sm:$0x1]
      %v1020 = vld [vmem:[#allocation2 + $0x8c] sm:$0x1]
      %v1021 = vld [vmem:[#allocation2 + $0x98] sm:$0x1]
      %v1022 = vld [vmem:[#allocation2 + $0xa4] sm:$0x1]
      %v1023 = vld [vmem:[#allocation2 + $0xb0] sm:$0x1]
      %v1024 = vld [vmem:[#allocation2 + $0xbc] sm:$0x1]
      %vm1025 = vsmask.f32 3328
      %vm1026 = vsmask.f32 7440
      %vm1027 = vmor %vm1025, %vm1026
      %v1029 = vshrl.u32 %v977, 16
      %v1031 = vrot.slane %v1029, 4
      %v1032 = vshll.u32 %v977, 16
      %v1034 = vrot.slane %v1032, 5
      %v1035 = vor.u32 %v1031, %v1034
      %v1036 = vrot.slane %v1035, 4
      %v1038 = vshll.u32 %v978, 16
      %v1040 = vrot.slane %v1038, 5
      %v1041 = vsel %vm1027, %v1036, %v1040
      %v1042 = vshrl.u32 %v978, 16
      %v1044 = vrot.slane %v1042, 4
      %v1045 = vor.u32 %v1044, %v1040
      %v1046 = vrot.slane %v1045, 4
      %v1048 = vshll.u32 %v1009, 16
      %v1050 = vrot.slane %v1048, 5
      %v1051 = vsel %vm1027, %v1046, %v1050
      %v1053 = vshrl.u32 %v979, 16
      %v1055 = vrot.slane %v1053, 4
      %v1056 = vshll.u32 %v979, 16
      %v1058 = vrot.slane %v1056, 5
      %v1059 = vor.u32 %v1055, %v1058
      %v1060 = vrot.slane %v1059, 4
      %v1062 = vshll.u32 %v980, 16
      %v1064 = vrot.slane %v1062, 5
      %v1065 = vsel %vm1027, %v1060, %v1064
      %v1066 = vshrl.u32 %v980, 16
      %v1068 = vrot.slane %v1066, 4
      %v1069 = vor.u32 %v1068, %v1064
      %v1070 = vrot.slane %v1069, 4
      %v1072 = vshll.u32 %v1010, 16
      %v1074 = vrot.slane %v1072, 5
      %v1075 = vsel %vm1027, %v1070, %v1074
      %v1077 = vshrl.u32 %v981, 16
      %v1079 = vrot.slane %v1077, 4
      %v1080 = vshll.u32 %v981, 16
      %v1082 = vrot.slane %v1080, 5
      %v1083 = vor.u32 %v1079, %v1082
      %v1084 = vrot.slane %v1083, 4
      %v1086 = vshll.u32 %v982, 16
      %v1088 = vrot.slane %v1086, 5
      %v1089 = vsel %vm1027, %v1084, %v1088
      %v1090 = vshrl.u32 %v982, 16
      %v1092 = vrot.slane %v1090, 4
      %v1093 = vor.u32 %v1092, %v1088
      %v1094 = vrot.slane %v1093, 4
      %v1096 = vshll.u32 %v1011, 16
      %v1098 = vrot.slane %v1096, 5
      %v1099 = vsel %vm1027, %v1094, %v1098
      %v1101 = vshrl.u32 %v983, 16
      %v1103 = vrot.slane %v1101, 4
      %v1104 = vshll.u32 %v983, 16
      %v1106 = vrot.slane %v1104, 5
      %v1107 = vor.u32 %v1103, %v1106
      %v1108 = vrot.slane %v1107, 4
      %v1110 = vshll.u32 %v984, 16
      %v1112 = vrot.slane %v1110, 5
      %v1113 = vsel %vm1027, %v1108, %v1112
      %v1114 = vshrl.u32 %v984, 16
      %v1116 = vrot.slane %v1114, 4
      %v1117 = vor.u32 %v1116, %v1112
      %v1118 = vrot.slane %v1117, 4
      %v1120 = vshll.u32 %v1012, 16
      %v1122 = vrot.slane %v1120, 5
      %v1123 = vsel %vm1027, %v1118, %v1122
      %v1125 = vshrl.u32 %v985, 16
      %v1127 = vrot.slane %v1125, 4
      %v1128 = vshll.u32 %v985, 16
      %v1130 = vrot.slane %v1128, 5
      %v1131 = vor.u32 %v1127, %v1130
      %v1132 = vrot.slane %v1131, 4
      %v1134 = vshll.u32 %v986, 16
      %v1136 = vrot.slane %v1134, 5
      %v1137 = vsel %vm1027, %v1132, %v1136
      %v1138 = vshrl.u32 %v986, 16
      %v1140 = vrot.slane %v1138, 4
      %v1141 = vor.u32 %v1140, %v1136
      %v1142 = vrot.slane %v1141, 4
      %v1144 = vshll.u32 %v1013, 16
      %v1146 = vrot.slane %v1144, 5
      %v1147 = vsel %vm1027, %v1142, %v1146
      %v1149 = vshrl.u32 %v987, 16
      %v1151 = vrot.slane %v1149, 4
      %v1152 = vshll.u32 %v987, 16
      %v1154 = vrot.slane %v1152, 5
      %v1155 = vor.u32 %v1151, %v1154
      %v1156 = vrot.slane %v1155, 4
      %v1158 = vshll.u32 %v988, 16
      %v1160 = vrot.slane %v1158, 5
      %v1161 = vsel %vm1027, %v1156, %v1160
      %v1162 = vshrl.u32 %v988, 16
      %v1164 = vrot.slane %v1162, 4
      %v1165 = vor.u32 %v1164, %v1160
      %v1166 = vrot.slane %v1165, 4
      %v1168 = vshll.u32 %v1014, 16
      %v1170 = vrot.slane %v1168, 5
      %v1171 = vsel %vm1027, %v1166, %v1170
      %v1173 = vshrl.u32 %v989, 16
      %v1175 = vrot.slane %v1173, 4
      %v1176 = vshll.u32 %v989, 16
      %v1178 = vrot.slane %v1176, 5
      %v1179 = vor.u32 %v1175, %v1178
      %v1180 = vrot.slane %v1179, 4
      %v1182 = vshll.u32 %v990, 16
      %v1184 = vrot.slane %v1182, 5
      %v1185 = vsel %vm1027, %v1180, %v1184
      %v1186 = vshrl.u32 %v990, 16
      %v1188 = vrot.slane %v1186, 4
      %v1189 = vor.u32 %v1188, %v1184
      %v1190 = vrot.slane %v1189, 4
      %v1192 = vshll.u32 %v1015, 16
      %v1194 = vrot.slane %v1192, 5
      %v1195 = vsel %vm1027, %v1190, %v1194
      %v1197 = vshrl.u32 %v991, 16
      %v1199 = vrot.slane %v1197, 4
      %v1200 = vshll.u32 %v991, 16
      %v1202 = vrot.slane %v1200, 5
      %v1203 = vor.u32 %v1199, %v1202
      %v1204 = vrot.slane %v1203, 4
      %v1206 = vshll.u32 %v992, 16
      %v1208 = vrot.slane %v1206, 5
      %v1209 = vsel %vm1027, %v1204, %v1208
      %v1210 = vshrl.u32 %v992, 16
      %v1212 = vrot.slane %v1210, 4
      %v1213 = vor.u32 %v1212, %v1208
      %v1214 = vrot.slane %v1213, 4
      %v1216 = vshll.u32 %v1016, 16
      %v1218 = vrot.slane %v1216, 5
      %v1219 = vsel %vm1027, %v1214, %v1218
      %v1221 = vshrl.u32 %v993, 16
      %v1223 = vrot.slane %v1221, 4
      %v1224 = vshll.u32 %v993, 16
      %v1226 = vrot.slane %v1224, 5
      %v1227 = vor.u32 %v1223, %v1226
      %v1228 = vrot.slane %v1227, 4
      %v1230 = vshll.u32 %v994, 16
      %v1232 = vrot.slane %v1230, 5
      %v1233 = vsel %vm1027, %v1228, %v1232
      %v1234 = vshrl.u32 %v994, 16
      %v1236 = vrot.slane %v1234, 4
      %v1237 = vor.u32 %v1236, %v1232
      %v1238 = vrot.slane %v1237, 4
      %v1240 = vshll.u32 %v1017, 16
      %v1242 = vrot.slane %v1240, 5
      %v1243 = vsel %vm1027, %v1238, %v1242
      %v1245 = vshrl.u32 %v995, 16
      %v1247 = vrot.slane %v1245, 4
      %v1248 = vshll.u32 %v995, 16
      %v1250 = vrot.slane %v1248, 5
      %v1251 = vor.u32 %v1247, %v1250
      %v1252 = vrot.slane %v1251, 4
      %v1254 = vshll.u32 %v996, 16
      %v1256 = vrot.slane %v1254, 5
      %v1257 = vsel %vm1027, %v1252, %v1256
      %v1258 = vshrl.u32 %v996, 16
      %v1260 = vrot.slane %v1258, 4
      %v1261 = vor.u32 %v1260, %v1256
      %v1262 = vrot.slane %v1261, 4
      %v1264 = vshll.u32 %v1018, 16
      %v1266 = vrot.slane %v1264, 5
      %v1267 = vsel %vm1027, %v1262, %v1266
      %v1269 = vshrl.u32 %v997, 16
      %v1271 = vrot.slane %v1269, 4
      %v1272 = vshll.u32 %v997, 16
      %v1274 = vrot.slane %v1272, 5
      %v1275 = vor.u32 %v1271, %v1274
      %v1276 = vrot.slane %v1275, 4
      %v1278 = vshll.u32 %v998, 16
      %v1280 = vrot.slane %v1278, 5
      %v1281 = vsel %vm1027, %v1276, %v1280
      %v1282 = vshrl.u32 %v998, 16
      %v1284 = vrot.slane %v1282, 4
      %v1285 = vor.u32 %v1284, %v1280
      %v1286 = vrot.slane %v1285, 4
      %v1288 = vshll.u32 %v1019, 16
      %v1290 = vrot.slane %v1288, 5
      %v1291 = vsel %vm1027, %v1286, %v1290
      %v1293 = vshrl.u32 %v999, 16
      %v1295 = vrot.slane %v1293, 4
      %v1296 = vshll.u32 %v999, 16
      %v1298 = vrot.slane %v1296, 5
      %v1299 = vor.u32 %v1295, %v1298
      %v1300 = vrot.slane %v1299, 4
      %v1302 = vshll.u32 %v1000, 16
      %v1304 = vrot.slane %v1302, 5
      %v1305 = vsel %vm1027, %v1300, %v1304
      %v1306 = vshrl.u32 %v1000, 16
      %v1308 = vrot.slane %v1306, 4
      %v1309 = vor.u32 %v1308, %v1304
      %v1310 = vrot.slane %v1309, 4
      %v1312 = vshll.u32 %v1020, 16
      %v1314 = vrot.slane %v1312, 5
      %v1315 = vsel %vm1027, %v1310, %v1314
      %v1317 = vshrl.u32 %v1001, 16
      %v1319 = vrot.slane %v1317, 4
      %v1320 = vshll.u32 %v1001, 16
      %v1322 = vrot.slane %v1320, 5
      %v1323 = vor.u32 %v1319, %v1322
      %v1324 = vrot.slane %v1323, 4
      %v1326 = vshll.u32 %v1002, 16
      %v1328 = vrot.slane %v1326, 5
      %v1329 = vsel %vm1027, %v1324, %v1328
      %v1330 = vshrl.u32 %v1002, 16
      %v1332 = vrot.slane %v1330, 4
      %v1333 = vor.u32 %v1332, %v1328
      %v1334 = vrot.slane %v1333, 4
      %v1336 = vshll.u32 %v1021, 16
      %v1338 = vrot.slane %v1336, 5
      %v1339 = vsel %vm1027, %v1334, %v1338
      %v1341 = vshrl.u32 %v1003, 16
      %v1343 = vrot.slane %v1341, 4
      %v1344 = vshll.u32 %v1003, 16
      %v1346 = vrot.slane %v1344, 5
      %v1347 = vor.u32 %v1343, %v1346
      %v1348 = vrot.slane %v1347, 4
      %v1350 = vshll.u32 %v1004, 16
      %v1352 = vrot.slane %v1350, 5
      %v1353 = vsel %vm1027, %v1348, %v1352
      %v1354 = vshrl.u32 %v1004, 16
      %v1356 = vrot.slane %v1354, 4
      %v1357 = vor.u32 %v1356, %v1352
      %v1358 = vrot.slane %v1357, 4
      %v1360 = vshll.u32 %v1022, 16
      %v1362 = vrot.slane %v1360, 5
      %v1363 = vsel %vm1027, %v1358, %v1362
      %v1365 = vshrl.u32 %v1005, 16
      %v1367 = vrot.slane %v1365, 4
      %v1368 = vshll.u32 %v1005, 16
      %v1370 = vrot.slane %v1368, 5
      %v1371 = vor.u32 %v1367, %v1370
      %v1372 = vrot.slane %v1371, 4
      %v1374 = vshll.u32 %v1006, 16
      %v1376 = vrot.slane %v1374, 5
      %v1377 = vsel %vm1027, %v1372, %v1376
      %v1378 = vshrl.u32 %v1006, 16
      %v1380 = vrot.slane %v1378, 4
      %v1381 = vor.u32 %v1380, %v1376
      %v1382 = vrot.slane %v1381, 4
      %v1384 = vshll.u32 %v1023, 16
      %v1386 = vrot.slane %v1384, 5
      %v1387 = vsel %vm1027, %v1382, %v1386
      %v1389 = vshrl.u32 %v1007, 16
      %v1391 = vrot.slane %v1389, 4
      %v1392 = vshll.u32 %v1007, 16
      %v1394 = vrot.slane %v1392, 5
      %v1395 = vor.u32 %v1391, %v1394
      %v1396 = vrot.slane %v1395, 4
      %v1398 = vshll.u32 %v1008, 16
      %v1400 = vrot.slane %v1398, 5
      %v1401 = vsel %vm1027, %v1396, %v1400
      %v1402 = vshrl.u32 %v1008, 16
      %v1404 = vrot.slane %v1402, 4
      %v1405 = vor.u32 %v1404, %v1400
      %v1406 = vrot.slane %v1405, 4
      %v1408 = vshll.u32 %v1024, 16
      %v1410 = vrot.slane %v1408, 5
      %v1411 = vsel %vm1027, %v1406, %v1410
      %v1412 = vld [vmem:[#allocation2] sm:$0xe]
      %v1413 = vld [vmem:[#allocation2 + $0xc] sm:$0xe]
      %v1414 = vld [vmem:[#allocation2 + $0x18] sm:$0xe]
      %v1415 = vld [vmem:[#allocation2 + $0x24] sm:$0xe]
      %v1416 = vld [vmem:[#allocation2 + $0x30] sm:$0xe]
      %v1417 = vld [vmem:[#allocation2 + $0x3c] sm:$0xe]
      %v1418 = vld [vmem:[#allocation2 + $0x48] sm:$0xe]
      %v1419 = vld [vmem:[#allocation2 + $0x54] sm:$0xe]
      %v1420 = vld [vmem:[#allocation2 + $0x60] sm:$0xe]
      %v1421 = vld [vmem:[#allocation2 + $0x6c] sm:$0xe]
      %v1422 = vld [vmem:[#allocation2 + $0x78] sm:$0xe]
      %v1423 = vld [vmem:[#allocation2 + $0x84] sm:$0xe]
      %v1424 = vld [vmem:[#allocation2 + $0x90] sm:$0xe]
      %v1425 = vld [vmem:[#allocation2 + $0x9c] sm:$0xe]
      %v1426 = vld [vmem:[#allocation2 + $0xa8] sm:$0xe]
      %v1427 = vld [vmem:[#allocation2 + $0xb4] sm:$0xe]
      %vm1476 = vcmask 1042432
      %vm1477 = vcmask 1046532
      %vm1478 = vmor %vm1476, %vm1477
      %v1479 = vrot.slane %v1412, 5
      %v1480 = vrot.slane %v1479, 4
      %v1481 = vrot.slane %v978, 5
      %v1482 = vsel %vm1478, %v1480, %v1481
      %v1483 = vrot.slane %v1481, 4
      %v1484 = vrot.slane %v1009, 5
      %v1485 = vsel %vm1478, %v1483, %v1484
      %v1486 = vrot.slane %v1413, 5
      %v1487 = vrot.slane %v1486, 4
      %v1488 = vrot.slane %v980, 5
      %v1489 = vsel %vm1478, %v1487, %v1488
      %v1490 = vrot.slane %v1488, 4
      %v1491 = vrot.slane %v1010, 5
      %v1492 = vsel %vm1478, %v1490, %v1491
      %v1493 = vrot.slane %v1414, 5
      %v1494 = vrot.slane %v1493, 4
      %v1495 = vrot.slane %v982, 5
      %v1496 = vsel %vm1478, %v1494, %v1495
      %v1497 = vrot.slane %v1495, 4
      %v1498 = vrot.slane %v1011, 5
      %v1499 = vsel %vm1478, %v1497, %v1498
      %v1500 = vrot.slane %v1415, 5
      %v1501 = vrot.slane %v1500, 4
      %v1502 = vrot.slane %v984, 5
      %v1503 = vsel %vm1478, %v1501, %v1502
      %v1504 = vrot.slane %v1502, 4
      %v1505 = vrot.slane %v1012, 5
      %v1506 = vsel %vm1478, %v1504, %v1505
      %v1507 = vrot.slane %v1416, 5
      %v1508 = vrot.slane %v1507, 4
      %v1509 = vrot.slane %v986, 5
      %v1510 = vsel %vm1478, %v1508, %v1509
      %v1511 = vrot.slane %v1509, 4
      %v1512 = vrot.slane %v1013, 5
      %v1513 = vsel %vm1478, %v1511, %v1512
      %v1514 = vrot.slane %v1417, 5
      %v1515 = vrot.slane %v1514, 4
      %v1516 = vrot.slane %v988, 5
      %v1517 = vsel %vm1478, %v1515, %v1516
      %v1518 = vrot.slane %v1516, 4
      %v1519 = vrot.slane %v1014, 5
      %v1520 = vsel %vm1478, %v1518, %v1519
      %v1521 = vrot.slane %v1418, 5
      %v1522 = vrot.slane %v1521, 4
      %v1523 = vrot.slane %v990, 5
      %v1524 = vsel %vm1478, %v1522, %v1523
      %v1525 = vrot.slane %v1523, 4
      %v1526 = vrot.slane %v1015, 5
      %v1527 = vsel %vm1478, %v1525, %v1526
      %v1528 = vrot.slane %v1419, 5
      %v1529 = vrot.slane %v1528, 4
      %v1530 = vrot.slane %v992, 5
      %v1531 = vsel %vm1478, %v1529, %v1530
      %v1532 = vrot.slane %v1530, 4
      %v1533 = vrot.slane %v1016, 5
      %v1534 = vsel %vm1478, %v1532, %v1533
      %v1535 = vrot.slane %v1420, 5
      %v1536 = vrot.slane %v1535, 4
      %v1537 = vrot.slane %v994, 5
      %v1538 = vsel %vm1478, %v1536, %v1537
      %v1539 = vrot.slane %v1537, 4
      %v1540 = vrot.slane %v1017, 5
      %v1541 = vsel %vm1478, %v1539, %v1540
      %v1542 = vrot.slane %v1421, 5
      %v1543 = vrot.slane %v1542, 4
      %v1544 = vrot.slane %v996, 5
      %v1545 = vsel %vm1478, %v1543, %v1544
      %v1546 = vrot.slane %v1544, 4
      %v1547 = vrot.slane %v1018, 5
      %v1548 = vsel %vm1478, %v1546, %v1547
      %v1549 = vrot.slane %v1422, 5
      %v1550 = vrot.slane %v1549, 4
      %v1551 = vrot.slane %v998, 5
      %v1552 = vsel %vm1478, %v1550, %v1551
      %v1553 = vrot.slane %v1551, 4
      %v1554 = vrot.slane %v1019, 5
      %v1555 = vsel %vm1478, %v1553, %v1554
      %v1556 = vrot.slane %v1423, 5
      %v1557 = vrot.slane %v1556, 4
      %v1558 = vrot.slane %v1000, 5
      %v1559 = vsel %vm1478, %v1557, %v1558
      %v1560 = vrot.slane %v1558, 4
      %v1561 = vrot.slane %v1020, 5
      %v1562 = vsel %vm1478, %v1560, %v1561
      %v1563 = vrot.slane %v1424, 5
      %v1564 = vrot.slane %v1563, 4
      %v1565 = vrot.slane %v1002, 5
      %v1566 = vsel %vm1478, %v1564, %v1565
      %v1567 = vrot.slane %v1565, 4
      %v1568 = vrot.slane %v1021, 5
      %v1569 = vsel %vm1478, %v1567, %v1568
      %v1570 = vrot.slane %v1425, 5
      %v1571 = vrot.slane %v1570, 4
      %v1572 = vrot.slane %v1004, 5
      %v1573 = vsel %vm1478, %v1571, %v1572
      %v1574 = vrot.slane %v1572, 4
      %v1575 = vrot.slane %v1022, 5
      %v1576 = vsel %vm1478, %v1574, %v1575
      %v1577 = vrot.slane %v1426, 5
      %v1578 = vrot.slane %v1577, 4
      %v1579 = vrot.slane %v1006, 5
      %v1580 = vsel %vm1478, %v1578, %v1579
      %v1581 = vrot.slane %v1579, 4
      %v1582 = vrot.slane %v1023, 5
      %v1583 = vsel %vm1478, %v1581, %v1582
      %v1584 = vrot.slane %v1427, 5
      %v1585 = vrot.slane %v1584, 4
      %v1586 = vrot.slane %v1008, 5
      %v1587 = vsel %vm1478, %v1585, %v1586
      %v1588 = vrot.slane %v1586, 4
      %v1589 = vrot.slane %v1024, 5
      %v1590 = vsel %vm1478, %v1588, %v1589
      %v1591 = vld [vmem:[%s859] sm:$0xf]
      %v1592 = vld [vmem:[%s859 + $0x4] sm:$0xf]
      %v1593 = vld [vmem:[%s859 + $0xc] sm:$0xf]
      %v1594 = vld [vmem:[%s859 + $0x10] sm:$0xf]
      %v1595 = vld [vmem:[%s859 + $0x18] sm:$0xf]
      %v1596 = vld [vmem:[%s859 + $0x1c] sm:$0xf]
      %v1597 = vld [vmem:[%s859 + $0x24] sm:$0xf]
      %v1598 = vld [vmem:[%s859 + $0x28] sm:$0xf]
      %v1599 = vld [vmem:[%s859 + $0x30] sm:$0xf]
      %v1600 = vld [vmem:[%s859 + $0x34] sm:$0xf]
      %v1601 = vld [vmem:[%s859 + $0x3c] sm:$0xf]
      %v1602 = vld [vmem:[%s859 + $0x40] sm:$0xf]
      %v1603 = vld [vmem:[%s859 + $0x48] sm:$0xf]
      %v1604 = vld [vmem:[%s859 + $0x4c] sm:$0xf]
      %v1605 = vld [vmem:[%s859 + $0x54] sm:$0xf]
      %v1606 = vld [vmem:[%s859 + $0x58] sm:$0xf]
      %v1607 = vld [vmem:[%s859 + $0x60] sm:$0xf]
      %v1608 = vld [vmem:[%s859 + $0x64] sm:$0xf]
      %v1609 = vld [vmem:[%s859 + $0x6c] sm:$0xf]
      %v1610 = vld [vmem:[%s859 + $0x70] sm:$0xf]
      %v1611 = vld [vmem:[%s859 + $0x78] sm:$0xf]
      %v1612 = vld [vmem:[%s859 + $0x7c] sm:$0xf]
      %v1613 = vld [vmem:[%s859 + $0x84] sm:$0xf]
      %v1614 = vld [vmem:[%s859 + $0x88] sm:$0xf]
      %v1615 = vld [vmem:[%s859 + $0x90] sm:$0xf]
      %v1616 = vld [vmem:[%s859 + $0x94] sm:$0xf]
      %v1617 = vld [vmem:[%s859 + $0x9c] sm:$0xf]
      %v1618 = vld [vmem:[%s859 + $0xa0] sm:$0xf]
      %v1619 = vld [vmem:[%s859 + $0xa8] sm:$0xf]
      %v1620 = vld [vmem:[%s859 + $0xac] sm:$0xf]
      %v1621 = vld [vmem:[%s859 + $0xb4] sm:$0xf]
      %v1622 = vld [vmem:[%s859 + $0xb8] sm:$0xf]
      %v1623 = vld [vmem:[%s859 + $0x8] sm:$0x1]
      %v1624 = vld [vmem:[%s859 + $0x14] sm:$0x1]
      %v1625 = vld [vmem:[%s859 + $0x20] sm:$0x1]
      %v1626 = vld [vmem:[%s859 + $0x2c] sm:$0x1]
      %v1627 = vld [vmem:[%s859 + $0x38] sm:$0x1]
      %v1628 = vld [vmem:[%s859 + $0x44] sm:$0x1]
      %v1629 = vld [vmem:[%s859 + $0x50] sm:$0x1]
      %v1630 = vld [vmem:[%s859 + $0x5c] sm:$0x1]
      %v1631 = vld [vmem:[%s859 + $0x68] sm:$0x1]
      %v1632 = vld [vmem:[%s859 + $0x74] sm:$0x1]
      %v1633 = vld [vmem:[%s859 + $0x80] sm:$0x1]
      %v1634 = vld [vmem:[%s859 + $0x8c] sm:$0x1]
      %v1635 = vld [vmem:[%s859 + $0x98] sm:$0x1]
      %v1636 = vld [vmem:[%s859 + $0xa4] sm:$0x1]
      %v1637 = vld [vmem:[%s859 + $0xb0] sm:$0x1]
      %v1638 = vld [vmem:[%s859 + $0xbc] sm:$0x1]
      %v1640 = vshrl.u32 %v1591, 16
      %v1642 = vrot.slane %v1640, 4
      %v1643 = vshll.u32 %v1591, 16
      %v1645 = vrot.slane %v1643, 5
      %v1646 = vor.u32 %v1642, %v1645
      %v1647 = vrot.slane %v1646, 4
      %v1649 = vshll.u32 %v1592, 16
      %v1651 = vrot.slane %v1649, 5
      %v1652 = vsel %vm1027, %v1647, %v1651
      %v1653 = vshrl.u32 %v1592, 16
      %v1655 = vrot.slane %v1653, 4
      %v1656 = vor.u32 %v1655, %v1651
      %v1657 = vrot.slane %v1656, 4
      %v1659 = vshll.u32 %v1623, 16
      %v1661 = vrot.slane %v1659, 5
      %v1662 = vsel %vm1027, %v1657, %v1661
      %v1664 = vshrl.u32 %v1593, 16
      %v1666 = vrot.slane %v1664, 4
      %v1667 = vshll.u32 %v1593, 16
      %v1669 = vrot.slane %v1667, 5
      %v1670 = vor.u32 %v1666, %v1669
      %v1671 = vrot.slane %v1670, 4
      %v1673 = vshll.u32 %v1594, 16
      %v1675 = vrot.slane %v1673, 5
      %v1676 = vsel %vm1027, %v1671, %v1675
      %v1677 = vshrl.u32 %v1594, 16
      %v1679 = vrot.slane %v1677, 4
      %v1680 = vor.u32 %v1679, %v1675
      %v1681 = vrot.slane %v1680, 4
      %v1683 = vshll.u32 %v1624, 16
      %v1685 = vrot.slane %v1683, 5
      %v1686 = vsel %vm1027, %v1681, %v1685
      %v1688 = vshrl.u32 %v1595, 16
      %v1690 = vrot.slane %v1688, 4
      %v1691 = vshll.u32 %v1595, 16
      %v1693 = vrot.slane %v1691, 5
      %v1694 = vor.u32 %v1690, %v1693
      %v1695 = vrot.slane %v1694, 4
      %v1697 = vshll.u32 %v1596, 16
      %v1699 = vrot.slane %v1697, 5
      %v1700 = vsel %vm1027, %v1695, %v1699
      %v1701 = vshrl.u32 %v1596, 16
      %v1703 = vrot.slane %v1701, 4
      %v1704 = vor.u32 %v1703, %v1699
      %v1705 = vrot.slane %v1704, 4
      %v1707 = vshll.u32 %v1625, 16
      %v1709 = vrot.slane %v1707, 5
      %v1710 = vsel %vm1027, %v1705, %v1709
      %v1712 = vshrl.u32 %v1597, 16
      %v1714 = vrot.slane %v1712, 4
      %v1715 = vshll.u32 %v1597, 16
      %v1717 = vrot.slane %v1715, 5
      %v1718 = vor.u32 %v1714, %v1717
      %v1719 = vrot.slane %v1718, 4
      %v1721 = vshll.u32 %v1598, 16
      %v1723 = vrot.slane %v1721, 5
      %v1724 = vsel %vm1027, %v1719, %v1723
      %v1725 = vshrl.u32 %v1598, 16
      %v1727 = vrot.slane %v1725, 4
      %v1728 = vor.u32 %v1727, %v1723
      %v1729 = vrot.slane %v1728, 4
      %v1731 = vshll.u32 %v1626, 16
      %v1733 = vrot.slane %v1731, 5
      %v1734 = vsel %vm1027, %v1729, %v1733
      %v1736 = vshrl.u32 %v1599, 16
      %v1738 = vrot.slane %v1736, 4
      %v1739 = vshll.u32 %v1599, 16
      %v1741 = vrot.slane %v1739, 5
      %v1742 = vor.u32 %v1738, %v1741
      %v1743 = vrot.slane %v1742, 4
      %v1745 = vshll.u32 %v1600, 16
      %v1747 = vrot.slane %v1745, 5
      %v1748 = vsel %vm1027, %v1743, %v1747
      %v1749 = vshrl.u32 %v1600, 16
      %v1751 = vrot.slane %v1749, 4
      %v1752 = vor.u32 %v1751, %v1747
      %v1753 = vrot.slane %v1752, 4
      %v1755 = vshll.u32 %v1627, 16
      %v1757 = vrot.slane %v1755, 5
      %v1758 = vsel %vm1027, %v1753, %v1757
      %v1760 = vshrl.u32 %v1601, 16
      %v1762 = vrot.slane %v1760, 4
      %v1763 = vshll.u32 %v1601, 16
      %v1765 = vrot.slane %v1763, 5
      %v1766 = vor.u32 %v1762, %v1765
      %v1767 = vrot.slane %v1766, 4
      %v1769 = vshll.u32 %v1602, 16
      %v1771 = vrot.slane %v1769, 5
      %v1772 = vsel %vm1027, %v1767, %v1771
      %v1773 = vshrl.u32 %v1602, 16
      %v1775 = vrot.slane %v1773, 4
      %v1776 = vor.u32 %v1775, %v1771
      %v1777 = vrot.slane %v1776, 4
      %v1779 = vshll.u32 %v1628, 16
      %v1781 = vrot.slane %v1779, 5
      %v1782 = vsel %vm1027, %v1777, %v1781
      %v1784 = vshrl.u32 %v1603, 16
      %v1786 = vrot.slane %v1784, 4
      %v1787 = vshll.u32 %v1603, 16
      %v1789 = vrot.slane %v1787, 5
      %v1790 = vor.u32 %v1786, %v1789
      %v1791 = vrot.slane %v1790, 4
      %v1793 = vshll.u32 %v1604, 16
      %v1795 = vrot.slane %v1793, 5
      %v1796 = vsel %vm1027, %v1791, %v1795
      %v1797 = vshrl.u32 %v1604, 16
      %v1799 = vrot.slane %v1797, 4
      %v1800 = vor.u32 %v1799, %v1795
      %v1801 = vrot.slane %v1800, 4
      %v1803 = vshll.u32 %v1629, 16
      %v1805 = vrot.slane %v1803, 5
      %v1806 = vsel %vm1027, %v1801, %v1805
      %v1808 = vshrl.u32 %v1605, 16
      %v1810 = vrot.slane %v1808, 4
      %v1811 = vshll.u32 %v1605, 16
      %v1813 = vrot.slane %v1811, 5
      %v1814 = vor.u32 %v1810, %v1813
      %v1815 = vrot.slane %v1814, 4
      %v1817 = vshll.u32 %v1606, 16
      %v1819 = vrot.slane %v1817, 5
      %v1820 = vsel %vm1027, %v1815, %v1819
      %v1821 = vshrl.u32 %v1606, 16
      %v1823 = vrot.slane %v1821, 4
      %v1824 = vor.u32 %v1823, %v1819
      %v1825 = vrot.slane %v1824, 4
      %v1827 = vshll.u32 %v1630, 16
      %v1829 = vrot.slane %v1827, 5
      %v1830 = vsel %vm1027, %v1825, %v1829
      %v1832 = vshrl.u32 %v1607, 16
      %v1834 = vrot.slane %v1832, 4
      %v1835 = vshll.u32 %v1607, 16
      %v1837 = vrot.slane %v1835, 5
      %v1838 = vor.u32 %v1834, %v1837
      %v1839 = vrot.slane %v1838, 4
      %v1841 = vshll.u32 %v1608, 16
      %v1843 = vrot.slane %v1841, 5
      %v1844 = vsel %vm1027, %v1839, %v1843
      %v1845 = vshrl.u32 %v1608, 16
      %v1847 = vrot.slane %v1845, 4
      %v1848 = vor.u32 %v1847, %v1843
      %v1849 = vrot.slane %v1848, 4
      %v1851 = vshll.u32 %v1631, 16
      %v1853 = vrot.slane %v1851, 5
      %v1854 = vsel %vm1027, %v1849, %v1853
      %v1856 = vshrl.u32 %v1609, 16
      %v1858 = vrot.slane %v1856, 4
      %v1859 = vshll.u32 %v1609, 16
      %v1861 = vrot.slane %v1859, 5
      %v1862 = vor.u32 %v1858, %v1861
      %v1863 = vrot.slane %v1862, 4
      %v1865 = vshll.u32 %v1610, 16
      %v1867 = vrot.slane %v1865, 5
      %v1868 = vsel %vm1027, %v1863, %v1867
      %v1869 = vshrl.u32 %v1610, 16
      %v1871 = vrot.slane %v1869, 4
      %v1872 = vor.u32 %v1871, %v1867
      %v1873 = vrot.slane %v1872, 4
      %v1875 = vshll.u32 %v1632, 16
      %v1877 = vrot.slane %v1875, 5
      %v1878 = vsel %vm1027, %v1873, %v1877
      %v1880 = vshrl.u32 %v1611, 16
      %v1882 = vrot.slane %v1880, 4
      %v1883 = vshll.u32 %v1611, 16
      %v1885 = vrot.slane %v1883, 5
      %v1886 = vor.u32 %v1882, %v1885
      %v1887 = vrot.slane %v1886, 4
      %v1889 = vshll.u32 %v1612, 16
      %v1891 = vrot.slane %v1889, 5
      %v1892 = vsel %vm1027, %v1887, %v1891
      %v1893 = vshrl.u32 %v1612, 16
      %v1895 = vrot.slane %v1893, 4
      %v1896 = vor.u32 %v1895, %v1891
      %v1897 = vrot.slane %v1896, 4
      %v1899 = vshll.u32 %v1633, 16
      %v1901 = vrot.slane %v1899, 5
      %v1902 = vsel %vm1027, %v1897, %v1901
      %v1904 = vshrl.u32 %v1613, 16
      %v1906 = vrot.slane %v1904, 4
      %v1907 = vshll.u32 %v1613, 16
      %v1909 = vrot.slane %v1907, 5
      %v1910 = vor.u32 %v1906, %v1909
      %v1911 = vrot.slane %v1910, 4
      %v1913 = vshll.u32 %v1614, 16
      %v1915 = vrot.slane %v1913, 5
      %v1916 = vsel %vm1027, %v1911, %v1915
      %v1917 = vshrl.u32 %v1614, 16
      %v1919 = vrot.slane %v1917, 4
      %v1920 = vor.u32 %v1919, %v1915
      %v1921 = vrot.slane %v1920, 4
      %v1923 = vshll.u32 %v1634, 16
      %v1925 = vrot.slane %v1923, 5
      %v1926 = vsel %vm1027, %v1921, %v1925
      %v1928 = vshrl.u32 %v1615, 16
      %v1930 = vrot.slane %v1928, 4
      %v1931 = vshll.u32 %v1615, 16
      %v1933 = vrot.slane %v1931, 5
      %v1934 = vor.u32 %v1930, %v1933
      %v1935 = vrot.slane %v1934, 4
      %v1937 = vshll.u32 %v1616, 16
      %v1939 = vrot.slane %v1937, 5
      %v1940 = vsel %vm1027, %v1935, %v1939
      %v1941 = vshrl.u32 %v1616, 16
      %v1943 = vrot.slane %v1941, 4
      %v1944 = vor.u32 %v1943, %v1939
      %v1945 = vrot.slane %v1944, 4
      %v1947 = vshll.u32 %v1635, 16
      %v1949 = vrot.slane %v1947, 5
      %v1950 = vsel %vm1027, %v1945, %v1949
      %v1952 = vshrl.u32 %v1617, 16
      %v1954 = vrot.slane %v1952, 4
      %v1955 = vshll.u32 %v1617, 16
      %v1957 = vrot.slane %v1955, 5
      %v1958 = vor.u32 %v1954, %v1957
      %v1959 = vrot.slane %v1958, 4
      %v1961 = vshll.u32 %v1618, 16
      %v1963 = vrot.slane %v1961, 5
      %v1964 = vsel %vm1027, %v1959, %v1963
      %v1965 = vshrl.u32 %v1618, 16
      %v1967 = vrot.slane %v1965, 4
      %v1968 = vor.u32 %v1967, %v1963
      %v1969 = vrot.slane %v1968, 4
      %v1971 = vshll.u32 %v1636, 16
      %v1973 = vrot.slane %v1971, 5
      %v1974 = vsel %vm1027, %v1969, %v1973
      %v1976 = vshrl.u32 %v1619, 16
      %v1978 = vrot.slane %v1976, 4
      %v1979 = vshll.u32 %v1619, 16
      %v1981 = vrot.slane %v1979, 5
      %v1982 = vor.u32 %v1978, %v1981
      %v1983 = vrot.slane %v1982, 4
      %v1985 = vshll.u32 %v1620, 16
      %v1987 = vrot.slane %v1985, 5
      %v1988 = vsel %vm1027, %v1983, %v1987
      %v1989 = vshrl.u32 %v1620, 16
      %v1991 = vrot.slane %v1989, 4
      %v1992 = vor.u32 %v1991, %v1987
      %v1993 = vrot.slane %v1992, 4
      %v1995 = vshll.u32 %v1637, 16
      %v1997 = vrot.slane %v1995, 5
      %v1998 = vsel %vm1027, %v1993, %v1997
      %v2000 = vshrl.u32 %v1621, 16
      %v2002 = vrot.slane %v2000, 4
      %v2003 = vshll.u32 %v1621, 16
      %v2005 = vrot.slane %v2003, 5
      %v2006 = vor.u32 %v2002, %v2005
      %v2007 = vrot.slane %v2006, 4
      %v2009 = vshll.u32 %v1622, 16
      %v2011 = vrot.slane %v2009, 5
      %v2012 = vsel %vm1027, %v2007, %v2011
      %v2013 = vshrl.u32 %v1622, 16
      %v2015 = vrot.slane %v2013, 4
      %v2016 = vor.u32 %v2015, %v2011
      %v2017 = vrot.slane %v2016, 4
      %v2019 = vshll.u32 %v1638, 16
      %v2021 = vrot.slane %v2019, 5
      %v2022 = vsel %vm1027, %v2017, %v2021
      %v2023 = vld [vmem:[%s859] sm:$0xe]
      %v2024 = vld [vmem:[%s859 + $0xc] sm:$0xe]
      %v2025 = vld [vmem:[%s859 + $0x18] sm:$0xe]
      %v2026 = vld [vmem:[%s859 + $0x24] sm:$0xe]
      %v2027 = vld [vmem:[%s859 + $0x30] sm:$0xe]
      %v2028 = vld [vmem:[%s859 + $0x3c] sm:$0xe]
      %v2029 = vld [vmem:[%s859 + $0x48] sm:$0xe]
      %v2030 = vld [vmem:[%s859 + $0x54] sm:$0xe]
      %v2031 = vld [vmem:[%s859 + $0x60] sm:$0xe]
      %v2032 = vld [vmem:[%s859 + $0x6c] sm:$0xe]
      %v2033 = vld [vmem:[%s859 + $0x78] sm:$0xe]
      %v2034 = vld [vmem:[%s859 + $0x84] sm:$0xe]
      %v2035 = vld [vmem:[%s859 + $0x90] sm:$0xe]
      %v2036 = vld [vmem:[%s859 + $0x9c] sm:$0xe]
      %v2037 = vld [vmem:[%s859 + $0xa8] sm:$0xe]
      %v2038 = vld [vmem:[%s859 + $0xb4] sm:$0xe]
      %v2087 = vrot.slane %v2023, 5
      %v2088 = vrot.slane %v2087, 4
      %v2089 = vrot.slane %v1592, 5
      %v2090 = vsel %vm1478, %v2088, %v2089
      %v2091 = vrot.slane %v2089, 4
      %v2092 = vrot.slane %v1623, 5
      %v2093 = vsel %vm1478, %v2091, %v2092
      %v2094 = vrot.slane %v2024, 5
      %v2095 = vrot.slane %v2094, 4
      %v2096 = vrot.slane %v1594, 5
      %v2097 = vsel %vm1478, %v2095, %v2096
      %v2098 = vrot.slane %v2096, 4
      %v2099 = vrot.slane %v1624, 5
      %v2100 = vsel %vm1478, %v2098, %v2099
      %v2101 = vrot.slane %v2025, 5
      %v2102 = vrot.slane %v2101, 4
      %v2103 = vrot.slane %v1596, 5
      %v2104 = vsel %vm1478, %v2102, %v2103
      %v2105 = vrot.slane %v2103, 4
      %v2106 = vrot.slane %v1625, 5
      %v2107 = vsel %vm1478, %v2105, %v2106
      %v2108 = vrot.slane %v2026, 5
      %v2109 = vrot.slane %v2108, 4
      %v2110 = vrot.slane %v1598, 5
      %v2111 = vsel %vm1478, %v2109, %v2110
      %v2112 = vrot.slane %v2110, 4
      %v2113 = vrot.slane %v1626, 5
      %v2114 = vsel %vm1478, %v2112, %v2113
      %v2115 = vrot.slane %v2027, 5
      %v2116 = vrot.slane %v2115, 4
      %v2117 = vrot.slane %v1600, 5
      %v2118 = vsel %vm1478, %v2116, %v2117
      %v2119 = vrot.slane %v2117, 4
      %v2120 = vrot.slane %v1627, 5
      %v2121 = vsel %vm1478, %v2119, %v2120
      %v2122 = vrot.slane %v2028, 5
      %v2123 = vrot.slane %v2122, 4
      %v2124 = vrot.slane %v1602, 5
      %v2125 = vsel %vm1478, %v2123, %v2124
      %v2126 = vrot.slane %v2124, 4
      %v2127 = vrot.slane %v1628, 5
      %v2128 = vsel %vm1478, %v2126, %v2127
      %v2129 = vrot.slane %v2029, 5
      %v2130 = vrot.slane %v2129, 4
      %v2131 = vrot.slane %v1604, 5
      %v2132 = vsel %vm1478, %v2130, %v2131
      %v2133 = vrot.slane %v2131, 4
      %v2134 = vrot.slane %v1629, 5
      %v2135 = vsel %vm1478, %v2133, %v2134
      %v2136 = vrot.slane %v2030, 5
      %v2137 = vrot.slane %v2136, 4
      %v2138 = vrot.slane %v1606, 5
      %v2139 = vsel %vm1478, %v2137, %v2138
      %v2140 = vrot.slane %v2138, 4
      %v2141 = vrot.slane %v1630, 5
      %v2142 = vsel %vm1478, %v2140, %v2141
      %v2143 = vrot.slane %v2031, 5
      %v2144 = vrot.slane %v2143, 4
      %v2145 = vrot.slane %v1608, 5
      %v2146 = vsel %vm1478, %v2144, %v2145
      %v2147 = vrot.slane %v2145, 4
      %v2148 = vrot.slane %v1631, 5
      %v2149 = vsel %vm1478, %v2147, %v2148
      %v2150 = vrot.slane %v2032, 5
      %v2151 = vrot.slane %v2150, 4
      %v2152 = vrot.slane %v1610, 5
      %v2153 = vsel %vm1478, %v2151, %v2152
      %v2154 = vrot.slane %v2152, 4
      %v2155 = vrot.slane %v1632, 5
      %v2156 = vsel %vm1478, %v2154, %v2155
      %v2157 = vrot.slane %v2033, 5
      %v2158 = vrot.slane %v2157, 4
      %v2159 = vrot.slane %v1612, 5
      %v2160 = vsel %vm1478, %v2158, %v2159
      %v2161 = vrot.slane %v2159, 4
      %v2162 = vrot.slane %v1633, 5
      %v2163 = vsel %vm1478, %v2161, %v2162
      %v2164 = vrot.slane %v2034, 5
      %v2165 = vrot.slane %v2164, 4
      %v2166 = vrot.slane %v1614, 5
      %v2167 = vsel %vm1478, %v2165, %v2166
      %v2168 = vrot.slane %v2166, 4
      %v2169 = vrot.slane %v1634, 5
      %v2170 = vsel %vm1478, %v2168, %v2169
      %v2171 = vrot.slane %v2035, 5
      %v2172 = vrot.slane %v2171, 4
      %v2173 = vrot.slane %v1616, 5
      %v2174 = vsel %vm1478, %v2172, %v2173
      %v2175 = vrot.slane %v2173, 4
      %v2176 = vrot.slane %v1635, 5
      %v2177 = vsel %vm1478, %v2175, %v2176
      %v2178 = vrot.slane %v2036, 5
      %v2179 = vrot.slane %v2178, 4
      %v2180 = vrot.slane %v1618, 5
      %v2181 = vsel %vm1478, %v2179, %v2180
      %v2182 = vrot.slane %v2180, 4
      %v2183 = vrot.slane %v1636, 5
      %v2184 = vsel %vm1478, %v2182, %v2183
      %v2185 = vrot.slane %v2037, 5
      %v2186 = vrot.slane %v2185, 4
      %v2187 = vrot.slane %v1620, 5
      %v2188 = vsel %vm1478, %v2186, %v2187
      %v2189 = vrot.slane %v2187, 4
      %v2190 = vrot.slane %v1637, 5
      %v2191 = vsel %vm1478, %v2189, %v2190
      %v2192 = vrot.slane %v2038, 5
      %v2193 = vrot.slane %v2192, 4
      %v2194 = vrot.slane %v1622, 5
      %v2195 = vsel %vm1478, %v2193, %v2194
      %v2196 = vrot.slane %v2194, 4
      %v2197 = vrot.slane %v1638, 5
      %v2198 = vsel %vm1478, %v2196, %v2197
      %s2199 = scalar_lea.vmem [#allocation2], 24
      %v2200 = vld [vmem:[%s2199] sm:$0xf]
      %v2201 = vld [vmem:[%s2199 + $0x4] sm:$0xf]
      %v2202 = vld [vmem:[%s2199 + $0xc] sm:$0xf]
      %v2203 = vld [vmem:[%s2199 + $0x10] sm:$0xf]
      %v2204 = vld [vmem:[%s2199 + $0x18] sm:$0xf]
      %v2205 = vld [vmem:[%s2199 + $0x1c] sm:$0xf]
      %v2206 = vld [vmem:[%s2199 + $0x24] sm:$0xf]
      %v2207 = vld [vmem:[%s2199 + $0x28] sm:$0xf]
      %v2208 = vld [vmem:[%s2199 + $0x30] sm:$0xf]
      %v2209 = vld [vmem:[%s2199 + $0x34] sm:$0xf]
      %v2210 = vld [vmem:[%s2199 + $0x3c] sm:$0xf]
      %v2211 = vld [vmem:[%s2199 + $0x40] sm:$0xf]
      %v2212 = vld [vmem:[%s2199 + $0x48] sm:$0xf]
      %v2213 = vld [vmem:[%s2199 + $0x4c] sm:$0xf]
      %v2214 = vld [vmem:[%s2199 + $0x54] sm:$0xf]
      %v2215 = vld [vmem:[%s2199 + $0x58] sm:$0xf]
      %v2216 = vld [vmem:[%s2199 + $0x60] sm:$0xf]
      %v2217 = vld [vmem:[%s2199 + $0x64] sm:$0xf]
      %v2218 = vld [vmem:[%s2199 + $0x6c] sm:$0xf]
      %v2219 = vld [vmem:[%s2199 + $0x70] sm:$0xf]
      %v2220 = vld [vmem:[%s2199 + $0x78] sm:$0xf]
      %v2221 = vld [vmem:[%s2199 + $0x7c] sm:$0xf]
      %v2222 = vld [vmem:[%s2199 + $0x84] sm:$0xf]
      %v2223 = vld [vmem:[%s2199 + $0x88] sm:$0xf]
      %v2224 = vld [vmem:[%s2199 + $0x90] sm:$0xf]
      %v2225 = vld [vmem:[%s2199 + $0x94] sm:$0xf]
      %v2226 = vld [vmem:[%s2199 + $0x9c] sm:$0xf]
      %v2227 = vld [vmem:[%s2199 + $0xa0] sm:$0xf]
      %v2228 = vld [vmem:[%s2199 + $0xa8] sm:$0xf]
      %v2229 = vld [vmem:[%s2199 + $0xac] sm:$0xf]
      %v2230 = vld [vmem:[%s2199 + $0xb4] sm:$0xf]
      %v2231 = vld [vmem:[%s2199 + $0xb8] sm:$0xf]
      %v2232 = vld [vmem:[%s2199 + $0x8] sm:$0x1]
      %v2233 = vld [vmem:[%s2199 + $0x14] sm:$0x1]
      %v2234 = vld [vmem:[%s2199 + $0x20] sm:$0x1]
      %v2235 = vld [vmem:[%s2199 + $0x2c] sm:$0x1]
      %v2236 = vld [vmem:[%s2199 + $0x38] sm:$0x1]
      %v2237 = vld [vmem:[%s2199 + $0x44] sm:$0x1]
      %v2238 = vld [vmem:[%s2199 + $0x50] sm:$0x1]
      %v2239 = vld [vmem:[%s2199 + $0x5c] sm:$0x1]
      %v2240 = vld [vmem:[%s2199 + $0x68] sm:$0x1]
      %v2241 = vld [vmem:[%s2199 + $0x74] sm:$0x1]
      %v2242 = vld [vmem:[%s2199 + $0x80] sm:$0x1]
      %v2243 = vld [vmem:[%s2199 + $0x8c] sm:$0x1]
      %v2244 = vld [vmem:[%s2199 + $0x98] sm:$0x1]
      %v2245 = vld [vmem:[%s2199 + $0xa4] sm:$0x1]
      %v2246 = vld [vmem:[%s2199 + $0xb0] sm:$0x1]
      %v2247 = vld [vmem:[%s2199 + $0xbc] sm:$0x1]
      %v2249 = vshrl.u32 %v2200, 16
      %v2251 = vrot.slane %v2249, 4
      %v2252 = vshll.u32 %v2200, 16
      %v2254 = vrot.slane %v2252, 5
      %v2255 = vor.u32 %v2251, %v2254
      %v2256 = vrot.slane %v2255, 4
      %v2258 = vshll.u32 %v2201, 16
      %v2260 = vrot.slane %v2258, 5
      %v2261 = vsel %vm1027, %v2256, %v2260
      %v2262 = vshrl.u32 %v2201, 16
      %v2264 = vrot.slane %v2262, 4
      %v2265 = vor.u32 %v2264, %v2260
      %v2266 = vrot.slane %v2265, 4
      %v2268 = vshll.u32 %v2232, 16
      %v2270 = vrot.slane %v2268, 5
      %v2271 = vsel %vm1027, %v2266, %v2270
      %v2273 = vshrl.u32 %v2202, 16
      %v2275 = vrot.slane %v2273, 4
      %v2276 = vshll.u32 %v2202, 16
      %v2278 = vrot.slane %v2276, 5
      %v2279 = vor.u32 %v2275, %v2278
      %v2280 = vrot.slane %v2279, 4
      %v2282 = vshll.u32 %v2203, 16
      %v2284 = vrot.slane %v2282, 5
      %v2285 = vsel %vm1027, %v2280, %v2284
      %v2286 = vshrl.u32 %v2203, 16
      %v2288 = vrot.slane %v2286, 4
      %v2289 = vor.u32 %v2288, %v2284
      %v2290 = vrot.slane %v2289, 4
      %v2292 = vshll.u32 %v2233, 16
      %v2294 = vrot.slane %v2292, 5
      %v2295 = vsel %vm1027, %v2290, %v2294
      %v2297 = vshrl.u32 %v2204, 16
      %v2299 = vrot.slane %v2297, 4
      %v2300 = vshll.u32 %v2204, 16
      %v2302 = vrot.slane %v2300, 5
      %v2303 = vor.u32 %v2299, %v2302
      %v2304 = vrot.slane %v2303, 4
      %v2306 = vshll.u32 %v2205, 16
      %v2308 = vrot.slane %v2306, 5
      %v2309 = vsel %vm1027, %v2304, %v2308
      %v2310 = vshrl.u32 %v2205, 16
      %v2312 = vrot.slane %v2310, 4
      %v2313 = vor.u32 %v2312, %v2308
      %v2314 = vrot.slane %v2313, 4
      %v2316 = vshll.u32 %v2234, 16
      %v2318 = vrot.slane %v2316, 5
      %v2319 = vsel %vm1027, %v2314, %v2318
      %v2321 = vshrl.u32 %v2206, 16
      %v2323 = vrot.slane %v2321, 4
      %v2324 = vshll.u32 %v2206, 16
      %v2326 = vrot.slane %v2324, 5
      %v2327 = vor.u32 %v2323, %v2326
      %v2328 = vrot.slane %v2327, 4
      %v2330 = vshll.u32 %v2207, 16
      %v2332 = vrot.slane %v2330, 5
      %v2333 = vsel %vm1027, %v2328, %v2332
      %v2334 = vshrl.u32 %v2207, 16
      %v2336 = vrot.slane %v2334, 4
      %v2337 = vor.u32 %v2336, %v2332
      %v2338 = vrot.slane %v2337, 4
      %v2340 = vshll.u32 %v2235, 16
      %v2342 = vrot.slane %v2340, 5
      %v2343 = vsel %vm1027, %v2338, %v2342
      %v2345 = vshrl.u32 %v2208, 16
      %v2347 = vrot.slane %v2345, 4
      %v2348 = vshll.u32 %v2208, 16
      %v2350 = vrot.slane %v2348, 5
      %v2351 = vor.u32 %v2347, %v2350
      %v2352 = vrot.slane %v2351, 4
      %v2354 = vshll.u32 %v2209, 16
      %v2356 = vrot.slane %v2354, 5
      %v2357 = vsel %vm1027, %v2352, %v2356
      %v2358 = vshrl.u32 %v2209, 16
      %v2360 = vrot.slane %v2358, 4
      %v2361 = vor.u32 %v2360, %v2356
      %v2362 = vrot.slane %v2361, 4
      %v2364 = vshll.u32 %v2236, 16
      %v2366 = vrot.slane %v2364, 5
      %v2367 = vsel %vm1027, %v2362, %v2366
      %v2369 = vshrl.u32 %v2210, 16
      %v2371 = vrot.slane %v2369, 4
      %v2372 = vshll.u32 %v2210, 16
      %v2374 = vrot.slane %v2372, 5
      %v2375 = vor.u32 %v2371, %v2374
      %v2376 = vrot.slane %v2375, 4
      %v2378 = vshll.u32 %v2211, 16
      %v2380 = vrot.slane %v2378, 5
      %v2381 = vsel %vm1027, %v2376, %v2380
      %v2382 = vshrl.u32 %v2211, 16
      %v2384 = vrot.slane %v2382, 4
      %v2385 = vor.u32 %v2384, %v2380
      %v2386 = vrot.slane %v2385, 4
      %v2388 = vshll.u32 %v2237, 16
      %v2390 = vrot.slane %v2388, 5
      %v2391 = vsel %vm1027, %v2386, %v2390
      %v2393 = vshrl.u32 %v2212, 16
      %v2395 = vrot.slane %v2393, 4
      %v2396 = vshll.u32 %v2212, 16
      %v2398 = vrot.slane %v2396, 5
      %v2399 = vor.u32 %v2395, %v2398
      %v2400 = vrot.slane %v2399, 4
      %v2402 = vshll.u32 %v2213, 16
      %v2404 = vrot.slane %v2402, 5
      %v2405 = vsel %vm1027, %v2400, %v2404
      %v2406 = vshrl.u32 %v2213, 16
      %v2408 = vrot.slane %v2406, 4
      %v2409 = vor.u32 %v2408, %v2404
      %v2410 = vrot.slane %v2409, 4
      %v2412 = vshll.u32 %v2238, 16
      %v2414 = vrot.slane %v2412, 5
      %v2415 = vsel %vm1027, %v2410, %v2414
      %v2417 = vshrl.u32 %v2214, 16
      %v2419 = vrot.slane %v2417, 4
      %v2420 = vshll.u32 %v2214, 16
      %v2422 = vrot.slane %v2420, 5
      %v2423 = vor.u32 %v2419, %v2422
      %v2424 = vrot.slane %v2423, 4
      %v2426 = vshll.u32 %v2215, 16
      %v2428 = vrot.slane %v2426, 5
      %v2429 = vsel %vm1027, %v2424, %v2428
      %v2430 = vshrl.u32 %v2215, 16
      %v2432 = vrot.slane %v2430, 4
      %v2433 = vor.u32 %v2432, %v2428
      %v2434 = vrot.slane %v2433, 4
      %v2436 = vshll.u32 %v2239, 16
      %v2438 = vrot.slane %v2436, 5
      %v2439 = vsel %vm1027, %v2434, %v2438
      %v2441 = vshrl.u32 %v2216, 16
      %v2443 = vrot.slane %v2441, 4
      %v2444 = vshll.u32 %v2216, 16
      %v2446 = vrot.slane %v2444, 5
      %v2447 = vor.u32 %v2443, %v2446
      %v2448 = vrot.slane %v2447, 4
      %v2450 = vshll.u32 %v2217, 16
      %v2452 = vrot.slane %v2450, 5
      %v2453 = vsel %vm1027, %v2448, %v2452
      %v2454 = vshrl.u32 %v2217, 16
      %v2456 = vrot.slane %v2454, 4
      %v2457 = vor.u32 %v2456, %v2452
      %v2458 = vrot.slane %v2457, 4
      %v2460 = vshll.u32 %v2240, 16
      %v2462 = vrot.slane %v2460, 5
      %v2463 = vsel %vm1027, %v2458, %v2462
      %v2465 = vshrl.u32 %v2218, 16
      %v2467 = vrot.slane %v2465, 4
      %v2468 = vshll.u32 %v2218, 16
      %v2470 = vrot.slane %v2468, 5
      %v2471 = vor.u32 %v2467, %v2470
      %v2472 = vrot.slane %v2471, 4
      %v2474 = vshll.u32 %v2219, 16
      %v2476 = vrot.slane %v2474, 5
      %v2477 = vsel %vm1027, %v2472, %v2476
      %v2478 = vshrl.u32 %v2219, 16
      %v2480 = vrot.slane %v2478, 4
      %v2481 = vor.u32 %v2480, %v2476
      %v2482 = vrot.slane %v2481, 4
      %v2484 = vshll.u32 %v2241, 16
      %v2486 = vrot.slane %v2484, 5
      %v2487 = vsel %vm1027, %v2482, %v2486
      %v2489 = vshrl.u32 %v2220, 16
      %v2491 = vrot.slane %v2489, 4
      %v2492 = vshll.u32 %v2220, 16
      %v2494 = vrot.slane %v2492, 5
      %v2495 = vor.u32 %v2491, %v2494
      %v2496 = vrot.slane %v2495, 4
      %v2498 = vshll.u32 %v2221, 16
      %v2500 = vrot.slane %v2498, 5
      %v2501 = vsel %vm1027, %v2496, %v2500
      %v2502 = vshrl.u32 %v2221, 16
      %v2504 = vrot.slane %v2502, 4
      %v2505 = vor.u32 %v2504, %v2500
      %v2506 = vrot.slane %v2505, 4
      %v2508 = vshll.u32 %v2242, 16
      %v2510 = vrot.slane %v2508, 5
      %v2511 = vsel %vm1027, %v2506, %v2510
      %v2513 = vshrl.u32 %v2222, 16
      %v2515 = vrot.slane %v2513, 4
      %v2516 = vshll.u32 %v2222, 16
      %v2518 = vrot.slane %v2516, 5
      %v2519 = vor.u32 %v2515, %v2518
      %v2520 = vrot.slane %v2519, 4
      %v2522 = vshll.u32 %v2223, 16
      %v2524 = vrot.slane %v2522, 5
      %v2525 = vsel %vm1027, %v2520, %v2524
      %v2526 = vshrl.u32 %v2223, 16
      %v2528 = vrot.slane %v2526, 4
      %v2529 = vor.u32 %v2528, %v2524
      %v2530 = vrot.slane %v2529, 4
      %v2532 = vshll.u32 %v2243, 16
      %v2534 = vrot.slane %v2532, 5
      %v2535 = vsel %vm1027, %v2530, %v2534
      %v2537 = vshrl.u32 %v2224, 16
      %v2539 = vrot.slane %v2537, 4
      %v2540 = vshll.u32 %v2224, 16
      %v2542 = vrot.slane %v2540, 5
      %v2543 = vor.u32 %v2539, %v2542
      %v2544 = vrot.slane %v2543, 4
      %v2546 = vshll.u32 %v2225, 16
      %v2548 = vrot.slane %v2546, 5
      %v2549 = vsel %vm1027, %v2544, %v2548
      %v2550 = vshrl.u32 %v2225, 16
      %v2552 = vrot.slane %v2550, 4
      %v2553 = vor.u32 %v2552, %v2548
      %v2554 = vrot.slane %v2553, 4
      %v2556 = vshll.u32 %v2244, 16
      %v2558 = vrot.slane %v2556, 5
      %v2559 = vsel %vm1027, %v2554, %v2558
      %v2561 = vshrl.u32 %v2226, 16
      %v2563 = vrot.slane %v2561, 4
      %v2564 = vshll.u32 %v2226, 16
      %v2566 = vrot.slane %v2564, 5
      %v2567 = vor.u32 %v2563, %v2566
      %v2568 = vrot.slane %v2567, 4
      %v2570 = vshll.u32 %v2227, 16
      %v2572 = vrot.slane %v2570, 5
      %v2573 = vsel %vm1027, %v2568, %v2572
      %v2574 = vshrl.u32 %v2227, 16
      %v2576 = vrot.slane %v2574, 4
      %v2577 = vor.u32 %v2576, %v2572
      %v2578 = vrot.slane %v2577, 4
      %v2580 = vshll.u32 %v2245, 16
      %v2582 = vrot.slane %v2580, 5
      %v2583 = vsel %vm1027, %v2578, %v2582
      %v2585 = vshrl.u32 %v2228, 16
      %v2587 = vrot.slane %v2585, 4
      %v2588 = vshll.u32 %v2228, 16
      %v2590 = vrot.slane %v2588, 5
      %v2591 = vor.u32 %v2587, %v2590
      %v2592 = vrot.slane %v2591, 4
      %v2594 = vshll.u32 %v2229, 16
      %v2596 = vrot.slane %v2594, 5
      %v2597 = vsel %vm1027, %v2592, %v2596
      %v2598 = vshrl.u32 %v2229, 16
      %v2600 = vrot.slane %v2598, 4
      %v2601 = vor.u32 %v2600, %v2596
      %v2602 = vrot.slane %v2601, 4
      %v2604 = vshll.u32 %v2246, 16
      %v2606 = vrot.slane %v2604, 5
      %v2607 = vsel %vm1027, %v2602, %v2606
      %v2609 = vshrl.u32 %v2230, 16
      %v2611 = vrot.slane %v2609, 4
      %v2612 = vshll.u32 %v2230, 16
      %v2614 = vrot.slane %v2612, 5
      %v2615 = vor.u32 %v2611, %v2614
      %v2616 = vrot.slane %v2615, 4
      %v2618 = vshll.u32 %v2231, 16
      %v2620 = vrot.slane %v2618, 5
      %v2621 = vsel %vm1027, %v2616, %v2620
      %v2622 = vshrl.u32 %v2231, 16
      %v2624 = vrot.slane %v2622, 4
      %v2625 = vor.u32 %v2624, %v2620
      %v2626 = vrot.slane %v2625, 4
      %v2628 = vshll.u32 %v2247, 16
      %v2630 = vrot.slane %v2628, 5
      %v2631 = vsel %vm1027, %v2626, %v2630
      %v2632 = vld [vmem:[%s2199] sm:$0xe]
      %v2633 = vld [vmem:[%s2199 + $0xc] sm:$0xe]
      %v2634 = vld [vmem:[%s2199 + $0x18] sm:$0xe]
      %v2635 = vld [vmem:[%s2199 + $0x24] sm:$0xe]
      %v2636 = vld [vmem:[%s2199 + $0x30] sm:$0xe]
      %v2637 = vld [vmem:[%s2199 + $0x3c] sm:$0xe]
      %v2638 = vld [vmem:[%s2199 + $0x48] sm:$0xe]
      %v2639 = vld [vmem:[%s2199 + $0x54] sm:$0xe]
      %v2640 = vld [vmem:[%s2199 + $0x60] sm:$0xe]
      %v2641 = vld [vmem:[%s2199 + $0x6c] sm:$0xe]
      %v2642 = vld [vmem:[%s2199 + $0x78] sm:$0xe]
      %v2643 = vld [vmem:[%s2199 + $0x84] sm:$0xe]
      %v2644 = vld [vmem:[%s2199 + $0x90] sm:$0xe]
      %v2645 = vld [vmem:[%s2199 + $0x9c] sm:$0xe]
      %v2646 = vld [vmem:[%s2199 + $0xa8] sm:$0xe]
      %v2647 = vld [vmem:[%s2199 + $0xb4] sm:$0xe]
      %v2696 = vrot.slane %v2632, 5
      %v2697 = vrot.slane %v2696, 4
      %v2698 = vrot.slane %v2201, 5
      %v2699 = vsel %vm1478, %v2697, %v2698
      %v2700 = vrot.slane %v2698, 4
      %v2701 = vrot.slane %v2232, 5
      %v2702 = vsel %vm1478, %v2700, %v2701
      %v2703 = vrot.slane %v2633, 5
      %v2704 = vrot.slane %v2703, 4
      %v2705 = vrot.slane %v2203, 5
      %v2706 = vsel %vm1478, %v2704, %v2705
      %v2707 = vrot.slane %v2705, 4
      %v2708 = vrot.slane %v2233, 5
      %v2709 = vsel %vm1478, %v2707, %v2708
      %v2710 = vrot.slane %v2634, 5
      %v2711 = vrot.slane %v2710, 4
      %v2712 = vrot.slane %v2205, 5
      %v2713 = vsel %vm1478, %v2711, %v2712
      %v2714 = vrot.slane %v2712, 4
      %v2715 = vrot.slane %v2234, 5
      %v2716 = vsel %vm1478, %v2714, %v2715
      %v2717 = vrot.slane %v2635, 5
      %v2718 = vrot.slane %v2717, 4
      %v2719 = vrot.slane %v2207, 5
      %v2720 = vsel %vm1478, %v2718, %v2719
      %v2721 = vrot.slane %v2719, 4
      %v2722 = vrot.slane %v2235, 5
      %v2723 = vsel %vm1478, %v2721, %v2722
      %v2724 = vrot.slane %v2636, 5
      %v2725 = vrot.slane %v2724, 4
      %v2726 = vrot.slane %v2209, 5
      %v2727 = vsel %vm1478, %v2725, %v2726
      %v2728 = vrot.slane %v2726, 4
      %v2729 = vrot.slane %v2236, 5
      %v2730 = vsel %vm1478, %v2728, %v2729
      %v2731 = vrot.slane %v2637, 5
      %v2732 = vrot.slane %v2731, 4
      %v2733 = vrot.slane %v2211, 5
      %v2734 = vsel %vm1478, %v2732, %v2733
      %v2735 = vrot.slane %v2733, 4
      %v2736 = vrot.slane %v2237, 5
      %v2737 = vsel %vm1478, %v2735, %v2736
      %v2738 = vrot.slane %v2638, 5
      %v2739 = vrot.slane %v2738, 4
      %v2740 = vrot.slane %v2213, 5
      %v2741 = vsel %vm1478, %v2739, %v2740
      %v2742 = vrot.slane %v2740, 4
      %v2743 = vrot.slane %v2238, 5
      %v2744 = vsel %vm1478, %v2742, %v2743
      %v2745 = vrot.slane %v2639, 5
      %v2746 = vrot.slane %v2745, 4
      %v2747 = vrot.slane %v2215, 5
      %v2748 = vsel %vm1478, %v2746, %v2747
      %v2749 = vrot.slane %v2747, 4
      %v2750 = vrot.slane %v2239, 5
      %v2751 = vsel %vm1478, %v2749, %v2750
      %v2752 = vrot.slane %v2640, 5
      %v2753 = vrot.slane %v2752, 4
      %v2754 = vrot.slane %v2217, 5
      %v2755 = vsel %vm1478, %v2753, %v2754
      %v2756 = vrot.slane %v2754, 4
      %v2757 = vrot.slane %v2240, 5
      %v2758 = vsel %vm1478, %v2756, %v2757
      %v2759 = vrot.slane %v2641, 5
      %v2760 = vrot.slane %v2759, 4
      %v2761 = vrot.slane %v2219, 5
      %v2762 = vsel %vm1478, %v2760, %v2761
      %v2763 = vrot.slane %v2761, 4
      %v2764 = vrot.slane %v2241, 5
      %v2765 = vsel %vm1478, %v2763, %v2764
      %v2766 = vrot.slane %v2642, 5
      %v2767 = vrot.slane %v2766, 4
      %v2768 = vrot.slane %v2221, 5
      %v2769 = vsel %vm1478, %v2767, %v2768
      %v2770 = vrot.slane %v2768, 4
      %v2771 = vrot.slane %v2242, 5
      %v2772 = vsel %vm1478, %v2770, %v2771
      %v2773 = vrot.slane %v2643, 5
      %v2774 = vrot.slane %v2773, 4
      %v2775 = vrot.slane %v2223, 5
      %v2776 = vsel %vm1478, %v2774, %v2775
      %v2777 = vrot.slane %v2775, 4
      %v2778 = vrot.slane %v2243, 5
      %v2779 = vsel %vm1478, %v2777, %v2778
      %v2780 = vrot.slane %v2644, 5
      %v2781 = vrot.slane %v2780, 4
      %v2782 = vrot.slane %v2225, 5
      %v2783 = vsel %vm1478, %v2781, %v2782
      %v2784 = vrot.slane %v2782, 4
      %v2785 = vrot.slane %v2244, 5
      %v2786 = vsel %vm1478, %v2784, %v2785
      %v2787 = vrot.slane %v2645, 5
      %v2788 = vrot.slane %v2787, 4
      %v2789 = vrot.slane %v2227, 5
      %v2790 = vsel %vm1478, %v2788, %v2789
      %v2791 = vrot.slane %v2789, 4
      %v2792 = vrot.slane %v2245, 5
      %v2793 = vsel %vm1478, %v2791, %v2792
      %v2794 = vrot.slane %v2646, 5
      %v2795 = vrot.slane %v2794, 4
      %v2796 = vrot.slane %v2229, 5
      %v2797 = vsel %vm1478, %v2795, %v2796
      %v2798 = vrot.slane %v2796, 4
      %v2799 = vrot.slane %v2246, 5
      %v2800 = vsel %vm1478, %v2798, %v2799
      %v2801 = vrot.slane %v2647, 5
      %v2802 = vrot.slane %v2801, 4
      %v2803 = vrot.slane %v2231, 5
      %v2804 = vsel %vm1478, %v2802, %v2803
      %v2805 = vrot.slane %v2803, 4
      %v2806 = vrot.slane %v2247, 5
      %v2807 = vsel %vm1478, %v2805, %v2806
      %v2824 = vunpack.c.l.b16 %v977
      %v2825 = vunpack.c.l.b16 %v978
      %v2826 = vunpack.c.l.b16 %v979
      %v2827 = vunpack.c.l.b16 %v980
      %v2828 = vunpack.c.l.b16 %v981
      %v2829 = vunpack.c.l.b16 %v982
      %v2830 = vunpack.c.l.b16 %v983
      %v2831 = vunpack.c.l.b16 %v984
      %v2832 = vunpack.c.l.b16 %v985
      %v2833 = vunpack.c.l.b16 %v986
      %v2834 = vunpack.c.l.b16 %v987
      %v2835 = vunpack.c.l.b16 %v988
      %v2836 = vunpack.c.l.b16 %v989
      %v2837 = vunpack.c.l.b16 %v990
      %v2838 = vunpack.c.l.b16 %v991
      %v2839 = vunpack.c.l.b16 %v992
      %v2840 = vunpack.c.l.b16 %v993
      %v2841 = vunpack.c.l.b16 %v994
      %v2842 = vunpack.c.l.b16 %v995
      %v2843 = vunpack.c.l.b16 %v996
      %v2844 = vunpack.c.l.b16 %v997
      %v2845 = vunpack.c.l.b16 %v998
      %v2846 = vunpack.c.l.b16 %v999
      %v2847 = vunpack.c.l.b16 %v1000
      %v2848 = vunpack.c.l.b16 %v1001
      %v2849 = vunpack.c.l.b16 %v1002
      %v2850 = vunpack.c.l.b16 %v1003
      %v2851 = vunpack.c.l.b16 %v1004
      %v2852 = vunpack.c.l.b16 %v1005
      %v2853 = vunpack.c.l.b16 %v1006
      %v2854 = vunpack.c.l.b16 %v1007
      %v2855 = vunpack.c.l.b16 %v1008
      %v2856 = vpack.c.b16 %v2825, %v2824
      %v2857 = vpack.c.b16 %v2827, %v2826
      %v2858 = vpack.c.b16 %v2829, %v2828
      %v2859 = vpack.c.b16 %v2831, %v2830
      %v2860 = vpack.c.b16 %v2833, %v2832
      %v2861 = vpack.c.b16 %v2835, %v2834
      %v2862 = vpack.c.b16 %v2837, %v2836
      %v2863 = vpack.c.b16 %v2839, %v2838
      %v2864 = vpack.c.b16 %v2841, %v2840
      %v2865 = vpack.c.b16 %v2843, %v2842
      %v2866 = vpack.c.b16 %v2845, %v2844
      %v2867 = vpack.c.b16 %v2847, %v2846
      %v2868 = vpack.c.b16 %v2849, %v2848
      %v2869 = vpack.c.b16 %v2851, %v2850
      %v2870 = vpack.c.b16 %v2853, %v2852
      %v2871 = vpack.c.b16 %v2855, %v2854
      %v2888 = vunpack.c.l.b16 %v1041
      %v2889 = vunpack.c.l.b16 %v1051
      %v2890 = vunpack.c.l.b16 %v1065
      %v2891 = vunpack.c.l.b16 %v1075
      %v2892 = vunpack.c.l.b16 %v1089
      %v2893 = vunpack.c.l.b16 %v1099
      %v2894 = vunpack.c.l.b16 %v1113
      %v2895 = vunpack.c.l.b16 %v1123
      %v2896 = vunpack.c.l.b16 %v1137
      %v2897 = vunpack.c.l.b16 %v1147
      %v2898 = vunpack.c.l.b16 %v1161
      %v2899 = vunpack.c.l.b16 %v1171
      %v2900 = vunpack.c.l.b16 %v1185
      %v2901 = vunpack.c.l.b16 %v1195
      %v2902 = vunpack.c.l.b16 %v1209
      %v2903 = vunpack.c.l.b16 %v1219
      %v2904 = vunpack.c.l.b16 %v1233
      %v2905 = vunpack.c.l.b16 %v1243
      %v2906 = vunpack.c.l.b16 %v1257
      %v2907 = vunpack.c.l.b16 %v1267
      %v2908 = vunpack.c.l.b16 %v1281
      %v2909 = vunpack.c.l.b16 %v1291
      %v2910 = vunpack.c.l.b16 %v1305
      %v2911 = vunpack.c.l.b16 %v1315
      %v2912 = vunpack.c.l.b16 %v1329
      %v2913 = vunpack.c.l.b16 %v1339
      %v2914 = vunpack.c.l.b16 %v1353
      %v2915 = vunpack.c.l.b16 %v1363
      %v2916 = vunpack.c.l.b16 %v1377
      %v2917 = vunpack.c.l.b16 %v1387
      %v2918 = vunpack.c.l.b16 %v1401
      %v2919 = vunpack.c.l.b16 %v1411
      %v2920 = vpack.c.b16 %v2889, %v2888
      %v2921 = vpack.c.b16 %v2891, %v2890
      %v2922 = vpack.c.b16 %v2893, %v2892
      %v2923 = vpack.c.b16 %v2895, %v2894
      %v2924 = vpack.c.b16 %v2897, %v2896
      %v2925 = vpack.c.b16 %v2899, %v2898
      %v2926 = vpack.c.b16 %v2901, %v2900
      %v2927 = vpack.c.b16 %v2903, %v2902
      %v2928 = vpack.c.b16 %v2905, %v2904
      %v2929 = vpack.c.b16 %v2907, %v2906
      %v2930 = vpack.c.b16 %v2909, %v2908
      %v2931 = vpack.c.b16 %v2911, %v2910
      %v2932 = vpack.c.b16 %v2913, %v2912
      %v2933 = vpack.c.b16 %v2915, %v2914
      %v2934 = vpack.c.b16 %v2917, %v2916
      %v2935 = vpack.c.b16 %v2919, %v2918
      %v2952 = vunpack.c.l.b16 %v1482
      %v2953 = vunpack.c.l.b16 %v1485
      %v2954 = vunpack.c.l.b16 %v1489
      %v2955 = vunpack.c.l.b16 %v1492
      %v2956 = vunpack.c.l.b16 %v1496
      %v2957 = vunpack.c.l.b16 %v1499
      %v2958 = vunpack.c.l.b16 %v1503
      %v2959 = vunpack.c.l.b16 %v1506
      %v2960 = vunpack.c.l.b16 %v1510
      %v2961 = vunpack.c.l.b16 %v1513
      %v2962 = vunpack.c.l.b16 %v1517
      %v2963 = vunpack.c.l.b16 %v1520
      %v2964 = vunpack.c.l.b16 %v1524
      %v2965 = vunpack.c.l.b16 %v1527
      %v2966 = vunpack.c.l.b16 %v1531
      %v2967 = vunpack.c.l.b16 %v1534
      %v2968 = vunpack.c.l.b16 %v1538
      %v2969 = vunpack.c.l.b16 %v1541
      %v2970 = vunpack.c.l.b16 %v1545
      %v2971 = vunpack.c.l.b16 %v1548
      %v2972 = vunpack.c.l.b16 %v1552
      %v2973 = vunpack.c.l.b16 %v1555
      %v2974 = vunpack.c.l.b16 %v1559
      %v2975 = vunpack.c.l.b16 %v1562
      %v2976 = vunpack.c.l.b16 %v1566
      %v2977 = vunpack.c.l.b16 %v1569
      %v2978 = vunpack.c.l.b16 %v1573
      %v2979 = vunpack.c.l.b16 %v1576
      %v2980 = vunpack.c.l.b16 %v1580
      %v2981 = vunpack.c.l.b16 %v1583
      %v2982 = vunpack.c.l.b16 %v1587
      %v2983 = vunpack.c.l.b16 %v1590
      %v2984 = vpack.c.b16 %v2953, %v2952
      %v2985 = vpack.c.b16 %v2955, %v2954
      %v2986 = vpack.c.b16 %v2957, %v2956
      %v2987 = vpack.c.b16 %v2959, %v2958
      %v2988 = vpack.c.b16 %v2961, %v2960
      %v2989 = vpack.c.b16 %v2963, %v2962
      %v2990 = vpack.c.b16 %v2965, %v2964
      %v2991 = vpack.c.b16 %v2967, %v2966
      %v2992 = vpack.c.b16 %v2969, %v2968
      %v2993 = vpack.c.b16 %v2971, %v2970
      %v2994 = vpack.c.b16 %v2973, %v2972
      %v2995 = vpack.c.b16 %v2975, %v2974
      %v2996 = vpack.c.b16 %v2977, %v2976
      %v2997 = vpack.c.b16 %v2979, %v2978
      %v2998 = vpack.c.b16 %v2981, %v2980
      %v2999 = vpack.c.b16 %v2983, %v2982
      %v3032 = vunpack.c.l.b16 %v1591
      %v3033 = vunpack.c.l.b16 %v1592
      %v3034 = vunpack.c.l.b16 %v1593
      %v3035 = vunpack.c.l.b16 %v1594
      %v3036 = vunpack.c.l.b16 %v1595
      %v3037 = vunpack.c.l.b16 %v1596
      %v3038 = vunpack.c.l.b16 %v1597
      %v3039 = vunpack.c.l.b16 %v1598
      %v3040 = vunpack.c.l.b16 %v1599
      %v3041 = vunpack.c.l.b16 %v1600
      %v3042 = vunpack.c.l.b16 %v1601
      %v3043 = vunpack.c.l.b16 %v1602
      %v3044 = vunpack.c.l.b16 %v1603
      %v3045 = vunpack.c.l.b16 %v1604
      %v3046 = vunpack.c.l.b16 %v1605
      %v3047 = vunpack.c.l.b16 %v1606
      %v3048 = vunpack.c.l.b16 %v1607
      %v3049 = vunpack.c.l.b16 %v1608
      %v3050 = vunpack.c.l.b16 %v1609
      %v3051 = vunpack.c.l.b16 %v1610
      %v3052 = vunpack.c.l.b16 %v1611
      %v3053 = vunpack.c.l.b16 %v1612
      %v3054 = vunpack.c.l.b16 %v1613
      %v3055 = vunpack.c.l.b16 %v1614
      %v3056 = vunpack.c.l.b16 %v1615
      %v3057 = vunpack.c.l.b16 %v1616
      %v3058 = vunpack.c.l.b16 %v1617
      %v3059 = vunpack.c.l.b16 %v1618
      %v3060 = vunpack.c.l.b16 %v1619
      %v3061 = vunpack.c.l.b16 %v1620
      %v3062 = vunpack.c.l.b16 %v1621
      %v3063 = vunpack.c.l.b16 %v1622
      %v3064 = vpack.c.b16 %v3033, %v3032
      %v3065 = vpack.c.b16 %v3035, %v3034
      %v3066 = vpack.c.b16 %v3037, %v3036
      %v3067 = vpack.c.b16 %v3039, %v3038
      %v3068 = vpack.c.b16 %v3041, %v3040
      %v3069 = vpack.c.b16 %v3043, %v3042
      %v3070 = vpack.c.b16 %v3045, %v3044
      %v3071 = vpack.c.b16 %v3047, %v3046
      %v3072 = vpack.c.b16 %v3049, %v3048
      %v3073 = vpack.c.b16 %v3051, %v3050
      %v3074 = vpack.c.b16 %v3053, %v3052
      %v3075 = vpack.c.b16 %v3055, %v3054
      %v3076 = vpack.c.b16 %v3057, %v3056
      %v3077 = vpack.c.b16 %v3059, %v3058
      %v3078 = vpack.c.b16 %v3061, %v3060
      %v3079 = vpack.c.b16 %v3063, %v3062
      %v3096 = vunpack.c.l.b16 %v1652
      %v3097 = vunpack.c.l.b16 %v1662
      %v3098 = vunpack.c.l.b16 %v1676
      %v3099 = vunpack.c.l.b16 %v1686
      %v3100 = vunpack.c.l.b16 %v1700
      %v3101 = vunpack.c.l.b16 %v1710
      %v3102 = vunpack.c.l.b16 %v1724
      %v3103 = vunpack.c.l.b16 %v1734
      %v3104 = vunpack.c.l.b16 %v1748
      %v3105 = vunpack.c.l.b16 %v1758
      %v3106 = vunpack.c.l.b16 %v1772
      %v3107 = vunpack.c.l.b16 %v1782
      %v3108 = vunpack.c.l.b16 %v1796
      %v3109 = vunpack.c.l.b16 %v1806
      %v3110 = vunpack.c.l.b16 %v1820
      %v3111 = vunpack.c.l.b16 %v1830
      %v3112 = vunpack.c.l.b16 %v1844
      %v3113 = vunpack.c.l.b16 %v1854
      %v3114 = vunpack.c.l.b16 %v1868
      %v3115 = vunpack.c.l.b16 %v1878
      %v3116 = vunpack.c.l.b16 %v1892
      %v3117 = vunpack.c.l.b16 %v1902
      %v3118 = vunpack.c.l.b16 %v1916
      %v3119 = vunpack.c.l.b16 %v1926
      %v3120 = vunpack.c.l.b16 %v1940
      %v3121 = vunpack.c.l.b16 %v1950
      %v3122 = vunpack.c.l.b16 %v1964
      %v3123 = vunpack.c.l.b16 %v1974
      %v3124 = vunpack.c.l.b16 %v1988
      %v3125 = vunpack.c.l.b16 %v1998
      %v3126 = vunpack.c.l.b16 %v2012
      %v3127 = vunpack.c.l.b16 %v2022
      %v3128 = vpack.c.b16 %v3097, %v3096
      %v3129 = vpack.c.b16 %v3099, %v3098
      %v3130 = vpack.c.b16 %v3101, %v3100
      %v3131 = vpack.c.b16 %v3103, %v3102
      %v3132 = vpack.c.b16 %v3105, %v3104
      %v3133 = vpack.c.b16 %v3107, %v3106
      %v3134 = vpack.c.b16 %v3109, %v3108
      %v3135 = vpack.c.b16 %v3111, %v3110
      %v3136 = vpack.c.b16 %v3113, %v3112
      %v3137 = vpack.c.b16 %v3115, %v3114
      %v3138 = vpack.c.b16 %v3117, %v3116
      %v3139 = vpack.c.b16 %v3119, %v3118
      %v3140 = vpack.c.b16 %v3121, %v3120
      %v3141 = vpack.c.b16 %v3123, %v3122
      %v3142 = vpack.c.b16 %v3125, %v3124
      %v3143 = vpack.c.b16 %v3127, %v3126
      %v3160 = vunpack.c.l.b16 %v2090
      %v3161 = vunpack.c.l.b16 %v2093
      %v3162 = vunpack.c.l.b16 %v2097
      %v3163 = vunpack.c.l.b16 %v2100
      %v3164 = vunpack.c.l.b16 %v2104
      %v3165 = vunpack.c.l.b16 %v2107
      %v3166 = vunpack.c.l.b16 %v2111
      %v3167 = vunpack.c.l.b16 %v2114
      %v3168 = vunpack.c.l.b16 %v2118
      %v3169 = vunpack.c.l.b16 %v2121
      %v3170 = vunpack.c.l.b16 %v2125
      %v3171 = vunpack.c.l.b16 %v2128
      %v3172 = vunpack.c.l.b16 %v2132
      %v3173 = vunpack.c.l.b16 %v2135
      %v3174 = vunpack.c.l.b16 %v2139
      %v3175 = vunpack.c.l.b16 %v2142
      %v3176 = vunpack.c.l.b16 %v2146
      %v3177 = vunpack.c.l.b16 %v2149
      %v3178 = vunpack.c.l.b16 %v2153
      %v3179 = vunpack.c.l.b16 %v2156
      %v3180 = vunpack.c.l.b16 %v2160
      %v3181 = vunpack.c.l.b16 %v2163
      %v3182 = vunpack.c.l.b16 %v2167
      %v3183 = vunpack.c.l.b16 %v2170
      %v3184 = vunpack.c.l.b16 %v2174
      %v3185 = vunpack.c.l.b16 %v2177
      %v3186 = vunpack.c.l.b16 %v2181
      %v3187 = vunpack.c.l.b16 %v2184
      %v3188 = vunpack.c.l.b16 %v2188
      %v3189 = vunpack.c.l.b16 %v2191
      %v3190 = vunpack.c.l.b16 %v2195
      %v3191 = vunpack.c.l.b16 %v2198
      %v3192 = vpack.c.b16 %v3161, %v3160
      %v3193 = vpack.c.b16 %v3163, %v3162
      %v3194 = vpack.c.b16 %v3165, %v3164
      %v3195 = vpack.c.b16 %v3167, %v3166
      %v3196 = vpack.c.b16 %v3169, %v3168
      %v3197 = vpack.c.b16 %v3171, %v3170
      %v3198 = vpack.c.b16 %v3173, %v3172
      %v3199 = vpack.c.b16 %v3175, %v3174
      %v3200 = vpack.c.b16 %v3177, %v3176
      %v3201 = vpack.c.b16 %v3179, %v3178
      %v3202 = vpack.c.b16 %v3181, %v3180
      %v3203 = vpack.c.b16 %v3183, %v3182
      %v3204 = vpack.c.b16 %v3185, %v3184
      %v3205 = vpack.c.b16 %v3187, %v3186
      %v3206 = vpack.c.b16 %v3189, %v3188
      %v3207 = vpack.c.b16 %v3191, %v3190
      %v3240 = vunpack.c.l.b16 %v2200
      %v3241 = vunpack.c.l.b16 %v2201
      %v3242 = vunpack.c.l.b16 %v2202
      %v3243 = vunpack.c.l.b16 %v2203
      %v3244 = vunpack.c.l.b16 %v2204
      %v3245 = vunpack.c.l.b16 %v2205
      %v3246 = vunpack.c.l.b16 %v2206
      %v3247 = vunpack.c.l.b16 %v2207
      %v3248 = vunpack.c.l.b16 %v2208
      %v3249 = vunpack.c.l.b16 %v2209
      %v3250 = vunpack.c.l.b16 %v2210
      %v3251 = vunpack.c.l.b16 %v2211
      %v3252 = vunpack.c.l.b16 %v2212
      %v3253 = vunpack.c.l.b16 %v2213
      %v3254 = vunpack.c.l.b16 %v2214
      %v3255 = vunpack.c.l.b16 %v2215
      %v3256 = vunpack.c.l.b16 %v2216
      %v3257 = vunpack.c.l.b16 %v2217
      %v3258 = vunpack.c.l.b16 %v2218
      %v3259 = vunpack.c.l.b16 %v2219
      %v3260 = vunpack.c.l.b16 %v2220
      %v3261 = vunpack.c.l.b16 %v2221
      %v3262 = vunpack.c.l.b16 %v2222
      %v3263 = vunpack.c.l.b16 %v2223
      %v3264 = vunpack.c.l.b16 %v2224
      %v3265 = vunpack.c.l.b16 %v2225
      %v3266 = vunpack.c.l.b16 %v2226
      %v3267 = vunpack.c.l.b16 %v2227
      %v3268 = vunpack.c.l.b16 %v2228
      %v3269 = vunpack.c.l.b16 %v2229
      %v3270 = vunpack.c.l.b16 %v2230
      %v3271 = vunpack.c.l.b16 %v2231
      %v3272 = vpack.c.b16 %v3241, %v3240
      %v3273 = vpack.c.b16 %v3243, %v3242
      %v3274 = vpack.c.b16 %v3245, %v3244
      %v3275 = vpack.c.b16 %v3247, %v3246
      %v3276 = vpack.c.b16 %v3249, %v3248
      %v3277 = vpack.c.b16 %v3251, %v3250
      %v3278 = vpack.c.b16 %v3253, %v3252
      %v3279 = vpack.c.b16 %v3255, %v3254
      %v3280 = vpack.c.b16 %v3257, %v3256
      %v3281 = vpack.c.b16 %v3259, %v3258
      %v3282 = vpack.c.b16 %v3261, %v3260
      %v3283 = vpack.c.b16 %v3263, %v3262
      %v3284 = vpack.c.b16 %v3265, %v3264
      %v3285 = vpack.c.b16 %v3267, %v3266
      %v3286 = vpack.c.b16 %v3269, %v3268
      %v3287 = vpack.c.b16 %v3271, %v3270
      %v3304 = vunpack.c.l.b16 %v2261
      %v3305 = vunpack.c.l.b16 %v2271
      %v3306 = vunpack.c.l.b16 %v2285
      %v3307 = vunpack.c.l.b16 %v2295
      %v3308 = vunpack.c.l.b16 %v2309
      %v3309 = vunpack.c.l.b16 %v2319
      %v3310 = vunpack.c.l.b16 %v2333
      %v3311 = vunpack.c.l.b16 %v2343
      %v3312 = vunpack.c.l.b16 %v2357
      %v3313 = vunpack.c.l.b16 %v2367
      %v3314 = vunpack.c.l.b16 %v2381
      %v3315 = vunpack.c.l.b16 %v2391
      %v3316 = vunpack.c.l.b16 %v2405
      %v3317 = vunpack.c.l.b16 %v2415
      %v3318 = vunpack.c.l.b16 %v2429
      %v3319 = vunpack.c.l.b16 %v2439
      %v3320 = vunpack.c.l.b16 %v2453
      %v3321 = vunpack.c.l.b16 %v2463
      %v3322 = vunpack.c.l.b16 %v2477
      %v3323 = vunpack.c.l.b16 %v2487
      %v3324 = vunpack.c.l.b16 %v2501
      %v3325 = vunpack.c.l.b16 %v2511
      %v3326 = vunpack.c.l.b16 %v2525
      %v3327 = vunpack.c.l.b16 %v2535
      %v3328 = vunpack.c.l.b16 %v2549
      %v3329 = vunpack.c.l.b16 %v2559
      %v3330 = vunpack.c.l.b16 %v2573
      %v3331 = vunpack.c.l.b16 %v2583
      %v3332 = vunpack.c.l.b16 %v2597
      %v3333 = vunpack.c.l.b16 %v2607
      %v3334 = vunpack.c.l.b16 %v2621
      %v3335 = vunpack.c.l.b16 %v2631
      %v3336 = vpack.c.b16 %v3305, %v3304
      %v3337 = vpack.c.b16 %v3307, %v3306
      %v3338 = vpack.c.b16 %v3309, %v3308
      %v3339 = vpack.c.b16 %v3311, %v3310
      %v3340 = vpack.c.b16 %v3313, %v3312
      %v3341 = vpack.c.b16 %v3315, %v3314
      %v3342 = vpack.c.b16 %v3317, %v3316
      %v3343 = vpack.c.b16 %v3319, %v3318
      %v3344 = vpack.c.b16 %v3321, %v3320
      %v3345 = vpack.c.b16 %v3323, %v3322
      %v3346 = vpack.c.b16 %v3325, %v3324
      %v3347 = vpack.c.b16 %v3327, %v3326
      %v3348 = vpack.c.b16 %v3329, %v3328
      %v3349 = vpack.c.b16 %v3331, %v3330
      %v3350 = vpack.c.b16 %v3333, %v3332
      %v3351 = vpack.c.b16 %v3335, %v3334
      %v3368 = vunpack.c.l.b16 %v2699
      %v3369 = vunpack.c.l.b16 %v2702
      %v3370 = vunpack.c.l.b16 %v2706
      %v3371 = vunpack.c.l.b16 %v2709
      %v3372 = vunpack.c.l.b16 %v2713
      %v3373 = vunpack.c.l.b16 %v2716
      %v3374 = vunpack.c.l.b16 %v2720
      %v3375 = vunpack.c.l.b16 %v2723
      %v3376 = vunpack.c.l.b16 %v2727
      %v3377 = vunpack.c.l.b16 %v2730
      %v3378 = vunpack.c.l.b16 %v2734
      %v3379 = vunpack.c.l.b16 %v2737
      %v3380 = vunpack.c.l.b16 %v2741
      %v3381 = vunpack.c.l.b16 %v2744
      %v3382 = vunpack.c.l.b16 %v2748
      %v3383 = vunpack.c.l.b16 %v2751
      %v3384 = vunpack.c.l.b16 %v2755
      %v3385 = vunpack.c.l.b16 %v2758
      %v3386 = vunpack.c.l.b16 %v2762
      %v3387 = vunpack.c.l.b16 %v2765
      %v3388 = vunpack.c.l.b16 %v2769
      %v3389 = vunpack.c.l.b16 %v2772
      %v3390 = vunpack.c.l.b16 %v2776
      %v3391 = vunpack.c.l.b16 %v2779
      %v3392 = vunpack.c.l.b16 %v2783
      %v3393 = vunpack.c.l.b16 %v2786
      %v3394 = vunpack.c.l.b16 %v2790
      %v3395 = vunpack.c.l.b16 %v2793
      %v3396 = vunpack.c.l.b16 %v2797
      %v3397 = vunpack.c.l.b16 %v2800
      %v3398 = vunpack.c.l.b16 %v2804
      %v3399 = vunpack.c.l.b16 %v2807
      %v3400 = vpack.c.b16 %v3369, %v3368
      %v3401 = vpack.c.b16 %v3371, %v3370
      %v3402 = vpack.c.b16 %v3373, %v3372
      %v3403 = vpack.c.b16 %v3375, %v3374
      %v3404 = vpack.c.b16 %v3377, %v3376
      %v3405 = vpack.c.b16 %v3379, %v3378
      %v3406 = vpack.c.b16 %v3381, %v3380
      %v3407 = vpack.c.b16 %v3383, %v3382
      %v3408 = vpack.c.b16 %v3385, %v3384
      %v3409 = vpack.c.b16 %v3387, %v3386
      %v3410 = vpack.c.b16 %v3389, %v3388
      %v3411 = vpack.c.b16 %v3391, %v3390
      %v3412 = vpack.c.b16 %v3393, %v3392
      %v3413 = vpack.c.b16 %v3395, %v3394
      %v3414 = vpack.c.b16 %v3397, %v3396
      %v3415 = vpack.c.b16 %v3399, %v3398
      %v3432 = vld [vmem:[%s265] sm:$0xf]
      %v3433 = vld [vmem:[%s265 + $0x4] sm:$0xf]
      %v3434 = vld [vmem:[%s265 + $0x8] sm:$0xf]
      %v3435 = vld [vmem:[%s265 + $0xc] sm:$0xf]
      %v3436 = vld [vmem:[%s265 + $0x10] sm:$0xf]
      %v3437 = vld [vmem:[%s265 + $0x14] sm:$0xf]
      %v3438 = vld [vmem:[%s265 + $0x18] sm:$0xf]
      %v3439 = vld [vmem:[%s265 + $0x1c] sm:$0xf]
      %v3440 = vld [vmem:[%s265 + $0x20] sm:$0xf]
      %v3441 = vld [vmem:[%s265 + $0x24] sm:$0xf]
      %v3442 = vld [vmem:[%s265 + $0x28] sm:$0xf]
      %v3443 = vld [vmem:[%s265 + $0x2c] sm:$0xf]
      %v3444 = vld [vmem:[%s265 + $0x30] sm:$0xf]
      %v3445 = vld [vmem:[%s265 + $0x34] sm:$0xf]
      %v3446 = vld [vmem:[%s265 + $0x38] sm:$0xf]
      %v3447 = vld [vmem:[%s265 + $0x3c] sm:$0xf]
      %v3448 = vld [vmem:[%s265 + $0x40] sm:$0xf]
      %v3449 = vld [vmem:[%s265 + $0x44] sm:$0xf]
      %v3450 = vld [vmem:[%s265 + $0x48] sm:$0xf]
      %v3451 = vld [vmem:[%s265 + $0x4c] sm:$0xf]
      %v3452 = vld [vmem:[%s265 + $0x50] sm:$0xf]
      %v3453 = vld [vmem:[%s265 + $0x54] sm:$0xf]
      %v3454 = vld [vmem:[%s265 + $0x58] sm:$0xf]
      %v3455 = vld [vmem:[%s265 + $0x5c] sm:$0xf]
      %v3456 = vld [vmem:[%s265 + $0x60] sm:$0xf]
      %v3457 = vld [vmem:[%s265 + $0x64] sm:$0xf]
      %v3458 = vld [vmem:[%s265 + $0x68] sm:$0xf]
      %v3459 = vld [vmem:[%s265 + $0x6c] sm:$0xf]
      %v3460 = vld [vmem:[%s265 + $0x70] sm:$0xf]
      %v3461 = vld [vmem:[%s265 + $0x74] sm:$0xf]
      %v3462 = vld [vmem:[%s265 + $0x78] sm:$0xf]
      %v3463 = vld [vmem:[%s265 + $0x7c] sm:$0xf]
      %v3464 = vld [vmem:[%s265 + $0x80] sm:$0xf]
      %v3465 = vld [vmem:[%s265 + $0x84] sm:$0xf]
      %v3466 = vld [vmem:[%s265 + $0x88] sm:$0xf]
      %v3467 = vld [vmem:[%s265 + $0x8c] sm:$0xf]
      %v3468 = vld [vmem:[%s265 + $0x90] sm:$0xf]
      %v3469 = vld [vmem:[%s265 + $0x94] sm:$0xf]
      %v3470 = vld [vmem:[%s265 + $0x98] sm:$0xf]
      %v3471 = vld [vmem:[%s265 + $0x9c] sm:$0xf]
      %v3472 = vld [vmem:[%s265 + $0xa0] sm:$0xf]
      %v3473 = vld [vmem:[%s265 + $0xa4] sm:$0xf]
      %v3474 = vld [vmem:[%s265 + $0xa8] sm:$0xf]
      %v3475 = vld [vmem:[%s265 + $0xac] sm:$0xf]
      %v3476 = vld [vmem:[%s265 + $0xb0] sm:$0xf]
      %v3477 = vld [vmem:[%s265 + $0xb4] sm:$0xf]
      %v3478 = vld [vmem:[%s265 + $0xb8] sm:$0xf]
      %v3479 = vld [vmem:[%s265 + $0xbc] sm:$0xf]
      %v3480 = vld [vmem:[%s265 + $0xc0] sm:$0xf]
      %v3481 = vld [vmem:[%s265 + $0xc4] sm:$0xf]
      %v3482 = vld [vmem:[%s265 + $0xc8] sm:$0xf]
      %v3483 = vld [vmem:[%s265 + $0xcc] sm:$0xf]
      %v3484 = vld [vmem:[%s265 + $0xd0] sm:$0xf]
      %v3485 = vld [vmem:[%s265 + $0xd4] sm:$0xf]
      %v3486 = vld [vmem:[%s265 + $0xd8] sm:$0xf]
      %v3487 = vld [vmem:[%s265 + $0xdc] sm:$0xf]
      %v3488 = vld [vmem:[%s265 + $0xe0] sm:$0xf]
      %v3489 = vld [vmem:[%s265 + $0xe4] sm:$0xf]
      %v3490 = vld [vmem:[%s265 + $0xe8] sm:$0xf]
      %v3491 = vld [vmem:[%s265 + $0xec] sm:$0xf]
      %v3492 = vld [vmem:[%s265 + $0xf0] sm:$0xf]
      %v3493 = vld [vmem:[%s265 + $0xf4] sm:$0xf]
      %v3494 = vld [vmem:[%s265 + $0xf8] sm:$0xf]
      %v3495 = vld [vmem:[%s265 + $0xfc] sm:$0xf]
      %v3496 = vld [vmem:[%s265 + $0x100] sm:$0xf]
      %v3497 = vld [vmem:[%s265 + $0x104] sm:$0xf]
      %v3498 = vld [vmem:[%s265 + $0x108] sm:$0xf]
      %v3499 = vld [vmem:[%s265 + $0x10c] sm:$0xf]
      %v3500 = vld [vmem:[%s265 + $0x110] sm:$0xf]
      %v3501 = vld [vmem:[%s265 + $0x114] sm:$0xf]
      %v3502 = vld [vmem:[%s265 + $0x118] sm:$0xf]
      %v3503 = vld [vmem:[%s265 + $0x11c] sm:$0xf]
      %v3504 = vld [vmem:[%s265 + $0x120] sm:$0xf]
      %v3505 = vld [vmem:[%s265 + $0x124] sm:$0xf]
      %v3506 = vld [vmem:[%s265 + $0x128] sm:$0xf]
      %v3507 = vld [vmem:[%s265 + $0x12c] sm:$0xf]
      %v3508 = vld [vmem:[%s265 + $0x130] sm:$0xf]
      %v3509 = vld [vmem:[%s265 + $0x134] sm:$0xf]
      %v3510 = vld [vmem:[%s265 + $0x138] sm:$0xf]
      %v3511 = vld [vmem:[%s265 + $0x13c] sm:$0xf]
      %v3512 = vld [vmem:[%s265 + $0x140] sm:$0xf]
      %v3513 = vld [vmem:[%s265 + $0x144] sm:$0xf]
      %v3514 = vld [vmem:[%s265 + $0x148] sm:$0xf]
      %v3515 = vld [vmem:[%s265 + $0x14c] sm:$0xf]
      %v3516 = vld [vmem:[%s265 + $0x150] sm:$0xf]
      %v3517 = vld [vmem:[%s265 + $0x154] sm:$0xf]
      %v3518 = vld [vmem:[%s265 + $0x158] sm:$0xf]
      %v3519 = vld [vmem:[%s265 + $0x15c] sm:$0xf]
      %v3520 = vld [vmem:[%s265 + $0x160] sm:$0xf]
      %v3521 = vld [vmem:[%s265 + $0x164] sm:$0xf]
      %v3522 = vld [vmem:[%s265 + $0x168] sm:$0xf]
      %v3523 = vld [vmem:[%s265 + $0x16c] sm:$0xf]
      %v3524 = vld [vmem:[%s265 + $0x170] sm:$0xf]
      %v3525 = vld [vmem:[%s265 + $0x174] sm:$0xf]
      %v3526 = vld [vmem:[%s265 + $0x178] sm:$0xf]
      %v3527 = vld [vmem:[%s265 + $0x17c] sm:$0xf]
      %v3528 = vld [vmem:[%s265 + $0x180] sm:$0xf]
      %v3529 = vld [vmem:[%s265 + $0x184] sm:$0xf]
      %v3530 = vld [vmem:[%s265 + $0x188] sm:$0xf]
      %v3531 = vld [vmem:[%s265 + $0x18c] sm:$0xf]
      %v3532 = vld [vmem:[%s265 + $0x190] sm:$0xf]
      %v3533 = vld [vmem:[%s265 + $0x194] sm:$0xf]
      %v3534 = vld [vmem:[%s265 + $0x198] sm:$0xf]
      %v3535 = vld [vmem:[%s265 + $0x19c] sm:$0xf]
      %v3536 = vld [vmem:[%s265 + $0x1a0] sm:$0xf]
      %v3537 = vld [vmem:[%s265 + $0x1a4] sm:$0xf]
      %v3538 = vld [vmem:[%s265 + $0x1a8] sm:$0xf]
      %v3539 = vld [vmem:[%s265 + $0x1ac] sm:$0xf]
      %v3540 = vld [vmem:[%s265 + $0x1b0] sm:$0xf]
      %v3541 = vld [vmem:[%s265 + $0x1b4] sm:$0xf]
      %v3542 = vld [vmem:[%s265 + $0x1b8] sm:$0xf]
      %v3543 = vld [vmem:[%s265 + $0x1bc] sm:$0xf]
      %v3544 = vld [vmem:[%s265 + $0x1c0] sm:$0xf]
      %v3545 = vld [vmem:[%s265 + $0x1c4] sm:$0xf]
      %v3546 = vld [vmem:[%s265 + $0x1c8] sm:$0xf]
      %v3547 = vld [vmem:[%s265 + $0x1cc] sm:$0xf]
      %v3548 = vld [vmem:[%s265 + $0x1d0] sm:$0xf]
      %v3549 = vld [vmem:[%s265 + $0x1d4] sm:$0xf]
      %v3550 = vld [vmem:[%s265 + $0x1d8] sm:$0xf]
      %v3551 = vld [vmem:[%s265 + $0x1dc] sm:$0xf]
      %v3552 = vld [vmem:[%s265 + $0x1e0] sm:$0xf]
      %v3553 = vld [vmem:[%s265 + $0x1e4] sm:$0xf]
      %v3554 = vld [vmem:[%s265 + $0x1e8] sm:$0xf]
      %v3555 = vld [vmem:[%s265 + $0x1ec] sm:$0xf]
      %v3556 = vld [vmem:[%s265 + $0x1f0] sm:$0xf]
      %v3557 = vld [vmem:[%s265 + $0x1f4] sm:$0xf]
      %v3558 = vld [vmem:[%s265 + $0x1f8] sm:$0xf]
      %v3559 = vld [vmem:[%s265 + $0x1fc] sm:$0xf]
      %v3560 = vld [vmem:[%s265 + $0x200] sm:$0xf]
      %v3561 = vld [vmem:[%s265 + $0x204] sm:$0xf]
      %v3562 = vld [vmem:[%s265 + $0x208] sm:$0xf]
      %v3563 = vld [vmem:[%s265 + $0x20c] sm:$0xf]
      %v3564 = vld [vmem:[%s265 + $0x210] sm:$0xf]
      %v3565 = vld [vmem:[%s265 + $0x214] sm:$0xf]
      %v3566 = vld [vmem:[%s265 + $0x218] sm:$0xf]
      %v3567 = vld [vmem:[%s265 + $0x21c] sm:$0xf]
      %v3568 = vld [vmem:[%s265 + $0x220] sm:$0xf]
      %v3569 = vld [vmem:[%s265 + $0x224] sm:$0xf]
      %v3570 = vld [vmem:[%s265 + $0x228] sm:$0xf]
      %v3571 = vld [vmem:[%s265 + $0x22c] sm:$0xf]
      %v3572 = vld [vmem:[%s265 + $0x230] sm:$0xf]
      %v3573 = vld [vmem:[%s265 + $0x234] sm:$0xf]
      %v3574 = vld [vmem:[%s265 + $0x238] sm:$0xf]
      %v3575 = vld [vmem:[%s265 + $0x23c] sm:$0xf]
      %v3720 = vunpack.c.l.b16 %v3432
      %v3721 = vunpack.c.l.b16 %v3433
      %v3722 = vunpack.c.l.b16 %v3434
      %v3723 = vunpack.c.l.b16 %v3435
      %v3724 = vunpack.c.l.b16 %v3436
      %v3725 = vunpack.c.l.b16 %v3437
      %v3726 = vunpack.c.l.b16 %v3438
      %v3727 = vunpack.c.l.b16 %v3439
      %v3728 = vunpack.c.l.b16 %v3440
      %v3729 = vunpack.c.l.b16 %v3441
      %v3730 = vunpack.c.l.b16 %v3442
      %v3731 = vunpack.c.l.b16 %v3443
      %v3732 = vunpack.c.l.b16 %v3444
      %v3733 = vunpack.c.l.b16 %v3445
      %v3734 = vunpack.c.l.b16 %v3446
      %v3735 = vunpack.c.l.b16 %v3447
      %v3736 = vunpack.c.l.b16 %v3448
      %v3737 = vunpack.c.l.b16 %v3449
      %v3738 = vunpack.c.l.b16 %v3450
      %v3739 = vunpack.c.l.b16 %v3451
      %v3740 = vunpack.c.l.b16 %v3452
      %v3741 = vunpack.c.l.b16 %v3453
      %v3742 = vunpack.c.l.b16 %v3454
      %v3743 = vunpack.c.l.b16 %v3455
      %v3744 = vunpack.c.l.b16 %v3456
      %v3745 = vunpack.c.l.b16 %v3457
      %v3746 = vunpack.c.l.b16 %v3458
      %v3747 = vunpack.c.l.b16 %v3459
      %v3748 = vunpack.c.l.b16 %v3460
      %v3749 = vunpack.c.l.b16 %v3461
      %v3750 = vunpack.c.l.b16 %v3462
      %v3751 = vunpack.c.l.b16 %v3463
      %v3752 = vunpack.c.l.b16 %v3464
      %v3753 = vunpack.c.l.b16 %v3465
      %v3754 = vunpack.c.l.b16 %v3466
      %v3755 = vunpack.c.l.b16 %v3467
      %v3756 = vunpack.c.l.b16 %v3468
      %v3757 = vunpack.c.l.b16 %v3469
      %v3758 = vunpack.c.l.b16 %v3470
      %v3759 = vunpack.c.l.b16 %v3471
      %v3760 = vunpack.c.l.b16 %v3472
      %v3761 = vunpack.c.l.b16 %v3473
      %v3762 = vunpack.c.l.b16 %v3474
      %v3763 = vunpack.c.l.b16 %v3475
      %v3764 = vunpack.c.l.b16 %v3476
      %v3765 = vunpack.c.l.b16 %v3477
      %v3766 = vunpack.c.l.b16 %v3478
      %v3767 = vunpack.c.l.b16 %v3479
      %v3768 = vunpack.c.l.b16 %v3480
      %v3769 = vunpack.c.l.b16 %v3481
      %v3770 = vunpack.c.l.b16 %v3482
      %v3771 = vunpack.c.l.b16 %v3483
      %v3772 = vunpack.c.l.b16 %v3484
      %v3773 = vunpack.c.l.b16 %v3485
      %v3774 = vunpack.c.l.b16 %v3486
      %v3775 = vunpack.c.l.b16 %v3487
      %v3776 = vunpack.c.l.b16 %v3488
      %v3777 = vunpack.c.l.b16 %v3489
      %v3778 = vunpack.c.l.b16 %v3490
      %v3779 = vunpack.c.l.b16 %v3491
      %v3780 = vunpack.c.l.b16 %v3492
      %v3781 = vunpack.c.l.b16 %v3493
      %v3782 = vunpack.c.l.b16 %v3494
      %v3783 = vunpack.c.l.b16 %v3495
      %v3784 = vunpack.c.l.b16 %v3496
      %v3785 = vunpack.c.l.b16 %v3497
      %v3786 = vunpack.c.l.b16 %v3498
      %v3787 = vunpack.c.l.b16 %v3499
      %v3788 = vunpack.c.l.b16 %v3500
      %v3789 = vunpack.c.l.b16 %v3501
      %v3790 = vunpack.c.l.b16 %v3502
      %v3791 = vunpack.c.l.b16 %v3503
      %v3792 = vunpack.c.l.b16 %v3504
      %v3793 = vunpack.c.l.b16 %v3505
      %v3794 = vunpack.c.l.b16 %v3506
      %v3795 = vunpack.c.l.b16 %v3507
      %v3796 = vunpack.c.l.b16 %v3508
      %v3797 = vunpack.c.l.b16 %v3509
      %v3798 = vunpack.c.l.b16 %v3510
      %v3799 = vunpack.c.l.b16 %v3511
      %v3800 = vunpack.c.l.b16 %v3512
      %v3801 = vunpack.c.l.b16 %v3513
      %v3802 = vunpack.c.l.b16 %v3514
      %v3803 = vunpack.c.l.b16 %v3515
      %v3804 = vunpack.c.l.b16 %v3516
      %v3805 = vunpack.c.l.b16 %v3517
      %v3806 = vunpack.c.l.b16 %v3518
      %v3807 = vunpack.c.l.b16 %v3519
      %v3808 = vunpack.c.l.b16 %v3520
      %v3809 = vunpack.c.l.b16 %v3521
      %v3810 = vunpack.c.l.b16 %v3522
      %v3811 = vunpack.c.l.b16 %v3523
      %v3812 = vunpack.c.l.b16 %v3524
      %v3813 = vunpack.c.l.b16 %v3525
      %v3814 = vunpack.c.l.b16 %v3526
      %v3815 = vunpack.c.l.b16 %v3527
      %v3816 = vunpack.c.l.b16 %v3528
      %v3817 = vunpack.c.l.b16 %v3529
      %v3818 = vunpack.c.l.b16 %v3530
      %v3819 = vunpack.c.l.b16 %v3531
      %v3820 = vunpack.c.l.b16 %v3532
      %v3821 = vunpack.c.l.b16 %v3533
      %v3822 = vunpack.c.l.b16 %v3534
      %v3823 = vunpack.c.l.b16 %v3535
      %v3824 = vunpack.c.l.b16 %v3536
      %v3825 = vunpack.c.l.b16 %v3537
      %v3826 = vunpack.c.l.b16 %v3538
      %v3827 = vunpack.c.l.b16 %v3539
      %v3828 = vunpack.c.l.b16 %v3540
      %v3829 = vunpack.c.l.b16 %v3541
      %v3830 = vunpack.c.l.b16 %v3542
      %v3831 = vunpack.c.l.b16 %v3543
      %v3832 = vunpack.c.l.b16 %v3544
      %v3833 = vunpack.c.l.b16 %v3545
      %v3834 = vunpack.c.l.b16 %v3546
      %v3835 = vunpack.c.l.b16 %v3547
      %v3836 = vunpack.c.l.b16 %v3548
      %v3837 = vunpack.c.l.b16 %v3549
      %v3838 = vunpack.c.l.b16 %v3550
      %v3839 = vunpack.c.l.b16 %v3551
      %v3840 = vunpack.c.l.b16 %v3552
      %v3841 = vunpack.c.l.b16 %v3553
      %v3842 = vunpack.c.l.b16 %v3554
      %v3843 = vunpack.c.l.b16 %v3555
      %v3844 = vunpack.c.l.b16 %v3556
      %v3845 = vunpack.c.l.b16 %v3557
      %v3846 = vunpack.c.l.b16 %v3558
      %v3847 = vunpack.c.l.b16 %v3559
      %v3848 = vunpack.c.l.b16 %v3560
      %v3849 = vunpack.c.l.b16 %v3561
      %v3850 = vunpack.c.l.b16 %v3562
      %v3851 = vunpack.c.l.b16 %v3563
      %v3852 = vunpack.c.l.b16 %v3564
      %v3853 = vunpack.c.l.b16 %v3565
      %v3854 = vunpack.c.l.b16 %v3566
      %v3855 = vunpack.c.l.b16 %v3567
      %v3856 = vunpack.c.l.b16 %v3568
      %v3857 = vunpack.c.l.b16 %v3569
      %v3858 = vunpack.c.l.b16 %v3570
      %v3859 = vunpack.c.l.b16 %v3571
      %v3860 = vunpack.c.l.b16 %v3572
      %v3861 = vunpack.c.l.b16 %v3573
      %v3862 = vunpack.c.l.b16 %v3574
      %v3863 = vunpack.c.l.b16 %v3575
      %v3864 = vpack.c.b16 %v3721, %v3720
      %v3865 = vpack.c.b16 %v3723, %v3722
      %v3866 = vpack.c.b16 %v3725, %v3724
      %v3867 = vpack.c.b16 %v3727, %v3726
      %v3868 = vpack.c.b16 %v3729, %v3728
      %v3869 = vpack.c.b16 %v3731, %v3730
      %v3870 = vpack.c.b16 %v3733, %v3732
      %v3871 = vpack.c.b16 %v3735, %v3734
      %v3872 = vpack.c.b16 %v3737, %v3736
      %v3873 = vpack.c.b16 %v3739, %v3738
      %v3874 = vpack.c.b16 %v3741, %v3740
      %v3875 = vpack.c.b16 %v3743, %v3742
      %v3876 = vpack.c.b16 %v3745, %v3744
      %v3877 = vpack.c.b16 %v3747, %v3746
      %v3878 = vpack.c.b16 %v3749, %v3748
      %v3879 = vpack.c.b16 %v3751, %v3750
      %v3880 = vpack.c.b16 %v3753, %v3752
      %v3881 = vpack.c.b16 %v3755, %v3754
      %v3882 = vpack.c.b16 %v3757, %v3756
      %v3883 = vpack.c.b16 %v3759, %v3758
      %v3884 = vpack.c.b16 %v3761, %v3760
      %v3885 = vpack.c.b16 %v3763, %v3762
      %v3886 = vpack.c.b16 %v3765, %v3764
      %v3887 = vpack.c.b16 %v3767, %v3766
      %v3888 = vpack.c.b16 %v3769, %v3768
      %v3889 = vpack.c.b16 %v3771, %v3770
      %v3890 = vpack.c.b16 %v3773, %v3772
      %v3891 = vpack.c.b16 %v3775, %v3774
      %v3892 = vpack.c.b16 %v3777, %v3776
      %v3893 = vpack.c.b16 %v3779, %v3778
      %v3894 = vpack.c.b16 %v3781, %v3780
      %v3895 = vpack.c.b16 %v3783, %v3782
      %v3896 = vpack.c.b16 %v3785, %v3784
      %v3897 = vpack.c.b16 %v3787, %v3786
      %v3898 = vpack.c.b16 %v3789, %v3788
      %v3899 = vpack.c.b16 %v3791, %v3790
      %v3900 = vpack.c.b16 %v3793, %v3792
      %v3901 = vpack.c.b16 %v3795, %v3794
      %v3902 = vpack.c.b16 %v3797, %v3796
      %v3903 = vpack.c.b16 %v3799, %v3798
      %v3904 = vpack.c.b16 %v3801, %v3800
      %v3905 = vpack.c.b16 %v3803, %v3802
      %v3906 = vpack.c.b16 %v3805, %v3804
      %v3907 = vpack.c.b16 %v3807, %v3806
      %v3908 = vpack.c.b16 %v3809, %v3808
      %v3909 = vpack.c.b16 %v3811, %v3810
      %v3910 = vpack.c.b16 %v3813, %v3812
      %v3911 = vpack.c.b16 %v3815, %v3814
      %v3912 = vpack.c.b16 %v3817, %v3816
      %v3913 = vpack.c.b16 %v3819, %v3818
      %v3914 = vpack.c.b16 %v3821, %v3820
      %v3915 = vpack.c.b16 %v3823, %v3822
      %v3916 = vpack.c.b16 %v3825, %v3824
      %v3917 = vpack.c.b16 %v3827, %v3826
      %v3918 = vpack.c.b16 %v3829, %v3828
      %v3919 = vpack.c.b16 %v3831, %v3830
      %v3920 = vpack.c.b16 %v3833, %v3832
      %v3921 = vpack.c.b16 %v3835, %v3834
      %v3922 = vpack.c.b16 %v3837, %v3836
      %v3923 = vpack.c.b16 %v3839, %v3838
      %v3924 = vpack.c.b16 %v3841, %v3840
      %v3925 = vpack.c.b16 %v3843, %v3842
      %v3926 = vpack.c.b16 %v3845, %v3844
      %v3927 = vpack.c.b16 %v3847, %v3846
      %v3928 = vpack.c.b16 %v3849, %v3848
      %v3929 = vpack.c.b16 %v3851, %v3850
      %v3930 = vpack.c.b16 %v3853, %v3852
      %v3931 = vpack.c.b16 %v3855, %v3854
      %v3932 = vpack.c.b16 %v3857, %v3856
      %v3933 = vpack.c.b16 %v3859, %v3858
      %v3934 = vpack.c.b16 %v3861, %v3860
      %v3935 = vpack.c.b16 %v3863, %v3862
      %4008 = vmatpush.bf16.msra.mxu0 %v3871
      %4009 = vmatpush.bf16.msra.mxu0 %v3870
      %4010 = vmatpush.bf16.msra.mxu0 %v3869
      %4011 = vmatpush.bf16.msra.mxu0 %v3868
      %4012 = vmatpush.bf16.msra.mxu0 %v3867
      %4013 = vmatpush.bf16.msra.mxu0 %v3866
      %4014 = vmatpush.bf16.msra.mxu0 %v3865
      %4015 = vmatpush.bf16.msra.mxu0 %v3864
      %4016 = vmatmul.bf16.gmra.mxu0 %v2856
      %v4017 = vpop.f32.mrf.mxu0
      %v4018 = vadd.f32 0.0, %v4017
      %v4019 = vpop.f32.mrf.mxu0
      %v4020 = vadd.f32 0.0, %v4019
      %4021 = vmatmul.bf16.gmra.mxu0 %v2857
      %v4022 = vpop.f32.mrf.mxu0
      %v4023 = vadd.f32 0.0, %v4022
      %v4024 = vpop.f32.mrf.mxu0
      %v4025 = vadd.f32 0.0, %v4024
      %4026 = vmatmul.bf16.gmra.mxu0 %v2858
      %v4027 = vpop.f32.mrf.mxu0
      %v4028 = vadd.f32 0.0, %v4027
      %v4029 = vpop.f32.mrf.mxu0
      %v4030 = vadd.f32 0.0, %v4029
      %4031 = vmatmul.bf16.gmra.mxu0 %v2859
      %v4032 = vpop.f32.mrf.mxu0
      %v4033 = vadd.f32 0.0, %v4032
      %v4034 = vpop.f32.mrf.mxu0
      %v4035 = vadd.f32 0.0, %v4034
      %4036 = vmatmul.bf16.gmra.mxu0 %v2860
      %v4037 = vpop.f32.mrf.mxu0
      %v4038 = vadd.f32 0.0, %v4037
      %v4039 = vpop.f32.mrf.mxu0
      %v4040 = vadd.f32 0.0, %v4039
      %4041 = vmatmul.bf16.gmra.mxu0 %v2861
      %v4042 = vpop.f32.mrf.mxu0
      %v4043 = vadd.f32 0.0, %v4042
      %v4044 = vpop.f32.mrf.mxu0
      %v4045 = vadd.f32 0.0, %v4044
      %4046 = vmatmul.bf16.gmra.mxu0 %v2862
      %v4047 = vpop.f32.mrf.mxu0
      %v4048 = vadd.f32 0.0, %v4047
      %v4049 = vpop.f32.mrf.mxu0
      %v4050 = vadd.f32 0.0, %v4049
      %4051 = vmatmul.bf16.gmra.mxu0 %v2863
      %v4052 = vpop.f32.mrf.mxu0
      %v4053 = vadd.f32 0.0, %v4052
      %v4054 = vpop.f32.mrf.mxu0
      %v4055 = vadd.f32 0.0, %v4054
      %4056 = vmatmul.bf16.gmra.mxu0 %v2864
      %v4057 = vpop.f32.mrf.mxu0
      %v4058 = vadd.f32 0.0, %v4057
      %v4059 = vpop.f32.mrf.mxu0
      %v4060 = vadd.f32 0.0, %v4059
      %4061 = vmatmul.bf16.gmra.mxu0 %v2865
      %v4062 = vpop.f32.mrf.mxu0
      %v4063 = vadd.f32 0.0, %v4062
      %v4064 = vpop.f32.mrf.mxu0
      %v4065 = vadd.f32 0.0, %v4064
      %4066 = vmatmul.bf16.gmra.mxu0 %v2866
      %v4067 = vpop.f32.mrf.mxu0
      %v4068 = vadd.f32 0.0, %v4067
      %v4069 = vpop.f32.mrf.mxu0
      %v4070 = vadd.f32 0.0, %v4069
      %4071 = vmatmul.bf16.gmra.mxu0 %v2867
      %v4072 = vpop.f32.mrf.mxu0
      %v4073 = vadd.f32 0.0, %v4072
      %v4074 = vpop.f32.mrf.mxu0
      %v4075 = vadd.f32 0.0, %v4074
      %4076 = vmatmul.bf16.gmra.mxu0 %v2868
      %v4077 = vpop.f32.mrf.mxu0
      %v4078 = vadd.f32 0.0, %v4077
      %v4079 = vpop.f32.mrf.mxu0
      %v4080 = vadd.f32 0.0, %v4079
      %4081 = vmatmul.bf16.gmra.mxu0 %v2869
      %v4082 = vpop.f32.mrf.mxu0
      %v4083 = vadd.f32 0.0, %v4082
      %v4084 = vpop.f32.mrf.mxu0
      %v4085 = vadd.f32 0.0, %v4084
      %4086 = vmatmul.bf16.gmra.mxu0 %v2870
      %v4087 = vpop.f32.mrf.mxu0
      %v4088 = vadd.f32 0.0, %v4087
      %v4089 = vpop.f32.mrf.mxu0
      %v4090 = vadd.f32 0.0, %v4089
      %4091 = vmatmul.bf16.gmra.mxu0 %v2871
      %v4092 = vpop.f32.mrf.mxu0
      %v4093 = vadd.f32 0.0, %v4092
      %v4094 = vpop.f32.mrf.mxu0
      %v4095 = vadd.f32 0.0, %v4094
      %4096 = vdwg.mxu0
      %4097 = vmatpush.bf16.msra.mxu0 %v3879
      %4098 = vmatpush.bf16.msra.mxu0 %v3878
      %4099 = vmatpush.bf16.msra.mxu0 %v3877
      %4100 = vmatpush.bf16.msra.mxu0 %v3876
      %4101 = vmatpush.bf16.msra.mxu0 %v3875
      %4102 = vmatpush.bf16.msra.mxu0 %v3874
      %4103 = vmatpush.bf16.msra.mxu0 %v3873
      %4104 = vmatpush.bf16.msra.mxu0 %v3872
      %4105 = vmatmul.bf16.gmra.mxu0 %v2920
      %v4106 = vpop.f32.mrf.mxu0
      %v4107 = vadd.f32 %v4018, %v4106
      %v4108 = vpop.f32.mrf.mxu0
      %v4109 = vadd.f32 %v4020, %v4108
      %4110 = vmatmul.bf16.gmra.mxu0 %v2921
      %v4111 = vpop.f32.mrf.mxu0
      %v4112 = vadd.f32 %v4023, %v4111
      %v4113 = vpop.f32.mrf.mxu0
      %v4114 = vadd.f32 %v4025, %v4113
      %4115 = vmatmul.bf16.gmra.mxu0 %v2922
      %v4116 = vpop.f32.mrf.mxu0
      %v4117 = vadd.f32 %v4028, %v4116
      %v4118 = vpop.f32.mrf.mxu0
      %v4119 = vadd.f32 %v4030, %v4118
      %4120 = vmatmul.bf16.gmra.mxu0 %v2923
      %v4121 = vpop.f32.mrf.mxu0
      %v4122 = vadd.f32 %v4033, %v4121
      %v4123 = vpop.f32.mrf.mxu0
      %v4124 = vadd.f32 %v4035, %v4123
      %4125 = vmatmul.bf16.gmra.mxu0 %v2924
      %v4126 = vpop.f32.mrf.mxu0
      %v4127 = vadd.f32 %v4038, %v4126
      %v4128 = vpop.f32.mrf.mxu0
      %v4129 = vadd.f32 %v4040, %v4128
      %4130 = vmatmul.bf16.gmra.mxu0 %v2925
      %v4131 = vpop.f32.mrf.mxu0
      %v4132 = vadd.f32 %v4043, %v4131
      %v4133 = vpop.f32.mrf.mxu0
      %v4134 = vadd.f32 %v4045, %v4133
      %4135 = vmatmul.bf16.gmra.mxu0 %v2926
      %v4136 = vpop.f32.mrf.mxu0
      %v4137 = vadd.f32 %v4048, %v4136
      %v4138 = vpop.f32.mrf.mxu0
      %v4139 = vadd.f32 %v4050, %v4138
      %4140 = vmatmul.bf16.gmra.mxu0 %v2927
      %v4141 = vpop.f32.mrf.mxu0
      %v4142 = vadd.f32 %v4053, %v4141
      %v4143 = vpop.f32.mrf.mxu0
      %v4144 = vadd.f32 %v4055, %v4143
      %4145 = vmatmul.bf16.gmra.mxu0 %v2928
      %v4146 = vpop.f32.mrf.mxu0
      %v4147 = vadd.f32 %v4058, %v4146
      %v4148 = vpop.f32.mrf.mxu0
      %v4149 = vadd.f32 %v4060, %v4148
      %4150 = vmatmul.bf16.gmra.mxu0 %v2929
      %v4151 = vpop.f32.mrf.mxu0
      %v4152 = vadd.f32 %v4063, %v4151
      %v4153 = vpop.f32.mrf.mxu0
      %v4154 = vadd.f32 %v4065, %v4153
      %4155 = vmatmul.bf16.gmra.mxu0 %v2930
      %v4156 = vpop.f32.mrf.mxu0
      %v4157 = vadd.f32 %v4068, %v4156
      %v4158 = vpop.f32.mrf.mxu0
      %v4159 = vadd.f32 %v4070, %v4158
      %4160 = vmatmul.bf16.gmra.mxu0 %v2931
      %v4161 = vpop.f32.mrf.mxu0
      %v4162 = vadd.f32 %v4073, %v4161
      %v4163 = vpop.f32.mrf.mxu0
      %v4164 = vadd.f32 %v4075, %v4163
      %4165 = vmatmul.bf16.gmra.mxu0 %v2932
      %v4166 = vpop.f32.mrf.mxu0
      %v4167 = vadd.f32 %v4078, %v4166
      %v4168 = vpop.f32.mrf.mxu0
      %v4169 = vadd.f32 %v4080, %v4168
      %4170 = vmatmul.bf16.gmra.mxu0 %v2933
      %v4171 = vpop.f32.mrf.mxu0
      %v4172 = vadd.f32 %v4083, %v4171
      %v4173 = vpop.f32.mrf.mxu0
      %v4174 = vadd.f32 %v4085, %v4173
      %4175 = vmatmul.bf16.gmra.mxu0 %v2934
      %v4176 = vpop.f32.mrf.mxu0
      %v4177 = vadd.f32 %v4088, %v4176
      %v4178 = vpop.f32.mrf.mxu0
      %v4179 = vadd.f32 %v4090, %v4178
      %4180 = vmatmul.bf16.gmra.mxu0 %v2935
      %v4181 = vpop.f32.mrf.mxu0
      %v4182 = vadd.f32 %v4093, %v4181
      %v4183 = vpop.f32.mrf.mxu0
      %v4184 = vadd.f32 %v4095, %v4183
      %4185 = vdwg.mxu0
      %4186 = vmatpush.bf16.msra.mxu0 %v3887
      %4187 = vmatpush.bf16.msra.mxu0 %v3886
      %4188 = vmatpush.bf16.msra.mxu0 %v3885
      %4189 = vmatpush.bf16.msra.mxu0 %v3884
      %4190 = vmatpush.bf16.msra.mxu0 %v3883
      %4191 = vmatpush.bf16.msra.mxu0 %v3882
      %4192 = vmatpush.bf16.msra.mxu0 %v3881
      %4193 = vmatpush.bf16.msra.mxu0 %v3880
      %4194 = vmatmul.bf16.gmra.mxu0 %v2984
      %v4195 = vpop.f32.mrf.mxu0
      %v4196 = vadd.f32 %v4107, %v4195
      %v4197 = vpop.f32.mrf.mxu0
      %v4198 = vadd.f32 %v4109, %v4197
      %4199 = vmatmul.bf16.gmra.mxu0 %v2985
      %v4200 = vpop.f32.mrf.mxu0
      %v4201 = vadd.f32 %v4112, %v4200
      %v4202 = vpop.f32.mrf.mxu0
      %v4203 = vadd.f32 %v4114, %v4202
      %4204 = vmatmul.bf16.gmra.mxu0 %v2986
      %v4205 = vpop.f32.mrf.mxu0
      %v4206 = vadd.f32 %v4117, %v4205
      %v4207 = vpop.f32.mrf.mxu0
      %v4208 = vadd.f32 %v4119, %v4207
      %4209 = vmatmul.bf16.gmra.mxu0 %v2987
      %v4210 = vpop.f32.mrf.mxu0
      %v4211 = vadd.f32 %v4122, %v4210
      %v4212 = vpop.f32.mrf.mxu0
      %v4213 = vadd.f32 %v4124, %v4212
      %4214 = vmatmul.bf16.gmra.mxu0 %v2988
      %v4215 = vpop.f32.mrf.mxu0
      %v4216 = vadd.f32 %v4127, %v4215
      %v4217 = vpop.f32.mrf.mxu0
      %v4218 = vadd.f32 %v4129, %v4217
      %4219 = vmatmul.bf16.gmra.mxu0 %v2989
      %v4220 = vpop.f32.mrf.mxu0
      %v4221 = vadd.f32 %v4132, %v4220
      %v4222 = vpop.f32.mrf.mxu0
      %v4223 = vadd.f32 %v4134, %v4222
      %4224 = vmatmul.bf16.gmra.mxu0 %v2990
      %v4225 = vpop.f32.mrf.mxu0
      %v4226 = vadd.f32 %v4137, %v4225
      %v4227 = vpop.f32.mrf.mxu0
      %v4228 = vadd.f32 %v4139, %v4227
      %4229 = vmatmul.bf16.gmra.mxu0 %v2991
      %v4230 = vpop.f32.mrf.mxu0
      %v4231 = vadd.f32 %v4142, %v4230
      %v4232 = vpop.f32.mrf.mxu0
      %v4233 = vadd.f32 %v4144, %v4232
      %4234 = vmatmul.bf16.gmra.mxu0 %v2992
      %v4235 = vpop.f32.mrf.mxu0
      %v4236 = vadd.f32 %v4147, %v4235
      %v4237 = vpop.f32.mrf.mxu0
      %v4238 = vadd.f32 %v4149, %v4237
      %4239 = vmatmul.bf16.gmra.mxu0 %v2993
      %v4240 = vpop.f32.mrf.mxu0
      %v4241 = vadd.f32 %v4152, %v4240
      %v4242 = vpop.f32.mrf.mxu0
      %v4243 = vadd.f32 %v4154, %v4242
      %4244 = vmatmul.bf16.gmra.mxu0 %v2994
      %v4245 = vpop.f32.mrf.mxu0
      %v4246 = vadd.f32 %v4157, %v4245
      %v4247 = vpop.f32.mrf.mxu0
      %v4248 = vadd.f32 %v4159, %v4247
      %4249 = vmatmul.bf16.gmra.mxu0 %v2995
      %v4250 = vpop.f32.mrf.mxu0
      %v4251 = vadd.f32 %v4162, %v4250
      %v4252 = vpop.f32.mrf.mxu0
      %v4253 = vadd.f32 %v4164, %v4252
      %4254 = vmatmul.bf16.gmra.mxu0 %v2996
      %v4255 = vpop.f32.mrf.mxu0
      %v4256 = vadd.f32 %v4167, %v4255
      %v4257 = vpop.f32.mrf.mxu0
      %v4258 = vadd.f32 %v4169, %v4257
      %4259 = vmatmul.bf16.gmra.mxu0 %v2997
      %v4260 = vpop.f32.mrf.mxu0
      %v4261 = vadd.f32 %v4172, %v4260
      %v4262 = vpop.f32.mrf.mxu0
      %v4263 = vadd.f32 %v4174, %v4262
      %4264 = vmatmul.bf16.gmra.mxu0 %v2998
      %v4265 = vpop.f32.mrf.mxu0
      %v4266 = vadd.f32 %v4177, %v4265
      %v4267 = vpop.f32.mrf.mxu0
      %v4268 = vadd.f32 %v4179, %v4267
      %4269 = vmatmul.bf16.gmra.mxu0 %v2999
      %v4270 = vpop.f32.mrf.mxu0
      %v4271 = vadd.f32 %v4182, %v4270
      %v4272 = vpop.f32.mrf.mxu0
      %v4273 = vadd.f32 %v4184, %v4272
      %4274 = vdwg.mxu0
      %4275 = vmatpush.bf16.msra.mxu0 %v3895
      %4276 = vmatpush.bf16.msra.mxu0 %v3894
      %4277 = vmatpush.bf16.msra.mxu0 %v3893
      %4278 = vmatpush.bf16.msra.mxu0 %v3892
      %4279 = vmatpush.bf16.msra.mxu0 %v3891
      %4280 = vmatpush.bf16.msra.mxu0 %v3890
      %4281 = vmatpush.bf16.msra.mxu0 %v3889
      %4282 = vmatpush.bf16.msra.mxu0 %v3888
      %4283 = vmatmul.bf16.gmra.mxu0 %v3064
      %v4284 = vpop.f32.mrf.mxu0
      %v4285 = vadd.f32 %v4196, %v4284
      %v4286 = vpop.f32.mrf.mxu0
      %v4287 = vadd.f32 %v4198, %v4286
      %4288 = vmatmul.bf16.gmra.mxu0 %v3065
      %v4289 = vpop.f32.mrf.mxu0
      %v4290 = vadd.f32 %v4201, %v4289
      %v4291 = vpop.f32.mrf.mxu0
      %v4292 = vadd.f32 %v4203, %v4291
      %4293 = vmatmul.bf16.gmra.mxu0 %v3066
      %v4294 = vpop.f32.mrf.mxu0
      %v4295 = vadd.f32 %v4206, %v4294
      %v4296 = vpop.f32.mrf.mxu0
      %v4297 = vadd.f32 %v4208, %v4296
      %4298 = vmatmul.bf16.gmra.mxu0 %v3067
      %v4299 = vpop.f32.mrf.mxu0
      %v4300 = vadd.f32 %v4211, %v4299
      %v4301 = vpop.f32.mrf.mxu0
      %v4302 = vadd.f32 %v4213, %v4301
      %4303 = vmatmul.bf16.gmra.mxu0 %v3068
      %v4304 = vpop.f32.mrf.mxu0
      %v4305 = vadd.f32 %v4216, %v4304
      %v4306 = vpop.f32.mrf.mxu0
      %v4307 = vadd.f32 %v4218, %v4306
      %4308 = vmatmul.bf16.gmra.mxu0 %v3069
      %v4309 = vpop.f32.mrf.mxu0
      %v4310 = vadd.f32 %v4221, %v4309
      %v4311 = vpop.f32.mrf.mxu0
      %v4312 = vadd.f32 %v4223, %v4311
      %4313 = vmatmul.bf16.gmra.mxu0 %v3070
      %v4314 = vpop.f32.mrf.mxu0
      %v4315 = vadd.f32 %v4226, %v4314
      %v4316 = vpop.f32.mrf.mxu0
      %v4317 = vadd.f32 %v4228, %v4316
      %4318 = vmatmul.bf16.gmra.mxu0 %v3071
      %v4319 = vpop.f32.mrf.mxu0
      %v4320 = vadd.f32 %v4231, %v4319
      %v4321 = vpop.f32.mrf.mxu0
      %v4322 = vadd.f32 %v4233, %v4321
      %4323 = vmatmul.bf16.gmra.mxu0 %v3072
      %v4324 = vpop.f32.mrf.mxu0
      %v4325 = vadd.f32 %v4236, %v4324
      %v4326 = vpop.f32.mrf.mxu0
      %v4327 = vadd.f32 %v4238, %v4326
      %4328 = vmatmul.bf16.gmra.mxu0 %v3073
      %v4329 = vpop.f32.mrf.mxu0
      %v4330 = vadd.f32 %v4241, %v4329
      %v4331 = vpop.f32.mrf.mxu0
      %v4332 = vadd.f32 %v4243, %v4331
      %4333 = vmatmul.bf16.gmra.mxu0 %v3074
      %v4334 = vpop.f32.mrf.mxu0
      %v4335 = vadd.f32 %v4246, %v4334
      %v4336 = vpop.f32.mrf.mxu0
      %v4337 = vadd.f32 %v4248, %v4336
      %4338 = vmatmul.bf16.gmra.mxu0 %v3075
      %v4339 = vpop.f32.mrf.mxu0
      %v4340 = vadd.f32 %v4251, %v4339
      %v4341 = vpop.f32.mrf.mxu0
      %v4342 = vadd.f32 %v4253, %v4341
      %4343 = vmatmul.bf16.gmra.mxu0 %v3076
      %v4344 = vpop.f32.mrf.mxu0
      %v4345 = vadd.f32 %v4256, %v4344
      %v4346 = vpop.f32.mrf.mxu0
      %v4347 = vadd.f32 %v4258, %v4346
      %4348 = vmatmul.bf16.gmra.mxu0 %v3077
      %v4349 = vpop.f32.mrf.mxu0
      %v4350 = vadd.f32 %v4261, %v4349
      %v4351 = vpop.f32.mrf.mxu0
      %v4352 = vadd.f32 %v4263, %v4351
      %4353 = vmatmul.bf16.gmra.mxu0 %v3078
      %v4354 = vpop.f32.mrf.mxu0
      %v4355 = vadd.f32 %v4266, %v4354
      %v4356 = vpop.f32.mrf.mxu0
      %v4357 = vadd.f32 %v4268, %v4356
      %4358 = vmatmul.bf16.gmra.mxu0 %v3079
      %v4359 = vpop.f32.mrf.mxu0
      %v4360 = vadd.f32 %v4271, %v4359
      %v4361 = vpop.f32.mrf.mxu0
      %v4362 = vadd.f32 %v4273, %v4361
      %4363 = vdwg.mxu0
      %4364 = vmatpush.bf16.msra.mxu0 %v3903
      %4365 = vmatpush.bf16.msra.mxu0 %v3902
      %4366 = vmatpush.bf16.msra.mxu0 %v3901
      %4367 = vmatpush.bf16.msra.mxu0 %v3900
      %4368 = vmatpush.bf16.msra.mxu0 %v3899
      %4369 = vmatpush.bf16.msra.mxu0 %v3898
      %4370 = vmatpush.bf16.msra.mxu0 %v3897
      %4371 = vmatpush.bf16.msra.mxu0 %v3896
      %4372 = vmatmul.bf16.gmra.mxu0 %v3128
      %v4373 = vpop.f32.mrf.mxu0
      %v4374 = vadd.f32 %v4285, %v4373
      %v4375 = vpop.f32.mrf.mxu0
      %v4376 = vadd.f32 %v4287, %v4375
      %4377 = vmatmul.bf16.gmra.mxu0 %v3129
      %v4378 = vpop.f32.mrf.mxu0
      %v4379 = vadd.f32 %v4290, %v4378
      %v4380 = vpop.f32.mrf.mxu0
      %v4381 = vadd.f32 %v4292, %v4380
      %4382 = vmatmul.bf16.gmra.mxu0 %v3130
      %v4383 = vpop.f32.mrf.mxu0
      %v4384 = vadd.f32 %v4295, %v4383
      %v4385 = vpop.f32.mrf.mxu0
      %v4386 = vadd.f32 %v4297, %v4385
      %4387 = vmatmul.bf16.gmra.mxu0 %v3131
      %v4388 = vpop.f32.mrf.mxu0
      %v4389 = vadd.f32 %v4300, %v4388
      %v4390 = vpop.f32.mrf.mxu0
      %v4391 = vadd.f32 %v4302, %v4390
      %4392 = vmatmul.bf16.gmra.mxu0 %v3132
      %v4393 = vpop.f32.mrf.mxu0
      %v4394 = vadd.f32 %v4305, %v4393
      %v4395 = vpop.f32.mrf.mxu0
      %v4396 = vadd.f32 %v4307, %v4395
      %4397 = vmatmul.bf16.gmra.mxu0 %v3133
      %v4398 = vpop.f32.mrf.mxu0
      %v4399 = vadd.f32 %v4310, %v4398
      %v4400 = vpop.f32.mrf.mxu0
      %v4401 = vadd.f32 %v4312, %v4400
      %4402 = vmatmul.bf16.gmra.mxu0 %v3134
      %v4403 = vpop.f32.mrf.mxu0
      %v4404 = vadd.f32 %v4315, %v4403
      %v4405 = vpop.f32.mrf.mxu0
      %v4406 = vadd.f32 %v4317, %v4405
      %4407 = vmatmul.bf16.gmra.mxu0 %v3135
      %v4408 = vpop.f32.mrf.mxu0
      %v4409 = vadd.f32 %v4320, %v4408
      %v4410 = vpop.f32.mrf.mxu0
      %v4411 = vadd.f32 %v4322, %v4410
      %4412 = vmatmul.bf16.gmra.mxu0 %v3136
      %v4413 = vpop.f32.mrf.mxu0
      %v4414 = vadd.f32 %v4325, %v4413
      %v4415 = vpop.f32.mrf.mxu0
      %v4416 = vadd.f32 %v4327, %v4415
      %4417 = vmatmul.bf16.gmra.mxu0 %v3137
      %v4418 = vpop.f32.mrf.mxu0
      %v4419 = vadd.f32 %v4330, %v4418
      %v4420 = vpop.f32.mrf.mxu0
      %v4421 = vadd.f32 %v4332, %v4420
      %4422 = vmatmul.bf16.gmra.mxu0 %v3138
      %v4423 = vpop.f32.mrf.mxu0
      %v4424 = vadd.f32 %v4335, %v4423
      %v4425 = vpop.f32.mrf.mxu0
      %v4426 = vadd.f32 %v4337, %v4425
      %4427 = vmatmul.bf16.gmra.mxu0 %v3139
      %v4428 = vpop.f32.mrf.mxu0
      %v4429 = vadd.f32 %v4340, %v4428
      %v4430 = vpop.f32.mrf.mxu0
      %v4431 = vadd.f32 %v4342, %v4430
      %4432 = vmatmul.bf16.gmra.mxu0 %v3140
      %v4433 = vpop.f32.mrf.mxu0
      %v4434 = vadd.f32 %v4345, %v4433
      %v4435 = vpop.f32.mrf.mxu0
      %v4436 = vadd.f32 %v4347, %v4435
      %4437 = vmatmul.bf16.gmra.mxu0 %v3141
      %v4438 = vpop.f32.mrf.mxu0
      %v4439 = vadd.f32 %v4350, %v4438
      %v4440 = vpop.f32.mrf.mxu0
      %v4441 = vadd.f32 %v4352, %v4440
      %4442 = vmatmul.bf16.gmra.mxu0 %v3142
      %v4443 = vpop.f32.mrf.mxu0
      %v4444 = vadd.f32 %v4355, %v4443
      %v4445 = vpop.f32.mrf.mxu0
      %v4446 = vadd.f32 %v4357, %v4445
      %4447 = vmatmul.bf16.gmra.mxu0 %v3143
      %v4448 = vpop.f32.mrf.mxu0
      %v4449 = vadd.f32 %v4360, %v4448
      %v4450 = vpop.f32.mrf.mxu0
      %v4451 = vadd.f32 %v4362, %v4450
      %4452 = vdwg.mxu0
      %4453 = vmatpush.bf16.msra.mxu0 %v3911
      %4454 = vmatpush.bf16.msra.mxu0 %v3910
      %4455 = vmatpush.bf16.msra.mxu0 %v3909
      %4456 = vmatpush.bf16.msra.mxu0 %v3908
      %4457 = vmatpush.bf16.msra.mxu0 %v3907
      %4458 = vmatpush.bf16.msra.mxu0 %v3906
      %4459 = vmatpush.bf16.msra.mxu0 %v3905
      %4460 = vmatpush.bf16.msra.mxu0 %v3904
      %4461 = vmatmul.bf16.gmra.mxu0 %v3192
      %v4462 = vpop.f32.mrf.mxu0
      %v4463 = vadd.f32 %v4374, %v4462
      %v4464 = vpop.f32.mrf.mxu0
      %v4465 = vadd.f32 %v4376, %v4464
      %4466 = vmatmul.bf16.gmra.mxu0 %v3193
      %v4467 = vpop.f32.mrf.mxu0
      %v4468 = vadd.f32 %v4379, %v4467
      %v4469 = vpop.f32.mrf.mxu0
      %v4470 = vadd.f32 %v4381, %v4469
      %4471 = vmatmul.bf16.gmra.mxu0 %v3194
      %v4472 = vpop.f32.mrf.mxu0
      %v4473 = vadd.f32 %v4384, %v4472
      %v4474 = vpop.f32.mrf.mxu0
      %v4475 = vadd.f32 %v4386, %v4474
      %4476 = vmatmul.bf16.gmra.mxu0 %v3195
      %v4477 = vpop.f32.mrf.mxu0
      %v4478 = vadd.f32 %v4389, %v4477
      %v4479 = vpop.f32.mrf.mxu0
      %v4480 = vadd.f32 %v4391, %v4479
      %4481 = vmatmul.bf16.gmra.mxu0 %v3196
      %v4482 = vpop.f32.mrf.mxu0
      %v4483 = vadd.f32 %v4394, %v4482
      %v4484 = vpop.f32.mrf.mxu0
      %v4485 = vadd.f32 %v4396, %v4484
      %4486 = vmatmul.bf16.gmra.mxu0 %v3197
      %v4487 = vpop.f32.mrf.mxu0
      %v4488 = vadd.f32 %v4399, %v4487
      %v4489 = vpop.f32.mrf.mxu0
      %v4490 = vadd.f32 %v4401, %v4489
      %4491 = vmatmul.bf16.gmra.mxu0 %v3198
      %v4492 = vpop.f32.mrf.mxu0
      %v4493 = vadd.f32 %v4404, %v4492
      %v4494 = vpop.f32.mrf.mxu0
      %v4495 = vadd.f32 %v4406, %v4494
      %4496 = vmatmul.bf16.gmra.mxu0 %v3199
      %v4497 = vpop.f32.mrf.mxu0
      %v4498 = vadd.f32 %v4409, %v4497
      %v4499 = vpop.f32.mrf.mxu0
      %v4500 = vadd.f32 %v4411, %v4499
      %4501 = vmatmul.bf16.gmra.mxu0 %v3200
      %v4502 = vpop.f32.mrf.mxu0
      %v4503 = vadd.f32 %v4414, %v4502
      %v4504 = vpop.f32.mrf.mxu0
      %v4505 = vadd.f32 %v4416, %v4504
      %4506 = vmatmul.bf16.gmra.mxu0 %v3201
      %v4507 = vpop.f32.mrf.mxu0
      %v4508 = vadd.f32 %v4419, %v4507
      %v4509 = vpop.f32.mrf.mxu0
      %v4510 = vadd.f32 %v4421, %v4509
      %4511 = vmatmul.bf16.gmra.mxu0 %v3202
      %v4512 = vpop.f32.mrf.mxu0
      %v4513 = vadd.f32 %v4424, %v4512
      %v4514 = vpop.f32.mrf.mxu0
      %v4515 = vadd.f32 %v4426, %v4514
      %4516 = vmatmul.bf16.gmra.mxu0 %v3203
      %v4517 = vpop.f32.mrf.mxu0
      %v4518 = vadd.f32 %v4429, %v4517
      %v4519 = vpop.f32.mrf.mxu0
      %v4520 = vadd.f32 %v4431, %v4519
      %4521 = vmatmul.bf16.gmra.mxu0 %v3204
      %v4522 = vpop.f32.mrf.mxu0
      %v4523 = vadd.f32 %v4434, %v4522
      %v4524 = vpop.f32.mrf.mxu0
      %v4525 = vadd.f32 %v4436, %v4524
      %4526 = vmatmul.bf16.gmra.mxu0 %v3205
      %v4527 = vpop.f32.mrf.mxu0
      %v4528 = vadd.f32 %v4439, %v4527
      %v4529 = vpop.f32.mrf.mxu0
      %v4530 = vadd.f32 %v4441, %v4529
      %4531 = vmatmul.bf16.gmra.mxu0 %v3206
      %v4532 = vpop.f32.mrf.mxu0
      %v4533 = vadd.f32 %v4444, %v4532
      %v4534 = vpop.f32.mrf.mxu0
      %v4535 = vadd.f32 %v4446, %v4534
      %4536 = vmatmul.bf16.gmra.mxu0 %v3207
      %v4537 = vpop.f32.mrf.mxu0
      %v4538 = vadd.f32 %v4449, %v4537
      %v4539 = vpop.f32.mrf.mxu0
      %v4540 = vadd.f32 %v4451, %v4539
      %4541 = vdwg.mxu0
      %4542 = vmatpush.bf16.msra.mxu0 %v3919
      %4543 = vmatpush.bf16.msra.mxu0 %v3918
      %4544 = vmatpush.bf16.msra.mxu0 %v3917
      %4545 = vmatpush.bf16.msra.mxu0 %v3916
      %4546 = vmatpush.bf16.msra.mxu0 %v3915
      %4547 = vmatpush.bf16.msra.mxu0 %v3914
      %4548 = vmatpush.bf16.msra.mxu0 %v3913
      %4549 = vmatpush.bf16.msra.mxu0 %v3912
      %4550 = vmatmul.bf16.gmra.mxu0 %v3272
      %v4551 = vpop.f32.mrf.mxu0
      %v4552 = vadd.f32 %v4463, %v4551
      %v4553 = vpop.f32.mrf.mxu0
      %v4554 = vadd.f32 %v4465, %v4553
      %4555 = vmatmul.bf16.gmra.mxu0 %v3273
      %v4556 = vpop.f32.mrf.mxu0
      %v4557 = vadd.f32 %v4468, %v4556
      %v4558 = vpop.f32.mrf.mxu0
      %v4559 = vadd.f32 %v4470, %v4558
      %4560 = vmatmul.bf16.gmra.mxu0 %v3274
      %v4561 = vpop.f32.mrf.mxu0
      %v4562 = vadd.f32 %v4473, %v4561
      %v4563 = vpop.f32.mrf.mxu0
      %v4564 = vadd.f32 %v4475, %v4563
      %4565 = vmatmul.bf16.gmra.mxu0 %v3275
      %v4566 = vpop.f32.mrf.mxu0
      %v4567 = vadd.f32 %v4478, %v4566
      %v4568 = vpop.f32.mrf.mxu0
      %v4569 = vadd.f32 %v4480, %v4568
      %4570 = vmatmul.bf16.gmra.mxu0 %v3276
      %v4571 = vpop.f32.mrf.mxu0
      %v4572 = vadd.f32 %v4483, %v4571
      %v4573 = vpop.f32.mrf.mxu0
      %v4574 = vadd.f32 %v4485, %v4573
      %4575 = vmatmul.bf16.gmra.mxu0 %v3277
      %v4576 = vpop.f32.mrf.mxu0
      %v4577 = vadd.f32 %v4488, %v4576
      %v4578 = vpop.f32.mrf.mxu0
      %v4579 = vadd.f32 %v4490, %v4578
      %4580 = vmatmul.bf16.gmra.mxu0 %v3278
      %v4581 = vpop.f32.mrf.mxu0
      %v4582 = vadd.f32 %v4493, %v4581
      %v4583 = vpop.f32.mrf.mxu0
      %v4584 = vadd.f32 %v4495, %v4583
      %4585 = vmatmul.bf16.gmra.mxu0 %v3279
      %v4586 = vpop.f32.mrf.mxu0
      %v4587 = vadd.f32 %v4498, %v4586
      %v4588 = vpop.f32.mrf.mxu0
      %v4589 = vadd.f32 %v4500, %v4588
      %4590 = vmatmul.bf16.gmra.mxu0 %v3280
      %v4591 = vpop.f32.mrf.mxu0
      %v4592 = vadd.f32 %v4503, %v4591
      %v4593 = vpop.f32.mrf.mxu0
      %v4594 = vadd.f32 %v4505, %v4593
      %4595 = vmatmul.bf16.gmra.mxu0 %v3281
      %v4596 = vpop.f32.mrf.mxu0
      %v4597 = vadd.f32 %v4508, %v4596
      %v4598 = vpop.f32.mrf.mxu0
      %v4599 = vadd.f32 %v4510, %v4598
      %4600 = vmatmul.bf16.gmra.mxu0 %v3282
      %v4601 = vpop.f32.mrf.mxu0
      %v4602 = vadd.f32 %v4513, %v4601
      %v4603 = vpop.f32.mrf.mxu0
      %v4604 = vadd.f32 %v4515, %v4603
      %4605 = vmatmul.bf16.gmra.mxu0 %v3283
      %v4606 = vpop.f32.mrf.mxu0
      %v4607 = vadd.f32 %v4518, %v4606
      %v4608 = vpop.f32.mrf.mxu0
      %v4609 = vadd.f32 %v4520, %v4608
      %4610 = vmatmul.bf16.gmra.mxu0 %v3284
      %v4611 = vpop.f32.mrf.mxu0
      %v4612 = vadd.f32 %v4523, %v4611
      %v4613 = vpop.f32.mrf.mxu0
      %v4614 = vadd.f32 %v4525, %v4613
      %4615 = vmatmul.bf16.gmra.mxu0 %v3285
      %v4616 = vpop.f32.mrf.mxu0
      %v4617 = vadd.f32 %v4528, %v4616
      %v4618 = vpop.f32.mrf.mxu0
      %v4619 = vadd.f32 %v4530, %v4618
      %4620 = vmatmul.bf16.gmra.mxu0 %v3286
      %v4621 = vpop.f32.mrf.mxu0
      %v4622 = vadd.f32 %v4533, %v4621
      %v4623 = vpop.f32.mrf.mxu0
      %v4624 = vadd.f32 %v4535, %v4623
      %4625 = vmatmul.bf16.gmra.mxu0 %v3287
      %v4626 = vpop.f32.mrf.mxu0
      %v4627 = vadd.f32 %v4538, %v4626
      %v4628 = vpop.f32.mrf.mxu0
      %v4629 = vadd.f32 %v4540, %v4628
      %4630 = vdwg.mxu0
      %4631 = vmatpush.bf16.msra.mxu0 %v3927
      %4632 = vmatpush.bf16.msra.mxu0 %v3926
      %4633 = vmatpush.bf16.msra.mxu0 %v3925
      %4634 = vmatpush.bf16.msra.mxu0 %v3924
      %4635 = vmatpush.bf16.msra.mxu0 %v3923
      %4636 = vmatpush.bf16.msra.mxu0 %v3922
      %4637 = vmatpush.bf16.msra.mxu0 %v3921
      %4638 = vmatpush.bf16.msra.mxu0 %v3920
      %4639 = vmatmul.bf16.gmra.mxu0 %v3336
      %v4640 = vpop.f32.mrf.mxu0
      %v4641 = vadd.f32 %v4552, %v4640
      %v4642 = vpop.f32.mrf.mxu0
      %v4643 = vadd.f32 %v4554, %v4642
      %4644 = vmatmul.bf16.gmra.mxu0 %v3337
      %v4645 = vpop.f32.mrf.mxu0
      %v4646 = vadd.f32 %v4557, %v4645
      %v4647 = vpop.f32.mrf.mxu0
      %v4648 = vadd.f32 %v4559, %v4647
      %4649 = vmatmul.bf16.gmra.mxu0 %v3338
      %v4650 = vpop.f32.mrf.mxu0
      %v4651 = vadd.f32 %v4562, %v4650
      %v4652 = vpop.f32.mrf.mxu0
      %v4653 = vadd.f32 %v4564, %v4652
      %4654 = vmatmul.bf16.gmra.mxu0 %v3339
      %v4655 = vpop.f32.mrf.mxu0
      %v4656 = vadd.f32 %v4567, %v4655
      %v4657 = vpop.f32.mrf.mxu0
      %v4658 = vadd.f32 %v4569, %v4657
      %4659 = vmatmul.bf16.gmra.mxu0 %v3340
      %v4660 = vpop.f32.mrf.mxu0
      %v4661 = vadd.f32 %v4572, %v4660
      %v4662 = vpop.f32.mrf.mxu0
      %v4663 = vadd.f32 %v4574, %v4662
      %4664 = vmatmul.bf16.gmra.mxu0 %v3341
      %v4665 = vpop.f32.mrf.mxu0
      %v4666 = vadd.f32 %v4577, %v4665
      %v4667 = vpop.f32.mrf.mxu0
      %v4668 = vadd.f32 %v4579, %v4667
      %4669 = vmatmul.bf16.gmra.mxu0 %v3342
      %v4670 = vpop.f32.mrf.mxu0
      %v4671 = vadd.f32 %v4582, %v4670
      %v4672 = vpop.f32.mrf.mxu0
      %v4673 = vadd.f32 %v4584, %v4672
      %4674 = vmatmul.bf16.gmra.mxu0 %v3343
      %v4675 = vpop.f32.mrf.mxu0
      %v4676 = vadd.f32 %v4587, %v4675
      %v4677 = vpop.f32.mrf.mxu0
      %v4678 = vadd.f32 %v4589, %v4677
      %4679 = vmatmul.bf16.gmra.mxu0 %v3344
      %v4680 = vpop.f32.mrf.mxu0
      %v4681 = vadd.f32 %v4592, %v4680
      %v4682 = vpop.f32.mrf.mxu0
      %v4683 = vadd.f32 %v4594, %v4682
      %4684 = vmatmul.bf16.gmra.mxu0 %v3345
      %v4685 = vpop.f32.mrf.mxu0
      %v4686 = vadd.f32 %v4597, %v4685
      %v4687 = vpop.f32.mrf.mxu0
      %v4688 = vadd.f32 %v4599, %v4687
      %4689 = vmatmul.bf16.gmra.mxu0 %v3346
      %v4690 = vpop.f32.mrf.mxu0
      %v4691 = vadd.f32 %v4602, %v4690
      %v4692 = vpop.f32.mrf.mxu0
      %v4693 = vadd.f32 %v4604, %v4692
      %4694 = vmatmul.bf16.gmra.mxu0 %v3347
      %v4695 = vpop.f32.mrf.mxu0
      %v4696 = vadd.f32 %v4607, %v4695
      %v4697 = vpop.f32.mrf.mxu0
      %v4698 = vadd.f32 %v4609, %v4697
      %4699 = vmatmul.bf16.gmra.mxu0 %v3348
      %v4700 = vpop.f32.mrf.mxu0
      %v4701 = vadd.f32 %v4612, %v4700
      %v4702 = vpop.f32.mrf.mxu0
      %v4703 = vadd.f32 %v4614, %v4702
      %4704 = vmatmul.bf16.gmra.mxu0 %v3349
      %v4705 = vpop.f32.mrf.mxu0
      %v4706 = vadd.f32 %v4617, %v4705
      %v4707 = vpop.f32.mrf.mxu0
      %v4708 = vadd.f32 %v4619, %v4707
      %4709 = vmatmul.bf16.gmra.mxu0 %v3350
      %v4710 = vpop.f32.mrf.mxu0
      %v4711 = vadd.f32 %v4622, %v4710
      %v4712 = vpop.f32.mrf.mxu0
      %v4713 = vadd.f32 %v4624, %v4712
      %4714 = vmatmul.bf16.gmra.mxu0 %v3351
      %v4715 = vpop.f32.mrf.mxu0
      %v4716 = vadd.f32 %v4627, %v4715
      %v4717 = vpop.f32.mrf.mxu0
      %v4718 = vadd.f32 %v4629, %v4717
      %4719 = vdwg.mxu0
      %4720 = vmatpush.bf16.msra.mxu0 %v3935
      %4721 = vmatpush.bf16.msra.mxu0 %v3934
      %4722 = vmatpush.bf16.msra.mxu0 %v3933
      %4723 = vmatpush.bf16.msra.mxu0 %v3932
      %4724 = vmatpush.bf16.msra.mxu0 %v3931
      %4725 = vmatpush.bf16.msra.mxu0 %v3930
      %4726 = vmatpush.bf16.msra.mxu0 %v3929
      %4727 = vmatpush.bf16.msra.mxu0 %v3928
      %4728 = vmatmul.bf16.gmra.mxu0 %v3400
      %v4729 = vpop.f32.mrf.mxu0
      %v4730 = vadd.f32 %v4641, %v4729
      %v4731 = vpop.f32.mrf.mxu0
      %v4732 = vadd.f32 %v4643, %v4731
      %4733 = vmatmul.bf16.gmra.mxu0 %v3401
      %v4734 = vpop.f32.mrf.mxu0
      %v4735 = vadd.f32 %v4646, %v4734
      %v4736 = vpop.f32.mrf.mxu0
      %v4737 = vadd.f32 %v4648, %v4736
      %4738 = vmatmul.bf16.gmra.mxu0 %v3402
      %v4739 = vpop.f32.mrf.mxu0
      %v4740 = vadd.f32 %v4651, %v4739
      %v4741 = vpop.f32.mrf.mxu0
      %v4742 = vadd.f32 %v4653, %v4741
      %4743 = vmatmul.bf16.gmra.mxu0 %v3403
      %v4744 = vpop.f32.mrf.mxu0
      %v4745 = vadd.f32 %v4656, %v4744
      %v4746 = vpop.f32.mrf.mxu0
      %v4747 = vadd.f32 %v4658, %v4746
      %4748 = vmatmul.bf16.gmra.mxu0 %v3404
      %v4749 = vpop.f32.mrf.mxu0
      %v4750 = vadd.f32 %v4661, %v4749
      %v4751 = vpop.f32.mrf.mxu0
      %v4752 = vadd.f32 %v4663, %v4751
      %4753 = vmatmul.bf16.gmra.mxu0 %v3405
      %v4754 = vpop.f32.mrf.mxu0
      %v4755 = vadd.f32 %v4666, %v4754
      %v4756 = vpop.f32.mrf.mxu0
      %v4757 = vadd.f32 %v4668, %v4756
      %4758 = vmatmul.bf16.gmra.mxu0 %v3406
      %v4759 = vpop.f32.mrf.mxu0
      %v4760 = vadd.f32 %v4671, %v4759
      %v4761 = vpop.f32.mrf.mxu0
      %v4762 = vadd.f32 %v4673, %v4761
      %4763 = vmatmul.bf16.gmra.mxu0 %v3407
      %v4764 = vpop.f32.mrf.mxu0
      %v4765 = vadd.f32 %v4676, %v4764
      %v4766 = vpop.f32.mrf.mxu0
      %v4767 = vadd.f32 %v4678, %v4766
      %4768 = vmatmul.bf16.gmra.mxu0 %v3408
      %v4769 = vpop.f32.mrf.mxu0
      %v4770 = vadd.f32 %v4681, %v4769
      %v4771 = vpop.f32.mrf.mxu0
      %v4772 = vadd.f32 %v4683, %v4771
      %4773 = vmatmul.bf16.gmra.mxu0 %v3409
      %v4774 = vpop.f32.mrf.mxu0
      %v4775 = vadd.f32 %v4686, %v4774
      %v4776 = vpop.f32.mrf.mxu0
      %v4777 = vadd.f32 %v4688, %v4776
      %4778 = vmatmul.bf16.gmra.mxu0 %v3410
      %v4779 = vpop.f32.mrf.mxu0
      %v4780 = vadd.f32 %v4691, %v4779
      %v4781 = vpop.f32.mrf.mxu0
      %v4782 = vadd.f32 %v4693, %v4781
      %4783 = vmatmul.bf16.gmra.mxu0 %v3411
      %v4784 = vpop.f32.mrf.mxu0
      %v4785 = vadd.f32 %v4696, %v4784
      %v4786 = vpop.f32.mrf.mxu0
      %v4787 = vadd.f32 %v4698, %v4786
      %4788 = vmatmul.bf16.gmra.mxu0 %v3412
      %v4789 = vpop.f32.mrf.mxu0
      %v4790 = vadd.f32 %v4701, %v4789
      %v4791 = vpop.f32.mrf.mxu0
      %v4792 = vadd.f32 %v4703, %v4791
      %4793 = vmatmul.bf16.gmra.mxu0 %v3413
      %v4794 = vpop.f32.mrf.mxu0
      %v4795 = vadd.f32 %v4706, %v4794
      %v4796 = vpop.f32.mrf.mxu0
      %v4797 = vadd.f32 %v4708, %v4796
      %4798 = vmatmul.bf16.gmra.mxu0 %v3414
      %v4799 = vpop.f32.mrf.mxu0
      %v4800 = vadd.f32 %v4711, %v4799
      %v4801 = vpop.f32.mrf.mxu0
      %v4802 = vadd.f32 %v4713, %v4801
      %4803 = vmatmul.bf16.gmra.mxu0 %v3415
      %v4804 = vpop.f32.mrf.mxu0
      %v4805 = vadd.f32 %v4716, %v4804
      %v4806 = vpop.f32.mrf.mxu0
      %v4807 = vadd.f32 %v4718, %v4806
      %4808 = vdwg.mxu0
      %4809 = vst [vmem:[%s273] sm:$0xff] %v4730
      %4810 = vst [vmem:[%s273 + $0x8] sm:$0xff] %v4732
      %4811 = vst [vmem:[%s273 + $0x10] sm:$0xff] %v4735
      %4812 = vst [vmem:[%s273 + $0x18] sm:$0xff] %v4737
      %4813 = vst [vmem:[%s273 + $0x20] sm:$0xff] %v4740
      %4814 = vst [vmem:[%s273 + $0x28] sm:$0xff] %v4742
      %4815 = vst [vmem:[%s273 + $0x30] sm:$0xff] %v4745
      %4816 = vst [vmem:[%s273 + $0x38] sm:$0xff] %v4747
      %4817 = vst [vmem:[%s273 + $0x40] sm:$0xff] %v4750
      %4818 = vst [vmem:[%s273 + $0x48] sm:$0xff] %v4752
      %4819 = vst [vmem:[%s273 + $0x50] sm:$0xff] %v4755
      %4820 = vst [vmem:[%s273 + $0x58] sm:$0xff] %v4757
      %4821 = vst [vmem:[%s273 + $0x60] sm:$0xff] %v4760
      %4822 = vst [vmem:[%s273 + $0x68] sm:$0xff] %v4762
      %4823 = vst [vmem:[%s273 + $0x70] sm:$0xff] %v4765
      %4824 = vst [vmem:[%s273 + $0x78] sm:$0xff] %v4767
      %4825 = vst [vmem:[%s273 + $0x80] sm:$0xff] %v4770
      %4826 = vst [vmem:[%s273 + $0x88] sm:$0xff] %v4772
      %4827 = vst [vmem:[%s273 + $0x90] sm:$0xff] %v4775
      %4828 = vst [vmem:[%s273 + $0x98] sm:$0xff] %v4777
      %4829 = vst [vmem:[%s273 + $0xa0] sm:$0xff] %v4780
      %4830 = vst [vmem:[%s273 + $0xa8] sm:$0xff] %v4782
      %4831 = vst [vmem:[%s273 + $0xb0] sm:$0xff] %v4785
      %4832 = vst [vmem:[%s273 + $0xb8] sm:$0xff] %v4787
      %4833 = vst [vmem:[%s273 + $0xc0] sm:$0xff] %v4790
      %4834 = vst [vmem:[%s273 + $0xc8] sm:$0xff] %v4792
      %4835 = vst [vmem:[%s273 + $0xd0] sm:$0xff] %v4795
      %4836 = vst [vmem:[%s273 + $0xd8] sm:$0xff] %v4797
      %4837 = vst [vmem:[%s273 + $0xe0] sm:$0xff] %v4800
      %4838 = vst [vmem:[%s273 + $0xe8] sm:$0xff] %v4802
      %4839 = vst [vmem:[%s273 + $0xf0] sm:$0xff] %v4805
      %4840 = vst [vmem:[%s273 + $0xf8] sm:$0xff] %v4807
      %v4841 = vadd.f32 %v4730, %v4732
      %v4842 = vadd.f32 %v4841, %v4735
      %v4843 = vadd.f32 %v4842, %v4737
      %v4844 = vadd.f32 %v4843, %v4740
      %v4845 = vadd.f32 %v4844, %v4742
      %v4846 = vadd.f32 %v4845, %v4745
      %v4847 = vadd.f32 %v4846, %v4747
      %v4848 = vadd.f32 %v4847, %v4750
      %v4849 = vadd.f32 %v4848, %v4752
      %v4850 = vadd.f32 %v4849, %v4755
      %v4851 = vadd.f32 %v4850, %v4757
      %v4852 = vadd.f32 %v4851, %v4760
      %v4853 = vadd.f32 %v4852, %v4762
      %v4854 = vadd.f32 %v4853, %v4765
      %v4855 = vadd.f32 %v4854, %v4767
      %v4856 = vadd.f32 %v4855, %v4770
      %v4857 = vadd.f32 %v4856, %v4772
      %v4858 = vadd.f32 %v4857, %v4775
      %v4859 = vadd.f32 %v4858, %v4777
      %v4860 = vadd.f32 %v4859, %v4780
      %v4861 = vadd.f32 %v4860, %v4782
      %v4862 = vadd.f32 %v4861, %v4785
      %v4863 = vadd.f32 %v4862, %v4787
      %v4864 = vadd.f32 %v4863, %v4790
      %v4865 = vadd.f32 %v4864, %v4792
      %v4866 = vadd.f32 %v4865, %v4795
      %v4867 = vadd.f32 %v4866, %v4797
      %v4868 = vadd.f32 %v4867, %v4800
      %v4869 = vadd.f32 %v4868, %v4802
      %v4870 = vadd.f32 %v4869, %v4805
      %v4871 = vadd.f32 %v4870, %v4807
      %v4872 = vrot.slane %v4871, 4
      %v4873 = vadd.f32 %v4871, %v4872
      %v4874 = vrot.slane %v4873, 2
      %v4875 = vadd.f32 %v4873, %v4874
      %v4876 = vrot.slane %v4875, 1
      %v4877 = vadd.f32 %v4875, %v4876
      %v4878 = vrcp.pop 256.0
      %v4879 = vmul.f32 256.0, %v4878
      %v4880 = vsub.f32 1.0, %v4879
      %v4881 = vmul.f32 %v4878, %v4880
      %v4882 = vadd.f32 %v4878, %v4881
      %vm4883 = vweird.f32 %v4878
      %v4884 = vsel %vm4883, %v4878, %v4882
      %v4885 = vmul.f32 %v4877, %v4884
      %4886 = vst [vmem:[%s280] sm:$0x1] %v4885
      %v4887 = vsub.f32 %v4730, %v4885
      %v4888 = vsub.f32 %v4732, %v4885
      %v4889 = vsub.f32 %v4735, %v4885
      %v4890 = vsub.f32 %v4737, %v4885
      %v4891 = vsub.f32 %v4740, %v4885
      %v4892 = vsub.f32 %v4742, %v4885
      %v4893 = vsub.f32 %v4745, %v4885
      %v4894 = vsub.f32 %v4747, %v4885
      %v4895 = vsub.f32 %v4750, %v4885
      %v4896 = vsub.f32 %v4752, %v4885
      %v4897 = vsub.f32 %v4755, %v4885
      %v4898 = vsub.f32 %v4757, %v4885
      %v4899 = vsub.f32 %v4760, %v4885
      %v4900 = vsub.f32 %v4762, %v4885
      %v4901 = vsub.f32 %v4765, %v4885
      %v4902 = vsub.f32 %v4767, %v4885
      %v4903 = vsub.f32 %v4770, %v4885
      %v4904 = vsub.f32 %v4772, %v4885
      %v4905 = vsub.f32 %v4775, %v4885
      %v4906 = vsub.f32 %v4777, %v4885
      %v4907 = vsub.f32 %v4780, %v4885
      %v4908 = vsub.f32 %v4782, %v4885
      %v4909 = vsub.f32 %v4785, %v4885
      %v4910 = vsub.f32 %v4787, %v4885
      %v4911 = vsub.f32 %v4790, %v4885
      %v4912 = vsub.f32 %v4792, %v4885
      %v4913 = vsub.f32 %v4795, %v4885
      %v4914 = vsub.f32 %v4797, %v4885
      %v4915 = vsub.f32 %v4800, %v4885
      %v4916 = vsub.f32 %v4802, %v4885
      %v4917 = vsub.f32 %v4805, %v4885
      %v4918 = vsub.f32 %v4807, %v4885
      %v4919 = vmul.f32 %v4887, %v4887
      %v4920 = vmul.f32 %v4888, %v4888
      %v4921 = vmul.f32 %v4889, %v4889
      %v4922 = vmul.f32 %v4890, %v4890
      %v4923 = vmul.f32 %v4891, %v4891
      %v4924 = vmul.f32 %v4892, %v4892
      %v4925 = vmul.f32 %v4893, %v4893
      %v4926 = vmul.f32 %v4894, %v4894
      %v4927 = vmul.f32 %v4895, %v4895
      %v4928 = vmul.f32 %v4896, %v4896
      %v4929 = vmul.f32 %v4897, %v4897
      %v4930 = vmul.f32 %v4898, %v4898
      %v4931 = vmul.f32 %v4899, %v4899
      %v4932 = vmul.f32 %v4900, %v4900
      %v4933 = vmul.f32 %v4901, %v4901
      %v4934 = vmul.f32 %v4902, %v4902
      %v4935 = vmul.f32 %v4903, %v4903
      %v4936 = vmul.f32 %v4904, %v4904
      %v4937 = vmul.f32 %v4905, %v4905
      %v4938 = vmul.f32 %v4906, %v4906
      %v4939 = vmul.f32 %v4907, %v4907
      %v4940 = vmul.f32 %v4908, %v4908
      %v4941 = vmul.f32 %v4909, %v4909
      %v4942 = vmul.f32 %v4910, %v4910
      %v4943 = vmul.f32 %v4911, %v4911
      %v4944 = vmul.f32 %v4912, %v4912
      %v4945 = vmul.f32 %v4913, %v4913
      %v4946 = vmul.f32 %v4914, %v4914
      %v4947 = vmul.f32 %v4915, %v4915
      %v4948 = vmul.f32 %v4916, %v4916
      %v4949 = vmul.f32 %v4917, %v4917
      %v4950 = vmul.f32 %v4918, %v4918
      %v4951 = vadd.f32 %v4919, %v4920
      %v4952 = vadd.f32 %v4951, %v4921
      %v4953 = vadd.f32 %v4952, %v4922
      %v4954 = vadd.f32 %v4953, %v4923
      %v4955 = vadd.f32 %v4954, %v4924
      %v4956 = vadd.f32 %v4955, %v4925
      %v4957 = vadd.f32 %v4956, %v4926
      %v4958 = vadd.f32 %v4957, %v4927
      %v4959 = vadd.f32 %v4958, %v4928
      %v4960 = vadd.f32 %v4959, %v4929
      %v4961 = vadd.f32 %v4960, %v4930
      %v4962 = vadd.f32 %v4961, %v4931
      %v4963 = vadd.f32 %v4962, %v4932
      %v4964 = vadd.f32 %v4963, %v4933
      %v4965 = vadd.f32 %v4964, %v4934
      %v4966 = vadd.f32 %v4965, %v4935
      %v4967 = vadd.f32 %v4966, %v4936
      %v4968 = vadd.f32 %v4967, %v4937
      %v4969 = vadd.f32 %v4968, %v4938
      %v4970 = vadd.f32 %v4969, %v4939
      %v4971 = vadd.f32 %v4970, %v4940
      %v4972 = vadd.f32 %v4971, %v4941
      %v4973 = vadd.f32 %v4972, %v4942
      %v4974 = vadd.f32 %v4973, %v4943
      %v4975 = vadd.f32 %v4974, %v4944
      %v4976 = vadd.f32 %v4975, %v4945
      %v4977 = vadd.f32 %v4976, %v4946
      %v4978 = vadd.f32 %v4977, %v4947
      %v4979 = vadd.f32 %v4978, %v4948
      %v4980 = vadd.f32 %v4979, %v4949
      %v4981 = vadd.f32 %v4980, %v4950
      %v4982 = vrot.slane %v4981, 4
      %v4983 = vadd.f32 %v4981, %v4982
      %v4984 = vrot.slane %v4983, 2
      %v4985 = vadd.f32 %v4983, %v4984
      %v4986 = vrot.slane %v4985, 1
      %v4987 = vadd.f32 %v4985, %v4986
      %4988 = vst [vmem:[%s280 + $0x1] sm:$0x1] %v4987
      %p4989 = scmp.lt.s32.totalorder %s21, 1
      %s4990 = scalar_select %p4989, %s21, 1
      %p4991 = scmp.lt.s32.totalorder %s22, 0
      %s4992 = scalar_select %p4991, %s22, 0
      %s4993 = smul.addr %s4990, 32
      %s4994 = sadd.s32 %s4992, %s4993
      %s4995 = smul.addr %s4994, 8
      %s4996 = scalar_lea.vmem %s4, %s4995
      %p4997 = scmp.lt.s32.totalorder %s21, 1
      %s4998 = scalar_select %p4997, %s21, 1
      %p4999 = scmp.lt.s32.totalorder %s22, 0
      %s5000 = scalar_select %p4999, %s22, 0
      %s5001 = sadd.s32 %s5000, %s4998
      %s5002 = smul.addr %s5001, 2
      %s5003 = scalar_lea.vmem %s5, %s5002
      // Predicated region
      $region37: #{bridge_forward.4} parent=35 // pred_check
        %p5004 = pneg %p143
      $region38: #{bridge_forward.4} parent=35 // pred_check_branch
        %5006 = sbr.rel (%p5004) target = $region40
      $region39: #{bridge_forward.4} parent=35 // pred_region
        _
      $region40: #{bridge_forward.4} parent=35 // pred_fallthru
        _
      // Predicated region
      $region41: #{bridge_forward.4} parent=35 // pred_check
        %p5007 = pneg %p171
      $region42: #{bridge_forward.4} parent=35 // pred_check_branch
        %5009 = sbr.rel (%p5007) target = $region44
      $region43: #{bridge_forward.4} parent=35 // pred_region
        _
      $region44: #{bridge_forward.4} parent=35 // pred_fallthru
        _
    $region36: #{bridge_forward.4} parent=5 // pred_fallthru
      _
    %p5010 = scmp.le.s32.totalorder 2, %s12
    // Predicated region
    $region45: #{bridge_forward.4} parent=5 // pred_check
      %p5011 = pneg %p5010
    $region46: #{bridge_forward.4} parent=5 // pred_check_branch
      %5013 = sbr.rel (%p5011) target = $region48
    $region47: #{bridge_forward.4} parent=5 // pred_region
      %s5014 = ssub.s32 %s12, 2
      // Predicated region
      $region49: #{bridge_forward.4} parent=47 // pred_check
        %p5015 = pneg %p149
      $region50: #{bridge_forward.4} parent=47 // pred_check_branch
        %5017 = sbr.rel (%p5015) target = $region52
      $region51: #{bridge_forward.4} parent=47 // pred_region
        %p5018 = scmp.lt.s32.totalorder %s23, 1
        %s5019 = scalar_select %p5018, %s23, 1
        %p5020 = scmp.lt.s32.totalorder %s24, 0
        %s5021 = scalar_select %p5020, %s24, 0
        %s5022 = smul.addr %s5019, 32
        %s5023 = sadd.s32 %s5021, %s5022
        %s5024 = smul.addr %s5023, 8
        %s5025 = scalar_lea.vmem %s4, %s5024
      $region52: #{bridge_forward.4} parent=47 // pred_fallthru
        _
      // Predicated region
      $region53: #{bridge_forward.4} parent=47 // pred_check
        %p5026 = pneg %p177
      $region54: #{bridge_forward.4} parent=47 // pred_check_branch
        %5028 = sbr.rel (%p5026) target = $region56
      $region55: #{bridge_forward.4} parent=47 // pred_region
        %p5029 = scmp.lt.s32.totalorder %s23, 1
        %s5030 = scalar_select %p5029, %s23, 1
        %p5031 = scmp.lt.s32.totalorder %s24, 0
        %s5032 = scalar_select %p5031, %s24, 0
        %s5033 = sadd.s32 %s5032, %s5030
        %s5034 = smul.addr %s5033, 2
        %s5035 = scalar_lea.vmem %s5, %s5034
      $region56: #{bridge_forward.4} parent=47 // pred_fallthru
        _
    $region48: #{bridge_forward.4} parent=5 // pred_fallthru
      _
  $region6: #{bridge_forward.4} parent=0 // loop_footer
    %s16 = sadd.s32 1, %s12
  $region7: #{bridge_forward.4} parent=0 // loop_footer_branch
    %11 = sbr.rel target = $region3
  $region8: #{bridge_forward.4} parent=0 // loop_exit
    _

</llo_original>
